<compile_context>
chip_gen: v7x
topology: tpu7x:2x2x1
jax: 0.10.0
libtpu: 0.0.40
codegen_flags: <defaults>
</compile_context>

<pallas_src>
import functools

import jax
import jax.numpy as jnp
from jax.experimental import pallas as pl
from jax.experimental.pallas import tpu as pltpu

LANE = 128          # vreg lane width (all TPU generations)
SUBL_BF16 = 16      # bf16 sublane packing granularity


def _round_up(v, m):
    return (v + m - 1) // m * m


def _bottleneck_kernel(xpad_ref, w1_ref, b1_ref, w2_ref, b2_ref, out_ref,
                       mid_ref, *, H, W, KH, KW, PAD, C0, shortcut):
    """One batch element per grid step.

    xpad_ref : (1, H+2P, W+2P, Cp)  bf16 padded input (NHWC, lane-dense Cp)
    w1_ref   : (KH, KW*Cp, Cm)      bf16 conv1 weights, kw-fused contraction
    b1_ref   : (1, Cm)              f32  conv1 bias (BN folded)
    w2_ref   : (KH, KW*Cm, Cp)      bf16 conv2 weights, kw-fused contraction
    b2_ref   : (1, Cp)              f32  conv2 bias (BN folded)
    out_ref  : (1, H, W, Cp)        f32
    mid_ref  : (H+2P, 2*C0+W, Cm)   bf16 scratch: zero-haloed conv1 activation
    """
    CM = w1_ref.shape[-1]
    CP = w2_ref.shape[-1]
    WM = mid_ref.shape[1]
    HP = H + 2 * PAD

    # Keep the halo of the conv1-activation scratch zero.  Thin strips are
    # re-zeroed every grid step (cheap) instead of a program_id==0 one-shot
    # init, so the kernel stays correct when the batch axis is sharded across
    # TensorCores ("parallel" semantics -> per-core scratch, per-core ids).
    if PAD:
        mid_ref[0:PAD, :, :] = jnp.zeros((PAD, WM, CM), mid_ref.dtype)
        mid_ref[PAD + H:HP, :, :] = jnp.zeros((PAD, WM, CM), mid_ref.dtype)
        mid_ref[:, C0 - PAD:C0, :] = jnp.zeros((HP, PAD, CM), mid_ref.dtype)
        mid_ref[:, C0 + W:C0 + W + PAD, :] = (
            jnp.zeros((HP, PAD, CM), mid_ref.dtype))

    # ---- conv1: KH matmuls, contraction depth KW*Cp (kw taps fused) ----
    acc1 = jnp.zeros((H * W, CM), jnp.float32)
    for kh in range(KH):
        lhs = jnp.concatenate(
            [xpad_ref[0, kh:kh + H, kw:kw + W, :] for kw in range(KW)],
            axis=-1).reshape(H * W, KW * CP)
        acc1 = acc1 + jnp.dot(lhs, w1_ref[kh],
                              preferred_element_type=jnp.float32)
    acc1 = acc1 + b1_ref[...]
    act1 = acc1 * jax.nn.sigmoid(acc1)                    # SiLU, f32 epilogue

    # Interior store is sublane-aligned (C0 is a multiple of 16 for bf16).
    mid_ref[PAD:PAD + H, C0:C0 + W, :] = (
        act1.reshape(H, W, CM).astype(mid_ref.dtype))

    # ---- conv2: same structure on the zero-haloed activation ----
    acc2 = jnp.zeros((H * W, CP), jnp.float32)
    for kh in range(KH):
        lhs = jnp.concatenate(
            [mid_ref[kh:kh + H, C0 - PAD + kw:C0 - PAD + kw + W, :]
             for kw in range(KW)],
            axis=-1).reshape(H * W, KW * CM)
        acc2 = acc2 + jnp.dot(lhs, w2_ref[kh],
                              preferred_element_type=jnp.float32)
    acc2 = acc2 + b2_ref[...]
    y = (acc2 * jax.nn.sigmoid(acc2)).reshape(H, W, CP)   # SiLU, f32

    if shortcut:
        y = y + xpad_ref[0, PAD:PAD + H, PAD:PAD + W, :].astype(jnp.float32)

    out_ref[0] = y.astype(out_ref.dtype)


def prepare_params(w1, b1, w2, b2):
    """Pad channels to lane multiples, fuse kw into K, cast weights to bf16."""
    KH, KW, C, Cmid = w1.shape
    CP, CM = _round_up(C, LANE), _round_up(Cmid, LANE)
    w1p = jnp.pad(w1, ((0, 0), (0, 0), (0, CP - C), (0, CM - Cmid)))
    w2p = jnp.pad(w2, ((0, 0), (0, 0), (0, CM - Cmid), (0, CP - C)))
    w1r = w1p.reshape(KH, KW * CP, CM).astype(jnp.bfloat16)
    w2r = w2p.reshape(KH, KW * CM, CP).astype(jnp.bfloat16)
    b1p = jnp.pad(b1, ((0, 0), (0, CM - Cmid))).astype(jnp.float32)
    b2p = jnp.pad(b2, ((0, 0), (0, CP - C))).astype(jnp.float32)
    return (w1r, b1p, w2r, b2p), (KH, KW, C, Cmid, CP, CM)


def bottleneck_forward_nhwc(x_nhwc, w1, b1, w2, b2, *, padding=1,
                            shortcut=True):
    """NHWC fast path. x_nhwc: (N, H, W, C). Returns (N, H, W, C) float32."""
    # TODO(synk): in production, hoist prepare_params() out of the hot path
    #             (parameters are static across calls).
    (w1r, b1p, w2r, b2p), (KH, KW, C, Cmid, CP, CM) = prepare_params(
        w1, b1, w2, b2)
    N, H, W, _ = x_nhwc.shape
    PAD = padding
    assert PAD >= 1, "BottleNeck kernel assumes 'same' padding >= 1"
    HP, WP = H + 2 * PAD, W + 2 * PAD
    C0 = _round_up(max(PAD, SUBL_BF16), SUBL_BF16)   # aligned interior column
    WM = 2 * C0 + W                                  # scratch width (>= halo)

    # Single fused pad: spatial halo + lane-dense channel pad, done in bf16.
    xpad = jnp.pad(x_nhwc.astype(jnp.bfloat16),
                   ((0, 0), (PAD, PAD), (PAD, PAD), (0, CP - C)))

    kernel = functools.partial(_bottleneck_kernel, H=H, W=W, KH=KH, KW=KW,
                               PAD=PAD, C0=C0, shortcut=shortcut)

    # Advisory cost estimate (helps XLA schedule the call vs. wrapper glue).
    flops = 4 * N * H * W * KH * KW * CP * CM
    transcendentals = N * H * W * (CP + CM)
    bytes_accessed = (xpad.size * 2 + N * H * W * CP * 4
                      + (w1r.size + w2r.size) * 2
                      + (b1p.size + b2p.size) * 4)

    # VMEM budget: double-buffered input/output blocks + weights + scratch +
    # matmul temporaries, with headroom; clamped below v7x physical (64 MiB).
    in_blk = HP * WP * CP * 2
    out_blk = H * W * CP * 4
    w_bytes = (w1r.size + w2r.size) * 2
    scratch_b = HP * WM * CM * 2
    tmp = H * W * KW * max(CP, CM) * 2 + H * W * max(CP, CM) * 4
    needed = 2 * (in_blk + out_blk) + w_bytes + scratch_b + 4 * tmp
    vmem_limit = int(min(max(2 * needed, 32 * 2**20), 48 * 2**20))

    out = pl.pallas_call(
        kernel,
        out_shape=jax.ShapeDtypeStruct((N, H, W, CP), jnp.float32),
        grid_spec=pltpu.PrefetchScalarGridSpec(
            num_scalar_prefetch=0,
            grid=(N,),
            in_specs=[
                pl.BlockSpec((1, HP, WP, CP), lambda n: (n, 0, 0, 0)),
                pl.BlockSpec((KH, KW * CP, CM), lambda n: (0, 0, 0)),
                pl.BlockSpec((1, CM), lambda n: (0, 0)),
                pl.BlockSpec((KH, KW * CM, CP), lambda n: (0, 0, 0)),
                pl.BlockSpec((1, CP), lambda n: (0, 0)),
            ],
            out_specs=pl.BlockSpec((1, H, W, CP), lambda n: (n, 0, 0, 0)),
            scratch_shapes=[pltpu.VMEM((HP, WM, CM), jnp.bfloat16)],
        ),
        compiler_params=pltpu.CompilerParams(
            dimension_semantics=("parallel",),
            vmem_limit_bytes=vmem_limit),
        cost_estimate=pl.CostEstimate(flops=flops,
                                      transcendentals=transcendentals,
                                      bytes_accessed=bytes_accessed),
    )(xpad, w1r, b1p, w2r, b2p)

    return out[..., :C]          # drop channel (lane) padding


def bottleneck_forward(x_nchw, w1, b1, w2, b2, *, padding=1, shortcut=True):
    """PyTorch-parity wrapper (NCHW in / NCHW out).  The transposes are test
    glue only; keep activations NHWC between layers in production."""
    x = jnp.transpose(x_nchw, (0, 2, 3, 1))
    y = bottleneck_forward_nhwc(x, w1, b1, w2, b2, padding=padding,
                                shortcut=shortcut)
    return jnp.transpose(y, (0, 3, 1, 2))


def make_params(key, channels, kernel_size=3):
    """Deterministic Conv2d + folded-BatchNorm parameters for both Conv blocks."""
    cmid = channels // 2
    ks = jax.random.split(key, 8)

    def conv_bn(kw, kg, kb, km, cin, cout):
        w = 0.1 * jax.random.normal(kw, (kernel_size, kernel_size, cin, cout),
                                    jnp.float32)          # HWIO
        gamma = 1.0 + 0.1 * jax.random.normal(kg, (cout,), jnp.float32)
        beta = 0.1 * jax.random.normal(kb, (cout,), jnp.float32)
        mean = 0.1 * jax.random.normal(km, (cout,), jnp.float32)
        var = jnp.ones((cout,), jnp.float32)
        eps = 1e-5
        scale = gamma / jnp.sqrt(var + eps)
        w_f = w * scale[None, None, None, :]
        b_f = (beta - mean * scale)[None, :]               # (1, cout)
        return w_f, b_f

    w1, b1 = conv_bn(ks[0], ks[1], ks[2], ks[3], channels, cmid)
    w2, b2 = conv_bn(ks[4], ks[5], ks[6], ks[7], cmid, channels)
    return w1, b1, w2, b2


def reference_forward(x_nchw, w1, b1, w2, b2, shortcut=True):
    """Pure-JAX reference with the same bf16-matmul / f32-epilogue semantics."""
    x = jnp.transpose(x_nchw, (0, 2, 3, 1)).astype(jnp.bfloat16)

    def conv_block(xh, w, b):
        y = jax.lax.conv_general_dilated(
            xh, w.astype(jnp.bfloat16), window_strides=(1, 1), padding="SAME",
            dimension_numbers=("NHWC", "HWIO", "NHWC"),
            preferred_element_type=jnp.float32)
        y = y + b
        return y * jax.nn.sigmoid(y)

    a1 = conv_block(x, w1, b1).astype(jnp.bfloat16)
    y = conv_block(a1, w2, b2)
    if shortcut:
        y = y + x.astype(jnp.float32)
    return jnp.transpose(y, (0, 3, 1, 2))


if __name__ == "__main__":
    key = jax.random.PRNGKey(0)
    k_x, k_p = jax.random.split(key)

    N, C, H, W = 2, 4, 16, 16
    x = jax.random.normal(k_x, (N, C, H, W), jnp.float32)
    w1, b1, w2, b2 = make_params(k_p, C)

    out = bottleneck_forward(x, w1, b1, w2, b2, padding=1, shortcut=True)
    out = jax.block_until_ready(out)

    ref = reference_forward(x, w1, b1, w2, b2, shortcut=True)
    assert out.shape == (N, C, H, W)
    assert jnp.allclose(out, ref, atol=1e-2, rtol=1e-2), (
        f"mismatch vs reference, max abs err "
        f"{jnp.max(jnp.abs(out - ref)):.3e}")

    print("KERNEL_OK")
</pallas_src>

<mosaic_0001>
module attributes {stable_mosaic.version = 11 : i64} {
  func.func @_bottleneck_kernel(%arg0: i32, %arg1: memref<1x18x18x128xbf16, #tpu.memory_space<vmem>>, %arg2: memref<3x384x128xbf16, #tpu.memory_space<vmem>>, %arg3: memref<1x128xf32, #tpu.memory_space<vmem>>, %arg4: memref<3x384x128xbf16, #tpu.memory_space<vmem>>, %arg5: memref<1x128xf32, #tpu.memory_space<vmem>>, %arg6: memref<1x16x16x128xf32, #tpu.memory_space<vmem>>, %arg7: memref<18x48x128xbf16, #tpu.memory_space<vmem>>) attributes {dimension_semantics = [#tpu.dimension_semantics<parallel>], iteration_bounds = array<i64: 2>, scalar_prefetch = 0 : i64, scratch_operands = 1 : i64, tpu.core_type = #tpu.core_type<tc>, window_params = [{transform_indices = @transform_0, window_bounds = array<i64: 1, 18, 18, 128>}, {pipeline_mode = #tpu.pipeline_mode<synchronous>, transform_indices = @transform_1, window_bounds = array<i64: 3, 384, 128>}, {pipeline_mode = #tpu.pipeline_mode<synchronous>, transform_indices = @transform_2, window_bounds = array<i64: 1, 128>}, {pipeline_mode = #tpu.pipeline_mode<synchronous>, transform_indices = @transform_3, window_bounds = array<i64: 3, 384, 128>}, {pipeline_mode = #tpu.pipeline_mode<synchronous>, transform_indices = @transform_4, window_bounds = array<i64: 1, 128>}, {transform_indices = @transform_5, window_bounds = array<i64: 1, 16, 16, 128>}]} {
    %cst = arith.constant 0.000000e+00 : bf16
    %0 = vector.broadcast %cst : bf16 to vector<1x48x128xbf16>
    %c0 = arith.constant 0 : index
    %c0_0 = arith.constant 0 : index
    %c0_1 = arith.constant 0 : index
    %1 = vector.load %arg7[%c0, %c0_0, %c0_1] : memref<18x48x128xbf16, #tpu.memory_space<vmem>>, vector<1x48x128xbf16>
    tpu.vector_store %arg7[%c0, %c0_0, %c0_1], %0 {strides = array<i32>} : memref<18x48x128xbf16, #tpu.memory_space<vmem>>, vector<1x48x128xbf16>,
    %cst_2 = arith.constant 0.000000e+00 : bf16
    %2 = vector.broadcast %cst_2 : bf16 to vector<1x48x128xbf16>
    %c17 = arith.constant 17 : index
    %c0_3 = arith.constant 0 : index
    %c0_4 = arith.constant 0 : index
    %3 = vector.load %arg7[%c17, %c0_3, %c0_4] : memref<18x48x128xbf16, #tpu.memory_space<vmem>>, vector<1x48x128xbf16>
    tpu.vector_store %arg7[%c17, %c0_3, %c0_4], %2 {strides = array<i32>} : memref<18x48x128xbf16, #tpu.memory_space<vmem>>, vector<1x48x128xbf16>,
    %cst_5 = arith.constant 0.000000e+00 : bf16
    %4 = vector.broadcast %cst_5 : bf16 to vector<18x1x128xbf16>
    %c0_6 = arith.constant 0 : index
    %c15 = arith.constant 15 : index
    %c0_7 = arith.constant 0 : index
    %5 = vector.load %arg7[%c0_6, %c15, %c0_7] : memref<18x48x128xbf16, #tpu.memory_space<vmem>>, vector<18x1x128xbf16>
    tpu.vector_store %arg7[%c0_6, %c15, %c0_7], %4 {strides = array<i32>} : memref<18x48x128xbf16, #tpu.memory_space<vmem>>, vector<18x1x128xbf16>,
    %cst_8 = arith.constant 0.000000e+00 : bf16
    %6 = vector.broadcast %cst_8 : bf16 to vector<18x1x128xbf16>
    %c0_9 = arith.constant 0 : index
    %c32 = arith.constant 32 : index
    %c0_10 = arith.constant 0 : index
    %7 = vector.load %arg7[%c0_9, %c32, %c0_10] : memref<18x48x128xbf16, #tpu.memory_space<vmem>>, vector<18x1x128xbf16>
    tpu.vector_store %arg7[%c0_9, %c32, %c0_10], %6 {strides = array<i32>} : memref<18x48x128xbf16, #tpu.memory_space<vmem>>, vector<18x1x128xbf16>,
    %cst_11 = arith.constant 0.000000e+00 : f32
    %8 = vector.broadcast %cst_11 : f32 to vector<256x128xf32>
    %c0_12 = arith.constant 0 : index
    %c0_13 = arith.constant 0 : index
    %c0_14 = arith.constant 0 : index
    %c0_15 = arith.constant 0 : index
    %9 = vector.load %arg1[%c0_12, %c0_13, %c0_14, %c0_15] : memref<1x18x18x128xbf16, #tpu.memory_space<vmem>>, vector<1x16x16x128xbf16>
    %10 = vector.shape_cast %9 : vector<1x16x16x128xbf16> to vector<16x16x128xbf16>
    %c0_16 = arith.constant 0 : index
    %c0_17 = arith.constant 0 : index
    %c1 = arith.constant 1 : index
    %c0_18 = arith.constant 0 : index
    %11 = vector.load %arg1[%c0_16, %c0_17, %c1, %c0_18] : memref<1x18x18x128xbf16, #tpu.memory_space<vmem>>, vector<1x16x16x128xbf16>
    %12 = vector.shape_cast %11 : vector<1x16x16x128xbf16> to vector<16x16x128xbf16>
    %c0_19 = arith.constant 0 : index
    %c0_20 = arith.constant 0 : index
    %c2 = arith.constant 2 : index
    %c0_21 = arith.constant 0 : index
    %13 = vector.load %arg1[%c0_19, %c0_20, %c2, %c0_21] : memref<1x18x18x128xbf16, #tpu.memory_space<vmem>>, vector<1x16x16x128xbf16>
    %14 = vector.shape_cast %13 : vector<1x16x16x128xbf16> to vector<16x16x128xbf16>
    %15 = tpu.concatenate %10, %12, %14 in 2 : vector<16x16x128xbf16>, vector<16x16x128xbf16>, vector<16x16x128xbf16> -> vector<16x16x384xbf16>
    %16 = vector.shape_cast %15 : vector<16x16x384xbf16> to vector<256x384xbf16>
    %c0_22 = arith.constant 0 : index
    %c0_23 = arith.constant 0 : index
    %c0_24 = arith.constant 0 : index
    %17 = vector.load %arg2[%c0_22, %c0_23, %c0_24] : memref<3x384x128xbf16, #tpu.memory_space<vmem>>, vector<1x384x128xbf16>
    %18 = vector.shape_cast %17 : vector<1x384x128xbf16> to vector<384x128xbf16>
    %cst_25 = arith.constant dense<0.000000e+00> : vector<256x128xf32>
    %19 = tpu.matmul %16, %18, %cst_25 {dimension_numbers = #tpu.dot_dimension_numbers<[1], [0], [0], [1], [0, 0, 1, 1], [], []>} : vector<256x384xbf16>, vector<384x128xbf16>, vector<256x128xf32> -> vector<256x128xf32>
    %20 = arith.addf %8, %19 : vector<256x128xf32>
    %c0_26 = arith.constant 0 : index
    %c1_27 = arith.constant 1 : index
    %c0_28 = arith.constant 0 : index
    %c0_29 = arith.constant 0 : index
    %21 = vector.load %arg1[%c0_26, %c1_27, %c0_28, %c0_29] : memref<1x18x18x128xbf16, #tpu.memory_space<vmem>>, vector<1x16x16x128xbf16>
    %22 = vector.shape_cast %21 : vector<1x16x16x128xbf16> to vector<16x16x128xbf16>
    %c0_30 = arith.constant 0 : index
    %c1_31 = arith.constant 1 : index
    %c1_32 = arith.constant 1 : index
    %c0_33 = arith.constant 0 : index
    %23 = vector.load %arg1[%c0_30, %c1_31, %c1_32, %c0_33] : memref<1x18x18x128xbf16, #tpu.memory_space<vmem>>, vector<1x16x16x128xbf16>
    %24 = vector.shape_cast %23 : vector<1x16x16x128xbf16> to vector<16x16x128xbf16>
    %c0_34 = arith.constant 0 : index
    %c1_35 = arith.constant 1 : index
    %c2_36 = arith.constant 2 : index
    %c0_37 = arith.constant 0 : index
    %25 = vector.load %arg1[%c0_34, %c1_35, %c2_36, %c0_37] : memref<1x18x18x128xbf16, #tpu.memory_space<vmem>>, vector<1x16x16x128xbf16>
    %26 = vector.shape_cast %25 : vector<1x16x16x128xbf16> to vector<16x16x128xbf16>
    %27 = tpu.concatenate %22, %24, %26 in 2 : vector<16x16x128xbf16>, vector<16x16x128xbf16>, vector<16x16x128xbf16> -> vector<16x16x384xbf16>
    %28 = vector.shape_cast %27 : vector<16x16x384xbf16> to vector<256x384xbf16>
    %c1_38 = arith.constant 1 : index
    %c0_39 = arith.constant 0 : index
    %c0_40 = arith.constant 0 : index
    %29 = vector.load %arg2[%c1_38, %c0_39, %c0_40] : memref<3x384x128xbf16, #tpu.memory_space<vmem>>, vector<1x384x128xbf16>
    %30 = vector.shape_cast %29 : vector<1x384x128xbf16> to vector<384x128xbf16>
    %cst_41 = arith.constant dense<0.000000e+00> : vector<256x128xf32>
    %31 = tpu.matmul %28, %30, %cst_41 {dimension_numbers = #tpu.dot_dimension_numbers<[1], [0], [0], [1], [0, 0, 1, 1], [], []>} : vector<256x384xbf16>, vector<384x128xbf16>, vector<256x128xf32> -> vector<256x128xf32>
    %32 = arith.addf %20, %31 : vector<256x128xf32>
    %c0_42 = arith.constant 0 : index
    %c2_43 = arith.constant 2 : index
    %c0_44 = arith.constant 0 : index
    %c0_45 = arith.constant 0 : index
    %33 = vector.load %arg1[%c0_42, %c2_43, %c0_44, %c0_45] : memref<1x18x18x128xbf16, #tpu.memory_space<vmem>>, vector<1x16x16x128xbf16>
    %34 = vector.shape_cast %33 : vector<1x16x16x128xbf16> to vector<16x16x128xbf16>
    %c0_46 = arith.constant 0 : index
    %c2_47 = arith.constant 2 : index
    %c1_48 = arith.constant 1 : index
    %c0_49 = arith.constant 0 : index
    %35 = vector.load %arg1[%c0_46, %c2_47, %c1_48, %c0_49] : memref<1x18x18x128xbf16, #tpu.memory_space<vmem>>, vector<1x16x16x128xbf16>
    %36 = vector.shape_cast %35 : vector<1x16x16x128xbf16> to vector<16x16x128xbf16>
    %c0_50 = arith.constant 0 : index
    %c2_51 = arith.constant 2 : index
    %c2_52 = arith.constant 2 : index
    %c0_53 = arith.constant 0 : index
    %37 = vector.load %arg1[%c0_50, %c2_51, %c2_52, %c0_53] : memref<1x18x18x128xbf16, #tpu.memory_space<vmem>>, vector<1x16x16x128xbf16>
    %38 = vector.shape_cast %37 : vector<1x16x16x128xbf16> to vector<16x16x128xbf16>
    %39 = tpu.concatenate %34, %36, %38 in 2 : vector<16x16x128xbf16>, vector<16x16x128xbf16>, vector<16x16x128xbf16> -> vector<16x16x384xbf16>
    %40 = vector.shape_cast %39 : vector<16x16x384xbf16> to vector<256x384xbf16>
    %c2_54 = arith.constant 2 : index
    %c0_55 = arith.constant 0 : index
    %c0_56 = arith.constant 0 : index
    %41 = vector.load %arg2[%c2_54, %c0_55, %c0_56] : memref<3x384x128xbf16, #tpu.memory_space<vmem>>, vector<1x384x128xbf16>
    %42 = vector.shape_cast %41 : vector<1x384x128xbf16> to vector<384x128xbf16>
    %cst_57 = arith.constant dense<0.000000e+00> : vector<256x128xf32>
    %43 = tpu.matmul %40, %42, %cst_57 {dimension_numbers = #tpu.dot_dimension_numbers<[1], [0], [0], [1], [0, 0, 1, 1], [], []>} : vector<256x384xbf16>, vector<384x128xbf16>, vector<256x128xf32> -> vector<256x128xf32>
    %44 = arith.addf %32, %43 : vector<256x128xf32>
    %c0_58 = arith.constant 0 : index
    %c0_59 = arith.constant 0 : index
    %45 = vector.load %arg3[%c0_58, %c0_59] : memref<1x128xf32, #tpu.memory_space<vmem>>, vector<1x128xf32>
    %46 = vector.broadcast %45 : vector<1x128xf32> to vector<256x128xf32>
    %47 = arith.addf %44, %46 : vector<256x128xf32>
    %48 = arith.negf %47 : vector<256x128xf32>
    %49 = math.exp %48 : vector<256x128xf32>
    %cst_60 = arith.constant 1.000000e+00 : f32
    %50 = vector.broadcast %cst_60 : f32 to vector<256x128xf32>
    %51 = arith.addf %50, %49 : vector<256x128xf32>
    %52 = arith.divf %50, %51 : vector<256x128xf32>
    %53 = arith.mulf %47, %52 : vector<256x128xf32>
    %54 = vector.shape_cast %53 : vector<256x128xf32> to vector<16x16x128xf32>
    %55 = arith.truncf %54 : vector<16x16x128xf32> to vector<16x16x128xbf16>
    %c1_61 = arith.constant 1 : index
    %c16 = arith.constant 16 : index
    %c0_62 = arith.constant 0 : index
    %56 = vector.load %arg7[%c1_61, %c16, %c0_62] : memref<18x48x128xbf16, #tpu.memory_space<vmem>>, vector<16x16x128xbf16>
    tpu.vector_store %arg7[%c1_61, %c16, %c0_62], %55 {strides = array<i32>} : memref<18x48x128xbf16, #tpu.memory_space<vmem>>, vector<16x16x128xbf16>,
    %cst_63 = arith.constant 0.000000e+00 : f32
    %57 = vector.broadcast %cst_63 : f32 to vector<256x128xf32>
    %c0_64 = arith.constant 0 : index
    %c15_65 = arith.constant 15 : index
    %c0_66 = arith.constant 0 : index
    %58 = vector.load %arg7[%c0_64, %c15_65, %c0_66] : memref<18x48x128xbf16, #tpu.memory_space<vmem>>, vector<16x16x128xbf16>
    %c0_67 = arith.constant 0 : index
    %c16_68 = arith.constant 16 : index
    %c0_69 = arith.constant 0 : index
    %59 = vector.load %arg7[%c0_67, %c16_68, %c0_69] : memref<18x48x128xbf16, #tpu.memory_space<vmem>>, vector<16x16x128xbf16>
    %c0_70 = arith.constant 0 : index
    %c17_71 = arith.constant 17 : index
    %c0_72 = arith.constant 0 : index
    %60 = vector.load %arg7[%c0_70, %c17_71, %c0_72] : memref<18x48x128xbf16, #tpu.memory_space<vmem>>, vector<16x16x128xbf16>
    %61 = tpu.concatenate %58, %59, %60 in 2 : vector<16x16x128xbf16>, vector<16x16x128xbf16>, vector<16x16x128xbf16> -> vector<16x16x384xbf16>
    %62 = vector.shape_cast %61 : vector<16x16x384xbf16> to vector<256x384xbf16>
    %c0_73 = arith.constant 0 : index
    %c0_74 = arith.constant 0 : index
    %c0_75 = arith.constant 0 : index
    %63 = vector.load %arg4[%c0_73, %c0_74, %c0_75] : memref<3x384x128xbf16, #tpu.memory_space<vmem>>, vector<1x384x128xbf16>
    %64 = vector.shape_cast %63 : vector<1x384x128xbf16> to vector<384x128xbf16>
    %cst_76 = arith.constant dense<0.000000e+00> : vector<256x128xf32>
    %65 = tpu.matmul %62, %64, %cst_76 {dimension_numbers = #tpu.dot_dimension_numbers<[1], [0], [0], [1], [0, 0, 1, 1], [], []>} : vector<256x384xbf16>, vector<384x128xbf16>, vector<256x128xf32> -> vector<256x128xf32>
    %66 = arith.addf %57, %65 : vector<256x128xf32>
    %c1_77 = arith.constant 1 : index
    %c15_78 = arith.constant 15 : index
    %c0_79 = arith.constant 0 : index
    %67 = vector.load %arg7[%c1_77, %c15_78, %c0_79] : memref<18x48x128xbf16, #tpu.memory_space<vmem>>, vector<16x16x128xbf16>
    %c1_80 = arith.constant 1 : index
    %c16_81 = arith.constant 16 : index
    %c0_82 = arith.constant 0 : index
    %68 = vector.load %arg7[%c1_80, %c16_81, %c0_82] : memref<18x48x128xbf16, #tpu.memory_space<vmem>>, vector<16x16x128xbf16>
    %c1_83 = arith.constant 1 : index
    %c17_84 = arith.constant 17 : index
    %c0_85 = arith.constant 0 : index
    %69 = vector.load %arg7[%c1_83, %c17_84, %c0_85] : memref<18x48x128xbf16, #tpu.memory_space<vmem>>, vector<16x16x128xbf16>
    %70 = tpu.concatenate %67, %68, %69 in 2 : vector<16x16x128xbf16>, vector<16x16x128xbf16>, vector<16x16x128xbf16> -> vector<16x16x384xbf16>
    %71 = vector.shape_cast %70 : vector<16x16x384xbf16> to vector<256x384xbf16>
    %c1_86 = arith.constant 1 : index
    %c0_87 = arith.constant 0 : index
    %c0_88 = arith.constant 0 : index
    %72 = vector.load %arg4[%c1_86, %c0_87, %c0_88] : memref<3x384x128xbf16, #tpu.memory_space<vmem>>, vector<1x384x128xbf16>
    %73 = vector.shape_cast %72 : vector<1x384x128xbf16> to vector<384x128xbf16>
    %cst_89 = arith.constant dense<0.000000e+00> : vector<256x128xf32>
    %74 = tpu.matmul %71, %73, %cst_89 {dimension_numbers = #tpu.dot_dimension_numbers<[1], [0], [0], [1], [0, 0, 1, 1], [], []>} : vector<256x384xbf16>, vector<384x128xbf16>, vector<256x128xf32> -> vector<256x128xf32>
    %75 = arith.addf %66, %74 : vector<256x128xf32>
    %c2_90 = arith.constant 2 : index
    %c15_91 = arith.constant 15 : index
    %c0_92 = arith.constant 0 : index
    %76 = vector.load %arg7[%c2_90, %c15_91, %c0_92] : memref<18x48x128xbf16, #tpu.memory_space<vmem>>, vector<16x16x128xbf16>
    %c2_93 = arith.constant 2 : index
    %c16_94 = arith.constant 16 : index
    %c0_95 = arith.constant 0 : index
    %77 = vector.load %arg7[%c2_93, %c16_94, %c0_95] : memref<18x48x128xbf16, #tpu.memory_space<vmem>>, vector<16x16x128xbf16>
    %c2_96 = arith.constant 2 : index
    %c17_97 = arith.constant 17 : index
    %c0_98 = arith.constant 0 : index
    %78 = vector.load %arg7[%c2_96, %c17_97, %c0_98] : memref<18x48x128xbf16, #tpu.memory_space<vmem>>, vector<16x16x128xbf16>
    %79 = tpu.concatenate %76, %77, %78 in 2 : vector<16x16x128xbf16>, vector<16x16x128xbf16>, vector<16x16x128xbf16> -> vector<16x16x384xbf16>
    %80 = vector.shape_cast %79 : vector<16x16x384xbf16> to vector<256x384xbf16>
    %c2_99 = arith.constant 2 : index
    %c0_100 = arith.constant 0 : index
    %c0_101 = arith.constant 0 : index
    %81 = vector.load %arg4[%c2_99, %c0_100, %c0_101] : memref<3x384x128xbf16, #tpu.memory_space<vmem>>, vector<1x384x128xbf16>
    %82 = vector.shape_cast %81 : vector<1x384x128xbf16> to vector<384x128xbf16>
    %cst_102 = arith.constant dense<0.000000e+00> : vector<256x128xf32>
    %83 = tpu.matmul %80, %82, %cst_102 {dimension_numbers = #tpu.dot_dimension_numbers<[1], [0], [0], [1], [0, 0, 1, 1], [], []>} : vector<256x384xbf16>, vector<384x128xbf16>, vector<256x128xf32> -> vector<256x128xf32>
    %84 = arith.addf %75, %83 : vector<256x128xf32>
    %c0_103 = arith.constant 0 : index
    %c0_104 = arith.constant 0 : index
    %85 = vector.load %arg5[%c0_103, %c0_104] : memref<1x128xf32, #tpu.memory_space<vmem>>, vector<1x128xf32>
    %86 = vector.broadcast %85 : vector<1x128xf32> to vector<256x128xf32>
    %87 = arith.addf %84, %86 : vector<256x128xf32>
    %88 = arith.negf %87 : vector<256x128xf32>
    %89 = math.exp %88 : vector<256x128xf32>
    %cst_105 = arith.constant 1.000000e+00 : f32
    %90 = vector.broadcast %cst_105 : f32 to vector<256x128xf32>
    %91 = arith.addf %90, %89 : vector<256x128xf32>
    %92 = arith.divf %90, %91 : vector<256x128xf32>
    %93 = arith.mulf %87, %92 : vector<256x128xf32>
    %94 = vector.shape_cast %93 : vector<256x128xf32> to vector<16x16x128xf32>
    %c0_106 = arith.constant 0 : index
    %c1_107 = arith.constant 1 : index
    %c1_108 = arith.constant 1 : index
    %c0_109 = arith.constant 0 : index
    %95 = vector.load %arg1[%c0_106, %c1_107, %c1_108, %c0_109] : memref<1x18x18x128xbf16, #tpu.memory_space<vmem>>, vector<1x16x16x128xbf16>
    %96 = vector.shape_cast %95 : vector<1x16x16x128xbf16> to vector<16x16x128xbf16>
    %97 = arith.extf %96 : vector<16x16x128xbf16> to vector<16x16x128xf32>
    %98 = arith.addf %94, %97 : vector<16x16x128xf32>
    %c0_110 = arith.constant 0 : index
    %c0_111 = arith.constant 0 : index
    %c0_112 = arith.constant 0 : index
    %c0_113 = arith.constant 0 : index
    %99 = vector.load %arg6[%c0_110, %c0_111, %c0_112, %c0_113] : memref<1x16x16x128xf32, #tpu.memory_space<vmem>>, vector<1x16x16x128xf32>
    %100 = vector.shape_cast %99 : vector<1x16x16x128xf32> to vector<16x16x128xf32>
    %101 = vector.shape_cast %98 : vector<16x16x128xf32> to vector<1x16x16x128xf32>
    tpu.vector_store %arg6[%c0_110, %c0_111, %c0_112, %c0_113], %101 {strides = array<i32>} : memref<1x16x16x128xf32, #tpu.memory_space<vmem>>, vector<1x16x16x128xf32>,
    return
  }
  func.func @transform_0(%arg0: i32) -> (i32, i32, i32, i32) {
    %c0_i32 = arith.constant 0 : i32
    %c0_i32_0 = arith.constant 0 : i32
    %c0_i32_1 = arith.constant 0 : i32
    %c0_i32_2 = arith.constant 0 : i32
    return %arg0, %c0_i32, %c0_i32_0, %c0_i32_1 : i32, i32, i32, i32
  }
  func.func @transform_1(%arg0: i32) -> (i32, i32, i32) {
    %c0_i32 = arith.constant 0 : i32
    %c0_i32_0 = arith.constant 0 : i32
    %c0_i32_1 = arith.constant 0 : i32
    %c0_i32_2 = arith.constant 0 : i32
    return %c0_i32, %c0_i32_0, %c0_i32_1 : i32, i32, i32
  }
  func.func @transform_2(%arg0: i32) -> (i32, i32) {
    %c0_i32 = arith.constant 0 : i32
    %c0_i32_0 = arith.constant 0 : i32
    %c0_i32_1 = arith.constant 0 : i32
    return %c0_i32, %c0_i32_0 : i32, i32
  }
  func.func @transform_3(%arg0: i32) -> (i32, i32, i32) {
    %c0_i32 = arith.constant 0 : i32
    %c0_i32_0 = arith.constant 0 : i32
    %c0_i32_1 = arith.constant 0 : i32
    %c0_i32_2 = arith.constant 0 : i32
    return %c0_i32, %c0_i32_0, %c0_i32_1 : i32, i32, i32
  }
  func.func @transform_4(%arg0: i32) -> (i32, i32) {
    %c0_i32 = arith.constant 0 : i32
    %c0_i32_0 = arith.constant 0 : i32
    %c0_i32_1 = arith.constant 0 : i32
    return %c0_i32, %c0_i32_0 : i32, i32
  }
  func.func @transform_5(%arg0: i32) -> (i32, i32, i32, i32) {
    %c0_i32 = arith.constant 0 : i32
    %c0_i32_0 = arith.constant 0 : i32
    %c0_i32_1 = arith.constant 0 : i32
    %c0_i32_2 = arith.constant 0 : i32
    return %arg0, %c0_i32, %c0_i32_0, %c0_i32_1 : i32, i32, i32, i32
  }
}

</mosaic_0001>

<llo_original>
// kernel: tpu_custom_call.1
$region0: #{tpu_custom_call.1}
  #allocation0 [shape = 'u32[]', space=smem, size = 0x4, offset = 0x4, fixed_abs, tag = 'smem constant byte address 0x4 - core index']
  #allocation1 [shape = 'u32[144,128]{1,0:T(1,128)}', space=vmem, size = 0x12000, scoped, tag = 'internal scratch']
  #allocation2 [shape = 'bf16[18,48,128]{2,1,0:T(16,128)(2,1)}', space=vmem, size = 0x36000, scoped, tag = 'scratch operand']
  %s0 = inlined_call_operand.vmem [shape: bf16[2,18,18,128], index: 0, kind: input, shape index: {}]
  %s1 = inlined_call_operand.vmem [shape: bf16[3,384,128], index: 1, kind: input, shape index: {}]
  %s2 = inlined_call_operand.vmem [shape: f32[1,128], index: 2, kind: input, shape index: {}]
  %s3 = inlined_call_operand.hbm [shape: bf16[3,384,128], index: 3, kind: input, shape index: {}]
  %s4 = inlined_call_operand.vmem [shape: f32[1,128], index: 4, kind: input, shape index: {}]
  %s5 = inlined_call_operand.hbm [shape: f32[2,16,16,128], index: 5, kind: output, shape index: {}]
  %s6 = sld [smem:[#allocation0]]
  $region57: #{tpu_custom_call.1} parent=0
    _
  %s8 = ssub.s32 1, %s6
  %s9 = scalar_select 0, %s8, %s6
  $region1: #{tpu_custom_call.1} parent=0
    #allocation3 [shape = 'u8[294912]{0}', space=vmem, size = 0x48000, scoped, tag = 'input window, operand 3, single buffered']
    #allocation4 [shape = 's32[2]{0}', space=sflag, size = 0x8, scoped, tag = 'scoped memory for tpu_custom_call.1']
    #allocation5 [shape = 's32[2]{0}', space=sflag, size = 0x8, scoped, tag = 'scoped memory for tpu_custom_call.1']
    #allocation6 [shape = 'u8[262144]{0}', space=vmem, size = 0x40000, scoped, tag = 'output window, operand 0']
    %10 = vsyncpa [#allocation4], 0
    %11 = vsyncpa [#allocation5], 0
    %s12 = scalar_lea.sflag [#allocation5], 1
    %13 = vsyncpa %s12, 0
    loop: start=0, step=1, limit=4
    $region2: #{tpu_custom_call.1} parent=1 // loop_pre_header
      _
    $region3: #{tpu_custom_call.1} parent=1 // loop_header
      %s15 = sphi 0, %s19
      %p16 = scmp.ge.s32.totalorder %s15, 4
      %s25 = sphi 0, %s27
      %s28 = sphi 0, %s25
      %s29 = sphi 0, %s28
      %s45 = sphi 0, %s29
      %s49 = sphi 0, %s49
      %s51 = sphi 0, %s49
      %s52 = sphi 0, %s51
      %s66 = sphi 0, %s52
      %s70 = sphi 0, %s70
      %s72 = sphi 0, %s70
      %s73 = sphi 0, %s72
      %s87 = sphi 0, %s73
      %s91 = sphi 0, %s91
      %s93 = sphi 0, %s91
      %s94 = sphi 0, %s93
      %s108 = sphi 0, %s94
      %s112 = sphi 0, %s112
      %s114 = sphi 0, %s112
      %s115 = sphi 0, %s114
      %s129 = sphi 0, %s115
      %s135 = sphi 0, %s137
      %s138 = sphi 0, %s135
      %s139 = sphi 0, %s138
      %s155 = sphi 0, %s139
    $region4: #{tpu_custom_call.1} parent=1 // loop_header_branch
      %18 = sbr.rel (%p16) target = $region8
    $region5: #{tpu_custom_call.1} parent=1 // loop_body
      %s20 = ssub.s32 %s15, 1
      %s21 = ssub.s32 %s15, 2
      %s22 = sadd.s32 %s15, 1
      %s23 = ssub.s32 %s15, %s22
      %p24 = scmp.eq.s32.totalorder %s23, 0
      %s26 = sadd.s32 %s25, 1
      %s27 = scalar_select %p24, %s25, %s26
      %p30 = pneg %p24
      %p31 = scmp.eq.s32.totalorder %s15, 1
      %p32 = por %p30, %p31
      %p33 = scmp.ne.s32.totalorder %s25, %s28
      %p34 = scmp.eq.s32.totalorder %s15, 0
      %p35 = por %p33, %p34
      %p36 = scmp.ne.s32.totalorder %s25, %s28
      %p37 = scmp.eq.s32.totalorder %s20, 1
      %p38 = por %p36, %p37
      %p39 = scmp.ne.s32.totalorder %s28, %s29
      %p40 = scmp.eq.s32.totalorder %s20, 0
      %p41 = por %p39, %p40
      %p42 = scmp.ne.s32.totalorder %s28, %s29
      %p43 = scmp.eq.s32.totalorder %s21, 1
      %p44 = por %p42, %p43
      %p46 = scmp.ne.s32.totalorder %s29, %s45
      %p47 = scmp.eq.s32.totalorder %s21, 0
      %p48 = por %p46, %p47
      %s50 = sadd.s32 %s49, 1
      %p53 = scmp.eq.s32.totalorder %s15, 1
      %p54 = scmp.ne.s32.totalorder %s49, %s51
      %p55 = scmp.eq.s32.totalorder %s15, 0
      %p56 = por %p54, %p55
      %p57 = scmp.ne.s32.totalorder %s49, %s51
      %p58 = scmp.eq.s32.totalorder %s20, 1
      %p59 = por %p57, %p58
      %p60 = scmp.ne.s32.totalorder %s51, %s52
      %p61 = scmp.eq.s32.totalorder %s20, 0
      %p62 = por %p60, %p61
      %p63 = scmp.ne.s32.totalorder %s51, %s52
      %p64 = scmp.eq.s32.totalorder %s21, 1
      %p65 = por %p63, %p64
      %p67 = scmp.ne.s32.totalorder %s52, %s66
      %p68 = scmp.eq.s32.totalorder %s21, 0
      %p69 = por %p67, %p68
      %s71 = sadd.s32 %s70, 1
      %p74 = scmp.eq.s32.totalorder %s15, 1
      %p75 = scmp.ne.s32.totalorder %s70, %s72
      %p76 = scmp.eq.s32.totalorder %s15, 0
      %p77 = por %p75, %p76
      %p78 = scmp.ne.s32.totalorder %s70, %s72
      %p79 = scmp.eq.s32.totalorder %s20, 1
      %p80 = por %p78, %p79
      %p81 = scmp.ne.s32.totalorder %s72, %s73
      %p82 = scmp.eq.s32.totalorder %s20, 0
      %p83 = por %p81, %p82
      %p84 = scmp.ne.s32.totalorder %s72, %s73
      %p85 = scmp.eq.s32.totalorder %s21, 1
      %p86 = por %p84, %p85
      %p88 = scmp.ne.s32.totalorder %s73, %s87
      %p89 = scmp.eq.s32.totalorder %s21, 0
      %p90 = por %p88, %p89
      %s92 = sadd.s32 %s91, 1
      %p95 = scmp.eq.s32.totalorder %s15, 1
      %p96 = scmp.ne.s32.totalorder %s91, %s93
      %p97 = scmp.eq.s32.totalorder %s15, 0
      %p98 = por %p96, %p97
      %p99 = scmp.ne.s32.totalorder %s91, %s93
      %p100 = scmp.eq.s32.totalorder %s20, 1
      %p101 = por %p99, %p100
      %p102 = scmp.ne.s32.totalorder %s93, %s94
      %p103 = scmp.eq.s32.totalorder %s20, 0
      %p104 = por %p102, %p103
      %p105 = scmp.ne.s32.totalorder %s93, %s94
      %p106 = scmp.eq.s32.totalorder %s21, 1
      %p107 = por %p105, %p106
      %p109 = scmp.ne.s32.totalorder %s94, %s108
      %p110 = scmp.eq.s32.totalorder %s21, 0
      %p111 = por %p109, %p110
      %s113 = sadd.s32 %s112, 1
      %p116 = scmp.eq.s32.totalorder %s15, 1
      %p117 = scmp.ne.s32.totalorder %s112, %s114
      %p118 = scmp.eq.s32.totalorder %s15, 0
      %p119 = por %p117, %p118
      %p120 = scmp.ne.s32.totalorder %s112, %s114
      %p121 = scmp.eq.s32.totalorder %s20, 1
      %p122 = por %p120, %p121
      %p123 = scmp.ne.s32.totalorder %s114, %s115
      %p124 = scmp.eq.s32.totalorder %s20, 0
      %p125 = por %p123, %p124
      %p126 = scmp.ne.s32.totalorder %s114, %s115
      %p127 = scmp.eq.s32.totalorder %s21, 1
      %p128 = por %p126, %p127
      %p130 = scmp.ne.s32.totalorder %s115, %s129
      %p131 = scmp.eq.s32.totalorder %s21, 0
      %p132 = por %p130, %p131
      %s133 = ssub.s32 %s15, %s22
      %p134 = scmp.eq.s32.totalorder %s133, 0
      %s136 = sadd.s32 %s135, 1
      %s137 = scalar_select %p134, %s135, %s136
      %p140 = pneg %p134
      %p141 = scmp.eq.s32.totalorder %s15, 1
      %p142 = por %p140, %p141
      %p143 = scmp.ne.s32.totalorder %s135, %s138
      %p144 = scmp.eq.s32.totalorder %s15, 0
      %p145 = por %p143, %p144
      %p146 = scmp.ne.s32.totalorder %s135, %s138
      %p147 = scmp.eq.s32.totalorder %s20, 1
      %p148 = por %p146, %p147
      %p149 = scmp.ne.s32.totalorder %s138, %s139
      %p150 = scmp.eq.s32.totalorder %s20, 0
      %p151 = por %p149, %p150
      %p152 = scmp.ne.s32.totalorder %s138, %s139
      %p153 = scmp.eq.s32.totalorder %s21, 1
      %p154 = por %p152, %p153
      %p156 = scmp.ne.s32.totalorder %s139, %s155
      %p157 = scmp.eq.s32.totalorder %s21, 0
      %p158 = por %p156, %p157
      %p159 = scmp.le.s32.totalorder 1, %s15
      %p160 = scmp.lt.s32.totalorder %s15, 3
      %p161 = pnand %p159, %p160
      %p162 = pneg %p161
      // Predicated region
      $region9: #{tpu_custom_call.1} parent=5 // pred_check
        _
      $region10: #{tpu_custom_call.1} parent=5 // pred_check_branch
        %164 = sbr.rel (%p161) target = $region12
      $region11: #{tpu_custom_call.1} parent=5 // pred_region
        %s165 = ssub.s32 %s15, 1
        // Predicated region
        $region13: #{tpu_custom_call.1} parent=11 // pred_check
          %p166 = pneg %p62
        $region14: #{tpu_custom_call.1} parent=11 // pred_check_branch
          %168 = sbr.rel (%p166) target = $region16
        $region15: #{tpu_custom_call.1} parent=11 // pred_region
          _
        $region16: #{tpu_custom_call.1} parent=11 // pred_fallthru
          _
        // Predicated region
        $region17: #{tpu_custom_call.1} parent=11 // pred_check
          %p169 = pneg %p83
        $region18: #{tpu_custom_call.1} parent=11 // pred_check_branch
          %171 = sbr.rel (%p169) target = $region20
        $region19: #{tpu_custom_call.1} parent=11 // pred_region
          _
        $region20: #{tpu_custom_call.1} parent=11 // pred_fallthru
          _
        // Predicated region
        $region21: #{tpu_custom_call.1} parent=11 // pred_check
          %p172 = pneg %p104
        $region22: #{tpu_custom_call.1} parent=11 // pred_check_branch
          %174 = sbr.rel (%p172) target = $region24
        $region23: #{tpu_custom_call.1} parent=11 // pred_region
          %s176 = ssub.s32 9216, 9216
          %177 = vsyncadd [#allocation4], %s176
          %s178 = sshll.u32 [#allocation3], 4
          %s179 = int_to_ptr.vmem [resolvable:$true] %s178
          %184 = dma.hbm_to_vmem [thread:$0]  %s3, 9216, %s179, [#allocation4], 64, 64, 4
        $region24: #{tpu_custom_call.1} parent=11 // pred_fallthru
          _
        // Predicated region
        $region25: #{tpu_custom_call.1} parent=11 // pred_check
          %p185 = pneg %p125
        $region26: #{tpu_custom_call.1} parent=11 // pred_check_branch
          %187 = sbr.rel (%p185) target = $region28
        $region27: #{tpu_custom_call.1} parent=11 // pred_region
          _
        $region28: #{tpu_custom_call.1} parent=11 // pred_fallthru
          _
      $region12: #{tpu_custom_call.1} parent=5 // pred_fallthru
        _
      %p188 = scmp.lt.s32.totalorder %s15, 2
      // Predicated region
      $region29: #{tpu_custom_call.1} parent=5 // pred_check
        %p189 = pneg %p188
      $region30: #{tpu_custom_call.1} parent=5 // pred_check_branch
        %191 = sbr.rel (%p189) target = $region32
      $region31: #{tpu_custom_call.1} parent=5 // pred_region
        // Predicated region
        $region33: #{tpu_custom_call.1} parent=31 // pred_check
          %p192 = pneg %p35
        $region34: #{tpu_custom_call.1} parent=31 // pred_check_branch
          %194 = sbr.rel (%p192) target = $region36
        $region35: #{tpu_custom_call.1} parent=31 // pred_region
          %p195 = scmp.lt.s32.totalorder %s15, 1
          %s196 = scalar_select %p195, %s15, 1
          %s197 = smul.addr %s196, 54
          %s198 = smul.addr %s197, 4
          %s199 = scalar_lea.vmem %s0, %s198
        $region36: #{tpu_custom_call.1} parent=31 // pred_fallthru
          _
      $region32: #{tpu_custom_call.1} parent=5 // pred_fallthru
        _
      %p200 = scmp.le.s32.totalorder 1, %s15
      %p201 = scmp.lt.s32.totalorder %s15, 3
      %p202 = pnand %p200, %p201
      %p203 = pneg %p202
      // Predicated region
      $region37: #{tpu_custom_call.1} parent=5 // pred_check
        _
      $region38: #{tpu_custom_call.1} parent=5 // pred_check_branch
        %205 = sbr.rel (%p202) target = $region40
      $region39: #{tpu_custom_call.1} parent=5 // pred_region
        %s206 = ssub.s32 %s15, 1
        // Predicated region
        $region41: #{tpu_custom_call.1} parent=39 // pred_check
          %p207 = pneg %p104
        $region42: #{tpu_custom_call.1} parent=39 // pred_check_branch
          %209 = sbr.rel (%p207) target = $region44
        $region43: #{tpu_custom_call.1} parent=39 // pred_region
          %210 = dma.done [#allocation4], 9216
        $region44: #{tpu_custom_call.1} parent=39 // pred_fallthru
          _
        %p211 = scmp.lt.s32.totalorder %s20, 1
        %s212 = scalar_select %p211, %s20, 1
        %s213 = smul.addr %s212, 54
        %s214 = smul.addr %s213, 4
        %s215 = scalar_lea.vmem %s0, %s214
        %p216 = pneg %p41
        %p217 = pneg %p38
        %p218 = pneg %p62
        %p219 = pneg %p59
        %p220 = pneg %p83
        %p221 = pneg %p80
        %p222 = pneg %p104
        %p223 = pneg %p101
        %p224 = pneg %p125
        %p225 = pneg %p122
        %p226 = pneg %p151
        %p227 = pneg %p148
        %s228 = sand.u32 %s138, 1
        %s229 = scalar_lea.sflag [#allocation5], %s228
        %s230 = sand.u32 %s138, 1
        %s231 = smul.addr %s230, 256
        %s232 = scalar_lea.vmem [#allocation6], %s231
        %p233 = scmp.lt.s32.totalorder %s20, 1
        %s234 = scalar_select %p233, %s20, 1
        %s235 = smul.addr %s234, 54
        %s236 = smul.addr %s235, 4
        %s237 = scalar_lea.vmem %s0, %s236
        %239 = vst [vmem:[#allocation2] sm:$0xff] 0
        %240 = vst [vmem:[#allocation2 + $0x8] sm:$0xff] 0
        %241 = vst [vmem:[#allocation2 + $0x10] sm:$0xff] 0
        %s242 = scalar_lea.vmem [#allocation2], 408
        %243 = vst [vmem:[%s242] sm:$0xff] 0
        %244 = vst [vmem:[%s242 + $0x8] sm:$0xff] 0
        %245 = vst [vmem:[%s242 + $0x10] sm:$0xff] 0
        %vm246 = vcmask 1047559
        %vm247 = vsmask.f32 7966
        %vm248 = vmand %vm246, %vm247
        %v249 = vld [vmem:[#allocation2] sm:$0x80]
        %v250 = vsel %vm248, 0, %v249
        %251 = vst [vmem:[#allocation2] sm:$0x80] %v250
        %v252 = vld [vmem:[#allocation2 + $0x18] sm:$0x80]
        %v253 = vsel %vm248, 0, %v252
        %254 = vst [vmem:[#allocation2 + $0x18] sm:$0x80] %v253
        %v255 = vld [vmem:[#allocation2 + $0x30] sm:$0x80]
        %v256 = vsel %vm248, 0, %v255
        %257 = vst [vmem:[#allocation2 + $0x30] sm:$0x80] %v256
        %v258 = vld [vmem:[#allocation2 + $0x48] sm:$0x80]
        %v259 = vsel %vm248, 0, %v258
        %260 = vst [vmem:[#allocation2 + $0x48] sm:$0x80] %v259
        %v261 = vld [vmem:[#allocation2 + $0x60] sm:$0x80]
        %v262 = vsel %vm248, 0, %v261
        %263 = vst [vmem:[#allocation2 + $0x60] sm:$0x80] %v262
        %v264 = vld [vmem:[#allocation2 + $0x78] sm:$0x80]
        %v265 = vsel %vm248, 0, %v264
        %266 = vst [vmem:[#allocation2 + $0x78] sm:$0x80] %v265
        %v267 = vld [vmem:[#allocation2 + $0x90] sm:$0x80]
        %v268 = vsel %vm248, 0, %v267
        %269 = vst [vmem:[#allocation2 + $0x90] sm:$0x80] %v268
        %v270 = vld [vmem:[#allocation2 + $0xa8] sm:$0x80]
        %v271 = vsel %vm248, 0, %v270
        %272 = vst [vmem:[#allocation2 + $0xa8] sm:$0x80] %v271
        %v273 = vld [vmem:[#allocation2 + $0xc0] sm:$0x80]
        %v274 = vsel %vm248, 0, %v273
        %275 = vst [vmem:[#allocation2 + $0xc0] sm:$0x80] %v274
        %v276 = vld [vmem:[#allocation2 + $0xd8] sm:$0x80]
        %v277 = vsel %vm248, 0, %v276
        %278 = vst [vmem:[#allocation2 + $0xd8] sm:$0x80] %v277
        %v279 = vld [vmem:[#allocation2 + $0xf0] sm:$0x80]
        %v280 = vsel %vm248, 0, %v279
        %281 = vst [vmem:[#allocation2 + $0xf0] sm:$0x80] %v280
        %v282 = vld [vmem:[#allocation2 + $0x108] sm:$0x80]
        %v283 = vsel %vm248, 0, %v282
        %284 = vst [vmem:[#allocation2 + $0x108] sm:$0x80] %v283
        %v285 = vld [vmem:[#allocation2 + $0x120] sm:$0x80]
        %v286 = vsel %vm248, 0, %v285
        %287 = vst [vmem:[#allocation2 + $0x120] sm:$0x80] %v286
        %v288 = vld [vmem:[#allocation2 + $0x138] sm:$0x80]
        %v289 = vsel %vm248, 0, %v288
        %290 = vst [vmem:[#allocation2 + $0x138] sm:$0x80] %v289
        %v291 = vld [vmem:[#allocation2 + $0x150] sm:$0x80]
        %v292 = vsel %vm248, 0, %v291
        %293 = vst [vmem:[#allocation2 + $0x150] sm:$0x80] %v292
        %v294 = vld [vmem:[#allocation2 + $0x168] sm:$0x80]
        %v295 = vsel %vm248, 0, %v294
        %296 = vst [vmem:[#allocation2 + $0x168] sm:$0x80] %v295
        %v297 = vld [vmem:[#allocation2 + $0x180] sm:$0x80]
        %v298 = vsel %vm248, 0, %v297
        %299 = vst [vmem:[#allocation2 + $0x180] sm:$0x80] %v298
        %v300 = vld [vmem:[#allocation2 + $0x198] sm:$0x80]
        %v301 = vsel %vm248, 0, %v300
        %302 = vst [vmem:[#allocation2 + $0x198] sm:$0x80] %v301
        %vm303 = vcmask 1040384
        %vm304 = vsmask.f32 256
        %vm305 = vmand %vm303, %vm304
        %v306 = vld [vmem:[#allocation2 + $0x10] sm:$0x1]
        %v307 = vsel %vm305, 0, %v306
        %308 = vst [vmem:[#allocation2 + $0x10] sm:$0x1] %v307
        %v309 = vld [vmem:[#allocation2 + $0x28] sm:$0x1]
        %v310 = vsel %vm305, 0, %v309
        %311 = vst [vmem:[#allocation2 + $0x28] sm:$0x1] %v310
        %v312 = vld [vmem:[#allocation2 + $0x40] sm:$0x1]
        %v313 = vsel %vm305, 0, %v312
        %314 = vst [vmem:[#allocation2 + $0x40] sm:$0x1] %v313
        %v315 = vld [vmem:[#allocation2 + $0x58] sm:$0x1]
        %v316 = vsel %vm305, 0, %v315
        %317 = vst [vmem:[#allocation2 + $0x58] sm:$0x1] %v316
        %v318 = vld [vmem:[#allocation2 + $0x70] sm:$0x1]
        %v319 = vsel %vm305, 0, %v318
        %320 = vst [vmem:[#allocation2 + $0x70] sm:$0x1] %v319
        %v321 = vld [vmem:[#allocation2 + $0x88] sm:$0x1]
        %v322 = vsel %vm305, 0, %v321
        %323 = vst [vmem:[#allocation2 + $0x88] sm:$0x1] %v322
        %v324 = vld [vmem:[#allocation2 + $0xa0] sm:$0x1]
        %v325 = vsel %vm305, 0, %v324
        %326 = vst [vmem:[#allocation2 + $0xa0] sm:$0x1] %v325
        %v327 = vld [vmem:[#allocation2 + $0xb8] sm:$0x1]
        %v328 = vsel %vm305, 0, %v327
        %329 = vst [vmem:[#allocation2 + $0xb8] sm:$0x1] %v328
        %v330 = vld [vmem:[#allocation2 + $0xd0] sm:$0x1]
        %v331 = vsel %vm305, 0, %v330
        %332 = vst [vmem:[#allocation2 + $0xd0] sm:$0x1] %v331
        %v333 = vld [vmem:[#allocation2 + $0xe8] sm:$0x1]
        %v334 = vsel %vm305, 0, %v333
        %335 = vst [vmem:[#allocation2 + $0xe8] sm:$0x1] %v334
        %v336 = vld [vmem:[#allocation2 + $0x100] sm:$0x1]
        %v337 = vsel %vm305, 0, %v336
        %338 = vst [vmem:[#allocation2 + $0x100] sm:$0x1] %v337
        %v339 = vld [vmem:[#allocation2 + $0x118] sm:$0x1]
        %v340 = vsel %vm305, 0, %v339
        %341 = vst [vmem:[#allocation2 + $0x118] sm:$0x1] %v340
        %v342 = vld [vmem:[#allocation2 + $0x130] sm:$0x1]
        %v343 = vsel %vm305, 0, %v342
        %344 = vst [vmem:[#allocation2 + $0x130] sm:$0x1] %v343
        %v345 = vld [vmem:[#allocation2 + $0x148] sm:$0x1]
        %v346 = vsel %vm305, 0, %v345
        %347 = vst [vmem:[#allocation2 + $0x148] sm:$0x1] %v346
        %v348 = vld [vmem:[#allocation2 + $0x160] sm:$0x1]
        %v349 = vsel %vm305, 0, %v348
        %350 = vst [vmem:[#allocation2 + $0x160] sm:$0x1] %v349
        %v351 = vld [vmem:[#allocation2 + $0x178] sm:$0x1]
        %v352 = vsel %vm305, 0, %v351
        %353 = vst [vmem:[#allocation2 + $0x178] sm:$0x1] %v352
        %v354 = vld [vmem:[#allocation2 + $0x190] sm:$0x1]
        %v355 = vsel %vm305, 0, %v354
        %356 = vst [vmem:[#allocation2 + $0x190] sm:$0x1] %v355
        %v357 = vld [vmem:[#allocation2 + $0x1a8] sm:$0x1]
        %v358 = vsel %vm305, 0, %v357
        %359 = vst [vmem:[#allocation2 + $0x1a8] sm:$0x1] %v358
        %v360 = vld [vmem:[%s237] sm:$0xf]
        %v361 = vld [vmem:[%s237 + $0x4] sm:$0xf]
        %v362 = vld [vmem:[%s237 + $0xc] sm:$0xf]
        %v363 = vld [vmem:[%s237 + $0x10] sm:$0xf]
        %v364 = vld [vmem:[%s237 + $0x18] sm:$0xf]
        %v365 = vld [vmem:[%s237 + $0x1c] sm:$0xf]
        %v366 = vld [vmem:[%s237 + $0x24] sm:$0xf]
        %v367 = vld [vmem:[%s237 + $0x28] sm:$0xf]
        %v368 = vld [vmem:[%s237 + $0x30] sm:$0xf]
        %v369 = vld [vmem:[%s237 + $0x34] sm:$0xf]
        %v370 = vld [vmem:[%s237 + $0x3c] sm:$0xf]
        %v371 = vld [vmem:[%s237 + $0x40] sm:$0xf]
        %v372 = vld [vmem:[%s237 + $0x48] sm:$0xf]
        %v373 = vld [vmem:[%s237 + $0x4c] sm:$0xf]
        %v374 = vld [vmem:[%s237 + $0x54] sm:$0xf]
        %v375 = vld [vmem:[%s237 + $0x58] sm:$0xf]
        %v376 = vld [vmem:[%s237 + $0x60] sm:$0xf]
        %v377 = vld [vmem:[%s237 + $0x64] sm:$0xf]
        %v378 = vld [vmem:[%s237 + $0x6c] sm:$0xf]
        %v379 = vld [vmem:[%s237 + $0x70] sm:$0xf]
        %v380 = vld [vmem:[%s237 + $0x78] sm:$0xf]
        %v381 = vld [vmem:[%s237 + $0x7c] sm:$0xf]
        %v382 = vld [vmem:[%s237 + $0x84] sm:$0xf]
        %v383 = vld [vmem:[%s237 + $0x88] sm:$0xf]
        %v384 = vld [vmem:[%s237 + $0x90] sm:$0xf]
        %v385 = vld [vmem:[%s237 + $0x94] sm:$0xf]
        %v386 = vld [vmem:[%s237 + $0x9c] sm:$0xf]
        %v387 = vld [vmem:[%s237 + $0xa0] sm:$0xf]
        %v388 = vld [vmem:[%s237 + $0xa8] sm:$0xf]
        %v389 = vld [vmem:[%s237 + $0xac] sm:$0xf]
        %v390 = vld [vmem:[%s237 + $0xb4] sm:$0xf]
        %v391 = vld [vmem:[%s237 + $0xb8] sm:$0xf]
        %v392 = vld [vmem:[%s237 + $0x8] sm:$0x1]
        %v393 = vld [vmem:[%s237 + $0x14] sm:$0x1]
        %v394 = vld [vmem:[%s237 + $0x20] sm:$0x1]
        %v395 = vld [vmem:[%s237 + $0x2c] sm:$0x1]
        %v396 = vld [vmem:[%s237 + $0x38] sm:$0x1]
        %v397 = vld [vmem:[%s237 + $0x44] sm:$0x1]
        %v398 = vld [vmem:[%s237 + $0x50] sm:$0x1]
        %v399 = vld [vmem:[%s237 + $0x5c] sm:$0x1]
        %v400 = vld [vmem:[%s237 + $0x68] sm:$0x1]
        %v401 = vld [vmem:[%s237 + $0x74] sm:$0x1]
        %v402 = vld [vmem:[%s237 + $0x80] sm:$0x1]
        %v403 = vld [vmem:[%s237 + $0x8c] sm:$0x1]
        %v404 = vld [vmem:[%s237 + $0x98] sm:$0x1]
        %v405 = vld [vmem:[%s237 + $0xa4] sm:$0x1]
        %v406 = vld [vmem:[%s237 + $0xb0] sm:$0x1]
        %v407 = vld [vmem:[%s237 + $0xbc] sm:$0x1]
        %v408 = vld [vmem:[%s237] sm:$0xe]
        %v409 = vld [vmem:[%s237 + $0xc] sm:$0xe]
        %v410 = vld [vmem:[%s237 + $0x18] sm:$0xe]
        %v411 = vld [vmem:[%s237 + $0x24] sm:$0xe]
        %v412 = vld [vmem:[%s237 + $0x30] sm:$0xe]
        %v413 = vld [vmem:[%s237 + $0x3c] sm:$0xe]
        %v414 = vld [vmem:[%s237 + $0x48] sm:$0xe]
        %v415 = vld [vmem:[%s237 + $0x54] sm:$0xe]
        %v416 = vld [vmem:[%s237 + $0x60] sm:$0xe]
        %v417 = vld [vmem:[%s237 + $0x6c] sm:$0xe]
        %v418 = vld [vmem:[%s237 + $0x78] sm:$0xe]
        %v419 = vld [vmem:[%s237 + $0x84] sm:$0xe]
        %v420 = vld [vmem:[%s237 + $0x90] sm:$0xe]
        %v421 = vld [vmem:[%s237 + $0x9c] sm:$0xe]
        %v422 = vld [vmem:[%s237 + $0xa8] sm:$0xe]
        %v423 = vld [vmem:[%s237 + $0xb4] sm:$0xe]
        %v456 = vunpack.c.l.b16 %v360
        %v457 = vunpack.c.l.b16 %v361
        %v458 = vunpack.c.l.b16 %v362
        %v459 = vunpack.c.l.b16 %v363
        %v460 = vunpack.c.l.b16 %v364
        %v461 = vunpack.c.l.b16 %v365
        %v462 = vunpack.c.l.b16 %v366
        %v463 = vunpack.c.l.b16 %v367
        %v464 = vunpack.c.l.b16 %v368
        %v465 = vunpack.c.l.b16 %v369
        %v466 = vunpack.c.l.b16 %v370
        %v467 = vunpack.c.l.b16 %v371
        %v468 = vunpack.c.l.b16 %v372
        %v469 = vunpack.c.l.b16 %v373
        %v470 = vunpack.c.l.b16 %v374
        %v471 = vunpack.c.l.b16 %v375
        %v472 = vunpack.c.l.b16 %v376
        %v473 = vunpack.c.l.b16 %v377
        %v474 = vunpack.c.l.b16 %v378
        %v475 = vunpack.c.l.b16 %v379
        %v476 = vunpack.c.l.b16 %v380
        %v477 = vunpack.c.l.b16 %v381
        %v478 = vunpack.c.l.b16 %v382
        %v479 = vunpack.c.l.b16 %v383
        %v480 = vunpack.c.l.b16 %v384
        %v481 = vunpack.c.l.b16 %v385
        %v482 = vunpack.c.l.b16 %v386
        %v483 = vunpack.c.l.b16 %v387
        %v484 = vunpack.c.l.b16 %v388
        %v485 = vunpack.c.l.b16 %v389
        %v486 = vunpack.c.l.b16 %v390
        %v487 = vunpack.c.l.b16 %v391
        %v488 = vpack.c.b16 %v457, %v456
        %v489 = vpack.c.b16 %v459, %v458
        %v490 = vpack.c.b16 %v461, %v460
        %v491 = vpack.c.b16 %v463, %v462
        %v492 = vpack.c.b16 %v465, %v464
        %v493 = vpack.c.b16 %v467, %v466
        %v494 = vpack.c.b16 %v469, %v468
        %v495 = vpack.c.b16 %v471, %v470
        %v496 = vpack.c.b16 %v473, %v472
        %v497 = vpack.c.b16 %v475, %v474
        %v498 = vpack.c.b16 %v477, %v476
        %v499 = vpack.c.b16 %v479, %v478
        %v500 = vpack.c.b16 %v481, %v480
        %v501 = vpack.c.b16 %v483, %v482
        %v502 = vpack.c.b16 %v485, %v484
        %v503 = vpack.c.b16 %v487, %v486
        %v536 = vunpack.c.l.b16 %v392
        %v537 = vunpack.c.l.b16 %v393
        %v538 = vunpack.c.l.b16 %v394
        %v539 = vunpack.c.l.b16 %v395
        %v540 = vunpack.c.l.b16 %v396
        %v541 = vunpack.c.l.b16 %v397
        %v542 = vunpack.c.l.b16 %v398
        %v543 = vunpack.c.l.b16 %v399
        %v544 = vunpack.c.l.b16 %v400
        %v545 = vunpack.c.l.b16 %v401
        %v546 = vunpack.c.l.b16 %v402
        %v547 = vunpack.c.l.b16 %v403
        %v548 = vunpack.c.l.b16 %v404
        %v549 = vunpack.c.l.b16 %v405
        %v550 = vunpack.c.l.b16 %v406
        %v551 = vunpack.c.l.b16 %v407
        %v552 = vpack.c.b16 %v536, %v536
        %v553 = vpack.c.b16 %v537, %v537
        %v554 = vpack.c.b16 %v538, %v538
        %v555 = vpack.c.b16 %v539, %v539
        %v556 = vpack.c.b16 %v540, %v540
        %v557 = vpack.c.b16 %v541, %v541
        %v558 = vpack.c.b16 %v542, %v542
        %v559 = vpack.c.b16 %v543, %v543
        %v560 = vpack.c.b16 %v544, %v544
        %v561 = vpack.c.b16 %v545, %v545
        %v562 = vpack.c.b16 %v546, %v546
        %v563 = vpack.c.b16 %v547, %v547
        %v564 = vpack.c.b16 %v548, %v548
        %v565 = vpack.c.b16 %v549, %v549
        %v566 = vpack.c.b16 %v550, %v550
        %v567 = vpack.c.b16 %v551, %v551
        %vm568 = vsmask.f32 7424
        %v570 = vshrl.u32 %v488, 16
        %v572 = vshll.u32 %v488, 16
        %v574 = vrot.slane %v572, 1
        %v575 = vor.u32 %v570, %v574
        %v577 = vshll.u32 %v552, 16
        %v579 = vrot.slane %v577, 1
        %v580 = vsel %vm568, %v575, %v579
        %v582 = vshrl.u32 %v489, 16
        %v584 = vshll.u32 %v489, 16
        %v586 = vrot.slane %v584, 1
        %v587 = vor.u32 %v582, %v586
        %v589 = vshll.u32 %v553, 16
        %v591 = vrot.slane %v589, 1
        %v592 = vsel %vm568, %v587, %v591
        %v594 = vshrl.u32 %v490, 16
        %v596 = vshll.u32 %v490, 16
        %v598 = vrot.slane %v596, 1
        %v599 = vor.u32 %v594, %v598
        %v601 = vshll.u32 %v554, 16
        %v603 = vrot.slane %v601, 1
        %v604 = vsel %vm568, %v599, %v603
        %v606 = vshrl.u32 %v491, 16
        %v608 = vshll.u32 %v491, 16
        %v610 = vrot.slane %v608, 1
        %v611 = vor.u32 %v606, %v610
        %v613 = vshll.u32 %v555, 16
        %v615 = vrot.slane %v613, 1
        %v616 = vsel %vm568, %v611, %v615
        %v618 = vshrl.u32 %v492, 16
        %v620 = vshll.u32 %v492, 16
        %v622 = vrot.slane %v620, 1
        %v623 = vor.u32 %v618, %v622
        %v625 = vshll.u32 %v556, 16
        %v627 = vrot.slane %v625, 1
        %v628 = vsel %vm568, %v623, %v627
        %v630 = vshrl.u32 %v493, 16
        %v632 = vshll.u32 %v493, 16
        %v634 = vrot.slane %v632, 1
        %v635 = vor.u32 %v630, %v634
        %v637 = vshll.u32 %v557, 16
        %v639 = vrot.slane %v637, 1
        %v640 = vsel %vm568, %v635, %v639
        %v642 = vshrl.u32 %v494, 16
        %v644 = vshll.u32 %v494, 16
        %v646 = vrot.slane %v644, 1
        %v647 = vor.u32 %v642, %v646
        %v649 = vshll.u32 %v558, 16
        %v651 = vrot.slane %v649, 1
        %v652 = vsel %vm568, %v647, %v651
        %v654 = vshrl.u32 %v495, 16
        %v656 = vshll.u32 %v495, 16
        %v658 = vrot.slane %v656, 1
        %v659 = vor.u32 %v654, %v658
        %v661 = vshll.u32 %v559, 16
        %v663 = vrot.slane %v661, 1
        %v664 = vsel %vm568, %v659, %v663
        %v666 = vshrl.u32 %v496, 16
        %v668 = vshll.u32 %v496, 16
        %v670 = vrot.slane %v668, 1
        %v671 = vor.u32 %v666, %v670
        %v673 = vshll.u32 %v560, 16
        %v675 = vrot.slane %v673, 1
        %v676 = vsel %vm568, %v671, %v675
        %v678 = vshrl.u32 %v497, 16
        %v680 = vshll.u32 %v497, 16
        %v682 = vrot.slane %v680, 1
        %v683 = vor.u32 %v678, %v682
        %v685 = vshll.u32 %v561, 16
        %v687 = vrot.slane %v685, 1
        %v688 = vsel %vm568, %v683, %v687
        %v690 = vshrl.u32 %v498, 16
        %v692 = vshll.u32 %v498, 16
        %v694 = vrot.slane %v692, 1
        %v695 = vor.u32 %v690, %v694
        %v697 = vshll.u32 %v562, 16
        %v699 = vrot.slane %v697, 1
        %v700 = vsel %vm568, %v695, %v699
        %v702 = vshrl.u32 %v499, 16
        %v704 = vshll.u32 %v499, 16
        %v706 = vrot.slane %v704, 1
        %v707 = vor.u32 %v702, %v706
        %v709 = vshll.u32 %v563, 16
        %v711 = vrot.slane %v709, 1
        %v712 = vsel %vm568, %v707, %v711
        %v714 = vshrl.u32 %v500, 16
        %v716 = vshll.u32 %v500, 16
        %v718 = vrot.slane %v716, 1
        %v719 = vor.u32 %v714, %v718
        %v721 = vshll.u32 %v564, 16
        %v723 = vrot.slane %v721, 1
        %v724 = vsel %vm568, %v719, %v723
        %v726 = vshrl.u32 %v501, 16
        %v728 = vshll.u32 %v501, 16
        %v730 = vrot.slane %v728, 1
        %v731 = vor.u32 %v726, %v730
        %v733 = vshll.u32 %v565, 16
        %v735 = vrot.slane %v733, 1
        %v736 = vsel %vm568, %v731, %v735
        %v738 = vshrl.u32 %v502, 16
        %v740 = vshll.u32 %v502, 16
        %v742 = vrot.slane %v740, 1
        %v743 = vor.u32 %v738, %v742
        %v745 = vshll.u32 %v566, 16
        %v747 = vrot.slane %v745, 1
        %v748 = vsel %vm568, %v743, %v747
        %v750 = vshrl.u32 %v503, 16
        %v752 = vshll.u32 %v503, 16
        %v754 = vrot.slane %v752, 1
        %v755 = vor.u32 %v750, %v754
        %v757 = vshll.u32 %v567, 16
        %v759 = vrot.slane %v757, 1
        %v760 = vsel %vm568, %v755, %v759
        %v793 = vunpack.c.l.b16 %v408
        %v794 = vunpack.c.l.b16 %v409
        %v795 = vunpack.c.l.b16 %v410
        %v796 = vunpack.c.l.b16 %v411
        %v797 = vunpack.c.l.b16 %v412
        %v798 = vunpack.c.l.b16 %v413
        %v799 = vunpack.c.l.b16 %v414
        %v800 = vunpack.c.l.b16 %v415
        %v801 = vunpack.c.l.b16 %v416
        %v802 = vunpack.c.l.b16 %v417
        %v803 = vunpack.c.l.b16 %v418
        %v804 = vunpack.c.l.b16 %v419
        %v805 = vunpack.c.l.b16 %v420
        %v806 = vunpack.c.l.b16 %v421
        %v807 = vunpack.c.l.b16 %v422
        %v808 = vunpack.c.l.b16 %v423
        %v809 = vpack.c.b16 %v457, %v793
        %v810 = vpack.c.b16 %v459, %v794
        %v811 = vpack.c.b16 %v461, %v795
        %v812 = vpack.c.b16 %v463, %v796
        %v813 = vpack.c.b16 %v465, %v797
        %v814 = vpack.c.b16 %v467, %v798
        %v815 = vpack.c.b16 %v469, %v799
        %v816 = vpack.c.b16 %v471, %v800
        %v817 = vpack.c.b16 %v473, %v801
        %v818 = vpack.c.b16 %v475, %v802
        %v819 = vpack.c.b16 %v477, %v803
        %v820 = vpack.c.b16 %v479, %v804
        %v821 = vpack.c.b16 %v481, %v805
        %v822 = vpack.c.b16 %v483, %v806
        %v823 = vpack.c.b16 %v485, %v807
        %v824 = vpack.c.b16 %v487, %v808
        %vm825 = vcmask 1046528
        %v826 = vrot.slane %v809, 1
        %v827 = vrot.slane %v552, 1
        %v828 = vsel %vm825, %v826, %v827
        %v829 = vrot.slane %v810, 1
        %v830 = vrot.slane %v553, 1
        %v831 = vsel %vm825, %v829, %v830
        %v832 = vrot.slane %v811, 1
        %v833 = vrot.slane %v554, 1
        %v834 = vsel %vm825, %v832, %v833
        %v835 = vrot.slane %v812, 1
        %v836 = vrot.slane %v555, 1
        %v837 = vsel %vm825, %v835, %v836
        %v838 = vrot.slane %v813, 1
        %v839 = vrot.slane %v556, 1
        %v840 = vsel %vm825, %v838, %v839
        %v841 = vrot.slane %v814, 1
        %v842 = vrot.slane %v557, 1
        %v843 = vsel %vm825, %v841, %v842
        %v844 = vrot.slane %v815, 1
        %v845 = vrot.slane %v558, 1
        %v846 = vsel %vm825, %v844, %v845
        %v847 = vrot.slane %v816, 1
        %v848 = vrot.slane %v559, 1
        %v849 = vsel %vm825, %v847, %v848
        %v850 = vrot.slane %v817, 1
        %v851 = vrot.slane %v560, 1
        %v852 = vsel %vm825, %v850, %v851
        %v853 = vrot.slane %v818, 1
        %v854 = vrot.slane %v561, 1
        %v855 = vsel %vm825, %v853, %v854
        %v856 = vrot.slane %v819, 1
        %v857 = vrot.slane %v562, 1
        %v858 = vsel %vm825, %v856, %v857
        %v859 = vrot.slane %v820, 1
        %v860 = vrot.slane %v563, 1
        %v861 = vsel %vm825, %v859, %v860
        %v862 = vrot.slane %v821, 1
        %v863 = vrot.slane %v564, 1
        %v864 = vsel %vm825, %v862, %v863
        %v865 = vrot.slane %v822, 1
        %v866 = vrot.slane %v565, 1
        %v867 = vsel %vm825, %v865, %v866
        %v868 = vrot.slane %v823, 1
        %v869 = vrot.slane %v566, 1
        %v870 = vsel %vm825, %v868, %v869
        %v871 = vrot.slane %v824, 1
        %v872 = vrot.slane %v567, 1
        %v873 = vsel %vm825, %v871, %v872
        %v890 = vld [vmem:[%s1] sm:$0xf]
        %v891 = vld [vmem:[%s1 + $0x4] sm:$0xf]
        %v892 = vld [vmem:[%s1 + $0x8] sm:$0xf]
        %v893 = vld [vmem:[%s1 + $0xc] sm:$0xf]
        %v894 = vld [vmem:[%s1 + $0x10] sm:$0xf]
        %v895 = vld [vmem:[%s1 + $0x14] sm:$0xf]
        %v896 = vld [vmem:[%s1 + $0x18] sm:$0xf]
        %v897 = vld [vmem:[%s1 + $0x1c] sm:$0xf]
        %v898 = vld [vmem:[%s1 + $0x20] sm:$0xf]
        %v899 = vld [vmem:[%s1 + $0x24] sm:$0xf]
        %v900 = vld [vmem:[%s1 + $0x28] sm:$0xf]
        %v901 = vld [vmem:[%s1 + $0x2c] sm:$0xf]
        %v902 = vld [vmem:[%s1 + $0x30] sm:$0xf]
        %v903 = vld [vmem:[%s1 + $0x34] sm:$0xf]
        %v904 = vld [vmem:[%s1 + $0x38] sm:$0xf]
        %v905 = vld [vmem:[%s1 + $0x3c] sm:$0xf]
        %v906 = vld [vmem:[%s1 + $0x40] sm:$0xf]
        %v907 = vld [vmem:[%s1 + $0x44] sm:$0xf]
        %v908 = vld [vmem:[%s1 + $0x48] sm:$0xf]
        %v909 = vld [vmem:[%s1 + $0x4c] sm:$0xf]
        %v910 = vld [vmem:[%s1 + $0x50] sm:$0xf]
        %v911 = vld [vmem:[%s1 + $0x54] sm:$0xf]
        %v912 = vld [vmem:[%s1 + $0x58] sm:$0xf]
        %v913 = vld [vmem:[%s1 + $0x5c] sm:$0xf]
        %v914 = vld [vmem:[%s1 + $0x60] sm:$0xf]
        %v915 = vld [vmem:[%s1 + $0x64] sm:$0xf]
        %v916 = vld [vmem:[%s1 + $0x68] sm:$0xf]
        %v917 = vld [vmem:[%s1 + $0x6c] sm:$0xf]
        %v918 = vld [vmem:[%s1 + $0x70] sm:$0xf]
        %v919 = vld [vmem:[%s1 + $0x74] sm:$0xf]
        %v920 = vld [vmem:[%s1 + $0x78] sm:$0xf]
        %v921 = vld [vmem:[%s1 + $0x7c] sm:$0xf]
        %v922 = vld [vmem:[%s1 + $0x80] sm:$0xf]
        %v923 = vld [vmem:[%s1 + $0x84] sm:$0xf]
        %v924 = vld [vmem:[%s1 + $0x88] sm:$0xf]
        %v925 = vld [vmem:[%s1 + $0x8c] sm:$0xf]
        %v926 = vld [vmem:[%s1 + $0x90] sm:$0xf]
        %v927 = vld [vmem:[%s1 + $0x94] sm:$0xf]
        %v928 = vld [vmem:[%s1 + $0x98] sm:$0xf]
        %v929 = vld [vmem:[%s1 + $0x9c] sm:$0xf]
        %v930 = vld [vmem:[%s1 + $0xa0] sm:$0xf]
        %v931 = vld [vmem:[%s1 + $0xa4] sm:$0xf]
        %v932 = vld [vmem:[%s1 + $0xa8] sm:$0xf]
        %v933 = vld [vmem:[%s1 + $0xac] sm:$0xf]
        %v934 = vld [vmem:[%s1 + $0xb0] sm:$0xf]
        %v935 = vld [vmem:[%s1 + $0xb4] sm:$0xf]
        %v936 = vld [vmem:[%s1 + $0xb8] sm:$0xf]
        %v937 = vld [vmem:[%s1 + $0xbc] sm:$0xf]
        %s938 = scalar_lea.vmem %s237, 12
        %v939 = vld [vmem:[%s938] sm:$0xf]
        %v940 = vld [vmem:[%s938 + $0x4] sm:$0xf]
        %v941 = vld [vmem:[%s938 + $0xc] sm:$0xf]
        %v942 = vld [vmem:[%s938 + $0x10] sm:$0xf]
        %v943 = vld [vmem:[%s938 + $0x18] sm:$0xf]
        %v944 = vld [vmem:[%s938 + $0x1c] sm:$0xf]
        %v945 = vld [vmem:[%s938 + $0x24] sm:$0xf]
        %v946 = vld [vmem:[%s938 + $0x28] sm:$0xf]
        %v947 = vld [vmem:[%s938 + $0x30] sm:$0xf]
        %v948 = vld [vmem:[%s938 + $0x34] sm:$0xf]
        %v949 = vld [vmem:[%s938 + $0x3c] sm:$0xf]
        %v950 = vld [vmem:[%s938 + $0x40] sm:$0xf]
        %v951 = vld [vmem:[%s938 + $0x48] sm:$0xf]
        %v952 = vld [vmem:[%s938 + $0x4c] sm:$0xf]
        %v953 = vld [vmem:[%s938 + $0x54] sm:$0xf]
        %v954 = vld [vmem:[%s938 + $0x58] sm:$0xf]
        %v955 = vld [vmem:[%s938 + $0x60] sm:$0xf]
        %v956 = vld [vmem:[%s938 + $0x64] sm:$0xf]
        %v957 = vld [vmem:[%s938 + $0x6c] sm:$0xf]
        %v958 = vld [vmem:[%s938 + $0x70] sm:$0xf]
        %v959 = vld [vmem:[%s938 + $0x78] sm:$0xf]
        %v960 = vld [vmem:[%s938 + $0x7c] sm:$0xf]
        %v961 = vld [vmem:[%s938 + $0x84] sm:$0xf]
        %v962 = vld [vmem:[%s938 + $0x88] sm:$0xf]
        %v963 = vld [vmem:[%s938 + $0x90] sm:$0xf]
        %v964 = vld [vmem:[%s938 + $0x94] sm:$0xf]
        %v965 = vld [vmem:[%s938 + $0x9c] sm:$0xf]
        %v966 = vld [vmem:[%s938 + $0xa0] sm:$0xf]
        %v967 = vld [vmem:[%s938 + $0xa8] sm:$0xf]
        %v968 = vld [vmem:[%s938 + $0xac] sm:$0xf]
        %v969 = vld [vmem:[%s938 + $0xb4] sm:$0xf]
        %v970 = vld [vmem:[%s938 + $0xb8] sm:$0xf]
        %v971 = vld [vmem:[%s938 + $0x8] sm:$0x1]
        %v972 = vld [vmem:[%s938 + $0x14] sm:$0x1]
        %v973 = vld [vmem:[%s938 + $0x20] sm:$0x1]
        %v974 = vld [vmem:[%s938 + $0x2c] sm:$0x1]
        %v975 = vld [vmem:[%s938 + $0x38] sm:$0x1]
        %v976 = vld [vmem:[%s938 + $0x44] sm:$0x1]
        %v977 = vld [vmem:[%s938 + $0x50] sm:$0x1]
        %v978 = vld [vmem:[%s938 + $0x5c] sm:$0x1]
        %v979 = vld [vmem:[%s938 + $0x68] sm:$0x1]
        %v980 = vld [vmem:[%s938 + $0x74] sm:$0x1]
        %v981 = vld [vmem:[%s938 + $0x80] sm:$0x1]
        %v982 = vld [vmem:[%s938 + $0x8c] sm:$0x1]
        %v983 = vld [vmem:[%s938 + $0x98] sm:$0x1]
        %v984 = vld [vmem:[%s938 + $0xa4] sm:$0x1]
        %v985 = vld [vmem:[%s938 + $0xb0] sm:$0x1]
        %v986 = vld [vmem:[%s938 + $0xbc] sm:$0x1]
        %v987 = vld [vmem:[%s938] sm:$0xe]
        %v988 = vld [vmem:[%s938 + $0xc] sm:$0xe]
        %v989 = vld [vmem:[%s938 + $0x18] sm:$0xe]
        %v990 = vld [vmem:[%s938 + $0x24] sm:$0xe]
        %v991 = vld [vmem:[%s938 + $0x30] sm:$0xe]
        %v992 = vld [vmem:[%s938 + $0x3c] sm:$0xe]
        %v993 = vld [vmem:[%s938 + $0x48] sm:$0xe]
        %v994 = vld [vmem:[%s938 + $0x54] sm:$0xe]
        %v995 = vld [vmem:[%s938 + $0x60] sm:$0xe]
        %v996 = vld [vmem:[%s938 + $0x6c] sm:$0xe]
        %v997 = vld [vmem:[%s938 + $0x78] sm:$0xe]
        %v998 = vld [vmem:[%s938 + $0x84] sm:$0xe]
        %v999 = vld [vmem:[%s938 + $0x90] sm:$0xe]
        %v1000 = vld [vmem:[%s938 + $0x9c] sm:$0xe]
        %v1001 = vld [vmem:[%s938 + $0xa8] sm:$0xe]
        %v1002 = vld [vmem:[%s938 + $0xb4] sm:$0xe]
        %v1035 = vunpack.c.l.b16 %v939
        %v1036 = vunpack.c.l.b16 %v940
        %v1037 = vunpack.c.l.b16 %v941
        %v1038 = vunpack.c.l.b16 %v942
        %v1039 = vunpack.c.l.b16 %v943
        %v1040 = vunpack.c.l.b16 %v944
        %v1041 = vunpack.c.l.b16 %v945
        %v1042 = vunpack.c.l.b16 %v946
        %v1043 = vunpack.c.l.b16 %v947
        %v1044 = vunpack.c.l.b16 %v948
        %v1045 = vunpack.c.l.b16 %v949
        %v1046 = vunpack.c.l.b16 %v950
        %v1047 = vunpack.c.l.b16 %v951
        %v1048 = vunpack.c.l.b16 %v952
        %v1049 = vunpack.c.l.b16 %v953
        %v1050 = vunpack.c.l.b16 %v954
        %v1051 = vunpack.c.l.b16 %v955
        %v1052 = vunpack.c.l.b16 %v956
        %v1053 = vunpack.c.l.b16 %v957
        %v1054 = vunpack.c.l.b16 %v958
        %v1055 = vunpack.c.l.b16 %v959
        %v1056 = vunpack.c.l.b16 %v960
        %v1057 = vunpack.c.l.b16 %v961
        %v1058 = vunpack.c.l.b16 %v962
        %v1059 = vunpack.c.l.b16 %v963
        %v1060 = vunpack.c.l.b16 %v964
        %v1061 = vunpack.c.l.b16 %v965
        %v1062 = vunpack.c.l.b16 %v966
        %v1063 = vunpack.c.l.b16 %v967
        %v1064 = vunpack.c.l.b16 %v968
        %v1065 = vunpack.c.l.b16 %v969
        %v1066 = vunpack.c.l.b16 %v970
        %v1067 = vpack.c.b16 %v1036, %v1035
        %v1068 = vpack.c.b16 %v1038, %v1037
        %v1069 = vpack.c.b16 %v1040, %v1039
        %v1070 = vpack.c.b16 %v1042, %v1041
        %v1071 = vpack.c.b16 %v1044, %v1043
        %v1072 = vpack.c.b16 %v1046, %v1045
        %v1073 = vpack.c.b16 %v1048, %v1047
        %v1074 = vpack.c.b16 %v1050, %v1049
        %v1075 = vpack.c.b16 %v1052, %v1051
        %v1076 = vpack.c.b16 %v1054, %v1053
        %v1077 = vpack.c.b16 %v1056, %v1055
        %v1078 = vpack.c.b16 %v1058, %v1057
        %v1079 = vpack.c.b16 %v1060, %v1059
        %v1080 = vpack.c.b16 %v1062, %v1061
        %v1081 = vpack.c.b16 %v1064, %v1063
        %v1082 = vpack.c.b16 %v1066, %v1065
        %v1115 = vunpack.c.l.b16 %v971
        %v1116 = vunpack.c.l.b16 %v972
        %v1117 = vunpack.c.l.b16 %v973
        %v1118 = vunpack.c.l.b16 %v974
        %v1119 = vunpack.c.l.b16 %v975
        %v1120 = vunpack.c.l.b16 %v976
        %v1121 = vunpack.c.l.b16 %v977
        %v1122 = vunpack.c.l.b16 %v978
        %v1123 = vunpack.c.l.b16 %v979
        %v1124 = vunpack.c.l.b16 %v980
        %v1125 = vunpack.c.l.b16 %v981
        %v1126 = vunpack.c.l.b16 %v982
        %v1127 = vunpack.c.l.b16 %v983
        %v1128 = vunpack.c.l.b16 %v984
        %v1129 = vunpack.c.l.b16 %v985
        %v1130 = vunpack.c.l.b16 %v986
        %v1131 = vpack.c.b16 %v1115, %v1115
        %v1132 = vpack.c.b16 %v1116, %v1116
        %v1133 = vpack.c.b16 %v1117, %v1117
        %v1134 = vpack.c.b16 %v1118, %v1118
        %v1135 = vpack.c.b16 %v1119, %v1119
        %v1136 = vpack.c.b16 %v1120, %v1120
        %v1137 = vpack.c.b16 %v1121, %v1121
        %v1138 = vpack.c.b16 %v1122, %v1122
        %v1139 = vpack.c.b16 %v1123, %v1123
        %v1140 = vpack.c.b16 %v1124, %v1124
        %v1141 = vpack.c.b16 %v1125, %v1125
        %v1142 = vpack.c.b16 %v1126, %v1126
        %v1143 = vpack.c.b16 %v1127, %v1127
        %v1144 = vpack.c.b16 %v1128, %v1128
        %v1145 = vpack.c.b16 %v1129, %v1129
        %v1146 = vpack.c.b16 %v1130, %v1130
        %v1148 = vshrl.u32 %v1067, 16
        %v1150 = vshll.u32 %v1067, 16
        %v1152 = vrot.slane %v1150, 1
        %v1153 = vor.u32 %v1148, %v1152
        %v1155 = vshll.u32 %v1131, 16
        %v1157 = vrot.slane %v1155, 1
        %v1158 = vsel %vm568, %v1153, %v1157
        %v1160 = vshrl.u32 %v1068, 16
        %v1162 = vshll.u32 %v1068, 16
        %v1164 = vrot.slane %v1162, 1
        %v1165 = vor.u32 %v1160, %v1164
        %v1167 = vshll.u32 %v1132, 16
        %v1169 = vrot.slane %v1167, 1
        %v1170 = vsel %vm568, %v1165, %v1169
        %v1172 = vshrl.u32 %v1069, 16
        %v1174 = vshll.u32 %v1069, 16
        %v1176 = vrot.slane %v1174, 1
        %v1177 = vor.u32 %v1172, %v1176
        %v1179 = vshll.u32 %v1133, 16
        %v1181 = vrot.slane %v1179, 1
        %v1182 = vsel %vm568, %v1177, %v1181
        %v1184 = vshrl.u32 %v1070, 16
        %v1186 = vshll.u32 %v1070, 16
        %v1188 = vrot.slane %v1186, 1
        %v1189 = vor.u32 %v1184, %v1188
        %v1191 = vshll.u32 %v1134, 16
        %v1193 = vrot.slane %v1191, 1
        %v1194 = vsel %vm568, %v1189, %v1193
        %v1196 = vshrl.u32 %v1071, 16
        %v1198 = vshll.u32 %v1071, 16
        %v1200 = vrot.slane %v1198, 1
        %v1201 = vor.u32 %v1196, %v1200
        %v1203 = vshll.u32 %v1135, 16
        %v1205 = vrot.slane %v1203, 1
        %v1206 = vsel %vm568, %v1201, %v1205
        %v1208 = vshrl.u32 %v1072, 16
        %v1210 = vshll.u32 %v1072, 16
        %v1212 = vrot.slane %v1210, 1
        %v1213 = vor.u32 %v1208, %v1212
        %v1215 = vshll.u32 %v1136, 16
        %v1217 = vrot.slane %v1215, 1
        %v1218 = vsel %vm568, %v1213, %v1217
        %v1220 = vshrl.u32 %v1073, 16
        %v1222 = vshll.u32 %v1073, 16
        %v1224 = vrot.slane %v1222, 1
        %v1225 = vor.u32 %v1220, %v1224
        %v1227 = vshll.u32 %v1137, 16
        %v1229 = vrot.slane %v1227, 1
        %v1230 = vsel %vm568, %v1225, %v1229
        %v1232 = vshrl.u32 %v1074, 16
        %v1234 = vshll.u32 %v1074, 16
        %v1236 = vrot.slane %v1234, 1
        %v1237 = vor.u32 %v1232, %v1236
        %v1239 = vshll.u32 %v1138, 16
        %v1241 = vrot.slane %v1239, 1
        %v1242 = vsel %vm568, %v1237, %v1241
        %v1244 = vshrl.u32 %v1075, 16
        %v1246 = vshll.u32 %v1075, 16
        %v1248 = vrot.slane %v1246, 1
        %v1249 = vor.u32 %v1244, %v1248
        %v1251 = vshll.u32 %v1139, 16
        %v1253 = vrot.slane %v1251, 1
        %v1254 = vsel %vm568, %v1249, %v1253
        %v1256 = vshrl.u32 %v1076, 16
        %v1258 = vshll.u32 %v1076, 16
        %v1260 = vrot.slane %v1258, 1
        %v1261 = vor.u32 %v1256, %v1260
        %v1263 = vshll.u32 %v1140, 16
        %v1265 = vrot.slane %v1263, 1
        %v1266 = vsel %vm568, %v1261, %v1265
        %v1268 = vshrl.u32 %v1077, 16
        %v1270 = vshll.u32 %v1077, 16
        %v1272 = vrot.slane %v1270, 1
        %v1273 = vor.u32 %v1268, %v1272
        %v1275 = vshll.u32 %v1141, 16
        %v1277 = vrot.slane %v1275, 1
        %v1278 = vsel %vm568, %v1273, %v1277
        %v1280 = vshrl.u32 %v1078, 16
        %v1282 = vshll.u32 %v1078, 16
        %v1284 = vrot.slane %v1282, 1
        %v1285 = vor.u32 %v1280, %v1284
        %v1287 = vshll.u32 %v1142, 16
        %v1289 = vrot.slane %v1287, 1
        %v1290 = vsel %vm568, %v1285, %v1289
        %v1292 = vshrl.u32 %v1079, 16
        %v1294 = vshll.u32 %v1079, 16
        %v1296 = vrot.slane %v1294, 1
        %v1297 = vor.u32 %v1292, %v1296
        %v1299 = vshll.u32 %v1143, 16
        %v1301 = vrot.slane %v1299, 1
        %v1302 = vsel %vm568, %v1297, %v1301
        %v1304 = vshrl.u32 %v1080, 16
        %v1306 = vshll.u32 %v1080, 16
        %v1308 = vrot.slane %v1306, 1
        %v1309 = vor.u32 %v1304, %v1308
        %v1311 = vshll.u32 %v1144, 16
        %v1313 = vrot.slane %v1311, 1
        %v1314 = vsel %vm568, %v1309, %v1313
        %v1316 = vshrl.u32 %v1081, 16
        %v1318 = vshll.u32 %v1081, 16
        %v1320 = vrot.slane %v1318, 1
        %v1321 = vor.u32 %v1316, %v1320
        %v1323 = vshll.u32 %v1145, 16
        %v1325 = vrot.slane %v1323, 1
        %v1326 = vsel %vm568, %v1321, %v1325
        %v1328 = vshrl.u32 %v1082, 16
        %v1330 = vshll.u32 %v1082, 16
        %v1332 = vrot.slane %v1330, 1
        %v1333 = vor.u32 %v1328, %v1332
        %v1335 = vshll.u32 %v1146, 16
        %v1337 = vrot.slane %v1335, 1
        %v1338 = vsel %vm568, %v1333, %v1337
        %v1371 = vunpack.c.l.b16 %v987
        %v1372 = vunpack.c.l.b16 %v988
        %v1373 = vunpack.c.l.b16 %v989
        %v1374 = vunpack.c.l.b16 %v990
        %v1375 = vunpack.c.l.b16 %v991
        %v1376 = vunpack.c.l.b16 %v992
        %v1377 = vunpack.c.l.b16 %v993
        %v1378 = vunpack.c.l.b16 %v994
        %v1379 = vunpack.c.l.b16 %v995
        %v1380 = vunpack.c.l.b16 %v996
        %v1381 = vunpack.c.l.b16 %v997
        %v1382 = vunpack.c.l.b16 %v998
        %v1383 = vunpack.c.l.b16 %v999
        %v1384 = vunpack.c.l.b16 %v1000
        %v1385 = vunpack.c.l.b16 %v1001
        %v1386 = vunpack.c.l.b16 %v1002
        %v1387 = vpack.c.b16 %v1036, %v1371
        %v1388 = vpack.c.b16 %v1038, %v1372
        %v1389 = vpack.c.b16 %v1040, %v1373
        %v1390 = vpack.c.b16 %v1042, %v1374
        %v1391 = vpack.c.b16 %v1044, %v1375
        %v1392 = vpack.c.b16 %v1046, %v1376
        %v1393 = vpack.c.b16 %v1048, %v1377
        %v1394 = vpack.c.b16 %v1050, %v1378
        %v1395 = vpack.c.b16 %v1052, %v1379
        %v1396 = vpack.c.b16 %v1054, %v1380
        %v1397 = vpack.c.b16 %v1056, %v1381
        %v1398 = vpack.c.b16 %v1058, %v1382
        %v1399 = vpack.c.b16 %v1060, %v1383
        %v1400 = vpack.c.b16 %v1062, %v1384
        %v1401 = vpack.c.b16 %v1064, %v1385
        %v1402 = vpack.c.b16 %v1066, %v1386
        %v1403 = vrot.slane %v1387, 1
        %v1404 = vrot.slane %v1131, 1
        %v1405 = vsel %vm825, %v1403, %v1404
        %v1406 = vrot.slane %v1388, 1
        %v1407 = vrot.slane %v1132, 1
        %v1408 = vsel %vm825, %v1406, %v1407
        %v1409 = vrot.slane %v1389, 1
        %v1410 = vrot.slane %v1133, 1
        %v1411 = vsel %vm825, %v1409, %v1410
        %v1412 = vrot.slane %v1390, 1
        %v1413 = vrot.slane %v1134, 1
        %v1414 = vsel %vm825, %v1412, %v1413
        %v1415 = vrot.slane %v1391, 1
        %v1416 = vrot.slane %v1135, 1
        %v1417 = vsel %vm825, %v1415, %v1416
        %v1418 = vrot.slane %v1392, 1
        %v1419 = vrot.slane %v1136, 1
        %v1420 = vsel %vm825, %v1418, %v1419
        %v1421 = vrot.slane %v1393, 1
        %v1422 = vrot.slane %v1137, 1
        %v1423 = vsel %vm825, %v1421, %v1422
        %v1424 = vrot.slane %v1394, 1
        %v1425 = vrot.slane %v1138, 1
        %v1426 = vsel %vm825, %v1424, %v1425
        %v1427 = vrot.slane %v1395, 1
        %v1428 = vrot.slane %v1139, 1
        %v1429 = vsel %vm825, %v1427, %v1428
        %v1430 = vrot.slane %v1396, 1
        %v1431 = vrot.slane %v1140, 1
        %v1432 = vsel %vm825, %v1430, %v1431
        %v1433 = vrot.slane %v1397, 1
        %v1434 = vrot.slane %v1141, 1
        %v1435 = vsel %vm825, %v1433, %v1434
        %v1436 = vrot.slane %v1398, 1
        %v1437 = vrot.slane %v1142, 1
        %v1438 = vsel %vm825, %v1436, %v1437
        %v1439 = vrot.slane %v1399, 1
        %v1440 = vrot.slane %v1143, 1
        %v1441 = vsel %vm825, %v1439, %v1440
        %v1442 = vrot.slane %v1400, 1
        %v1443 = vrot.slane %v1144, 1
        %v1444 = vsel %vm825, %v1442, %v1443
        %v1445 = vrot.slane %v1401, 1
        %v1446 = vrot.slane %v1145, 1
        %v1447 = vsel %vm825, %v1445, %v1446
        %v1448 = vrot.slane %v1402, 1
        %v1449 = vrot.slane %v1146, 1
        %v1450 = vsel %vm825, %v1448, %v1449
        %s1467 = scalar_lea.vmem %s1, 192
        %v1468 = vld [vmem:[%s1467] sm:$0xf]
        %v1469 = vld [vmem:[%s1467 + $0x4] sm:$0xf]
        %v1470 = vld [vmem:[%s1467 + $0x8] sm:$0xf]
        %v1471 = vld [vmem:[%s1467 + $0xc] sm:$0xf]
        %v1472 = vld [vmem:[%s1467 + $0x10] sm:$0xf]
        %v1473 = vld [vmem:[%s1467 + $0x14] sm:$0xf]
        %v1474 = vld [vmem:[%s1467 + $0x18] sm:$0xf]
        %v1475 = vld [vmem:[%s1467 + $0x1c] sm:$0xf]
        %v1476 = vld [vmem:[%s1467 + $0x20] sm:$0xf]
        %v1477 = vld [vmem:[%s1467 + $0x24] sm:$0xf]
        %v1478 = vld [vmem:[%s1467 + $0x28] sm:$0xf]
        %v1479 = vld [vmem:[%s1467 + $0x2c] sm:$0xf]
        %v1480 = vld [vmem:[%s1467 + $0x30] sm:$0xf]
        %v1481 = vld [vmem:[%s1467 + $0x34] sm:$0xf]
        %v1482 = vld [vmem:[%s1467 + $0x38] sm:$0xf]
        %v1483 = vld [vmem:[%s1467 + $0x3c] sm:$0xf]
        %v1484 = vld [vmem:[%s1467 + $0x40] sm:$0xf]
        %v1485 = vld [vmem:[%s1467 + $0x44] sm:$0xf]
        %v1486 = vld [vmem:[%s1467 + $0x48] sm:$0xf]
        %v1487 = vld [vmem:[%s1467 + $0x4c] sm:$0xf]
        %v1488 = vld [vmem:[%s1467 + $0x50] sm:$0xf]
        %v1489 = vld [vmem:[%s1467 + $0x54] sm:$0xf]
        %v1490 = vld [vmem:[%s1467 + $0x58] sm:$0xf]
        %v1491 = vld [vmem:[%s1467 + $0x5c] sm:$0xf]
        %v1492 = vld [vmem:[%s1467 + $0x60] sm:$0xf]
        %v1493 = vld [vmem:[%s1467 + $0x64] sm:$0xf]
        %v1494 = vld [vmem:[%s1467 + $0x68] sm:$0xf]
        %v1495 = vld [vmem:[%s1467 + $0x6c] sm:$0xf]
        %v1496 = vld [vmem:[%s1467 + $0x70] sm:$0xf]
        %v1497 = vld [vmem:[%s1467 + $0x74] sm:$0xf]
        %v1498 = vld [vmem:[%s1467 + $0x78] sm:$0xf]
        %v1499 = vld [vmem:[%s1467 + $0x7c] sm:$0xf]
        %v1500 = vld [vmem:[%s1467 + $0x80] sm:$0xf]
        %v1501 = vld [vmem:[%s1467 + $0x84] sm:$0xf]
        %v1502 = vld [vmem:[%s1467 + $0x88] sm:$0xf]
        %v1503 = vld [vmem:[%s1467 + $0x8c] sm:$0xf]
        %v1504 = vld [vmem:[%s1467 + $0x90] sm:$0xf]
        %v1505 = vld [vmem:[%s1467 + $0x94] sm:$0xf]
        %v1506 = vld [vmem:[%s1467 + $0x98] sm:$0xf]
        %v1507 = vld [vmem:[%s1467 + $0x9c] sm:$0xf]
        %v1508 = vld [vmem:[%s1467 + $0xa0] sm:$0xf]
        %v1509 = vld [vmem:[%s1467 + $0xa4] sm:$0xf]
        %v1510 = vld [vmem:[%s1467 + $0xa8] sm:$0xf]
        %v1511 = vld [vmem:[%s1467 + $0xac] sm:$0xf]
        %v1512 = vld [vmem:[%s1467 + $0xb0] sm:$0xf]
        %v1513 = vld [vmem:[%s1467 + $0xb4] sm:$0xf]
        %v1514 = vld [vmem:[%s1467 + $0xb8] sm:$0xf]
        %v1515 = vld [vmem:[%s1467 + $0xbc] sm:$0xf]
        %v1564 = vunpack.c.l.b16 %v1468
        %v1565 = vunpack.c.l.b16 %v1469
        %v1566 = vunpack.c.l.b16 %v1470
        %v1567 = vunpack.c.l.b16 %v1471
        %v1568 = vunpack.c.l.b16 %v1472
        %v1569 = vunpack.c.l.b16 %v1473
        %v1570 = vunpack.c.l.b16 %v1474
        %v1571 = vunpack.c.l.b16 %v1475
        %v1572 = vunpack.c.l.b16 %v1476
        %v1573 = vunpack.c.l.b16 %v1477
        %v1574 = vunpack.c.l.b16 %v1478
        %v1575 = vunpack.c.l.b16 %v1479
        %v1576 = vunpack.c.l.b16 %v1480
        %v1577 = vunpack.c.l.b16 %v1481
        %v1578 = vunpack.c.l.b16 %v1482
        %v1579 = vunpack.c.l.b16 %v1483
        %v1580 = vunpack.c.l.b16 %v1484
        %v1581 = vunpack.c.l.b16 %v1485
        %v1582 = vunpack.c.l.b16 %v1486
        %v1583 = vunpack.c.l.b16 %v1487
        %v1584 = vunpack.c.l.b16 %v1488
        %v1585 = vunpack.c.l.b16 %v1489
        %v1586 = vunpack.c.l.b16 %v1490
        %v1587 = vunpack.c.l.b16 %v1491
        %v1588 = vunpack.c.l.b16 %v1492
        %v1589 = vunpack.c.l.b16 %v1493
        %v1590 = vunpack.c.l.b16 %v1494
        %v1591 = vunpack.c.l.b16 %v1495
        %v1592 = vunpack.c.l.b16 %v1496
        %v1593 = vunpack.c.l.b16 %v1497
        %v1594 = vunpack.c.l.b16 %v1498
        %v1595 = vunpack.c.l.b16 %v1499
        %v1596 = vunpack.c.l.b16 %v1500
        %v1597 = vunpack.c.l.b16 %v1501
        %v1598 = vunpack.c.l.b16 %v1502
        %v1599 = vunpack.c.l.b16 %v1503
        %v1600 = vunpack.c.l.b16 %v1504
        %v1601 = vunpack.c.l.b16 %v1505
        %v1602 = vunpack.c.l.b16 %v1506
        %v1603 = vunpack.c.l.b16 %v1507
        %v1604 = vunpack.c.l.b16 %v1508
        %v1605 = vunpack.c.l.b16 %v1509
        %v1606 = vunpack.c.l.b16 %v1510
        %v1607 = vunpack.c.l.b16 %v1511
        %v1608 = vunpack.c.l.b16 %v1512
        %v1609 = vunpack.c.l.b16 %v1513
        %v1610 = vunpack.c.l.b16 %v1514
        %v1611 = vunpack.c.l.b16 %v1515
        %v1612 = vpack.c.b16 %v1565, %v1564
        %v1613 = vpack.c.b16 %v1567, %v1566
        %v1614 = vpack.c.b16 %v1569, %v1568
        %v1615 = vpack.c.b16 %v1571, %v1570
        %v1616 = vpack.c.b16 %v1573, %v1572
        %v1617 = vpack.c.b16 %v1575, %v1574
        %v1618 = vpack.c.b16 %v1577, %v1576
        %v1619 = vpack.c.b16 %v1579, %v1578
        %v1620 = vpack.c.b16 %v1581, %v1580
        %v1621 = vpack.c.b16 %v1583, %v1582
        %v1622 = vpack.c.b16 %v1585, %v1584
        %v1623 = vpack.c.b16 %v1587, %v1586
        %v1624 = vpack.c.b16 %v1589, %v1588
        %v1625 = vpack.c.b16 %v1591, %v1590
        %v1626 = vpack.c.b16 %v1593, %v1592
        %v1627 = vpack.c.b16 %v1595, %v1594
        %v1628 = vpack.c.b16 %v1597, %v1596
        %v1629 = vpack.c.b16 %v1599, %v1598
        %v1630 = vpack.c.b16 %v1601, %v1600
        %v1631 = vpack.c.b16 %v1603, %v1602
        %v1632 = vpack.c.b16 %v1605, %v1604
        %v1633 = vpack.c.b16 %v1607, %v1606
        %v1634 = vpack.c.b16 %v1609, %v1608
        %v1635 = vpack.c.b16 %v1611, %v1610
        %1660 = vmatprep.subr.bf16.mxu0 0
        %1661 = vmatpush1.bf16.msra.mxu0 %v1612
        %1662 = vmatprep.subr.bf16.mxu0 0
        %1663 = vmatpush1.bf16.msra.mxu0 %v1613
        %1664 = vmatprep.subr.bf16.mxu0 0
        %1665 = vmatpush1.bf16.msra.mxu0 %v1614
        %1666 = vmatprep.subr.bf16.mxu0 0
        %1667 = vmatpush1.bf16.msra.mxu0 %v1615
        %1668 = vmatprep.subr.bf16.mxu0 0
        %1669 = vmatpush1.bf16.msra.mxu0 %v1616
        %1670 = vmatprep.subr.bf16.mxu0 0
        %1671 = vmatpush1.bf16.msra.mxu0 %v1617
        %1672 = vmatprep.subr.bf16.mxu0 0
        %1673 = vmatpush1.bf16.msra.mxu0 %v1618
        %1674 = vmatprep.subr.bf16.mxu0 0
        %1675 = vmatpush1.bf16.msra.mxu0 %v1619
        %1676 = vmatprep.subr.bf16.mxu0 0
        %1677 = vmatpush1.bf16.msra.mxu0 %v1620
        %1678 = vmatprep.subr.bf16.mxu0 0
        %1679 = vmatpush1.bf16.msra.mxu0 %v1621
        %1680 = vmatprep.subr.bf16.mxu0 0
        %1681 = vmatpush1.bf16.msra.mxu0 %v1622
        %1682 = vmatprep.subr.bf16.mxu0 0
        %1683 = vmatpush1.bf16.msra.mxu0 %v1623
        %1684 = vmatprep.subr.bf16.mxu0 0
        %1685 = vmatpush1.bf16.msra.mxu0 %v1624
        %1686 = vmatprep.subr.bf16.mxu0 0
        %1687 = vmatpush1.bf16.msra.mxu0 %v1625
        %1688 = vmatprep.subr.bf16.mxu0 0
        %1689 = vmatpush1.bf16.msra.mxu0 %v1626
        %1690 = vmatprep.subr.bf16.mxu0 0
        %1691 = vmatpush1.bf16.msra.mxu0 %v1627
        %1692 = vmatprep.mubr.bf16.mxu0 %v1158
        %1693 = vmatmul.mubr.bf16.gmra.mrb[0].mxu0 %v1067
        %v1694 = vpop.f32.mrb[0].mxu0
        %v1695 = vadd.f32 0.0, %v1694
        %v1696 = vpop.f32.mrb[0].mxu0
        %v1697 = vpop.f32.mrb[0].mxu0
        %v1698 = vadd.f32 0.0, %v1697
        %v1699 = vpop.f32.mrb[0].mxu0
        %1700 = vmatprep.mubr.bf16.mxu0 %v1170
        %1701 = vmatmul.mubr.bf16.gmra.mrb[0].mxu0 %v1068
        %v1702 = vpop.f32.mrb[0].mxu0
        %v1703 = vadd.f32 0.0, %v1702
        %v1704 = vpop.f32.mrb[0].mxu0
        %v1705 = vpop.f32.mrb[0].mxu0
        %v1706 = vadd.f32 0.0, %v1705
        %v1707 = vpop.f32.mrb[0].mxu0
        %1708 = vmatprep.mubr.bf16.mxu0 %v1182
        %1709 = vmatmul.mubr.bf16.gmra.mrb[0].mxu0 %v1069
        %v1710 = vpop.f32.mrb[0].mxu0
        %v1711 = vadd.f32 0.0, %v1710
        %v1712 = vpop.f32.mrb[0].mxu0
        %v1713 = vpop.f32.mrb[0].mxu0
        %v1714 = vadd.f32 0.0, %v1713
        %v1715 = vpop.f32.mrb[0].mxu0
        %1716 = vmatprep.mubr.bf16.mxu0 %v1194
        %1717 = vmatmul.mubr.bf16.gmra.mrb[0].mxu0 %v1070
        %v1718 = vpop.f32.mrb[0].mxu0
        %v1719 = vadd.f32 0.0, %v1718
        %v1720 = vpop.f32.mrb[0].mxu0
        %v1721 = vpop.f32.mrb[0].mxu0
        %v1722 = vadd.f32 0.0, %v1721
        %v1723 = vpop.f32.mrb[0].mxu0
        %1724 = vmatprep.mubr.bf16.mxu0 %v1206
        %1725 = vmatmul.mubr.bf16.gmra.mrb[0].mxu0 %v1071
        %v1726 = vpop.f32.mrb[0].mxu0
        %v1727 = vadd.f32 0.0, %v1726
        %v1728 = vpop.f32.mrb[0].mxu0
        %v1729 = vpop.f32.mrb[0].mxu0
        %v1730 = vadd.f32 0.0, %v1729
        %v1731 = vpop.f32.mrb[0].mxu0
        %1732 = vmatprep.mubr.bf16.mxu0 %v1218
        %1733 = vmatmul.mubr.bf16.gmra.mrb[0].mxu0 %v1072
        %v1734 = vpop.f32.mrb[0].mxu0
        %v1735 = vadd.f32 0.0, %v1734
        %v1736 = vpop.f32.mrb[0].mxu0
        %v1737 = vpop.f32.mrb[0].mxu0
        %v1738 = vadd.f32 0.0, %v1737
        %v1739 = vpop.f32.mrb[0].mxu0
        %1740 = vmatprep.mubr.bf16.mxu0 %v1230
        %1741 = vmatmul.mubr.bf16.gmra.mrb[0].mxu0 %v1073
        %v1742 = vpop.f32.mrb[0].mxu0
        %v1743 = vadd.f32 0.0, %v1742
        %v1744 = vpop.f32.mrb[0].mxu0
        %v1745 = vpop.f32.mrb[0].mxu0
        %v1746 = vadd.f32 0.0, %v1745
        %v1747 = vpop.f32.mrb[0].mxu0
        %1748 = vmatprep.mubr.bf16.mxu0 %v1242
        %1749 = vmatmul.mubr.bf16.gmra.mrb[0].mxu0 %v1074
        %v1750 = vpop.f32.mrb[0].mxu0
        %v1751 = vadd.f32 0.0, %v1750
        %v1752 = vpop.f32.mrb[0].mxu0
        %v1753 = vpop.f32.mrb[0].mxu0
        %v1754 = vadd.f32 0.0, %v1753
        %v1755 = vpop.f32.mrb[0].mxu0
        %1756 = vmatprep.mubr.bf16.mxu0 %v1254
        %1757 = vmatmul.mubr.bf16.gmra.mrb[0].mxu0 %v1075
        %v1758 = vpop.f32.mrb[0].mxu0
        %v1759 = vadd.f32 0.0, %v1758
        %v1760 = vpop.f32.mrb[0].mxu0
        %v1761 = vpop.f32.mrb[0].mxu0
        %v1762 = vadd.f32 0.0, %v1761
        %v1763 = vpop.f32.mrb[0].mxu0
        %1764 = vmatprep.mubr.bf16.mxu0 %v1266
        %1765 = vmatmul.mubr.bf16.gmra.mrb[0].mxu0 %v1076
        %v1766 = vpop.f32.mrb[0].mxu0
        %v1767 = vadd.f32 0.0, %v1766
        %v1768 = vpop.f32.mrb[0].mxu0
        %v1769 = vpop.f32.mrb[0].mxu0
        %v1770 = vadd.f32 0.0, %v1769
        %v1771 = vpop.f32.mrb[0].mxu0
        %1772 = vmatprep.mubr.bf16.mxu0 %v1278
        %1773 = vmatmul.mubr.bf16.gmra.mrb[0].mxu0 %v1077
        %v1774 = vpop.f32.mrb[0].mxu0
        %v1775 = vadd.f32 0.0, %v1774
        %v1776 = vpop.f32.mrb[0].mxu0
        %v1777 = vpop.f32.mrb[0].mxu0
        %v1778 = vadd.f32 0.0, %v1777
        %v1779 = vpop.f32.mrb[0].mxu0
        %1780 = vmatprep.mubr.bf16.mxu0 %v1290
        %1781 = vmatmul.mubr.bf16.gmra.mrb[0].mxu0 %v1078
        %v1782 = vpop.f32.mrb[0].mxu0
        %v1783 = vadd.f32 0.0, %v1782
        %v1784 = vpop.f32.mrb[0].mxu0
        %v1785 = vpop.f32.mrb[0].mxu0
        %v1786 = vadd.f32 0.0, %v1785
        %v1787 = vpop.f32.mrb[0].mxu0
        %1788 = vmatprep.mubr.bf16.mxu0 %v1302
        %1789 = vmatmul.mubr.bf16.gmra.mrb[0].mxu0 %v1079
        %v1790 = vpop.f32.mrb[0].mxu0
        %v1791 = vadd.f32 0.0, %v1790
        %v1792 = vpop.f32.mrb[0].mxu0
        %v1793 = vpop.f32.mrb[0].mxu0
        %v1794 = vadd.f32 0.0, %v1793
        %v1795 = vpop.f32.mrb[0].mxu0
        %1796 = vmatprep.mubr.bf16.mxu0 %v1314
        %1797 = vmatmul.mubr.bf16.gmra.mrb[0].mxu0 %v1080
        %v1798 = vpop.f32.mrb[0].mxu0
        %v1799 = vadd.f32 0.0, %v1798
        %v1800 = vpop.f32.mrb[0].mxu0
        %v1801 = vpop.f32.mrb[0].mxu0
        %v1802 = vadd.f32 0.0, %v1801
        %v1803 = vpop.f32.mrb[0].mxu0
        %1804 = vmatprep.mubr.bf16.mxu0 %v1326
        %1805 = vmatmul.mubr.bf16.gmra.mrb[0].mxu0 %v1081
        %v1806 = vpop.f32.mrb[0].mxu0
        %v1807 = vadd.f32 0.0, %v1806
        %v1808 = vpop.f32.mrb[0].mxu0
        %v1809 = vpop.f32.mrb[0].mxu0
        %v1810 = vadd.f32 0.0, %v1809
        %v1811 = vpop.f32.mrb[0].mxu0
        %1812 = vmatprep.mubr.bf16.mxu0 %v1338
        %1813 = vmatmul.mubr.bf16.gmra.mrb[0].mxu0 %v1082
        %v1814 = vpop.f32.mrb[0].mxu0
        %v1815 = vadd.f32 0.0, %v1814
        %v1816 = vpop.f32.mrb[0].mxu0
        %v1817 = vpop.f32.mrb[0].mxu0
        %v1818 = vadd.f32 0.0, %v1817
        %v1819 = vpop.f32.mrb[0].mxu0
        %1820 = vdwg.mxu0
        %1821 = vmatprep.subr.bf16.mxu0 0
        %1822 = vmatpush1.bf16.msra.mxu0 %v1628
        %1823 = vmatprep.subr.bf16.mxu0 0
        %1824 = vmatpush1.bf16.msra.mxu0 %v1629
        %1825 = vmatprep.subr.bf16.mxu0 0
        %1826 = vmatpush1.bf16.msra.mxu0 %v1630
        %1827 = vmatprep.subr.bf16.mxu0 0
        %1828 = vmatpush1.bf16.msra.mxu0 %v1631
        %1829 = vmatprep.subr.bf16.mxu0 0
        %1830 = vmatpush1.bf16.msra.mxu0 %v1632
        %1831 = vmatprep.subr.bf16.mxu0 0
        %1832 = vmatpush1.bf16.msra.mxu0 %v1633
        %1833 = vmatprep.subr.bf16.mxu0 0
        %1834 = vmatpush1.bf16.msra.mxu0 %v1634
        %1835 = vmatprep.subr.bf16.mxu0 0
        %1836 = vmatpush1.bf16.msra.mxu0 %v1635
        %1837 = vmatprep.subr.bf16.mxu0 0
        %1838 = vmatpush1.bf16.msra.mxu0 0
        %1839 = vmatprep.subr.bf16.mxu0 0
        %1840 = vmatpush1.bf16.msra.mxu0 0
        %1841 = vmatprep.subr.bf16.mxu0 0
        %1842 = vmatpush1.bf16.msra.mxu0 0
        %1843 = vmatprep.subr.bf16.mxu0 0
        %1844 = vmatpush1.bf16.msra.mxu0 0
        %1845 = vmatprep.subr.bf16.mxu0 0
        %1846 = vmatpush1.bf16.msra.mxu0 0
        %1847 = vmatprep.subr.bf16.mxu0 0
        %1848 = vmatpush1.bf16.msra.mxu0 0
        %1849 = vmatprep.subr.bf16.mxu0 0
        %1850 = vmatpush1.bf16.msra.mxu0 0
        %1851 = vmatprep.subr.bf16.mxu0 0
        %1852 = vmatpush1.bf16.msra.mxu0 0
        %1853 = vmatprep.mubr.bf16.mxu0 0
        %1854 = vmatmul.mubr.bf16.gmra.mrb[0].mxu0 %v1405
        %v1855 = vpop.f32.mrb[0].mxu0
        %v1856 = vadd.f32 %v1695, %v1855
        %v1857 = vpop.f32.mrb[0].mxu0
        %v1858 = vpop.f32.mrb[0].mxu0
        %v1859 = vadd.f32 %v1698, %v1858
        %v1860 = vpop.f32.mrb[0].mxu0
        %1861 = vmatprep.mubr.bf16.mxu0 0
        %1862 = vmatmul.mubr.bf16.gmra.mrb[0].mxu0 %v1408
        %v1863 = vpop.f32.mrb[0].mxu0
        %v1864 = vadd.f32 %v1703, %v1863
        %v1865 = vpop.f32.mrb[0].mxu0
        %v1866 = vpop.f32.mrb[0].mxu0
        %v1867 = vadd.f32 %v1706, %v1866
        %v1868 = vpop.f32.mrb[0].mxu0
        %1869 = vmatprep.mubr.bf16.mxu0 0
        %1870 = vmatmul.mubr.bf16.gmra.mrb[0].mxu0 %v1411
        %v1871 = vpop.f32.mrb[0].mxu0
        %v1872 = vadd.f32 %v1711, %v1871
        %v1873 = vpop.f32.mrb[0].mxu0
        %v1874 = vpop.f32.mrb[0].mxu0
        %v1875 = vadd.f32 %v1714, %v1874
        %v1876 = vpop.f32.mrb[0].mxu0
        %1877 = vmatprep.mubr.bf16.mxu0 0
        %1878 = vmatmul.mubr.bf16.gmra.mrb[0].mxu0 %v1414
        %v1879 = vpop.f32.mrb[0].mxu0
        %v1880 = vadd.f32 %v1719, %v1879
        %v1881 = vpop.f32.mrb[0].mxu0
        %v1882 = vpop.f32.mrb[0].mxu0
        %v1883 = vadd.f32 %v1722, %v1882
        %v1884 = vpop.f32.mrb[0].mxu0
        %1885 = vmatprep.mubr.bf16.mxu0 0
        %1886 = vmatmul.mubr.bf16.gmra.mrb[0].mxu0 %v1417
        %v1887 = vpop.f32.mrb[0].mxu0
        %v1888 = vadd.f32 %v1727, %v1887
        %v1889 = vpop.f32.mrb[0].mxu0
        %v1890 = vpop.f32.mrb[0].mxu0
        %v1891 = vadd.f32 %v1730, %v1890
        %v1892 = vpop.f32.mrb[0].mxu0
        %1893 = vmatprep.mubr.bf16.mxu0 0
        %1894 = vmatmul.mubr.bf16.gmra.mrb[0].mxu0 %v1420
        %v1895 = vpop.f32.mrb[0].mxu0
        %v1896 = vadd.f32 %v1735, %v1895
        %v1897 = vpop.f32.mrb[0].mxu0
        %v1898 = vpop.f32.mrb[0].mxu0
        %v1899 = vadd.f32 %v1738, %v1898
        %v1900 = vpop.f32.mrb[0].mxu0
        %1901 = vmatprep.mubr.bf16.mxu0 0
        %1902 = vmatmul.mubr.bf16.gmra.mrb[0].mxu0 %v1423
        %v1903 = vpop.f32.mrb[0].mxu0
        %v1904 = vadd.f32 %v1743, %v1903
        %v1905 = vpop.f32.mrb[0].mxu0
        %v1906 = vpop.f32.mrb[0].mxu0
        %v1907 = vadd.f32 %v1746, %v1906
        %v1908 = vpop.f32.mrb[0].mxu0
        %1909 = vmatprep.mubr.bf16.mxu0 0
        %1910 = vmatmul.mubr.bf16.gmra.mrb[0].mxu0 %v1426
        %v1911 = vpop.f32.mrb[0].mxu0
        %v1912 = vadd.f32 %v1751, %v1911
        %v1913 = vpop.f32.mrb[0].mxu0
        %v1914 = vpop.f32.mrb[0].mxu0
        %v1915 = vadd.f32 %v1754, %v1914
        %v1916 = vpop.f32.mrb[0].mxu0
        %1917 = vmatprep.mubr.bf16.mxu0 0
        %1918 = vmatmul.mubr.bf16.gmra.mrb[0].mxu0 %v1429
        %v1919 = vpop.f32.mrb[0].mxu0
        %v1920 = vadd.f32 %v1759, %v1919
        %v1921 = vpop.f32.mrb[0].mxu0
        %v1922 = vpop.f32.mrb[0].mxu0
        %v1923 = vadd.f32 %v1762, %v1922
        %v1924 = vpop.f32.mrb[0].mxu0
        %1925 = vmatprep.mubr.bf16.mxu0 0
        %1926 = vmatmul.mubr.bf16.gmra.mrb[0].mxu0 %v1432
        %v1927 = vpop.f32.mrb[0].mxu0
        %v1928 = vadd.f32 %v1767, %v1927
        %v1929 = vpop.f32.mrb[0].mxu0
        %v1930 = vpop.f32.mrb[0].mxu0
        %v1931 = vadd.f32 %v1770, %v1930
        %v1932 = vpop.f32.mrb[0].mxu0
        %1933 = vmatprep.mubr.bf16.mxu0 0
        %1934 = vmatmul.mubr.bf16.gmra.mrb[0].mxu0 %v1435
        %v1935 = vpop.f32.mrb[0].mxu0
        %v1936 = vadd.f32 %v1775, %v1935
        %v1937 = vpop.f32.mrb[0].mxu0
        %v1938 = vpop.f32.mrb[0].mxu0
        %v1939 = vadd.f32 %v1778, %v1938
        %v1940 = vpop.f32.mrb[0].mxu0
        %1941 = vmatprep.mubr.bf16.mxu0 0
        %1942 = vmatmul.mubr.bf16.gmra.mrb[0].mxu0 %v1438
        %v1943 = vpop.f32.mrb[0].mxu0
        %v1944 = vadd.f32 %v1783, %v1943
        %v1945 = vpop.f32.mrb[0].mxu0
        %v1946 = vpop.f32.mrb[0].mxu0
        %v1947 = vadd.f32 %v1786, %v1946
        %v1948 = vpop.f32.mrb[0].mxu0
        %1949 = vmatprep.mubr.bf16.mxu0 0
        %1950 = vmatmul.mubr.bf16.gmra.mrb[0].mxu0 %v1441
        %v1951 = vpop.f32.mrb[0].mxu0
        %v1952 = vadd.f32 %v1791, %v1951
        %v1953 = vpop.f32.mrb[0].mxu0
        %v1954 = vpop.f32.mrb[0].mxu0
        %v1955 = vadd.f32 %v1794, %v1954
        %v1956 = vpop.f32.mrb[0].mxu0
        %1957 = vmatprep.mubr.bf16.mxu0 0
        %1958 = vmatmul.mubr.bf16.gmra.mrb[0].mxu0 %v1444
        %v1959 = vpop.f32.mrb[0].mxu0
        %v1960 = vadd.f32 %v1799, %v1959
        %v1961 = vpop.f32.mrb[0].mxu0
        %v1962 = vpop.f32.mrb[0].mxu0
        %v1963 = vadd.f32 %v1802, %v1962
        %v1964 = vpop.f32.mrb[0].mxu0
        %1965 = vmatprep.mubr.bf16.mxu0 0
        %1966 = vmatmul.mubr.bf16.gmra.mrb[0].mxu0 %v1447
        %v1967 = vpop.f32.mrb[0].mxu0
        %v1968 = vadd.f32 %v1807, %v1967
        %v1969 = vpop.f32.mrb[0].mxu0
        %v1970 = vpop.f32.mrb[0].mxu0
        %v1971 = vadd.f32 %v1810, %v1970
        %v1972 = vpop.f32.mrb[0].mxu0
        %1973 = vmatprep.mubr.bf16.mxu0 0
        %1974 = vmatmul.mubr.bf16.gmra.mrb[0].mxu0 %v1450
        %v1975 = vpop.f32.mrb[0].mxu0
        %v1976 = vadd.f32 %v1815, %v1975
        %v1977 = vpop.f32.mrb[0].mxu0
        %v1978 = vpop.f32.mrb[0].mxu0
        %v1979 = vadd.f32 %v1818, %v1978
        %v1980 = vpop.f32.mrb[0].mxu0
        %1981 = vdwg.mxu0
        %v2030 = vunpack.c.l.b16 %v890
        %v2031 = vunpack.c.l.b16 %v891
        %v2032 = vunpack.c.l.b16 %v892
        %v2033 = vunpack.c.l.b16 %v893
        %v2034 = vunpack.c.l.b16 %v894
        %v2035 = vunpack.c.l.b16 %v895
        %v2036 = vunpack.c.l.b16 %v896
        %v2037 = vunpack.c.l.b16 %v897
        %v2038 = vunpack.c.l.b16 %v898
        %v2039 = vunpack.c.l.b16 %v899
        %v2040 = vunpack.c.l.b16 %v900
        %v2041 = vunpack.c.l.b16 %v901
        %v2042 = vunpack.c.l.b16 %v902
        %v2043 = vunpack.c.l.b16 %v903
        %v2044 = vunpack.c.l.b16 %v904
        %v2045 = vunpack.c.l.b16 %v905
        %v2046 = vunpack.c.l.b16 %v906
        %v2047 = vunpack.c.l.b16 %v907
        %v2048 = vunpack.c.l.b16 %v908
        %v2049 = vunpack.c.l.b16 %v909
        %v2050 = vunpack.c.l.b16 %v910
        %v2051 = vunpack.c.l.b16 %v911
        %v2052 = vunpack.c.l.b16 %v912
        %v2053 = vunpack.c.l.b16 %v913
        %v2054 = vunpack.c.l.b16 %v914
        %v2055 = vunpack.c.l.b16 %v915
        %v2056 = vunpack.c.l.b16 %v916
        %v2057 = vunpack.c.l.b16 %v917
        %v2058 = vunpack.c.l.b16 %v918
        %v2059 = vunpack.c.l.b16 %v919
        %v2060 = vunpack.c.l.b16 %v920
        %v2061 = vunpack.c.l.b16 %v921
        %v2062 = vunpack.c.l.b16 %v922
        %v2063 = vunpack.c.l.b16 %v923
        %v2064 = vunpack.c.l.b16 %v924
        %v2065 = vunpack.c.l.b16 %v925
        %v2066 = vunpack.c.l.b16 %v926
        %v2067 = vunpack.c.l.b16 %v927
        %v2068 = vunpack.c.l.b16 %v928
        %v2069 = vunpack.c.l.b16 %v929
        %v2070 = vunpack.c.l.b16 %v930
        %v2071 = vunpack.c.l.b16 %v931
        %v2072 = vunpack.c.l.b16 %v932
        %v2073 = vunpack.c.l.b16 %v933
        %v2074 = vunpack.c.l.b16 %v934
        %v2075 = vunpack.c.l.b16 %v935
        %v2076 = vunpack.c.l.b16 %v936
        %v2077 = vunpack.c.l.b16 %v937
        %v2078 = vpack.c.b16 %v2031, %v2030
        %v2079 = vpack.c.b16 %v2033, %v2032
        %v2080 = vpack.c.b16 %v2035, %v2034
        %v2081 = vpack.c.b16 %v2037, %v2036
        %v2082 = vpack.c.b16 %v2039, %v2038
        %v2083 = vpack.c.b16 %v2041, %v2040
        %v2084 = vpack.c.b16 %v2043, %v2042
        %v2085 = vpack.c.b16 %v2045, %v2044
        %v2086 = vpack.c.b16 %v2047, %v2046
        %v2087 = vpack.c.b16 %v2049, %v2048
        %v2088 = vpack.c.b16 %v2051, %v2050
        %v2089 = vpack.c.b16 %v2053, %v2052
        %v2090 = vpack.c.b16 %v2055, %v2054
        %v2091 = vpack.c.b16 %v2057, %v2056
        %v2092 = vpack.c.b16 %v2059, %v2058
        %v2093 = vpack.c.b16 %v2061, %v2060
        %v2094 = vpack.c.b16 %v2063, %v2062
        %v2095 = vpack.c.b16 %v2065, %v2064
        %v2096 = vpack.c.b16 %v2067, %v2066
        %v2097 = vpack.c.b16 %v2069, %v2068
        %v2098 = vpack.c.b16 %v2071, %v2070
        %v2099 = vpack.c.b16 %v2073, %v2072
        %v2100 = vpack.c.b16 %v2075, %v2074
        %v2101 = vpack.c.b16 %v2077, %v2076
        %2126 = vmatprep.subr.bf16.mxu0 0
        %2127 = vmatpush1.bf16.msra.mxu0 %v2078
        %2128 = vmatprep.subr.bf16.mxu0 0
        %2129 = vmatpush1.bf16.msra.mxu0 %v2079
        %2130 = vmatprep.subr.bf16.mxu0 0
        %2131 = vmatpush1.bf16.msra.mxu0 %v2080
        %2132 = vmatprep.subr.bf16.mxu0 0
        %2133 = vmatpush1.bf16.msra.mxu0 %v2081
        %2134 = vmatprep.subr.bf16.mxu0 0
        %2135 = vmatpush1.bf16.msra.mxu0 %v2082
        %2136 = vmatprep.subr.bf16.mxu0 0
        %2137 = vmatpush1.bf16.msra.mxu0 %v2083
        %2138 = vmatprep.subr.bf16.mxu0 0
        %2139 = vmatpush1.bf16.msra.mxu0 %v2084
        %2140 = vmatprep.subr.bf16.mxu0 0
        %2141 = vmatpush1.bf16.msra.mxu0 %v2085
        %2142 = vmatprep.subr.bf16.mxu0 0
        %2143 = vmatpush1.bf16.msra.mxu0 %v2086
        %2144 = vmatprep.subr.bf16.mxu0 0
        %2145 = vmatpush1.bf16.msra.mxu0 %v2087
        %2146 = vmatprep.subr.bf16.mxu0 0
        %2147 = vmatpush1.bf16.msra.mxu0 %v2088
        %2148 = vmatprep.subr.bf16.mxu0 0
        %2149 = vmatpush1.bf16.msra.mxu0 %v2089
        %2150 = vmatprep.subr.bf16.mxu0 0
        %2151 = vmatpush1.bf16.msra.mxu0 %v2090
        %2152 = vmatprep.subr.bf16.mxu0 0
        %2153 = vmatpush1.bf16.msra.mxu0 %v2091
        %2154 = vmatprep.subr.bf16.mxu0 0
        %2155 = vmatpush1.bf16.msra.mxu0 %v2092
        %2156 = vmatprep.subr.bf16.mxu0 0
        %2157 = vmatpush1.bf16.msra.mxu0 %v2093
        %2158 = vmatprep.mubr.bf16.mxu0 %v580
        %2159 = vmatmul.mubr.bf16.gmra.mrb[0].mxu0 %v488
        %v2160 = vpop.f32.mrb[0].mxu0
        %v2161 = vadd.f32 %v1856, %v2160
        %v2162 = vpop.f32.mrb[0].mxu0
        %v2163 = vpop.f32.mrb[0].mxu0
        %v2164 = vadd.f32 %v1859, %v2163
        %v2165 = vpop.f32.mrb[0].mxu0
        %2166 = vmatprep.mubr.bf16.mxu0 %v592
        %2167 = vmatmul.mubr.bf16.gmra.mrb[0].mxu0 %v489
        %v2168 = vpop.f32.mrb[0].mxu0
        %v2169 = vadd.f32 %v1864, %v2168
        %v2170 = vpop.f32.mrb[0].mxu0
        %v2171 = vpop.f32.mrb[0].mxu0
        %v2172 = vadd.f32 %v1867, %v2171
        %v2173 = vpop.f32.mrb[0].mxu0
        %2174 = vmatprep.mubr.bf16.mxu0 %v604
        %2175 = vmatmul.mubr.bf16.gmra.mrb[0].mxu0 %v490
        %v2176 = vpop.f32.mrb[0].mxu0
        %v2177 = vadd.f32 %v1872, %v2176
        %v2178 = vpop.f32.mrb[0].mxu0
        %v2179 = vpop.f32.mrb[0].mxu0
        %v2180 = vadd.f32 %v1875, %v2179
        %v2181 = vpop.f32.mrb[0].mxu0
        %2182 = vmatprep.mubr.bf16.mxu0 %v616
        %2183 = vmatmul.mubr.bf16.gmra.mrb[0].mxu0 %v491
        %v2184 = vpop.f32.mrb[0].mxu0
        %v2185 = vadd.f32 %v1880, %v2184
        %v2186 = vpop.f32.mrb[0].mxu0
        %v2187 = vpop.f32.mrb[0].mxu0
        %v2188 = vadd.f32 %v1883, %v2187
        %v2189 = vpop.f32.mrb[0].mxu0
        %2190 = vmatprep.mubr.bf16.mxu0 %v628
        %2191 = vmatmul.mubr.bf16.gmra.mrb[0].mxu0 %v492
        %v2192 = vpop.f32.mrb[0].mxu0
        %v2193 = vadd.f32 %v1888, %v2192
        %v2194 = vpop.f32.mrb[0].mxu0
        %v2195 = vpop.f32.mrb[0].mxu0
        %v2196 = vadd.f32 %v1891, %v2195
        %v2197 = vpop.f32.mrb[0].mxu0
        %2198 = vmatprep.mubr.bf16.mxu0 %v640
        %2199 = vmatmul.mubr.bf16.gmra.mrb[0].mxu0 %v493
        %v2200 = vpop.f32.mrb[0].mxu0
        %v2201 = vadd.f32 %v1896, %v2200
        %v2202 = vpop.f32.mrb[0].mxu0
        %v2203 = vpop.f32.mrb[0].mxu0
        %v2204 = vadd.f32 %v1899, %v2203
        %v2205 = vpop.f32.mrb[0].mxu0
        %2206 = vmatprep.mubr.bf16.mxu0 %v652
        %2207 = vmatmul.mubr.bf16.gmra.mrb[0].mxu0 %v494
        %v2208 = vpop.f32.mrb[0].mxu0
        %v2209 = vadd.f32 %v1904, %v2208
        %v2210 = vpop.f32.mrb[0].mxu0
        %v2211 = vpop.f32.mrb[0].mxu0
        %v2212 = vadd.f32 %v1907, %v2211
        %v2213 = vpop.f32.mrb[0].mxu0
        %2214 = vmatprep.mubr.bf16.mxu0 %v664
        %2215 = vmatmul.mubr.bf16.gmra.mrb[0].mxu0 %v495
        %v2216 = vpop.f32.mrb[0].mxu0
        %v2217 = vadd.f32 %v1912, %v2216
        %v2218 = vpop.f32.mrb[0].mxu0
        %v2219 = vpop.f32.mrb[0].mxu0
        %v2220 = vadd.f32 %v1915, %v2219
        %v2221 = vpop.f32.mrb[0].mxu0
        %2222 = vmatprep.mubr.bf16.mxu0 %v676
        %2223 = vmatmul.mubr.bf16.gmra.mrb[0].mxu0 %v496
        %v2224 = vpop.f32.mrb[0].mxu0
        %v2225 = vadd.f32 %v1920, %v2224
        %v2226 = vpop.f32.mrb[0].mxu0
        %v2227 = vpop.f32.mrb[0].mxu0
        %v2228 = vadd.f32 %v1923, %v2227
        %v2229 = vpop.f32.mrb[0].mxu0
        %2230 = vmatprep.mubr.bf16.mxu0 %v688
        %2231 = vmatmul.mubr.bf16.gmra.mrb[0].mxu0 %v497
        %v2232 = vpop.f32.mrb[0].mxu0
        %v2233 = vadd.f32 %v1928, %v2232
        %v2234 = vpop.f32.mrb[0].mxu0
        %v2235 = vpop.f32.mrb[0].mxu0
        %v2236 = vadd.f32 %v1931, %v2235
        %v2237 = vpop.f32.mrb[0].mxu0
        %2238 = vmatprep.mubr.bf16.mxu0 %v700
        %2239 = vmatmul.mubr.bf16.gmra.mrb[0].mxu0 %v498
        %v2240 = vpop.f32.mrb[0].mxu0
        %v2241 = vadd.f32 %v1936, %v2240
        %v2242 = vpop.f32.mrb[0].mxu0
        %v2243 = vpop.f32.mrb[0].mxu0
        %v2244 = vadd.f32 %v1939, %v2243
        %v2245 = vpop.f32.mrb[0].mxu0
        %2246 = vmatprep.mubr.bf16.mxu0 %v712
        %2247 = vmatmul.mubr.bf16.gmra.mrb[0].mxu0 %v499
        %v2248 = vpop.f32.mrb[0].mxu0
        %v2249 = vadd.f32 %v1944, %v2248
        %v2250 = vpop.f32.mrb[0].mxu0
        %v2251 = vpop.f32.mrb[0].mxu0
        %v2252 = vadd.f32 %v1947, %v2251
        %v2253 = vpop.f32.mrb[0].mxu0
        %2254 = vmatprep.mubr.bf16.mxu0 %v724
        %2255 = vmatmul.mubr.bf16.gmra.mrb[0].mxu0 %v500
        %v2256 = vpop.f32.mrb[0].mxu0
        %v2257 = vadd.f32 %v1952, %v2256
        %v2258 = vpop.f32.mrb[0].mxu0
        %v2259 = vpop.f32.mrb[0].mxu0
        %v2260 = vadd.f32 %v1955, %v2259
        %v2261 = vpop.f32.mrb[0].mxu0
        %2262 = vmatprep.mubr.bf16.mxu0 %v736
        %2263 = vmatmul.mubr.bf16.gmra.mrb[0].mxu0 %v501
        %v2264 = vpop.f32.mrb[0].mxu0
        %v2265 = vadd.f32 %v1960, %v2264
        %v2266 = vpop.f32.mrb[0].mxu0
        %v2267 = vpop.f32.mrb[0].mxu0
        %v2268 = vadd.f32 %v1963, %v2267
        %v2269 = vpop.f32.mrb[0].mxu0
        %2270 = vmatprep.mubr.bf16.mxu0 %v748
        %2271 = vmatmul.mubr.bf16.gmra.mrb[0].mxu0 %v502
        %v2272 = vpop.f32.mrb[0].mxu0
        %v2273 = vadd.f32 %v1968, %v2272
        %v2274 = vpop.f32.mrb[0].mxu0
        %v2275 = vpop.f32.mrb[0].mxu0
        %v2276 = vadd.f32 %v1971, %v2275
        %v2277 = vpop.f32.mrb[0].mxu0
        %2278 = vmatprep.mubr.bf16.mxu0 %v760
        %2279 = vmatmul.mubr.bf16.gmra.mrb[0].mxu0 %v503
        %v2280 = vpop.f32.mrb[0].mxu0
        %v2281 = vadd.f32 %v1976, %v2280
        %v2282 = vpop.f32.mrb[0].mxu0
        %v2283 = vpop.f32.mrb[0].mxu0
        %v2284 = vadd.f32 %v1979, %v2283
        %v2285 = vpop.f32.mrb[0].mxu0
        %2286 = vdwg.mxu0
        %2287 = vmatprep.subr.bf16.mxu0 0
        %2288 = vmatpush1.bf16.msra.mxu0 %v2094
        %2289 = vmatprep.subr.bf16.mxu0 0
        %2290 = vmatpush1.bf16.msra.mxu0 %v2095
        %2291 = vmatprep.subr.bf16.mxu0 0
        %2292 = vmatpush1.bf16.msra.mxu0 %v2096
        %2293 = vmatprep.subr.bf16.mxu0 0
        %2294 = vmatpush1.bf16.msra.mxu0 %v2097
        %2295 = vmatprep.subr.bf16.mxu0 0
        %2296 = vmatpush1.bf16.msra.mxu0 %v2098
        %2297 = vmatprep.subr.bf16.mxu0 0
        %2298 = vmatpush1.bf16.msra.mxu0 %v2099
        %2299 = vmatprep.subr.bf16.mxu0 0
        %2300 = vmatpush1.bf16.msra.mxu0 %v2100
        %2301 = vmatprep.subr.bf16.mxu0 0
        %2302 = vmatpush1.bf16.msra.mxu0 %v2101
        %2303 = vmatprep.subr.bf16.mxu0 0
        %2304 = vmatpush1.bf16.msra.mxu0 0
        %2305 = vmatprep.subr.bf16.mxu0 0
        %2306 = vmatpush1.bf16.msra.mxu0 0
        %2307 = vmatprep.subr.bf16.mxu0 0
        %2308 = vmatpush1.bf16.msra.mxu0 0
        %2309 = vmatprep.subr.bf16.mxu0 0
        %2310 = vmatpush1.bf16.msra.mxu0 0
        %2311 = vmatprep.subr.bf16.mxu0 0
        %2312 = vmatpush1.bf16.msra.mxu0 0
        %2313 = vmatprep.subr.bf16.mxu0 0
        %2314 = vmatpush1.bf16.msra.mxu0 0
        %2315 = vmatprep.subr.bf16.mxu0 0
        %2316 = vmatpush1.bf16.msra.mxu0 0
        %2317 = vmatprep.subr.bf16.mxu0 0
        %2318 = vmatpush1.bf16.msra.mxu0 0
        %2319 = vmatprep.mubr.bf16.mxu0 0
        %2320 = vmatmul.mubr.bf16.gmra.mrb[0].mxu0 %v828
        %v2321 = vpop.f32.mrb[0].mxu0
        %v2322 = vadd.f32 %v2161, %v2321
        %v2323 = vpop.f32.mrb[0].mxu0
        %v2324 = vpop.f32.mrb[0].mxu0
        %v2325 = vadd.f32 %v2164, %v2324
        %v2326 = vpop.f32.mrb[0].mxu0
        %2327 = vmatprep.mubr.bf16.mxu0 0
        %2328 = vmatmul.mubr.bf16.gmra.mrb[0].mxu0 %v831
        %v2329 = vpop.f32.mrb[0].mxu0
        %v2330 = vadd.f32 %v2169, %v2329
        %v2331 = vpop.f32.mrb[0].mxu0
        %v2332 = vpop.f32.mrb[0].mxu0
        %v2333 = vadd.f32 %v2172, %v2332
        %v2334 = vpop.f32.mrb[0].mxu0
        %2335 = vmatprep.mubr.bf16.mxu0 0
        %2336 = vmatmul.mubr.bf16.gmra.mrb[0].mxu0 %v834
        %v2337 = vpop.f32.mrb[0].mxu0
        %v2338 = vadd.f32 %v2177, %v2337
        %v2339 = vpop.f32.mrb[0].mxu0
        %v2340 = vpop.f32.mrb[0].mxu0
        %v2341 = vadd.f32 %v2180, %v2340
        %v2342 = vpop.f32.mrb[0].mxu0
        %2343 = vmatprep.mubr.bf16.mxu0 0
        %2344 = vmatmul.mubr.bf16.gmra.mrb[0].mxu0 %v837
        %v2345 = vpop.f32.mrb[0].mxu0
        %v2346 = vadd.f32 %v2185, %v2345
        %v2347 = vpop.f32.mrb[0].mxu0
        %v2348 = vpop.f32.mrb[0].mxu0
        %v2349 = vadd.f32 %v2188, %v2348
        %v2350 = vpop.f32.mrb[0].mxu0
        %2351 = vmatprep.mubr.bf16.mxu0 0
        %2352 = vmatmul.mubr.bf16.gmra.mrb[0].mxu0 %v840
        %v2353 = vpop.f32.mrb[0].mxu0
        %v2354 = vadd.f32 %v2193, %v2353
        %v2355 = vpop.f32.mrb[0].mxu0
        %v2356 = vpop.f32.mrb[0].mxu0
        %v2357 = vadd.f32 %v2196, %v2356
        %v2358 = vpop.f32.mrb[0].mxu0
        %2359 = vmatprep.mubr.bf16.mxu0 0
        %2360 = vmatmul.mubr.bf16.gmra.mrb[0].mxu0 %v843
        %v2361 = vpop.f32.mrb[0].mxu0
        %v2362 = vadd.f32 %v2201, %v2361
        %v2363 = vpop.f32.mrb[0].mxu0
        %v2364 = vpop.f32.mrb[0].mxu0
        %v2365 = vadd.f32 %v2204, %v2364
        %v2366 = vpop.f32.mrb[0].mxu0
        %2367 = vmatprep.mubr.bf16.mxu0 0
        %2368 = vmatmul.mubr.bf16.gmra.mrb[0].mxu0 %v846
        %v2369 = vpop.f32.mrb[0].mxu0
        %v2370 = vadd.f32 %v2209, %v2369
        %v2371 = vpop.f32.mrb[0].mxu0
        %v2372 = vpop.f32.mrb[0].mxu0
        %v2373 = vadd.f32 %v2212, %v2372
        %v2374 = vpop.f32.mrb[0].mxu0
        %2375 = vmatprep.mubr.bf16.mxu0 0
        %2376 = vmatmul.mubr.bf16.gmra.mrb[0].mxu0 %v849
        %v2377 = vpop.f32.mrb[0].mxu0
        %v2378 = vadd.f32 %v2217, %v2377
        %v2379 = vpop.f32.mrb[0].mxu0
        %v2380 = vpop.f32.mrb[0].mxu0
        %v2381 = vadd.f32 %v2220, %v2380
        %v2382 = vpop.f32.mrb[0].mxu0
        %2383 = vmatprep.mubr.bf16.mxu0 0
        %2384 = vmatmul.mubr.bf16.gmra.mrb[0].mxu0 %v852
        %v2385 = vpop.f32.mrb[0].mxu0
        %v2386 = vadd.f32 %v2225, %v2385
        %v2387 = vpop.f32.mrb[0].mxu0
        %v2388 = vpop.f32.mrb[0].mxu0
        %v2389 = vadd.f32 %v2228, %v2388
        %v2390 = vpop.f32.mrb[0].mxu0
        %2391 = vmatprep.mubr.bf16.mxu0 0
        %2392 = vmatmul.mubr.bf16.gmra.mrb[0].mxu0 %v855
        %v2393 = vpop.f32.mrb[0].mxu0
        %v2394 = vadd.f32 %v2233, %v2393
        %v2395 = vpop.f32.mrb[0].mxu0
        %v2396 = vpop.f32.mrb[0].mxu0
        %v2397 = vadd.f32 %v2236, %v2396
        %v2398 = vpop.f32.mrb[0].mxu0
        %2399 = vmatprep.mubr.bf16.mxu0 0
        %2400 = vmatmul.mubr.bf16.gmra.mrb[0].mxu0 %v858
        %v2401 = vpop.f32.mrb[0].mxu0
        %v2402 = vadd.f32 %v2241, %v2401
        %v2403 = vpop.f32.mrb[0].mxu0
        %v2404 = vpop.f32.mrb[0].mxu0
        %v2405 = vadd.f32 %v2244, %v2404
        %v2406 = vpop.f32.mrb[0].mxu0
        %2407 = vmatprep.mubr.bf16.mxu0 0
        %2408 = vmatmul.mubr.bf16.gmra.mrb[0].mxu0 %v861
        %v2409 = vpop.f32.mrb[0].mxu0
        %v2410 = vadd.f32 %v2249, %v2409
        %v2411 = vpop.f32.mrb[0].mxu0
        %v2412 = vpop.f32.mrb[0].mxu0
        %v2413 = vadd.f32 %v2252, %v2412
        %v2414 = vpop.f32.mrb[0].mxu0
        %2415 = vmatprep.mubr.bf16.mxu0 0
        %2416 = vmatmul.mubr.bf16.gmra.mrb[0].mxu0 %v864
        %v2417 = vpop.f32.mrb[0].mxu0
        %v2418 = vadd.f32 %v2257, %v2417
        %v2419 = vpop.f32.mrb[0].mxu0
        %v2420 = vpop.f32.mrb[0].mxu0
        %v2421 = vadd.f32 %v2260, %v2420
        %v2422 = vpop.f32.mrb[0].mxu0
        %2423 = vmatprep.mubr.bf16.mxu0 0
        %2424 = vmatmul.mubr.bf16.gmra.mrb[0].mxu0 %v867
        %v2425 = vpop.f32.mrb[0].mxu0
        %v2426 = vadd.f32 %v2265, %v2425
        %v2427 = vpop.f32.mrb[0].mxu0
        %v2428 = vpop.f32.mrb[0].mxu0
        %v2429 = vadd.f32 %v2268, %v2428
        %v2430 = vpop.f32.mrb[0].mxu0
        %2431 = vmatprep.mubr.bf16.mxu0 0
        %2432 = vmatmul.mubr.bf16.gmra.mrb[0].mxu0 %v870
        %v2433 = vpop.f32.mrb[0].mxu0
        %v2434 = vadd.f32 %v2273, %v2433
        %v2435 = vpop.f32.mrb[0].mxu0
        %v2436 = vpop.f32.mrb[0].mxu0
        %v2437 = vadd.f32 %v2276, %v2436
        %v2438 = vpop.f32.mrb[0].mxu0
        %2439 = vmatprep.mubr.bf16.mxu0 0
        %2440 = vmatmul.mubr.bf16.gmra.mrb[0].mxu0 %v873
        %v2441 = vpop.f32.mrb[0].mxu0
        %v2442 = vadd.f32 %v2281, %v2441
        %v2443 = vpop.f32.mrb[0].mxu0
        %v2444 = vpop.f32.mrb[0].mxu0
        %v2445 = vadd.f32 %v2284, %v2444
        %v2446 = vpop.f32.mrb[0].mxu0
        %2447 = vdwg.mxu0
        %s2448 = scalar_lea.vmem %s237, 24
        %v2449 = vld [vmem:[%s2448] sm:$0xf]
        %v2450 = vld [vmem:[%s2448 + $0x4] sm:$0xf]
        %v2451 = vld [vmem:[%s2448 + $0xc] sm:$0xf]
        %v2452 = vld [vmem:[%s2448 + $0x10] sm:$0xf]
        %v2453 = vld [vmem:[%s2448 + $0x18] sm:$0xf]
        %v2454 = vld [vmem:[%s2448 + $0x1c] sm:$0xf]
        %v2455 = vld [vmem:[%s2448 + $0x24] sm:$0xf]
        %v2456 = vld [vmem:[%s2448 + $0x28] sm:$0xf]
        %v2457 = vld [vmem:[%s2448 + $0x30] sm:$0xf]
        %v2458 = vld [vmem:[%s2448 + $0x34] sm:$0xf]
        %v2459 = vld [vmem:[%s2448 + $0x3c] sm:$0xf]
        %v2460 = vld [vmem:[%s2448 + $0x40] sm:$0xf]
        %v2461 = vld [vmem:[%s2448 + $0x48] sm:$0xf]
        %v2462 = vld [vmem:[%s2448 + $0x4c] sm:$0xf]
        %v2463 = vld [vmem:[%s2448 + $0x54] sm:$0xf]
        %v2464 = vld [vmem:[%s2448 + $0x58] sm:$0xf]
        %v2465 = vld [vmem:[%s2448 + $0x60] sm:$0xf]
        %v2466 = vld [vmem:[%s2448 + $0x64] sm:$0xf]
        %v2467 = vld [vmem:[%s2448 + $0x6c] sm:$0xf]
        %v2468 = vld [vmem:[%s2448 + $0x70] sm:$0xf]
        %v2469 = vld [vmem:[%s2448 + $0x78] sm:$0xf]
        %v2470 = vld [vmem:[%s2448 + $0x7c] sm:$0xf]
        %v2471 = vld [vmem:[%s2448 + $0x84] sm:$0xf]
        %v2472 = vld [vmem:[%s2448 + $0x88] sm:$0xf]
        %v2473 = vld [vmem:[%s2448 + $0x90] sm:$0xf]
        %v2474 = vld [vmem:[%s2448 + $0x94] sm:$0xf]
        %v2475 = vld [vmem:[%s2448 + $0x9c] sm:$0xf]
        %v2476 = vld [vmem:[%s2448 + $0xa0] sm:$0xf]
        %v2477 = vld [vmem:[%s2448 + $0xa8] sm:$0xf]
        %v2478 = vld [vmem:[%s2448 + $0xac] sm:$0xf]
        %v2479 = vld [vmem:[%s2448 + $0xb4] sm:$0xf]
        %v2480 = vld [vmem:[%s2448 + $0xb8] sm:$0xf]
        %v2481 = vld [vmem:[%s2448 + $0x8] sm:$0x1]
        %v2482 = vld [vmem:[%s2448 + $0x14] sm:$0x1]
        %v2483 = vld [vmem:[%s2448 + $0x20] sm:$0x1]
        %v2484 = vld [vmem:[%s2448 + $0x2c] sm:$0x1]
        %v2485 = vld [vmem:[%s2448 + $0x38] sm:$0x1]
        %v2486 = vld [vmem:[%s2448 + $0x44] sm:$0x1]
        %v2487 = vld [vmem:[%s2448 + $0x50] sm:$0x1]
        %v2488 = vld [vmem:[%s2448 + $0x5c] sm:$0x1]
        %v2489 = vld [vmem:[%s2448 + $0x68] sm:$0x1]
        %v2490 = vld [vmem:[%s2448 + $0x74] sm:$0x1]
        %v2491 = vld [vmem:[%s2448 + $0x80] sm:$0x1]
        %v2492 = vld [vmem:[%s2448 + $0x8c] sm:$0x1]
        %v2493 = vld [vmem:[%s2448 + $0x98] sm:$0x1]
        %v2494 = vld [vmem:[%s2448 + $0xa4] sm:$0x1]
        %v2495 = vld [vmem:[%s2448 + $0xb0] sm:$0x1]
        %v2496 = vld [vmem:[%s2448 + $0xbc] sm:$0x1]
        %v2497 = vld [vmem:[%s2448] sm:$0xe]
        %v2498 = vld [vmem:[%s2448 + $0xc] sm:$0xe]
        %v2499 = vld [vmem:[%s2448 + $0x18] sm:$0xe]
        %v2500 = vld [vmem:[%s2448 + $0x24] sm:$0xe]
        %v2501 = vld [vmem:[%s2448 + $0x30] sm:$0xe]
        %v2502 = vld [vmem:[%s2448 + $0x3c] sm:$0xe]
        %v2503 = vld [vmem:[%s2448 + $0x48] sm:$0xe]
        %v2504 = vld [vmem:[%s2448 + $0x54] sm:$0xe]
        %v2505 = vld [vmem:[%s2448 + $0x60] sm:$0xe]
        %v2506 = vld [vmem:[%s2448 + $0x6c] sm:$0xe]
        %v2507 = vld [vmem:[%s2448 + $0x78] sm:$0xe]
        %v2508 = vld [vmem:[%s2448 + $0x84] sm:$0xe]
        %v2509 = vld [vmem:[%s2448 + $0x90] sm:$0xe]
        %v2510 = vld [vmem:[%s2448 + $0x9c] sm:$0xe]
        %v2511 = vld [vmem:[%s2448 + $0xa8] sm:$0xe]
        %v2512 = vld [vmem:[%s2448 + $0xb4] sm:$0xe]
        %v2545 = vunpack.c.l.b16 %v2449
        %v2546 = vunpack.c.l.b16 %v2450
        %v2547 = vunpack.c.l.b16 %v2451
        %v2548 = vunpack.c.l.b16 %v2452
        %v2549 = vunpack.c.l.b16 %v2453
        %v2550 = vunpack.c.l.b16 %v2454
        %v2551 = vunpack.c.l.b16 %v2455
        %v2552 = vunpack.c.l.b16 %v2456
        %v2553 = vunpack.c.l.b16 %v2457
        %v2554 = vunpack.c.l.b16 %v2458
        %v2555 = vunpack.c.l.b16 %v2459
        %v2556 = vunpack.c.l.b16 %v2460
        %v2557 = vunpack.c.l.b16 %v2461
        %v2558 = vunpack.c.l.b16 %v2462
        %v2559 = vunpack.c.l.b16 %v2463
        %v2560 = vunpack.c.l.b16 %v2464
        %v2561 = vunpack.c.l.b16 %v2465
        %v2562 = vunpack.c.l.b16 %v2466
        %v2563 = vunpack.c.l.b16 %v2467
        %v2564 = vunpack.c.l.b16 %v2468
        %v2565 = vunpack.c.l.b16 %v2469
        %v2566 = vunpack.c.l.b16 %v2470
        %v2567 = vunpack.c.l.b16 %v2471
        %v2568 = vunpack.c.l.b16 %v2472
        %v2569 = vunpack.c.l.b16 %v2473
        %v2570 = vunpack.c.l.b16 %v2474
        %v2571 = vunpack.c.l.b16 %v2475
        %v2572 = vunpack.c.l.b16 %v2476
        %v2573 = vunpack.c.l.b16 %v2477
        %v2574 = vunpack.c.l.b16 %v2478
        %v2575 = vunpack.c.l.b16 %v2479
        %v2576 = vunpack.c.l.b16 %v2480
        %v2577 = vpack.c.b16 %v2546, %v2545
        %v2578 = vpack.c.b16 %v2548, %v2547
        %v2579 = vpack.c.b16 %v2550, %v2549
        %v2580 = vpack.c.b16 %v2552, %v2551
        %v2581 = vpack.c.b16 %v2554, %v2553
        %v2582 = vpack.c.b16 %v2556, %v2555
        %v2583 = vpack.c.b16 %v2558, %v2557
        %v2584 = vpack.c.b16 %v2560, %v2559
        %v2585 = vpack.c.b16 %v2562, %v2561
        %v2586 = vpack.c.b16 %v2564, %v2563
        %v2587 = vpack.c.b16 %v2566, %v2565
        %v2588 = vpack.c.b16 %v2568, %v2567
        %v2589 = vpack.c.b16 %v2570, %v2569
        %v2590 = vpack.c.b16 %v2572, %v2571
        %v2591 = vpack.c.b16 %v2574, %v2573
        %v2592 = vpack.c.b16 %v2576, %v2575
        %v2625 = vunpack.c.l.b16 %v2481
        %v2626 = vunpack.c.l.b16 %v2482
        %v2627 = vunpack.c.l.b16 %v2483
        %v2628 = vunpack.c.l.b16 %v2484
        %v2629 = vunpack.c.l.b16 %v2485
        %v2630 = vunpack.c.l.b16 %v2486
        %v2631 = vunpack.c.l.b16 %v2487
        %v2632 = vunpack.c.l.b16 %v2488
        %v2633 = vunpack.c.l.b16 %v2489
        %v2634 = vunpack.c.l.b16 %v2490
        %v2635 = vunpack.c.l.b16 %v2491
        %v2636 = vunpack.c.l.b16 %v2492
        %v2637 = vunpack.c.l.b16 %v2493
        %v2638 = vunpack.c.l.b16 %v2494
        %v2639 = vunpack.c.l.b16 %v2495
        %v2640 = vunpack.c.l.b16 %v2496
        %v2641 = vpack.c.b16 %v2625, %v2625
        %v2642 = vpack.c.b16 %v2626, %v2626
        %v2643 = vpack.c.b16 %v2627, %v2627
        %v2644 = vpack.c.b16 %v2628, %v2628
        %v2645 = vpack.c.b16 %v2629, %v2629
        %v2646 = vpack.c.b16 %v2630, %v2630
        %v2647 = vpack.c.b16 %v2631, %v2631
        %v2648 = vpack.c.b16 %v2632, %v2632
        %v2649 = vpack.c.b16 %v2633, %v2633
        %v2650 = vpack.c.b16 %v2634, %v2634
        %v2651 = vpack.c.b16 %v2635, %v2635
        %v2652 = vpack.c.b16 %v2636, %v2636
        %v2653 = vpack.c.b16 %v2637, %v2637
        %v2654 = vpack.c.b16 %v2638, %v2638
        %v2655 = vpack.c.b16 %v2639, %v2639
        %v2656 = vpack.c.b16 %v2640, %v2640
        %v2658 = vshrl.u32 %v2577, 16
        %v2660 = vshll.u32 %v2577, 16
        %v2662 = vrot.slane %v2660, 1
        %v2663 = vor.u32 %v2658, %v2662
        %v2665 = vshll.u32 %v2641, 16
        %v2667 = vrot.slane %v2665, 1
        %v2668 = vsel %vm568, %v2663, %v2667
        %v2670 = vshrl.u32 %v2578, 16
        %v2672 = vshll.u32 %v2578, 16
        %v2674 = vrot.slane %v2672, 1
        %v2675 = vor.u32 %v2670, %v2674
        %v2677 = vshll.u32 %v2642, 16
        %v2679 = vrot.slane %v2677, 1
        %v2680 = vsel %vm568, %v2675, %v2679
        %v2682 = vshrl.u32 %v2579, 16
        %v2684 = vshll.u32 %v2579, 16
        %v2686 = vrot.slane %v2684, 1
        %v2687 = vor.u32 %v2682, %v2686
        %v2689 = vshll.u32 %v2643, 16
        %v2691 = vrot.slane %v2689, 1
        %v2692 = vsel %vm568, %v2687, %v2691
        %v2694 = vshrl.u32 %v2580, 16
        %v2696 = vshll.u32 %v2580, 16
        %v2698 = vrot.slane %v2696, 1
        %v2699 = vor.u32 %v2694, %v2698
        %v2701 = vshll.u32 %v2644, 16
        %v2703 = vrot.slane %v2701, 1
        %v2704 = vsel %vm568, %v2699, %v2703
        %v2706 = vshrl.u32 %v2581, 16
        %v2708 = vshll.u32 %v2581, 16
        %v2710 = vrot.slane %v2708, 1
        %v2711 = vor.u32 %v2706, %v2710
        %v2713 = vshll.u32 %v2645, 16
        %v2715 = vrot.slane %v2713, 1
        %v2716 = vsel %vm568, %v2711, %v2715
        %v2718 = vshrl.u32 %v2582, 16
        %v2720 = vshll.u32 %v2582, 16
        %v2722 = vrot.slane %v2720, 1
        %v2723 = vor.u32 %v2718, %v2722
        %v2725 = vshll.u32 %v2646, 16
        %v2727 = vrot.slane %v2725, 1
        %v2728 = vsel %vm568, %v2723, %v2727
        %v2730 = vshrl.u32 %v2583, 16
        %v2732 = vshll.u32 %v2583, 16
        %v2734 = vrot.slane %v2732, 1
        %v2735 = vor.u32 %v2730, %v2734
        %v2737 = vshll.u32 %v2647, 16
        %v2739 = vrot.slane %v2737, 1
        %v2740 = vsel %vm568, %v2735, %v2739
        %v2742 = vshrl.u32 %v2584, 16
        %v2744 = vshll.u32 %v2584, 16
        %v2746 = vrot.slane %v2744, 1
        %v2747 = vor.u32 %v2742, %v2746
        %v2749 = vshll.u32 %v2648, 16
        %v2751 = vrot.slane %v2749, 1
        %v2752 = vsel %vm568, %v2747, %v2751
        %v2754 = vshrl.u32 %v2585, 16
        %v2756 = vshll.u32 %v2585, 16
        %v2758 = vrot.slane %v2756, 1
        %v2759 = vor.u32 %v2754, %v2758
        %v2761 = vshll.u32 %v2649, 16
        %v2763 = vrot.slane %v2761, 1
        %v2764 = vsel %vm568, %v2759, %v2763
        %v2766 = vshrl.u32 %v2586, 16
        %v2768 = vshll.u32 %v2586, 16
        %v2770 = vrot.slane %v2768, 1
        %v2771 = vor.u32 %v2766, %v2770
        %v2773 = vshll.u32 %v2650, 16
        %v2775 = vrot.slane %v2773, 1
        %v2776 = vsel %vm568, %v2771, %v2775
        %v2778 = vshrl.u32 %v2587, 16
        %v2780 = vshll.u32 %v2587, 16
        %v2782 = vrot.slane %v2780, 1
        %v2783 = vor.u32 %v2778, %v2782
        %v2785 = vshll.u32 %v2651, 16
        %v2787 = vrot.slane %v2785, 1
        %v2788 = vsel %vm568, %v2783, %v2787
        %v2790 = vshrl.u32 %v2588, 16
        %v2792 = vshll.u32 %v2588, 16
        %v2794 = vrot.slane %v2792, 1
        %v2795 = vor.u32 %v2790, %v2794
        %v2797 = vshll.u32 %v2652, 16
        %v2799 = vrot.slane %v2797, 1
        %v2800 = vsel %vm568, %v2795, %v2799
        %v2802 = vshrl.u32 %v2589, 16
        %v2804 = vshll.u32 %v2589, 16
        %v2806 = vrot.slane %v2804, 1
        %v2807 = vor.u32 %v2802, %v2806
        %v2809 = vshll.u32 %v2653, 16
        %v2811 = vrot.slane %v2809, 1
        %v2812 = vsel %vm568, %v2807, %v2811
        %v2814 = vshrl.u32 %v2590, 16
        %v2816 = vshll.u32 %v2590, 16
        %v2818 = vrot.slane %v2816, 1
        %v2819 = vor.u32 %v2814, %v2818
        %v2821 = vshll.u32 %v2654, 16
        %v2823 = vrot.slane %v2821, 1
        %v2824 = vsel %vm568, %v2819, %v2823
        %v2826 = vshrl.u32 %v2591, 16
        %v2828 = vshll.u32 %v2591, 16
        %v2830 = vrot.slane %v2828, 1
        %v2831 = vor.u32 %v2826, %v2830
        %v2833 = vshll.u32 %v2655, 16
        %v2835 = vrot.slane %v2833, 1
        %v2836 = vsel %vm568, %v2831, %v2835
        %v2838 = vshrl.u32 %v2592, 16
        %v2840 = vshll.u32 %v2592, 16
        %v2842 = vrot.slane %v2840, 1
        %v2843 = vor.u32 %v2838, %v2842
        %v2845 = vshll.u32 %v2656, 16
        %v2847 = vrot.slane %v2845, 1
        %v2848 = vsel %vm568, %v2843, %v2847
        %v2881 = vunpack.c.l.b16 %v2497
        %v2882 = vunpack.c.l.b16 %v2498
        %v2883 = vunpack.c.l.b16 %v2499
        %v2884 = vunpack.c.l.b16 %v2500
        %v2885 = vunpack.c.l.b16 %v2501
        %v2886 = vunpack.c.l.b16 %v2502
        %v2887 = vunpack.c.l.b16 %v2503
        %v2888 = vunpack.c.l.b16 %v2504
        %v2889 = vunpack.c.l.b16 %v2505
        %v2890 = vunpack.c.l.b16 %v2506
        %v2891 = vunpack.c.l.b16 %v2507
        %v2892 = vunpack.c.l.b16 %v2508
        %v2893 = vunpack.c.l.b16 %v2509
        %v2894 = vunpack.c.l.b16 %v2510
        %v2895 = vunpack.c.l.b16 %v2511
        %v2896 = vunpack.c.l.b16 %v2512
        %v2897 = vpack.c.b16 %v2546, %v2881
        %v2898 = vpack.c.b16 %v2548, %v2882
        %v2899 = vpack.c.b16 %v2550, %v2883
        %v2900 = vpack.c.b16 %v2552, %v2884
        %v2901 = vpack.c.b16 %v2554, %v2885
        %v2902 = vpack.c.b16 %v2556, %v2886
        %v2903 = vpack.c.b16 %v2558, %v2887
        %v2904 = vpack.c.b16 %v2560, %v2888
        %v2905 = vpack.c.b16 %v2562, %v2889
        %v2906 = vpack.c.b16 %v2564, %v2890
        %v2907 = vpack.c.b16 %v2566, %v2891
        %v2908 = vpack.c.b16 %v2568, %v2892
        %v2909 = vpack.c.b16 %v2570, %v2893
        %v2910 = vpack.c.b16 %v2572, %v2894
        %v2911 = vpack.c.b16 %v2574, %v2895
        %v2912 = vpack.c.b16 %v2576, %v2896
        %v2913 = vrot.slane %v2897, 1
        %v2914 = vrot.slane %v2641, 1
        %v2915 = vsel %vm825, %v2913, %v2914
        %v2916 = vrot.slane %v2898, 1
        %v2917 = vrot.slane %v2642, 1
        %v2918 = vsel %vm825, %v2916, %v2917
        %v2919 = vrot.slane %v2899, 1
        %v2920 = vrot.slane %v2643, 1
        %v2921 = vsel %vm825, %v2919, %v2920
        %v2922 = vrot.slane %v2900, 1
        %v2923 = vrot.slane %v2644, 1
        %v2924 = vsel %vm825, %v2922, %v2923
        %v2925 = vrot.slane %v2901, 1
        %v2926 = vrot.slane %v2645, 1
        %v2927 = vsel %vm825, %v2925, %v2926
        %v2928 = vrot.slane %v2902, 1
        %v2929 = vrot.slane %v2646, 1
        %v2930 = vsel %vm825, %v2928, %v2929
        %v2931 = vrot.slane %v2903, 1
        %v2932 = vrot.slane %v2647, 1
        %v2933 = vsel %vm825, %v2931, %v2932
        %v2934 = vrot.slane %v2904, 1
        %v2935 = vrot.slane %v2648, 1
        %v2936 = vsel %vm825, %v2934, %v2935
        %v2937 = vrot.slane %v2905, 1
        %v2938 = vrot.slane %v2649, 1
        %v2939 = vsel %vm825, %v2937, %v2938
        %v2940 = vrot.slane %v2906, 1
        %v2941 = vrot.slane %v2650, 1
        %v2942 = vsel %vm825, %v2940, %v2941
        %v2943 = vrot.slane %v2907, 1
        %v2944 = vrot.slane %v2651, 1
        %v2945 = vsel %vm825, %v2943, %v2944
        %v2946 = vrot.slane %v2908, 1
        %v2947 = vrot.slane %v2652, 1
        %v2948 = vsel %vm825, %v2946, %v2947
        %v2949 = vrot.slane %v2909, 1
        %v2950 = vrot.slane %v2653, 1
        %v2951 = vsel %vm825, %v2949, %v2950
        %v2952 = vrot.slane %v2910, 1
        %v2953 = vrot.slane %v2654, 1
        %v2954 = vsel %vm825, %v2952, %v2953
        %v2955 = vrot.slane %v2911, 1
        %v2956 = vrot.slane %v2655, 1
        %v2957 = vsel %vm825, %v2955, %v2956
        %v2958 = vrot.slane %v2912, 1
        %v2959 = vrot.slane %v2656, 1
        %v2960 = vsel %vm825, %v2958, %v2959
        %s2977 = scalar_lea.vmem %s1, 384
        %v2978 = vld [vmem:[%s2977] sm:$0xf]
        %v2979 = vld [vmem:[%s2977 + $0x4] sm:$0xf]
        %v2980 = vld [vmem:[%s2977 + $0x8] sm:$0xf]
        %v2981 = vld [vmem:[%s2977 + $0xc] sm:$0xf]
        %v2982 = vld [vmem:[%s2977 + $0x10] sm:$0xf]
        %v2983 = vld [vmem:[%s2977 + $0x14] sm:$0xf]
        %v2984 = vld [vmem:[%s2977 + $0x18] sm:$0xf]
        %v2985 = vld [vmem:[%s2977 + $0x1c] sm:$0xf]
        %v2986 = vld [vmem:[%s2977 + $0x20] sm:$0xf]
        %v2987 = vld [vmem:[%s2977 + $0x24] sm:$0xf]
        %v2988 = vld [vmem:[%s2977 + $0x28] sm:$0xf]
        %v2989 = vld [vmem:[%s2977 + $0x2c] sm:$0xf]
        %v2990 = vld [vmem:[%s2977 + $0x30] sm:$0xf]
        %v2991 = vld [vmem:[%s2977 + $0x34] sm:$0xf]
        %v2992 = vld [vmem:[%s2977 + $0x38] sm:$0xf]
        %v2993 = vld [vmem:[%s2977 + $0x3c] sm:$0xf]
        %v2994 = vld [vmem:[%s2977 + $0x40] sm:$0xf]
        %v2995 = vld [vmem:[%s2977 + $0x44] sm:$0xf]
        %v2996 = vld [vmem:[%s2977 + $0x48] sm:$0xf]
        %v2997 = vld [vmem:[%s2977 + $0x4c] sm:$0xf]
        %v2998 = vld [vmem:[%s2977 + $0x50] sm:$0xf]
        %v2999 = vld [vmem:[%s2977 + $0x54] sm:$0xf]
        %v3000 = vld [vmem:[%s2977 + $0x58] sm:$0xf]
        %v3001 = vld [vmem:[%s2977 + $0x5c] sm:$0xf]
        %v3002 = vld [vmem:[%s2977 + $0x60] sm:$0xf]
        %v3003 = vld [vmem:[%s2977 + $0x64] sm:$0xf]
        %v3004 = vld [vmem:[%s2977 + $0x68] sm:$0xf]
        %v3005 = vld [vmem:[%s2977 + $0x6c] sm:$0xf]
        %v3006 = vld [vmem:[%s2977 + $0x70] sm:$0xf]
        %v3007 = vld [vmem:[%s2977 + $0x74] sm:$0xf]
        %v3008 = vld [vmem:[%s2977 + $0x78] sm:$0xf]
        %v3009 = vld [vmem:[%s2977 + $0x7c] sm:$0xf]
        %v3010 = vld [vmem:[%s2977 + $0x80] sm:$0xf]
        %v3011 = vld [vmem:[%s2977 + $0x84] sm:$0xf]
        %v3012 = vld [vmem:[%s2977 + $0x88] sm:$0xf]
        %v3013 = vld [vmem:[%s2977 + $0x8c] sm:$0xf]
        %v3014 = vld [vmem:[%s2977 + $0x90] sm:$0xf]
        %v3015 = vld [vmem:[%s2977 + $0x94] sm:$0xf]
        %v3016 = vld [vmem:[%s2977 + $0x98] sm:$0xf]
        %v3017 = vld [vmem:[%s2977 + $0x9c] sm:$0xf]
        %v3018 = vld [vmem:[%s2977 + $0xa0] sm:$0xf]
        %v3019 = vld [vmem:[%s2977 + $0xa4] sm:$0xf]
        %v3020 = vld [vmem:[%s2977 + $0xa8] sm:$0xf]
        %v3021 = vld [vmem:[%s2977 + $0xac] sm:$0xf]
        %v3022 = vld [vmem:[%s2977 + $0xb0] sm:$0xf]
        %v3023 = vld [vmem:[%s2977 + $0xb4] sm:$0xf]
        %v3024 = vld [vmem:[%s2977 + $0xb8] sm:$0xf]
        %v3025 = vld [vmem:[%s2977 + $0xbc] sm:$0xf]
        %v3074 = vunpack.c.l.b16 %v2978
        %v3075 = vunpack.c.l.b16 %v2979
        %v3076 = vunpack.c.l.b16 %v2980
        %v3077 = vunpack.c.l.b16 %v2981
        %v3078 = vunpack.c.l.b16 %v2982
        %v3079 = vunpack.c.l.b16 %v2983
        %v3080 = vunpack.c.l.b16 %v2984
        %v3081 = vunpack.c.l.b16 %v2985
        %v3082 = vunpack.c.l.b16 %v2986
        %v3083 = vunpack.c.l.b16 %v2987
        %v3084 = vunpack.c.l.b16 %v2988
        %v3085 = vunpack.c.l.b16 %v2989
        %v3086 = vunpack.c.l.b16 %v2990
        %v3087 = vunpack.c.l.b16 %v2991
        %v3088 = vunpack.c.l.b16 %v2992
        %v3089 = vunpack.c.l.b16 %v2993
        %v3090 = vunpack.c.l.b16 %v2994
        %v3091 = vunpack.c.l.b16 %v2995
        %v3092 = vunpack.c.l.b16 %v2996
        %v3093 = vunpack.c.l.b16 %v2997
        %v3094 = vunpack.c.l.b16 %v2998
        %v3095 = vunpack.c.l.b16 %v2999
        %v3096 = vunpack.c.l.b16 %v3000
        %v3097 = vunpack.c.l.b16 %v3001
        %v3098 = vunpack.c.l.b16 %v3002
        %v3099 = vunpack.c.l.b16 %v3003
        %v3100 = vunpack.c.l.b16 %v3004
        %v3101 = vunpack.c.l.b16 %v3005
        %v3102 = vunpack.c.l.b16 %v3006
        %v3103 = vunpack.c.l.b16 %v3007
        %v3104 = vunpack.c.l.b16 %v3008
        %v3105 = vunpack.c.l.b16 %v3009
        %v3106 = vunpack.c.l.b16 %v3010
        %v3107 = vunpack.c.l.b16 %v3011
        %v3108 = vunpack.c.l.b16 %v3012
        %v3109 = vunpack.c.l.b16 %v3013
        %v3110 = vunpack.c.l.b16 %v3014
        %v3111 = vunpack.c.l.b16 %v3015
        %v3112 = vunpack.c.l.b16 %v3016
        %v3113 = vunpack.c.l.b16 %v3017
        %v3114 = vunpack.c.l.b16 %v3018
        %v3115 = vunpack.c.l.b16 %v3019
        %v3116 = vunpack.c.l.b16 %v3020
        %v3117 = vunpack.c.l.b16 %v3021
        %v3118 = vunpack.c.l.b16 %v3022
        %v3119 = vunpack.c.l.b16 %v3023
        %v3120 = vunpack.c.l.b16 %v3024
        %v3121 = vunpack.c.l.b16 %v3025
        %v3122 = vpack.c.b16 %v3075, %v3074
        %v3123 = vpack.c.b16 %v3077, %v3076
        %v3124 = vpack.c.b16 %v3079, %v3078
        %v3125 = vpack.c.b16 %v3081, %v3080
        %v3126 = vpack.c.b16 %v3083, %v3082
        %v3127 = vpack.c.b16 %v3085, %v3084
        %v3128 = vpack.c.b16 %v3087, %v3086
        %v3129 = vpack.c.b16 %v3089, %v3088
        %v3130 = vpack.c.b16 %v3091, %v3090
        %v3131 = vpack.c.b16 %v3093, %v3092
        %v3132 = vpack.c.b16 %v3095, %v3094
        %v3133 = vpack.c.b16 %v3097, %v3096
        %v3134 = vpack.c.b16 %v3099, %v3098
        %v3135 = vpack.c.b16 %v3101, %v3100
        %v3136 = vpack.c.b16 %v3103, %v3102
        %v3137 = vpack.c.b16 %v3105, %v3104
        %v3138 = vpack.c.b16 %v3107, %v3106
        %v3139 = vpack.c.b16 %v3109, %v3108
        %v3140 = vpack.c.b16 %v3111, %v3110
        %v3141 = vpack.c.b16 %v3113, %v3112
        %v3142 = vpack.c.b16 %v3115, %v3114
        %v3143 = vpack.c.b16 %v3117, %v3116
        %v3144 = vpack.c.b16 %v3119, %v3118
        %v3145 = vpack.c.b16 %v3121, %v3120
        %3170 = vmatprep.subr.bf16.mxu0 0
        %3171 = vmatpush1.bf16.msra.mxu0 %v3122
        %3172 = vmatprep.subr.bf16.mxu0 0
        %3173 = vmatpush1.bf16.msra.mxu0 %v3123
        %3174 = vmatprep.subr.bf16.mxu0 0
        %3175 = vmatpush1.bf16.msra.mxu0 %v3124
        %3176 = vmatprep.subr.bf16.mxu0 0
        %3177 = vmatpush1.bf16.msra.mxu0 %v3125
        %3178 = vmatprep.subr.bf16.mxu0 0
        %3179 = vmatpush1.bf16.msra.mxu0 %v3126
        %3180 = vmatprep.subr.bf16.mxu0 0
        %3181 = vmatpush1.bf16.msra.mxu0 %v3127
        %3182 = vmatprep.subr.bf16.mxu0 0
        %3183 = vmatpush1.bf16.msra.mxu0 %v3128
        %3184 = vmatprep.subr.bf16.mxu0 0
        %3185 = vmatpush1.bf16.msra.mxu0 %v3129
        %3186 = vmatprep.subr.bf16.mxu0 0
        %3187 = vmatpush1.bf16.msra.mxu0 %v3130
        %3188 = vmatprep.subr.bf16.mxu0 0
        %3189 = vmatpush1.bf16.msra.mxu0 %v3131
        %3190 = vmatprep.subr.bf16.mxu0 0
        %3191 = vmatpush1.bf16.msra.mxu0 %v3132
        %3192 = vmatprep.subr.bf16.mxu0 0
        %3193 = vmatpush1.bf16.msra.mxu0 %v3133
        %3194 = vmatprep.subr.bf16.mxu0 0
        %3195 = vmatpush1.bf16.msra.mxu0 %v3134
        %3196 = vmatprep.subr.bf16.mxu0 0
        %3197 = vmatpush1.bf16.msra.mxu0 %v3135
        %3198 = vmatprep.subr.bf16.mxu0 0
        %3199 = vmatpush1.bf16.msra.mxu0 %v3136
        %3200 = vmatprep.subr.bf16.mxu0 0
        %3201 = vmatpush1.bf16.msra.mxu0 %v3137
        %3202 = vmatprep.mubr.bf16.mxu0 %v2668
        %3203 = vmatmul.mubr.bf16.gmra.mrb[0].mxu0 %v2577
        %v3204 = vpop.f32.mrb[0].mxu0
        %v3205 = vadd.f32 0.0, %v3204
        %v3206 = vpop.f32.mrb[0].mxu0
        %v3207 = vpop.f32.mrb[0].mxu0
        %v3208 = vadd.f32 0.0, %v3207
        %v3209 = vpop.f32.mrb[0].mxu0
        %3210 = vmatprep.mubr.bf16.mxu0 %v2680
        %3211 = vmatmul.mubr.bf16.gmra.mrb[0].mxu0 %v2578
        %v3212 = vpop.f32.mrb[0].mxu0
        %v3213 = vadd.f32 0.0, %v3212
        %v3214 = vpop.f32.mrb[0].mxu0
        %v3215 = vpop.f32.mrb[0].mxu0
        %v3216 = vadd.f32 0.0, %v3215
        %v3217 = vpop.f32.mrb[0].mxu0
        %3218 = vmatprep.mubr.bf16.mxu0 %v2692
        %3219 = vmatmul.mubr.bf16.gmra.mrb[0].mxu0 %v2579
        %v3220 = vpop.f32.mrb[0].mxu0
        %v3221 = vadd.f32 0.0, %v3220
        %v3222 = vpop.f32.mrb[0].mxu0
        %v3223 = vpop.f32.mrb[0].mxu0
        %v3224 = vadd.f32 0.0, %v3223
        %v3225 = vpop.f32.mrb[0].mxu0
        %3226 = vmatprep.mubr.bf16.mxu0 %v2704
        %3227 = vmatmul.mubr.bf16.gmra.mrb[0].mxu0 %v2580
        %v3228 = vpop.f32.mrb[0].mxu0
        %v3229 = vadd.f32 0.0, %v3228
        %v3230 = vpop.f32.mrb[0].mxu0
        %v3231 = vpop.f32.mrb[0].mxu0
        %v3232 = vadd.f32 0.0, %v3231
        %v3233 = vpop.f32.mrb[0].mxu0
        %3234 = vmatprep.mubr.bf16.mxu0 %v2716
        %3235 = vmatmul.mubr.bf16.gmra.mrb[0].mxu0 %v2581
        %v3236 = vpop.f32.mrb[0].mxu0
        %v3237 = vadd.f32 0.0, %v3236
        %v3238 = vpop.f32.mrb[0].mxu0
        %v3239 = vpop.f32.mrb[0].mxu0
        %v3240 = vadd.f32 0.0, %v3239
        %v3241 = vpop.f32.mrb[0].mxu0
        %3242 = vmatprep.mubr.bf16.mxu0 %v2728
        %3243 = vmatmul.mubr.bf16.gmra.mrb[0].mxu0 %v2582
        %v3244 = vpop.f32.mrb[0].mxu0
        %v3245 = vadd.f32 0.0, %v3244
        %v3246 = vpop.f32.mrb[0].mxu0
        %v3247 = vpop.f32.mrb[0].mxu0
        %v3248 = vadd.f32 0.0, %v3247
        %v3249 = vpop.f32.mrb[0].mxu0
        %3250 = vmatprep.mubr.bf16.mxu0 %v2740
        %3251 = vmatmul.mubr.bf16.gmra.mrb[0].mxu0 %v2583
        %v3252 = vpop.f32.mrb[0].mxu0
        %v3253 = vadd.f32 0.0, %v3252
        %v3254 = vpop.f32.mrb[0].mxu0
        %v3255 = vpop.f32.mrb[0].mxu0
        %v3256 = vadd.f32 0.0, %v3255
        %v3257 = vpop.f32.mrb[0].mxu0
        %3258 = vmatprep.mubr.bf16.mxu0 %v2752
        %3259 = vmatmul.mubr.bf16.gmra.mrb[0].mxu0 %v2584
        %v3260 = vpop.f32.mrb[0].mxu0
        %v3261 = vadd.f32 0.0, %v3260
        %v3262 = vpop.f32.mrb[0].mxu0
        %v3263 = vpop.f32.mrb[0].mxu0
        %v3264 = vadd.f32 0.0, %v3263
        %v3265 = vpop.f32.mrb[0].mxu0
        %3266 = vmatprep.mubr.bf16.mxu0 %v2764
        %3267 = vmatmul.mubr.bf16.gmra.mrb[0].mxu0 %v2585
        %v3268 = vpop.f32.mrb[0].mxu0
        %v3269 = vadd.f32 0.0, %v3268
        %v3270 = vpop.f32.mrb[0].mxu0
        %v3271 = vpop.f32.mrb[0].mxu0
        %v3272 = vadd.f32 0.0, %v3271
        %v3273 = vpop.f32.mrb[0].mxu0
        %3274 = vmatprep.mubr.bf16.mxu0 %v2776
        %3275 = vmatmul.mubr.bf16.gmra.mrb[0].mxu0 %v2586
        %v3276 = vpop.f32.mrb[0].mxu0
        %v3277 = vadd.f32 0.0, %v3276
        %v3278 = vpop.f32.mrb[0].mxu0
        %v3279 = vpop.f32.mrb[0].mxu0
        %v3280 = vadd.f32 0.0, %v3279
        %v3281 = vpop.f32.mrb[0].mxu0
        %3282 = vmatprep.mubr.bf16.mxu0 %v2788
        %3283 = vmatmul.mubr.bf16.gmra.mrb[0].mxu0 %v2587
        %v3284 = vpop.f32.mrb[0].mxu0
        %v3285 = vadd.f32 0.0, %v3284
        %v3286 = vpop.f32.mrb[0].mxu0
        %v3287 = vpop.f32.mrb[0].mxu0
        %v3288 = vadd.f32 0.0, %v3287
        %v3289 = vpop.f32.mrb[0].mxu0
        %3290 = vmatprep.mubr.bf16.mxu0 %v2800
        %3291 = vmatmul.mubr.bf16.gmra.mrb[0].mxu0 %v2588
        %v3292 = vpop.f32.mrb[0].mxu0
        %v3293 = vadd.f32 0.0, %v3292
        %v3294 = vpop.f32.mrb[0].mxu0
        %v3295 = vpop.f32.mrb[0].mxu0
        %v3296 = vadd.f32 0.0, %v3295
        %v3297 = vpop.f32.mrb[0].mxu0
        %3298 = vmatprep.mubr.bf16.mxu0 %v2812
        %3299 = vmatmul.mubr.bf16.gmra.mrb[0].mxu0 %v2589
        %v3300 = vpop.f32.mrb[0].mxu0
        %v3301 = vadd.f32 0.0, %v3300
        %v3302 = vpop.f32.mrb[0].mxu0
        %v3303 = vpop.f32.mrb[0].mxu0
        %v3304 = vadd.f32 0.0, %v3303
        %v3305 = vpop.f32.mrb[0].mxu0
        %3306 = vmatprep.mubr.bf16.mxu0 %v2824
        %3307 = vmatmul.mubr.bf16.gmra.mrb[0].mxu0 %v2590
        %v3308 = vpop.f32.mrb[0].mxu0
        %v3309 = vadd.f32 0.0, %v3308
        %v3310 = vpop.f32.mrb[0].mxu0
        %v3311 = vpop.f32.mrb[0].mxu0
        %v3312 = vadd.f32 0.0, %v3311
        %v3313 = vpop.f32.mrb[0].mxu0
        %3314 = vmatprep.mubr.bf16.mxu0 %v2836
        %3315 = vmatmul.mubr.bf16.gmra.mrb[0].mxu0 %v2591
        %v3316 = vpop.f32.mrb[0].mxu0
        %v3317 = vadd.f32 0.0, %v3316
        %v3318 = vpop.f32.mrb[0].mxu0
        %v3319 = vpop.f32.mrb[0].mxu0
        %v3320 = vadd.f32 0.0, %v3319
        %v3321 = vpop.f32.mrb[0].mxu0
        %3322 = vmatprep.mubr.bf16.mxu0 %v2848
        %3323 = vmatmul.mubr.bf16.gmra.mrb[0].mxu0 %v2592
        %v3324 = vpop.f32.mrb[0].mxu0
        %v3325 = vadd.f32 0.0, %v3324
        %v3326 = vpop.f32.mrb[0].mxu0
        %v3327 = vpop.f32.mrb[0].mxu0
        %v3328 = vadd.f32 0.0, %v3327
        %v3329 = vpop.f32.mrb[0].mxu0
        %3330 = vdwg.mxu0
        %3331 = vmatprep.subr.bf16.mxu0 0
        %3332 = vmatpush1.bf16.msra.mxu0 %v3138
        %3333 = vmatprep.subr.bf16.mxu0 0
        %3334 = vmatpush1.bf16.msra.mxu0 %v3139
        %3335 = vmatprep.subr.bf16.mxu0 0
        %3336 = vmatpush1.bf16.msra.mxu0 %v3140
        %3337 = vmatprep.subr.bf16.mxu0 0
        %3338 = vmatpush1.bf16.msra.mxu0 %v3141
        %3339 = vmatprep.subr.bf16.mxu0 0
        %3340 = vmatpush1.bf16.msra.mxu0 %v3142
        %3341 = vmatprep.subr.bf16.mxu0 0
        %3342 = vmatpush1.bf16.msra.mxu0 %v3143
        %3343 = vmatprep.subr.bf16.mxu0 0
        %3344 = vmatpush1.bf16.msra.mxu0 %v3144
        %3345 = vmatprep.subr.bf16.mxu0 0
        %3346 = vmatpush1.bf16.msra.mxu0 %v3145
        %3347 = vmatprep.subr.bf16.mxu0 0
        %3348 = vmatpush1.bf16.msra.mxu0 0
        %3349 = vmatprep.subr.bf16.mxu0 0
        %3350 = vmatpush1.bf16.msra.mxu0 0
        %3351 = vmatprep.subr.bf16.mxu0 0
        %3352 = vmatpush1.bf16.msra.mxu0 0
        %3353 = vmatprep.subr.bf16.mxu0 0
        %3354 = vmatpush1.bf16.msra.mxu0 0
        %3355 = vmatprep.subr.bf16.mxu0 0
        %3356 = vmatpush1.bf16.msra.mxu0 0
        %3357 = vmatprep.subr.bf16.mxu0 0
        %3358 = vmatpush1.bf16.msra.mxu0 0
        %3359 = vmatprep.subr.bf16.mxu0 0
        %3360 = vmatpush1.bf16.msra.mxu0 0
        %3361 = vmatprep.subr.bf16.mxu0 0
        %3362 = vmatpush1.bf16.msra.mxu0 0
        %3363 = vmatprep.mubr.bf16.mxu0 0
        %3364 = vmatmul.mubr.bf16.gmra.mrb[0].mxu0 %v2915
        %v3365 = vpop.f32.mrb[0].mxu0
        %v3366 = vadd.f32 %v3205, %v3365
        %v3367 = vpop.f32.mrb[0].mxu0
        %v3368 = vpop.f32.mrb[0].mxu0
        %v3369 = vadd.f32 %v3208, %v3368
        %v3370 = vpop.f32.mrb[0].mxu0
        %3371 = vmatprep.mubr.bf16.mxu0 0
        %3372 = vmatmul.mubr.bf16.gmra.mrb[0].mxu0 %v2918
        %v3373 = vpop.f32.mrb[0].mxu0
        %v3374 = vadd.f32 %v3213, %v3373
        %v3375 = vpop.f32.mrb[0].mxu0
        %v3376 = vpop.f32.mrb[0].mxu0
        %v3377 = vadd.f32 %v3216, %v3376
        %v3378 = vpop.f32.mrb[0].mxu0
        %3379 = vmatprep.mubr.bf16.mxu0 0
        %3380 = vmatmul.mubr.bf16.gmra.mrb[0].mxu0 %v2921
        %v3381 = vpop.f32.mrb[0].mxu0
        %v3382 = vadd.f32 %v3221, %v3381
        %v3383 = vpop.f32.mrb[0].mxu0
        %v3384 = vpop.f32.mrb[0].mxu0
        %v3385 = vadd.f32 %v3224, %v3384
        %v3386 = vpop.f32.mrb[0].mxu0
        %3387 = vmatprep.mubr.bf16.mxu0 0
        %3388 = vmatmul.mubr.bf16.gmra.mrb[0].mxu0 %v2924
        %v3389 = vpop.f32.mrb[0].mxu0
        %v3390 = vadd.f32 %v3229, %v3389
        %v3391 = vpop.f32.mrb[0].mxu0
        %v3392 = vpop.f32.mrb[0].mxu0
        %v3393 = vadd.f32 %v3232, %v3392
        %v3394 = vpop.f32.mrb[0].mxu0
        %3395 = vmatprep.mubr.bf16.mxu0 0
        %3396 = vmatmul.mubr.bf16.gmra.mrb[0].mxu0 %v2927
        %v3397 = vpop.f32.mrb[0].mxu0
        %v3398 = vadd.f32 %v3237, %v3397
        %v3399 = vpop.f32.mrb[0].mxu0
        %v3400 = vpop.f32.mrb[0].mxu0
        %v3401 = vadd.f32 %v3240, %v3400
        %v3402 = vpop.f32.mrb[0].mxu0
        %3403 = vmatprep.mubr.bf16.mxu0 0
        %3404 = vmatmul.mubr.bf16.gmra.mrb[0].mxu0 %v2930
        %v3405 = vpop.f32.mrb[0].mxu0
        %v3406 = vadd.f32 %v3245, %v3405
        %v3407 = vpop.f32.mrb[0].mxu0
        %v3408 = vpop.f32.mrb[0].mxu0
        %v3409 = vadd.f32 %v3248, %v3408
        %v3410 = vpop.f32.mrb[0].mxu0
        %3411 = vmatprep.mubr.bf16.mxu0 0
        %3412 = vmatmul.mubr.bf16.gmra.mrb[0].mxu0 %v2933
        %v3413 = vpop.f32.mrb[0].mxu0
        %v3414 = vadd.f32 %v3253, %v3413
        %v3415 = vpop.f32.mrb[0].mxu0
        %v3416 = vpop.f32.mrb[0].mxu0
        %v3417 = vadd.f32 %v3256, %v3416
        %v3418 = vpop.f32.mrb[0].mxu0
        %3419 = vmatprep.mubr.bf16.mxu0 0
        %3420 = vmatmul.mubr.bf16.gmra.mrb[0].mxu0 %v2936
        %v3421 = vpop.f32.mrb[0].mxu0
        %v3422 = vadd.f32 %v3261, %v3421
        %v3423 = vpop.f32.mrb[0].mxu0
        %v3424 = vpop.f32.mrb[0].mxu0
        %v3425 = vadd.f32 %v3264, %v3424
        %v3426 = vpop.f32.mrb[0].mxu0
        %3427 = vmatprep.mubr.bf16.mxu0 0
        %3428 = vmatmul.mubr.bf16.gmra.mrb[0].mxu0 %v2939
        %v3429 = vpop.f32.mrb[0].mxu0
        %v3430 = vadd.f32 %v3269, %v3429
        %v3431 = vpop.f32.mrb[0].mxu0
        %v3432 = vpop.f32.mrb[0].mxu0
        %v3433 = vadd.f32 %v3272, %v3432
        %v3434 = vpop.f32.mrb[0].mxu0
        %3435 = vmatprep.mubr.bf16.mxu0 0
        %3436 = vmatmul.mubr.bf16.gmra.mrb[0].mxu0 %v2942
        %v3437 = vpop.f32.mrb[0].mxu0
        %v3438 = vadd.f32 %v3277, %v3437
        %v3439 = vpop.f32.mrb[0].mxu0
        %v3440 = vpop.f32.mrb[0].mxu0
        %v3441 = vadd.f32 %v3280, %v3440
        %v3442 = vpop.f32.mrb[0].mxu0
        %3443 = vmatprep.mubr.bf16.mxu0 0
        %3444 = vmatmul.mubr.bf16.gmra.mrb[0].mxu0 %v2945
        %v3445 = vpop.f32.mrb[0].mxu0
        %v3446 = vadd.f32 %v3285, %v3445
        %v3447 = vpop.f32.mrb[0].mxu0
        %v3448 = vpop.f32.mrb[0].mxu0
        %v3449 = vadd.f32 %v3288, %v3448
        %v3450 = vpop.f32.mrb[0].mxu0
        %3451 = vmatprep.mubr.bf16.mxu0 0
        %3452 = vmatmul.mubr.bf16.gmra.mrb[0].mxu0 %v2948
        %v3453 = vpop.f32.mrb[0].mxu0
        %v3454 = vadd.f32 %v3293, %v3453
        %v3455 = vpop.f32.mrb[0].mxu0
        %v3456 = vpop.f32.mrb[0].mxu0
        %v3457 = vadd.f32 %v3296, %v3456
        %v3458 = vpop.f32.mrb[0].mxu0
        %3459 = vmatprep.mubr.bf16.mxu0 0
        %3460 = vmatmul.mubr.bf16.gmra.mrb[0].mxu0 %v2951
        %v3461 = vpop.f32.mrb[0].mxu0
        %v3462 = vadd.f32 %v3301, %v3461
        %v3463 = vpop.f32.mrb[0].mxu0
        %v3464 = vpop.f32.mrb[0].mxu0
        %v3465 = vadd.f32 %v3304, %v3464
        %v3466 = vpop.f32.mrb[0].mxu0
        %3467 = vmatprep.mubr.bf16.mxu0 0
        %3468 = vmatmul.mubr.bf16.gmra.mrb[0].mxu0 %v2954
        %v3469 = vpop.f32.mrb[0].mxu0
        %v3470 = vadd.f32 %v3309, %v3469
        %v3471 = vpop.f32.mrb[0].mxu0
        %v3472 = vpop.f32.mrb[0].mxu0
        %v3473 = vadd.f32 %v3312, %v3472
        %v3474 = vpop.f32.mrb[0].mxu0
        %3475 = vmatprep.mubr.bf16.mxu0 0
        %3476 = vmatmul.mubr.bf16.gmra.mrb[0].mxu0 %v2957
        %v3477 = vpop.f32.mrb[0].mxu0
        %v3478 = vadd.f32 %v3317, %v3477
        %v3479 = vpop.f32.mrb[0].mxu0
        %v3480 = vpop.f32.mrb[0].mxu0
        %v3481 = vadd.f32 %v3320, %v3480
        %v3482 = vpop.f32.mrb[0].mxu0
        %3483 = vmatprep.mubr.bf16.mxu0 0
        %3484 = vmatmul.mubr.bf16.gmra.mrb[0].mxu0 %v2960
        %v3485 = vpop.f32.mrb[0].mxu0
        %v3486 = vadd.f32 %v3325, %v3485
        %v3487 = vpop.f32.mrb[0].mxu0
        %v3488 = vpop.f32.mrb[0].mxu0
        %v3489 = vadd.f32 %v3328, %v3488
        %v3490 = vpop.f32.mrb[0].mxu0
        %3491 = vdwg.mxu0
        %v3492 = vadd.f32 %v2322, %v3366
        %v3493 = vadd.f32 %v2325, %v3369
        %v3494 = vadd.f32 %v2330, %v3374
        %v3495 = vadd.f32 %v2333, %v3377
        %v3496 = vadd.f32 %v2338, %v3382
        %v3497 = vadd.f32 %v2341, %v3385
        %v3498 = vadd.f32 %v2346, %v3390
        %v3499 = vadd.f32 %v2349, %v3393
        %v3500 = vadd.f32 %v2354, %v3398
        %v3501 = vadd.f32 %v2357, %v3401
        %v3502 = vadd.f32 %v2362, %v3406
        %v3503 = vadd.f32 %v2365, %v3409
        %v3504 = vadd.f32 %v2370, %v3414
        %v3505 = vadd.f32 %v2373, %v3417
        %v3506 = vadd.f32 %v2378, %v3422
        %v3507 = vadd.f32 %v2381, %v3425
        %v3508 = vadd.f32 %v2386, %v3430
        %v3509 = vadd.f32 %v2389, %v3433
        %v3510 = vadd.f32 %v2394, %v3438
        %v3511 = vadd.f32 %v2397, %v3441
        %v3512 = vadd.f32 %v2402, %v3446
        %v3513 = vadd.f32 %v2405, %v3449
        %v3514 = vadd.f32 %v2410, %v3454
        %v3515 = vadd.f32 %v2413, %v3457
        %v3516 = vadd.f32 %v2418, %v3462
        %v3517 = vadd.f32 %v2421, %v3465
        %v3518 = vadd.f32 %v2426, %v3470
        %v3519 = vadd.f32 %v2429, %v3473
        %v3520 = vadd.f32 %v2434, %v3478
        %v3521 = vadd.f32 %v2437, %v3481
        %v3522 = vadd.f32 %v2442, %v3486
        %v3523 = vadd.f32 %v2445, %v3489
        %v3524 = vld [vmem:[%s2] sm:$0x1]
        %v3526 = vlaneseq
        %v3527 = vshrl.u32 %v3526, 7
        %v3528 = vsub.s32 0, %v3527
        %v3529 = vrot.slane %v3524, %v3528
        %v3531 = vadd.f32 %v3492, %v3529
        %v3532 = vadd.f32 %v3493, %v3529
        %v3533 = vadd.f32 %v3494, %v3529
        %v3534 = vadd.f32 %v3495, %v3529
        %v3535 = vadd.f32 %v3496, %v3529
        %v3536 = vadd.f32 %v3497, %v3529
        %v3537 = vadd.f32 %v3498, %v3529
        %v3538 = vadd.f32 %v3499, %v3529
        %v3539 = vadd.f32 %v3500, %v3529
        %v3540 = vadd.f32 %v3501, %v3529
        %v3541 = vadd.f32 %v3502, %v3529
        %v3542 = vadd.f32 %v3503, %v3529
        %v3543 = vadd.f32 %v3504, %v3529
        %v3544 = vadd.f32 %v3505, %v3529
        %v3545 = vadd.f32 %v3506, %v3529
        %v3546 = vadd.f32 %v3507, %v3529
        %v3547 = vadd.f32 %v3508, %v3529
        %v3548 = vadd.f32 %v3509, %v3529
        %v3549 = vadd.f32 %v3510, %v3529
        %v3550 = vadd.f32 %v3511, %v3529
        %v3551 = vadd.f32 %v3512, %v3529
        %v3552 = vadd.f32 %v3513, %v3529
        %v3553 = vadd.f32 %v3514, %v3529
        %v3554 = vadd.f32 %v3515, %v3529
        %v3555 = vadd.f32 %v3516, %v3529
        %v3556 = vadd.f32 %v3517, %v3529
        %v3557 = vadd.f32 %v3518, %v3529
        %v3558 = vadd.f32 %v3519, %v3529
        %v3559 = vadd.f32 %v3520, %v3529
        %v3560 = vadd.f32 %v3521, %v3529
        %v3561 = vadd.f32 %v3522, %v3529
        %v3562 = vadd.f32 %v3523, %v3529
        %v3563 = vxor.u32 %v3531, 2147483648
        %v3564 = vxor.u32 %v3532, 2147483648
        %v3565 = vxor.u32 %v3533, 2147483648
        %v3566 = vxor.u32 %v3534, 2147483648
        %v3567 = vxor.u32 %v3535, 2147483648
        %v3568 = vxor.u32 %v3536, 2147483648
        %v3569 = vxor.u32 %v3537, 2147483648
        %v3570 = vxor.u32 %v3538, 2147483648
        %v3571 = vxor.u32 %v3539, 2147483648
        %v3572 = vxor.u32 %v3540, 2147483648
        %v3573 = vxor.u32 %v3541, 2147483648
        %v3574 = vxor.u32 %v3542, 2147483648
        %v3575 = vxor.u32 %v3543, 2147483648
        %v3576 = vxor.u32 %v3544, 2147483648
        %v3577 = vxor.u32 %v3545, 2147483648
        %v3578 = vxor.u32 %v3546, 2147483648
        %v3579 = vxor.u32 %v3547, 2147483648
        %v3580 = vxor.u32 %v3548, 2147483648
        %v3581 = vxor.u32 %v3549, 2147483648
        %v3582 = vxor.u32 %v3550, 2147483648
        %v3583 = vxor.u32 %v3551, 2147483648
        %v3584 = vxor.u32 %v3552, 2147483648
        %v3585 = vxor.u32 %v3553, 2147483648
        %v3586 = vxor.u32 %v3554, 2147483648
        %v3587 = vxor.u32 %v3555, 2147483648
        %v3588 = vxor.u32 %v3556, 2147483648
        %v3589 = vxor.u32 %v3557, 2147483648
        %v3590 = vxor.u32 %v3558, 2147483648
        %v3591 = vxor.u32 %v3559, 2147483648
        %v3592 = vxor.u32 %v3560, 2147483648
        %v3593 = vxor.u32 %v3561, 2147483648
        %v3594 = vxor.u32 %v3562, 2147483648
        %v3595 = vmul.f32 %v3563, 1.442695
        %v3596 = vpow.pop %v3595
        %v3597 = vmul.f32 %v3564, 1.442695
        %v3598 = vpow.pop %v3597
        %v3599 = vmul.f32 %v3565, 1.442695
        %v3600 = vpow.pop %v3599
        %v3601 = vmul.f32 %v3566, 1.442695
        %v3602 = vpow.pop %v3601
        %v3603 = vmul.f32 %v3567, 1.442695
        %v3604 = vpow.pop %v3603
        %v3605 = vmul.f32 %v3568, 1.442695
        %v3606 = vpow.pop %v3605
        %v3607 = vmul.f32 %v3569, 1.442695
        %v3608 = vpow.pop %v3607
        %v3609 = vmul.f32 %v3570, 1.442695
        %v3610 = vpow.pop %v3609
        %v3611 = vmul.f32 %v3571, 1.442695
        %v3612 = vpow.pop %v3611
        %v3613 = vmul.f32 %v3572, 1.442695
        %v3614 = vpow.pop %v3613
        %v3615 = vmul.f32 %v3573, 1.442695
        %v3616 = vpow.pop %v3615
        %v3617 = vmul.f32 %v3574, 1.442695
        %v3618 = vpow.pop %v3617
        %v3619 = vmul.f32 %v3575, 1.442695
        %v3620 = vpow.pop %v3619
        %v3621 = vmul.f32 %v3576, 1.442695
        %v3622 = vpow.pop %v3621
        %v3623 = vmul.f32 %v3577, 1.442695
        %v3624 = vpow.pop %v3623
        %v3625 = vmul.f32 %v3578, 1.442695
        %v3626 = vpow.pop %v3625
        %v3627 = vmul.f32 %v3579, 1.442695
        %v3628 = vpow.pop %v3627
        %v3629 = vmul.f32 %v3580, 1.442695
        %v3630 = vpow.pop %v3629
        %v3631 = vmul.f32 %v3581, 1.442695
        %v3632 = vpow.pop %v3631
        %v3633 = vmul.f32 %v3582, 1.442695
        %v3634 = vpow.pop %v3633
        %v3635 = vmul.f32 %v3583, 1.442695
        %v3636 = vpow.pop %v3635
        %v3637 = vmul.f32 %v3584, 1.442695
        %v3638 = vpow.pop %v3637
        %v3639 = vmul.f32 %v3585, 1.442695
        %v3640 = vpow.pop %v3639
        %v3641 = vmul.f32 %v3586, 1.442695
        %v3642 = vpow.pop %v3641
        %v3643 = vmul.f32 %v3587, 1.442695
        %v3644 = vpow.pop %v3643
        %v3645 = vmul.f32 %v3588, 1.442695
        %v3646 = vpow.pop %v3645
        %v3647 = vmul.f32 %v3589, 1.442695
        %v3648 = vpow.pop %v3647
        %v3649 = vmul.f32 %v3590, 1.442695
        %v3650 = vpow.pop %v3649
        %v3651 = vmul.f32 %v3591, 1.442695
        %v3652 = vpow.pop %v3651
        %v3653 = vmul.f32 %v3592, 1.442695
        %v3654 = vpow.pop %v3653
        %v3655 = vmul.f32 %v3593, 1.442695
        %v3656 = vpow.pop %v3655
        %v3657 = vmul.f32 %v3594, 1.442695
        %v3658 = vpow.pop %v3657
        %v3659 = vadd.f32 %v3596, 1.0
        %v3660 = vadd.f32 %v3598, 1.0
        %v3661 = vadd.f32 %v3600, 1.0
        %v3662 = vadd.f32 %v3602, 1.0
        %v3663 = vadd.f32 %v3604, 1.0
        %v3664 = vadd.f32 %v3606, 1.0
        %v3665 = vadd.f32 %v3608, 1.0
        %v3666 = vadd.f32 %v3610, 1.0
        %v3667 = vadd.f32 %v3612, 1.0
        %v3668 = vadd.f32 %v3614, 1.0
        %v3669 = vadd.f32 %v3616, 1.0
        %v3670 = vadd.f32 %v3618, 1.0
        %v3671 = vadd.f32 %v3620, 1.0
        %v3672 = vadd.f32 %v3622, 1.0
        %v3673 = vadd.f32 %v3624, 1.0
        %v3674 = vadd.f32 %v3626, 1.0
        %v3675 = vadd.f32 %v3628, 1.0
        %v3676 = vadd.f32 %v3630, 1.0
        %v3677 = vadd.f32 %v3632, 1.0
        %v3678 = vadd.f32 %v3634, 1.0
        %v3679 = vadd.f32 %v3636, 1.0
        %v3680 = vadd.f32 %v3638, 1.0
        %v3681 = vadd.f32 %v3640, 1.0
        %v3682 = vadd.f32 %v3642, 1.0
        %v3683 = vadd.f32 %v3644, 1.0
        %v3684 = vadd.f32 %v3646, 1.0
        %v3685 = vadd.f32 %v3648, 1.0
        %v3686 = vadd.f32 %v3650, 1.0
        %v3687 = vadd.f32 %v3652, 1.0
        %v3688 = vadd.f32 %v3654, 1.0
        %v3689 = vadd.f32 %v3656, 1.0
        %v3690 = vadd.f32 %v3658, 1.0
        %v3691 = vrcp.pop %v3659
        %v3692 = vmul.f32 1.0, %v3691
        %v3693 = vrcp.pop %v3660
        %v3694 = vmul.f32 1.0, %v3693
        %v3695 = vrcp.pop %v3661
        %v3696 = vmul.f32 1.0, %v3695
        %v3697 = vrcp.pop %v3662
        %v3698 = vmul.f32 1.0, %v3697
        %v3699 = vrcp.pop %v3663
        %v3700 = vmul.f32 1.0, %v3699
        %v3701 = vrcp.pop %v3664
        %v3702 = vmul.f32 1.0, %v3701
        %v3703 = vrcp.pop %v3665
        %v3704 = vmul.f32 1.0, %v3703
        %v3705 = vrcp.pop %v3666
        %v3706 = vmul.f32 1.0, %v3705
        %v3707 = vrcp.pop %v3667
        %v3708 = vmul.f32 1.0, %v3707
        %v3709 = vrcp.pop %v3668
        %v3710 = vmul.f32 1.0, %v3709
        %v3711 = vrcp.pop %v3669
        %v3712 = vmul.f32 1.0, %v3711
        %v3713 = vrcp.pop %v3670
        %v3714 = vmul.f32 1.0, %v3713
        %v3715 = vrcp.pop %v3671
        %v3716 = vmul.f32 1.0, %v3715
        %v3717 = vrcp.pop %v3672
        %v3718 = vmul.f32 1.0, %v3717
        %v3719 = vrcp.pop %v3673
        %v3720 = vmul.f32 1.0, %v3719
        %v3721 = vrcp.pop %v3674
        %v3722 = vmul.f32 1.0, %v3721
        %v3723 = vrcp.pop %v3675
        %v3724 = vmul.f32 1.0, %v3723
        %v3725 = vrcp.pop %v3676
        %v3726 = vmul.f32 1.0, %v3725
        %v3727 = vrcp.pop %v3677
        %v3728 = vmul.f32 1.0, %v3727
        %v3729 = vrcp.pop %v3678
        %v3730 = vmul.f32 1.0, %v3729
        %v3731 = vrcp.pop %v3679
        %v3732 = vmul.f32 1.0, %v3731
        %v3733 = vrcp.pop %v3680
        %v3734 = vmul.f32 1.0, %v3733
        %v3735 = vrcp.pop %v3681
        %v3736 = vmul.f32 1.0, %v3735
        %v3737 = vrcp.pop %v3682
        %v3738 = vmul.f32 1.0, %v3737
        %v3739 = vrcp.pop %v3683
        %v3740 = vmul.f32 1.0, %v3739
        %v3741 = vrcp.pop %v3684
        %v3742 = vmul.f32 1.0, %v3741
        %v3743 = vrcp.pop %v3685
        %v3744 = vmul.f32 1.0, %v3743
        %v3745 = vrcp.pop %v3686
        %v3746 = vmul.f32 1.0, %v3745
        %v3747 = vrcp.pop %v3687
        %v3748 = vmul.f32 1.0, %v3747
        %v3749 = vrcp.pop %v3688
        %v3750 = vmul.f32 1.0, %v3749
        %v3751 = vrcp.pop %v3689
        %v3752 = vmul.f32 1.0, %v3751
        %v3753 = vrcp.pop %v3690
        %v3754 = vmul.f32 1.0, %v3753
        %v3755 = vmul.f32 %v3531, %v3692
        %v3756 = vmul.f32 %v3532, %v3694
        %v3757 = vmul.f32 %v3533, %v3696
        %v3758 = vmul.f32 %v3534, %v3698
        %v3759 = vmul.f32 %v3535, %v3700
        %v3760 = vmul.f32 %v3536, %v3702
        %v3761 = vmul.f32 %v3537, %v3704
        %v3762 = vmul.f32 %v3538, %v3706
        %v3763 = vmul.f32 %v3539, %v3708
        %v3764 = vmul.f32 %v3540, %v3710
        %v3765 = vmul.f32 %v3541, %v3712
        %v3766 = vmul.f32 %v3542, %v3714
        %v3767 = vmul.f32 %v3543, %v3716
        %v3768 = vmul.f32 %v3544, %v3718
        %v3769 = vmul.f32 %v3545, %v3720
        %v3770 = vmul.f32 %v3546, %v3722
        %v3771 = vmul.f32 %v3547, %v3724
        %v3772 = vmul.f32 %v3548, %v3726
        %v3773 = vmul.f32 %v3549, %v3728
        %v3774 = vmul.f32 %v3550, %v3730
        %v3775 = vmul.f32 %v3551, %v3732
        %v3776 = vmul.f32 %v3552, %v3734
        %v3777 = vmul.f32 %v3553, %v3736
        %v3778 = vmul.f32 %v3554, %v3738
        %v3779 = vmul.f32 %v3555, %v3740
        %v3780 = vmul.f32 %v3556, %v3742
        %v3781 = vmul.f32 %v3557, %v3744
        %v3782 = vmul.f32 %v3558, %v3746
        %v3783 = vmul.f32 %v3559, %v3748
        %v3784 = vmul.f32 %v3560, %v3750
        %v3785 = vmul.f32 %v3561, %v3752
        %v3786 = vmul.f32 %v3562, %v3754
        %v3787 = vpack.c.bf16 %v3756, %v3755
        %v3788 = vpack.c.bf16 %v3758, %v3757
        %v3789 = vpack.c.bf16 %v3760, %v3759
        %v3790 = vpack.c.bf16 %v3762, %v3761
        %v3791 = vpack.c.bf16 %v3764, %v3763
        %v3792 = vpack.c.bf16 %v3766, %v3765
        %v3793 = vpack.c.bf16 %v3768, %v3767
        %v3794 = vpack.c.bf16 %v3770, %v3769
        %v3795 = vpack.c.bf16 %v3772, %v3771
        %v3796 = vpack.c.bf16 %v3774, %v3773
        %v3797 = vpack.c.bf16 %v3776, %v3775
        %v3798 = vpack.c.bf16 %v3778, %v3777
        %v3799 = vpack.c.bf16 %v3780, %v3779
        %v3800 = vpack.c.bf16 %v3782, %v3781
        %v3801 = vpack.c.bf16 %v3784, %v3783
        %v3802 = vpack.c.bf16 %v3786, %v3785
        %s3803 = scalar_lea.vmem [#allocation2], 24
        %3804 = vst [vmem:[%s3803 + $0x8] sm:$0xff] %v3787
        %3805 = vst [vmem:[%s3803 + $0x20] sm:$0xff] %v3788
        %3806 = vst [vmem:[%s3803 + $0x38] sm:$0xff] %v3789
        %3807 = vst [vmem:[%s3803 + $0x50] sm:$0xff] %v3790
        %3808 = vst [vmem:[%s3803 + $0x68] sm:$0xff] %v3791
        %3809 = vst [vmem:[%s3803 + $0x80] sm:$0xff] %v3792
        %3810 = vst [vmem:[%s3803 + $0x98] sm:$0xff] %v3793
        %3811 = vst [vmem:[%s3803 + $0xb0] sm:$0xff] %v3794
        %3812 = vst [vmem:[%s3803 + $0xc8] sm:$0xff] %v3795
        %3813 = vst [vmem:[%s3803 + $0xe0] sm:$0xff] %v3796
        %3814 = vst [vmem:[%s3803 + $0xf8] sm:$0xff] %v3797
        %3815 = vst [vmem:[%s3803 + $0x110] sm:$0xff] %v3798
        %3816 = vst [vmem:[%s3803 + $0x128] sm:$0xff] %v3799
        %3817 = vst [vmem:[%s3803 + $0x140] sm:$0xff] %v3800
        %3818 = vst [vmem:[%s3803 + $0x158] sm:$0xff] %v3801
        %3819 = vst [vmem:[%s3803 + $0x170] sm:$0xff] %v3802
        %v3820 = vld [vmem:[#allocation2] sm:$0x80]
        %v3821 = vld [vmem:[#allocation2 + $0x8] sm:$0xff]
        %v3822 = vld [vmem:[#allocation2 + $0x18] sm:$0x80]
        %v3823 = vld [vmem:[#allocation2 + $0x20] sm:$0xff]
        %v3824 = vld [vmem:[#allocation2 + $0x30] sm:$0x80]
        %v3825 = vld [vmem:[#allocation2 + $0x38] sm:$0xff]
        %v3826 = vld [vmem:[#allocation2 + $0x48] sm:$0x80]
        %v3827 = vld [vmem:[#allocation2 + $0x50] sm:$0xff]
        %v3828 = vld [vmem:[#allocation2 + $0x60] sm:$0x80]
        %v3829 = vld [vmem:[#allocation2 + $0x68] sm:$0xff]
        %v3830 = vld [vmem:[#allocation2 + $0x78] sm:$0x80]
        %v3831 = vld [vmem:[#allocation2 + $0x80] sm:$0xff]
        %v3832 = vld [vmem:[#allocation2 + $0x90] sm:$0x80]
        %v3833 = vld [vmem:[#allocation2 + $0x98] sm:$0xff]
        %v3834 = vld [vmem:[#allocation2 + $0xa8] sm:$0x80]
        %v3835 = vld [vmem:[#allocation2 + $0xb0] sm:$0xff]
        %v3836 = vld [vmem:[#allocation2 + $0xc0] sm:$0x80]
        %v3837 = vld [vmem:[#allocation2 + $0xc8] sm:$0xff]
        %v3838 = vld [vmem:[#allocation2 + $0xd8] sm:$0x80]
        %v3839 = vld [vmem:[#allocation2 + $0xe0] sm:$0xff]
        %v3840 = vld [vmem:[#allocation2 + $0xf0] sm:$0x80]
        %v3841 = vld [vmem:[#allocation2 + $0xf8] sm:$0xff]
        %v3842 = vld [vmem:[#allocation2 + $0x108] sm:$0x80]
        %v3843 = vld [vmem:[#allocation2 + $0x110] sm:$0xff]
        %v3844 = vld [vmem:[#allocation2 + $0x120] sm:$0x80]
        %v3845 = vld [vmem:[#allocation2 + $0x128] sm:$0xff]
        %v3846 = vld [vmem:[#allocation2 + $0x138] sm:$0x80]
        %v3847 = vld [vmem:[#allocation2 + $0x140] sm:$0xff]
        %v3848 = vld [vmem:[#allocation2 + $0x150] sm:$0x80]
        %v3849 = vld [vmem:[#allocation2 + $0x158] sm:$0xff]
        %v3850 = vld [vmem:[#allocation2 + $0x168] sm:$0x80]
        %v3851 = vld [vmem:[#allocation2 + $0x170] sm:$0xff]
        %v3852 = vld [vmem:[#allocation2 + $0x10] sm:$0x1]
        %v3853 = vld [vmem:[#allocation2 + $0x28] sm:$0x1]
        %v3854 = vld [vmem:[#allocation2 + $0x40] sm:$0x1]
        %v3855 = vld [vmem:[#allocation2 + $0x58] sm:$0x1]
        %v3856 = vld [vmem:[#allocation2 + $0x70] sm:$0x1]
        %v3857 = vld [vmem:[#allocation2 + $0x88] sm:$0x1]
        %v3858 = vld [vmem:[#allocation2 + $0xa0] sm:$0x1]
        %v3859 = vld [vmem:[#allocation2 + $0xb8] sm:$0x1]
        %v3860 = vld [vmem:[#allocation2 + $0xd0] sm:$0x1]
        %v3861 = vld [vmem:[#allocation2 + $0xe8] sm:$0x1]
        %v3862 = vld [vmem:[#allocation2 + $0x100] sm:$0x1]
        %v3863 = vld [vmem:[#allocation2 + $0x118] sm:$0x1]
        %v3864 = vld [vmem:[#allocation2 + $0x130] sm:$0x1]
        %v3865 = vld [vmem:[#allocation2 + $0x148] sm:$0x1]
        %v3866 = vld [vmem:[#allocation2 + $0x160] sm:$0x1]
        %v3867 = vld [vmem:[#allocation2 + $0x178] sm:$0x1]
        %v3869 = vshll.u32 %v3821, 16
        %v3871 = vrot.slane %v3869, 1
        %v3872 = vshrl.u32 %v3821, 16
        %v3874 = vor.u32 %v3872, %v3871
        %v3876 = vshll.u32 %v3823, 16
        %v3878 = vrot.slane %v3876, 1
        %v3879 = vshrl.u32 %v3823, 16
        %v3881 = vor.u32 %v3879, %v3878
        %v3883 = vshll.u32 %v3825, 16
        %v3885 = vrot.slane %v3883, 1
        %v3886 = vshrl.u32 %v3825, 16
        %v3888 = vor.u32 %v3886, %v3885
        %v3890 = vshll.u32 %v3827, 16
        %v3892 = vrot.slane %v3890, 1
        %v3893 = vshrl.u32 %v3827, 16
        %v3895 = vor.u32 %v3893, %v3892
        %v3897 = vshll.u32 %v3829, 16
        %v3899 = vrot.slane %v3897, 1
        %v3900 = vshrl.u32 %v3829, 16
        %v3902 = vor.u32 %v3900, %v3899
        %v3904 = vshll.u32 %v3831, 16
        %v3906 = vrot.slane %v3904, 1
        %v3907 = vshrl.u32 %v3831, 16
        %v3909 = vor.u32 %v3907, %v3906
        %v3911 = vshll.u32 %v3833, 16
        %v3913 = vrot.slane %v3911, 1
        %v3914 = vshrl.u32 %v3833, 16
        %v3916 = vor.u32 %v3914, %v3913
        %v3918 = vshll.u32 %v3835, 16
        %v3920 = vrot.slane %v3918, 1
        %v3921 = vshrl.u32 %v3835, 16
        %v3923 = vor.u32 %v3921, %v3920
        %v3925 = vshll.u32 %v3837, 16
        %v3927 = vrot.slane %v3925, 1
        %v3928 = vshrl.u32 %v3837, 16
        %v3930 = vor.u32 %v3928, %v3927
        %v3932 = vshll.u32 %v3839, 16
        %v3934 = vrot.slane %v3932, 1
        %v3935 = vshrl.u32 %v3839, 16
        %v3937 = vor.u32 %v3935, %v3934
        %v3939 = vshll.u32 %v3841, 16
        %v3941 = vrot.slane %v3939, 1
        %v3942 = vshrl.u32 %v3841, 16
        %v3944 = vor.u32 %v3942, %v3941
        %v3946 = vshll.u32 %v3843, 16
        %v3948 = vrot.slane %v3946, 1
        %v3949 = vshrl.u32 %v3843, 16
        %v3951 = vor.u32 %v3949, %v3948
        %v3953 = vshll.u32 %v3845, 16
        %v3955 = vrot.slane %v3953, 1
        %v3956 = vshrl.u32 %v3845, 16
        %v3958 = vor.u32 %v3956, %v3955
        %v3960 = vshll.u32 %v3847, 16
        %v3962 = vrot.slane %v3960, 1
        %v3963 = vshrl.u32 %v3847, 16
        %v3965 = vor.u32 %v3963, %v3962
        %v3967 = vshll.u32 %v3849, 16
        %v3969 = vrot.slane %v3967, 1
        %v3970 = vshrl.u32 %v3849, 16
        %v3972 = vor.u32 %v3970, %v3969
        %v3974 = vshll.u32 %v3851, 16
        %v3976 = vrot.slane %v3974, 1
        %v3977 = vshrl.u32 %v3851, 16
        %v3979 = vor.u32 %v3977, %v3976
        %v4012 = vrot.slane %v3821, 1
        %v4013 = vrot.slane %v3852, 1
        %v4014 = vsel %vm825, %v4012, %v4013
        %v4015 = vrot.slane %v3823, 1
        %v4016 = vrot.slane %v3853, 1
        %v4017 = vsel %vm825, %v4015, %v4016
        %v4018 = vrot.slane %v3825, 1
        %v4019 = vrot.slane %v3854, 1
        %v4020 = vsel %vm825, %v4018, %v4019
        %v4021 = vrot.slane %v3827, 1
        %v4022 = vrot.slane %v3855, 1
        %v4023 = vsel %vm825, %v4021, %v4022
        %v4024 = vrot.slane %v3829, 1
        %v4025 = vrot.slane %v3856, 1
        %v4026 = vsel %vm825, %v4024, %v4025
        %v4027 = vrot.slane %v3831, 1
        %v4028 = vrot.slane %v3857, 1
        %v4029 = vsel %vm825, %v4027, %v4028
        %v4030 = vrot.slane %v3833, 1
        %v4031 = vrot.slane %v3858, 1
        %v4032 = vsel %vm825, %v4030, %v4031
        %v4033 = vrot.slane %v3835, 1
        %v4034 = vrot.slane %v3859, 1
        %v4035 = vsel %vm825, %v4033, %v4034
        %v4036 = vrot.slane %v3837, 1
        %v4037 = vrot.slane %v3860, 1
        %v4038 = vsel %vm825, %v4036, %v4037
        %v4039 = vrot.slane %v3839, 1
        %v4040 = vrot.slane %v3861, 1
        %v4041 = vsel %vm825, %v4039, %v4040
        %v4042 = vrot.slane %v3841, 1
        %v4043 = vrot.slane %v3862, 1
        %v4044 = vsel %vm825, %v4042, %v4043
        %v4045 = vrot.slane %v3843, 1
        %v4046 = vrot.slane %v3863, 1
        %v4047 = vsel %vm825, %v4045, %v4046
        %v4048 = vrot.slane %v3845, 1
        %v4049 = vrot.slane %v3864, 1
        %v4050 = vsel %vm825, %v4048, %v4049
        %v4051 = vrot.slane %v3847, 1
        %v4052 = vrot.slane %v3865, 1
        %v4053 = vsel %vm825, %v4051, %v4052
        %v4054 = vrot.slane %v3849, 1
        %v4055 = vrot.slane %v3866, 1
        %v4056 = vsel %vm825, %v4054, %v4055
        %v4057 = vrot.slane %v3851, 1
        %v4058 = vrot.slane %v3867, 1
        %v4059 = vsel %vm825, %v4057, %v4058
        %v4061 = vshrl.u32 %v3820, 16
        %v4063 = vrot.slane %v4061, 7
        %v4064 = vrot.slane %v3872, 7
        %v4065 = vor.u32 %v4064, %v3869
        %v4066 = vsel %vm304, %v4063, %v4065
        %v4068 = vshrl.u32 %v3871, 16
        %v4070 = vrot.slane %v4068, 7
        %v4072 = vshrl.u32 %v3874, 16
        %v4074 = vrot.slane %v4072, 7
        %v4075 = vshll.u32 %v3874, 16
        %v4077 = vor.u32 %v4074, %v4075
        %v4078 = vsel %vm304, %v4070, %v4077
        %v4080 = vshrl.u32 %v4012, 16
        %v4082 = vrot.slane %v4080, 7
        %v4084 = vshrl.u32 %v4014, 16
        %v4086 = vrot.slane %v4084, 7
        %v4087 = vshll.u32 %v4014, 16
        %v4089 = vor.u32 %v4086, %v4087
        %v4090 = vsel %vm304, %v4082, %v4089
        %v4092 = vshrl.u32 %v3822, 16
        %v4094 = vrot.slane %v4092, 7
        %v4095 = vrot.slane %v3879, 7
        %v4096 = vor.u32 %v4095, %v3876
        %v4097 = vsel %vm304, %v4094, %v4096
        %v4099 = vshrl.u32 %v3878, 16
        %v4101 = vrot.slane %v4099, 7
        %v4103 = vshrl.u32 %v3881, 16
        %v4105 = vrot.slane %v4103, 7
        %v4106 = vshll.u32 %v3881, 16
        %v4108 = vor.u32 %v4105, %v4106
        %v4109 = vsel %vm304, %v4101, %v4108
        %v4111 = vshrl.u32 %v4015, 16
        %v4113 = vrot.slane %v4111, 7
        %v4115 = vshrl.u32 %v4017, 16
        %v4117 = vrot.slane %v4115, 7
        %v4118 = vshll.u32 %v4017, 16
        %v4120 = vor.u32 %v4117, %v4118
        %v4121 = vsel %vm304, %v4113, %v4120
        %v4123 = vshrl.u32 %v3824, 16
        %v4125 = vrot.slane %v4123, 7
        %v4126 = vrot.slane %v3886, 7
        %v4127 = vor.u32 %v4126, %v3883
        %v4128 = vsel %vm304, %v4125, %v4127
        %v4130 = vshrl.u32 %v3885, 16
        %v4132 = vrot.slane %v4130, 7
        %v4134 = vshrl.u32 %v3888, 16
        %v4136 = vrot.slane %v4134, 7
        %v4137 = vshll.u32 %v3888, 16
        %v4139 = vor.u32 %v4136, %v4137
        %v4140 = vsel %vm304, %v4132, %v4139
        %v4142 = vshrl.u32 %v4018, 16
        %v4144 = vrot.slane %v4142, 7
        %v4146 = vshrl.u32 %v4020, 16
        %v4148 = vrot.slane %v4146, 7
        %v4149 = vshll.u32 %v4020, 16
        %v4151 = vor.u32 %v4148, %v4149
        %v4152 = vsel %vm304, %v4144, %v4151
        %v4154 = vshrl.u32 %v3826, 16
        %v4156 = vrot.slane %v4154, 7
        %v4157 = vrot.slane %v3893, 7
        %v4158 = vor.u32 %v4157, %v3890
        %v4159 = vsel %vm304, %v4156, %v4158
        %v4161 = vshrl.u32 %v3892, 16
        %v4163 = vrot.slane %v4161, 7
        %v4165 = vshrl.u32 %v3895, 16
        %v4167 = vrot.slane %v4165, 7
        %v4168 = vshll.u32 %v3895, 16
        %v4170 = vor.u32 %v4167, %v4168
        %v4171 = vsel %vm304, %v4163, %v4170
        %v4173 = vshrl.u32 %v4021, 16
        %v4175 = vrot.slane %v4173, 7
        %v4177 = vshrl.u32 %v4023, 16
        %v4179 = vrot.slane %v4177, 7
        %v4180 = vshll.u32 %v4023, 16
        %v4182 = vor.u32 %v4179, %v4180
        %v4183 = vsel %vm304, %v4175, %v4182
        %v4185 = vshrl.u32 %v3828, 16
        %v4187 = vrot.slane %v4185, 7
        %v4188 = vrot.slane %v3900, 7
        %v4189 = vor.u32 %v4188, %v3897
        %v4190 = vsel %vm304, %v4187, %v4189
        %v4192 = vshrl.u32 %v3899, 16
        %v4194 = vrot.slane %v4192, 7
        %v4196 = vshrl.u32 %v3902, 16
        %v4198 = vrot.slane %v4196, 7
        %v4199 = vshll.u32 %v3902, 16
        %v4201 = vor.u32 %v4198, %v4199
        %v4202 = vsel %vm304, %v4194, %v4201
        %v4204 = vshrl.u32 %v4024, 16
        %v4206 = vrot.slane %v4204, 7
        %v4208 = vshrl.u32 %v4026, 16
        %v4210 = vrot.slane %v4208, 7
        %v4211 = vshll.u32 %v4026, 16
        %v4213 = vor.u32 %v4210, %v4211
        %v4214 = vsel %vm304, %v4206, %v4213
        %v4216 = vshrl.u32 %v3830, 16
        %v4218 = vrot.slane %v4216, 7
        %v4219 = vrot.slane %v3907, 7
        %v4220 = vor.u32 %v4219, %v3904
        %v4221 = vsel %vm304, %v4218, %v4220
        %v4223 = vshrl.u32 %v3906, 16
        %v4225 = vrot.slane %v4223, 7
        %v4227 = vshrl.u32 %v3909, 16
        %v4229 = vrot.slane %v4227, 7
        %v4230 = vshll.u32 %v3909, 16
        %v4232 = vor.u32 %v4229, %v4230
        %v4233 = vsel %vm304, %v4225, %v4232
        %v4235 = vshrl.u32 %v4027, 16
        %v4237 = vrot.slane %v4235, 7
        %v4239 = vshrl.u32 %v4029, 16
        %v4241 = vrot.slane %v4239, 7
        %v4242 = vshll.u32 %v4029, 16
        %v4244 = vor.u32 %v4241, %v4242
        %v4245 = vsel %vm304, %v4237, %v4244
        %v4247 = vshrl.u32 %v3832, 16
        %v4249 = vrot.slane %v4247, 7
        %v4250 = vrot.slane %v3914, 7
        %v4251 = vor.u32 %v4250, %v3911
        %v4252 = vsel %vm304, %v4249, %v4251
        %v4254 = vshrl.u32 %v3913, 16
        %v4256 = vrot.slane %v4254, 7
        %v4258 = vshrl.u32 %v3916, 16
        %v4260 = vrot.slane %v4258, 7
        %v4261 = vshll.u32 %v3916, 16
        %v4263 = vor.u32 %v4260, %v4261
        %v4264 = vsel %vm304, %v4256, %v4263
        %v4266 = vshrl.u32 %v4030, 16
        %v4268 = vrot.slane %v4266, 7
        %v4270 = vshrl.u32 %v4032, 16
        %v4272 = vrot.slane %v4270, 7
        %v4273 = vshll.u32 %v4032, 16
        %v4275 = vor.u32 %v4272, %v4273
        %v4276 = vsel %vm304, %v4268, %v4275
        %v4278 = vshrl.u32 %v3834, 16
        %v4280 = vrot.slane %v4278, 7
        %v4281 = vrot.slane %v3921, 7
        %v4282 = vor.u32 %v4281, %v3918
        %v4283 = vsel %vm304, %v4280, %v4282
        %v4285 = vshrl.u32 %v3920, 16
        %v4287 = vrot.slane %v4285, 7
        %v4289 = vshrl.u32 %v3923, 16
        %v4291 = vrot.slane %v4289, 7
        %v4292 = vshll.u32 %v3923, 16
        %v4294 = vor.u32 %v4291, %v4292
        %v4295 = vsel %vm304, %v4287, %v4294
        %v4297 = vshrl.u32 %v4033, 16
        %v4299 = vrot.slane %v4297, 7
        %v4301 = vshrl.u32 %v4035, 16
        %v4303 = vrot.slane %v4301, 7
        %v4304 = vshll.u32 %v4035, 16
        %v4306 = vor.u32 %v4303, %v4304
        %v4307 = vsel %vm304, %v4299, %v4306
        %v4309 = vshrl.u32 %v3836, 16
        %v4311 = vrot.slane %v4309, 7
        %v4312 = vrot.slane %v3928, 7
        %v4313 = vor.u32 %v4312, %v3925
        %v4314 = vsel %vm304, %v4311, %v4313
        %v4316 = vshrl.u32 %v3927, 16
        %v4318 = vrot.slane %v4316, 7
        %v4320 = vshrl.u32 %v3930, 16
        %v4322 = vrot.slane %v4320, 7
        %v4323 = vshll.u32 %v3930, 16
        %v4325 = vor.u32 %v4322, %v4323
        %v4326 = vsel %vm304, %v4318, %v4325
        %v4328 = vshrl.u32 %v4036, 16
        %v4330 = vrot.slane %v4328, 7
        %v4332 = vshrl.u32 %v4038, 16
        %v4334 = vrot.slane %v4332, 7
        %v4335 = vshll.u32 %v4038, 16
        %v4337 = vor.u32 %v4334, %v4335
        %v4338 = vsel %vm304, %v4330, %v4337
        %v4340 = vshrl.u32 %v3838, 16
        %v4342 = vrot.slane %v4340, 7
        %v4343 = vrot.slane %v3935, 7
        %v4344 = vor.u32 %v4343, %v3932
        %v4345 = vsel %vm304, %v4342, %v4344
        %v4347 = vshrl.u32 %v3934, 16
        %v4349 = vrot.slane %v4347, 7
        %v4351 = vshrl.u32 %v3937, 16
        %v4353 = vrot.slane %v4351, 7
        %v4354 = vshll.u32 %v3937, 16
        %v4356 = vor.u32 %v4353, %v4354
        %v4357 = vsel %vm304, %v4349, %v4356
        %v4359 = vshrl.u32 %v4039, 16
        %v4361 = vrot.slane %v4359, 7
        %v4363 = vshrl.u32 %v4041, 16
        %v4365 = vrot.slane %v4363, 7
        %v4366 = vshll.u32 %v4041, 16
        %v4368 = vor.u32 %v4365, %v4366
        %v4369 = vsel %vm304, %v4361, %v4368
        %v4371 = vshrl.u32 %v3840, 16
        %v4373 = vrot.slane %v4371, 7
        %v4374 = vrot.slane %v3942, 7
        %v4375 = vor.u32 %v4374, %v3939
        %v4376 = vsel %vm304, %v4373, %v4375
        %v4378 = vshrl.u32 %v3941, 16
        %v4380 = vrot.slane %v4378, 7
        %v4382 = vshrl.u32 %v3944, 16
        %v4384 = vrot.slane %v4382, 7
        %v4385 = vshll.u32 %v3944, 16
        %v4387 = vor.u32 %v4384, %v4385
        %v4388 = vsel %vm304, %v4380, %v4387
        %v4390 = vshrl.u32 %v4042, 16
        %v4392 = vrot.slane %v4390, 7
        %v4394 = vshrl.u32 %v4044, 16
        %v4396 = vrot.slane %v4394, 7
        %v4397 = vshll.u32 %v4044, 16
        %v4399 = vor.u32 %v4396, %v4397
        %v4400 = vsel %vm304, %v4392, %v4399
        %v4402 = vshrl.u32 %v3842, 16
        %v4404 = vrot.slane %v4402, 7
        %v4405 = vrot.slane %v3949, 7
        %v4406 = vor.u32 %v4405, %v3946
        %v4407 = vsel %vm304, %v4404, %v4406
        %v4409 = vshrl.u32 %v3948, 16
        %v4411 = vrot.slane %v4409, 7
        %v4413 = vshrl.u32 %v3951, 16
        %v4415 = vrot.slane %v4413, 7
        %v4416 = vshll.u32 %v3951, 16
        %v4418 = vor.u32 %v4415, %v4416
        %v4419 = vsel %vm304, %v4411, %v4418
        %v4421 = vshrl.u32 %v4045, 16
        %v4423 = vrot.slane %v4421, 7
        %v4425 = vshrl.u32 %v4047, 16
        %v4427 = vrot.slane %v4425, 7
        %v4428 = vshll.u32 %v4047, 16
        %v4430 = vor.u32 %v4427, %v4428
        %v4431 = vsel %vm304, %v4423, %v4430
        %v4433 = vshrl.u32 %v3844, 16
        %v4435 = vrot.slane %v4433, 7
        %v4436 = vrot.slane %v3956, 7
        %v4437 = vor.u32 %v4436, %v3953
        %v4438 = vsel %vm304, %v4435, %v4437
        %v4440 = vshrl.u32 %v3955, 16
        %v4442 = vrot.slane %v4440, 7
        %v4444 = vshrl.u32 %v3958, 16
        %v4446 = vrot.slane %v4444, 7
        %v4447 = vshll.u32 %v3958, 16
        %v4449 = vor.u32 %v4446, %v4447
        %v4450 = vsel %vm304, %v4442, %v4449
        %v4452 = vshrl.u32 %v4048, 16
        %v4454 = vrot.slane %v4452, 7
        %v4456 = vshrl.u32 %v4050, 16
        %v4458 = vrot.slane %v4456, 7
        %v4459 = vshll.u32 %v4050, 16
        %v4461 = vor.u32 %v4458, %v4459
        %v4462 = vsel %vm304, %v4454, %v4461
        %v4464 = vshrl.u32 %v3846, 16
        %v4466 = vrot.slane %v4464, 7
        %v4467 = vrot.slane %v3963, 7
        %v4468 = vor.u32 %v4467, %v3960
        %v4469 = vsel %vm304, %v4466, %v4468
        %v4471 = vshrl.u32 %v3962, 16
        %v4473 = vrot.slane %v4471, 7
        %v4475 = vshrl.u32 %v3965, 16
        %v4477 = vrot.slane %v4475, 7
        %v4478 = vshll.u32 %v3965, 16
        %v4480 = vor.u32 %v4477, %v4478
        %v4481 = vsel %vm304, %v4473, %v4480
        %v4483 = vshrl.u32 %v4051, 16
        %v4485 = vrot.slane %v4483, 7
        %v4487 = vshrl.u32 %v4053, 16
        %v4489 = vrot.slane %v4487, 7
        %v4490 = vshll.u32 %v4053, 16
        %v4492 = vor.u32 %v4489, %v4490
        %v4493 = vsel %vm304, %v4485, %v4492
        %v4495 = vshrl.u32 %v3848, 16
        %v4497 = vrot.slane %v4495, 7
        %v4498 = vrot.slane %v3970, 7
        %v4499 = vor.u32 %v4498, %v3967
        %v4500 = vsel %vm304, %v4497, %v4499
        %v4502 = vshrl.u32 %v3969, 16
        %v4504 = vrot.slane %v4502, 7
        %v4506 = vshrl.u32 %v3972, 16
        %v4508 = vrot.slane %v4506, 7
        %v4509 = vshll.u32 %v3972, 16
        %v4511 = vor.u32 %v4508, %v4509
        %v4512 = vsel %vm304, %v4504, %v4511
        %v4514 = vshrl.u32 %v4054, 16
        %v4516 = vrot.slane %v4514, 7
        %v4518 = vshrl.u32 %v4056, 16
        %v4520 = vrot.slane %v4518, 7
        %v4521 = vshll.u32 %v4056, 16
        %v4523 = vor.u32 %v4520, %v4521
        %v4524 = vsel %vm304, %v4516, %v4523
        %v4526 = vshrl.u32 %v3850, 16
        %v4528 = vrot.slane %v4526, 7
        %v4529 = vrot.slane %v3977, 7
        %v4530 = vor.u32 %v4529, %v3974
        %v4531 = vsel %vm304, %v4528, %v4530
        %v4533 = vshrl.u32 %v3976, 16
        %v4535 = vrot.slane %v4533, 7
        %v4537 = vshrl.u32 %v3979, 16
        %v4539 = vrot.slane %v4537, 7
        %v4540 = vshll.u32 %v3979, 16
        %v4542 = vor.u32 %v4539, %v4540
        %v4543 = vsel %vm304, %v4535, %v4542
        %v4545 = vshrl.u32 %v4057, 16
        %v4547 = vrot.slane %v4545, 7
        %v4549 = vshrl.u32 %v4059, 16
        %v4551 = vrot.slane %v4549, 7
        %v4552 = vshll.u32 %v4059, 16
        %v4554 = vor.u32 %v4551, %v4552
        %v4555 = vsel %vm304, %v4547, %v4554
        %v4604 = vld [vmem:[#allocation3] sm:$0xf]
        %v4605 = vld [vmem:[#allocation3 + $0x4] sm:$0xf]
        %v4606 = vld [vmem:[#allocation3 + $0x8] sm:$0xf]
        %v4607 = vld [vmem:[#allocation3 + $0xc] sm:$0xf]
        %v4608 = vld [vmem:[#allocation3 + $0x10] sm:$0xf]
        %v4609 = vld [vmem:[#allocation3 + $0x14] sm:$0xf]
        %v4610 = vld [vmem:[#allocation3 + $0x18] sm:$0xf]
        %v4611 = vld [vmem:[#allocation3 + $0x1c] sm:$0xf]
        %v4612 = vld [vmem:[#allocation3 + $0x20] sm:$0xf]
        %v4613 = vld [vmem:[#allocation3 + $0x24] sm:$0xf]
        %v4614 = vld [vmem:[#allocation3 + $0x28] sm:$0xf]
        %v4615 = vld [vmem:[#allocation3 + $0x2c] sm:$0xf]
        %v4616 = vld [vmem:[#allocation3 + $0x30] sm:$0xf]
        %v4617 = vld [vmem:[#allocation3 + $0x34] sm:$0xf]
        %v4618 = vld [vmem:[#allocation3 + $0x38] sm:$0xf]
        %v4619 = vld [vmem:[#allocation3 + $0x3c] sm:$0xf]
        %v4620 = vld [vmem:[#allocation3 + $0x40] sm:$0xf]
        %v4621 = vld [vmem:[#allocation3 + $0x44] sm:$0xf]
        %v4622 = vld [vmem:[#allocation3 + $0x48] sm:$0xf]
        %v4623 = vld [vmem:[#allocation3 + $0x4c] sm:$0xf]
        %v4624 = vld [vmem:[#allocation3 + $0x50] sm:$0xf]
        %v4625 = vld [vmem:[#allocation3 + $0x54] sm:$0xf]
        %v4626 = vld [vmem:[#allocation3 + $0x58] sm:$0xf]
        %v4627 = vld [vmem:[#allocation3 + $0x5c] sm:$0xf]
        %v4628 = vld [vmem:[#allocation3 + $0x60] sm:$0xf]
        %v4629 = vld [vmem:[#allocation3 + $0x64] sm:$0xf]
        %v4630 = vld [vmem:[#allocation3 + $0x68] sm:$0xf]
        %v4631 = vld [vmem:[#allocation3 + $0x6c] sm:$0xf]
        %v4632 = vld [vmem:[#allocation3 + $0x70] sm:$0xf]
        %v4633 = vld [vmem:[#allocation3 + $0x74] sm:$0xf]
        %v4634 = vld [vmem:[#allocation3 + $0x78] sm:$0xf]
        %v4635 = vld [vmem:[#allocation3 + $0x7c] sm:$0xf]
        %v4636 = vld [vmem:[#allocation3 + $0x80] sm:$0xf]
        %v4637 = vld [vmem:[#allocation3 + $0x84] sm:$0xf]
        %v4638 = vld [vmem:[#allocation3 + $0x88] sm:$0xf]
        %v4639 = vld [vmem:[#allocation3 + $0x8c] sm:$0xf]
        %v4640 = vld [vmem:[#allocation3 + $0x90] sm:$0xf]
        %v4641 = vld [vmem:[#allocation3 + $0x94] sm:$0xf]
        %v4642 = vld [vmem:[#allocation3 + $0x98] sm:$0xf]
        %v4643 = vld [vmem:[#allocation3 + $0x9c] sm:$0xf]
        %v4644 = vld [vmem:[#allocation3 + $0xa0] sm:$0xf]
        %v4645 = vld [vmem:[#allocation3 + $0xa4] sm:$0xf]
        %v4646 = vld [vmem:[#allocation3 + $0xa8] sm:$0xf]
        %v4647 = vld [vmem:[#allocation3 + $0xac] sm:$0xf]
        %v4648 = vld [vmem:[#allocation3 + $0xb0] sm:$0xf]
        %v4649 = vld [vmem:[#allocation3 + $0xb4] sm:$0xf]
        %v4650 = vld [vmem:[#allocation3 + $0xb8] sm:$0xf]
        %v4651 = vld [vmem:[#allocation3 + $0xbc] sm:$0xf]
        %v4652 = vld [vmem:[%s3803] sm:$0x80]
        %v4653 = vld [vmem:[%s3803 + $0x8] sm:$0xff]
        %v4654 = vld [vmem:[%s3803 + $0x18] sm:$0x80]
        %v4655 = vld [vmem:[%s3803 + $0x20] sm:$0xff]
        %v4656 = vld [vmem:[%s3803 + $0x30] sm:$0x80]
        %v4657 = vld [vmem:[%s3803 + $0x38] sm:$0xff]
        %v4658 = vld [vmem:[%s3803 + $0x48] sm:$0x80]
        %v4659 = vld [vmem:[%s3803 + $0x50] sm:$0xff]
        %v4660 = vld [vmem:[%s3803 + $0x60] sm:$0x80]
        %v4661 = vld [vmem:[%s3803 + $0x68] sm:$0xff]
        %v4662 = vld [vmem:[%s3803 + $0x78] sm:$0x80]
        %v4663 = vld [vmem:[%s3803 + $0x80] sm:$0xff]
        %v4664 = vld [vmem:[%s3803 + $0x90] sm:$0x80]
        %v4665 = vld [vmem:[%s3803 + $0x98] sm:$0xff]
        %v4666 = vld [vmem:[%s3803 + $0xa8] sm:$0x80]
        %v4667 = vld [vmem:[%s3803 + $0xb0] sm:$0xff]
        %v4668 = vld [vmem:[%s3803 + $0xc0] sm:$0x80]
        %v4669 = vld [vmem:[%s3803 + $0xc8] sm:$0xff]
        %v4670 = vld [vmem:[%s3803 + $0xd8] sm:$0x80]
        %v4671 = vld [vmem:[%s3803 + $0xe0] sm:$0xff]
        %v4672 = vld [vmem:[%s3803 + $0xf0] sm:$0x80]
        %v4673 = vld [vmem:[%s3803 + $0xf8] sm:$0xff]
        %v4674 = vld [vmem:[%s3803 + $0x108] sm:$0x80]
        %v4675 = vld [vmem:[%s3803 + $0x110] sm:$0xff]
        %v4676 = vld [vmem:[%s3803 + $0x120] sm:$0x80]
        %v4677 = vld [vmem:[%s3803 + $0x128] sm:$0xff]
        %v4678 = vld [vmem:[%s3803 + $0x138] sm:$0x80]
        %v4679 = vld [vmem:[%s3803 + $0x140] sm:$0xff]
        %v4680 = vld [vmem:[%s3803 + $0x150] sm:$0x80]
        %v4681 = vld [vmem:[%s3803 + $0x158] sm:$0xff]
        %v4682 = vld [vmem:[%s3803 + $0x168] sm:$0x80]
        %v4683 = vld [vmem:[%s3803 + $0x170] sm:$0xff]
        %v4684 = vld [vmem:[%s3803 + $0x10] sm:$0x1]
        %v4685 = vld [vmem:[%s3803 + $0x28] sm:$0x1]
        %v4686 = vld [vmem:[%s3803 + $0x40] sm:$0x1]
        %v4687 = vld [vmem:[%s3803 + $0x58] sm:$0x1]
        %v4688 = vld [vmem:[%s3803 + $0x70] sm:$0x1]
        %v4689 = vld [vmem:[%s3803 + $0x88] sm:$0x1]
        %v4690 = vld [vmem:[%s3803 + $0xa0] sm:$0x1]
        %v4691 = vld [vmem:[%s3803 + $0xb8] sm:$0x1]
        %v4692 = vld [vmem:[%s3803 + $0xd0] sm:$0x1]
        %v4693 = vld [vmem:[%s3803 + $0xe8] sm:$0x1]
        %v4694 = vld [vmem:[%s3803 + $0x100] sm:$0x1]
        %v4695 = vld [vmem:[%s3803 + $0x118] sm:$0x1]
        %v4696 = vld [vmem:[%s3803 + $0x130] sm:$0x1]
        %v4697 = vld [vmem:[%s3803 + $0x148] sm:$0x1]
        %v4698 = vld [vmem:[%s3803 + $0x160] sm:$0x1]
        %v4699 = vld [vmem:[%s3803 + $0x178] sm:$0x1]
        %v4701 = vshll.u32 %v4653, 16
        %v4703 = vrot.slane %v4701, 1
        %v4704 = vshrl.u32 %v4653, 16
        %v4706 = vor.u32 %v4704, %v4703
        %v4708 = vshll.u32 %v4655, 16
        %v4710 = vrot.slane %v4708, 1
        %v4711 = vshrl.u32 %v4655, 16
        %v4713 = vor.u32 %v4711, %v4710
        %v4715 = vshll.u32 %v4657, 16
        %v4717 = vrot.slane %v4715, 1
        %v4718 = vshrl.u32 %v4657, 16
        %v4720 = vor.u32 %v4718, %v4717
        %v4722 = vshll.u32 %v4659, 16
        %v4724 = vrot.slane %v4722, 1
        %v4725 = vshrl.u32 %v4659, 16
        %v4727 = vor.u32 %v4725, %v4724
        %v4729 = vshll.u32 %v4661, 16
        %v4731 = vrot.slane %v4729, 1
        %v4732 = vshrl.u32 %v4661, 16
        %v4734 = vor.u32 %v4732, %v4731
        %v4736 = vshll.u32 %v4663, 16
        %v4738 = vrot.slane %v4736, 1
        %v4739 = vshrl.u32 %v4663, 16
        %v4741 = vor.u32 %v4739, %v4738
        %v4743 = vshll.u32 %v4665, 16
        %v4745 = vrot.slane %v4743, 1
        %v4746 = vshrl.u32 %v4665, 16
        %v4748 = vor.u32 %v4746, %v4745
        %v4750 = vshll.u32 %v4667, 16
        %v4752 = vrot.slane %v4750, 1
        %v4753 = vshrl.u32 %v4667, 16
        %v4755 = vor.u32 %v4753, %v4752
        %v4757 = vshll.u32 %v4669, 16
        %v4759 = vrot.slane %v4757, 1
        %v4760 = vshrl.u32 %v4669, 16
        %v4762 = vor.u32 %v4760, %v4759
        %v4764 = vshll.u32 %v4671, 16
        %v4766 = vrot.slane %v4764, 1
        %v4767 = vshrl.u32 %v4671, 16
        %v4769 = vor.u32 %v4767, %v4766
        %v4771 = vshll.u32 %v4673, 16
        %v4773 = vrot.slane %v4771, 1
        %v4774 = vshrl.u32 %v4673, 16
        %v4776 = vor.u32 %v4774, %v4773
        %v4778 = vshll.u32 %v4675, 16
        %v4780 = vrot.slane %v4778, 1
        %v4781 = vshrl.u32 %v4675, 16
        %v4783 = vor.u32 %v4781, %v4780
        %v4785 = vshll.u32 %v4677, 16
        %v4787 = vrot.slane %v4785, 1
        %v4788 = vshrl.u32 %v4677, 16
        %v4790 = vor.u32 %v4788, %v4787
        %v4792 = vshll.u32 %v4679, 16
        %v4794 = vrot.slane %v4792, 1
        %v4795 = vshrl.u32 %v4679, 16
        %v4797 = vor.u32 %v4795, %v4794
        %v4799 = vshll.u32 %v4681, 16
        %v4801 = vrot.slane %v4799, 1
        %v4802 = vshrl.u32 %v4681, 16
        %v4804 = vor.u32 %v4802, %v4801
        %v4806 = vshll.u32 %v4683, 16
        %v4808 = vrot.slane %v4806, 1
        %v4809 = vshrl.u32 %v4683, 16
        %v4811 = vor.u32 %v4809, %v4808
        %v4844 = vrot.slane %v4653, 1
        %v4845 = vrot.slane %v4684, 1
        %v4846 = vsel %vm825, %v4844, %v4845
        %v4847 = vrot.slane %v4655, 1
        %v4848 = vrot.slane %v4685, 1
        %v4849 = vsel %vm825, %v4847, %v4848
        %v4850 = vrot.slane %v4657, 1
        %v4851 = vrot.slane %v4686, 1
        %v4852 = vsel %vm825, %v4850, %v4851
        %v4853 = vrot.slane %v4659, 1
        %v4854 = vrot.slane %v4687, 1
        %v4855 = vsel %vm825, %v4853, %v4854
        %v4856 = vrot.slane %v4661, 1
        %v4857 = vrot.slane %v4688, 1
        %v4858 = vsel %vm825, %v4856, %v4857
        %v4859 = vrot.slane %v4663, 1
        %v4860 = vrot.slane %v4689, 1
        %v4861 = vsel %vm825, %v4859, %v4860
        %v4862 = vrot.slane %v4665, 1
        %v4863 = vrot.slane %v4690, 1
        %v4864 = vsel %vm825, %v4862, %v4863
        %v4865 = vrot.slane %v4667, 1
        %v4866 = vrot.slane %v4691, 1
        %v4867 = vsel %vm825, %v4865, %v4866
        %v4868 = vrot.slane %v4669, 1
        %v4869 = vrot.slane %v4692, 1
        %v4870 = vsel %vm825, %v4868, %v4869
        %v4871 = vrot.slane %v4671, 1
        %v4872 = vrot.slane %v4693, 1
        %v4873 = vsel %vm825, %v4871, %v4872
        %v4874 = vrot.slane %v4673, 1
        %v4875 = vrot.slane %v4694, 1
        %v4876 = vsel %vm825, %v4874, %v4875
        %v4877 = vrot.slane %v4675, 1
        %v4878 = vrot.slane %v4695, 1
        %v4879 = vsel %vm825, %v4877, %v4878
        %v4880 = vrot.slane %v4677, 1
        %v4881 = vrot.slane %v4696, 1
        %v4882 = vsel %vm825, %v4880, %v4881
        %v4883 = vrot.slane %v4679, 1
        %v4884 = vrot.slane %v4697, 1
        %v4885 = vsel %vm825, %v4883, %v4884
        %v4886 = vrot.slane %v4681, 1
        %v4887 = vrot.slane %v4698, 1
        %v4888 = vsel %vm825, %v4886, %v4887
        %v4889 = vrot.slane %v4683, 1
        %v4890 = vrot.slane %v4699, 1
        %v4891 = vsel %vm825, %v4889, %v4890
        %v4893 = vshrl.u32 %v4652, 16
        %v4895 = vrot.slane %v4893, 7
        %v4896 = vrot.slane %v4704, 7
        %v4897 = vor.u32 %v4896, %v4701
        %v4898 = vsel %vm304, %v4895, %v4897
        %v4900 = vshrl.u32 %v4703, 16
        %v4902 = vrot.slane %v4900, 7
        %v4904 = vshrl.u32 %v4706, 16
        %v4906 = vrot.slane %v4904, 7
        %v4907 = vshll.u32 %v4706, 16
        %v4909 = vor.u32 %v4906, %v4907
        %v4910 = vsel %vm304, %v4902, %v4909
        %v4912 = vshrl.u32 %v4844, 16
        %v4914 = vrot.slane %v4912, 7
        %v4916 = vshrl.u32 %v4846, 16
        %v4918 = vrot.slane %v4916, 7
        %v4919 = vshll.u32 %v4846, 16
        %v4921 = vor.u32 %v4918, %v4919
        %v4922 = vsel %vm304, %v4914, %v4921
        %v4924 = vshrl.u32 %v4654, 16
        %v4926 = vrot.slane %v4924, 7
        %v4927 = vrot.slane %v4711, 7
        %v4928 = vor.u32 %v4927, %v4708
        %v4929 = vsel %vm304, %v4926, %v4928
        %v4931 = vshrl.u32 %v4710, 16
        %v4933 = vrot.slane %v4931, 7
        %v4935 = vshrl.u32 %v4713, 16
        %v4937 = vrot.slane %v4935, 7
        %v4938 = vshll.u32 %v4713, 16
        %v4940 = vor.u32 %v4937, %v4938
        %v4941 = vsel %vm304, %v4933, %v4940
        %v4943 = vshrl.u32 %v4847, 16
        %v4945 = vrot.slane %v4943, 7
        %v4947 = vshrl.u32 %v4849, 16
        %v4949 = vrot.slane %v4947, 7
        %v4950 = vshll.u32 %v4849, 16
        %v4952 = vor.u32 %v4949, %v4950
        %v4953 = vsel %vm304, %v4945, %v4952
        %v4955 = vshrl.u32 %v4656, 16
        %v4957 = vrot.slane %v4955, 7
        %v4958 = vrot.slane %v4718, 7
        %v4959 = vor.u32 %v4958, %v4715
        %v4960 = vsel %vm304, %v4957, %v4959
        %v4962 = vshrl.u32 %v4717, 16
        %v4964 = vrot.slane %v4962, 7
        %v4966 = vshrl.u32 %v4720, 16
        %v4968 = vrot.slane %v4966, 7
        %v4969 = vshll.u32 %v4720, 16
        %v4971 = vor.u32 %v4968, %v4969
        %v4972 = vsel %vm304, %v4964, %v4971
        %v4974 = vshrl.u32 %v4850, 16
        %v4976 = vrot.slane %v4974, 7
        %v4978 = vshrl.u32 %v4852, 16
        %v4980 = vrot.slane %v4978, 7
        %v4981 = vshll.u32 %v4852, 16
        %v4983 = vor.u32 %v4980, %v4981
        %v4984 = vsel %vm304, %v4976, %v4983
        %v4986 = vshrl.u32 %v4658, 16
        %v4988 = vrot.slane %v4986, 7
        %v4989 = vrot.slane %v4725, 7
        %v4990 = vor.u32 %v4989, %v4722
        %v4991 = vsel %vm304, %v4988, %v4990
        %v4993 = vshrl.u32 %v4724, 16
        %v4995 = vrot.slane %v4993, 7
        %v4997 = vshrl.u32 %v4727, 16
        %v4999 = vrot.slane %v4997, 7
        %v5000 = vshll.u32 %v4727, 16
        %v5002 = vor.u32 %v4999, %v5000
        %v5003 = vsel %vm304, %v4995, %v5002
        %v5005 = vshrl.u32 %v4853, 16
        %v5007 = vrot.slane %v5005, 7
        %v5009 = vshrl.u32 %v4855, 16
        %v5011 = vrot.slane %v5009, 7
        %v5012 = vshll.u32 %v4855, 16
        %v5014 = vor.u32 %v5011, %v5012
        %v5015 = vsel %vm304, %v5007, %v5014
        %v5017 = vshrl.u32 %v4660, 16
        %v5019 = vrot.slane %v5017, 7
        %v5020 = vrot.slane %v4732, 7
        %v5021 = vor.u32 %v5020, %v4729
        %v5022 = vsel %vm304, %v5019, %v5021
        %v5024 = vshrl.u32 %v4731, 16
        %v5026 = vrot.slane %v5024, 7
        %v5028 = vshrl.u32 %v4734, 16
        %v5030 = vrot.slane %v5028, 7
        %v5031 = vshll.u32 %v4734, 16
        %v5033 = vor.u32 %v5030, %v5031
        %v5034 = vsel %vm304, %v5026, %v5033
        %v5036 = vshrl.u32 %v4856, 16
        %v5038 = vrot.slane %v5036, 7
        %v5040 = vshrl.u32 %v4858, 16
        %v5042 = vrot.slane %v5040, 7
        %v5043 = vshll.u32 %v4858, 16
        %v5045 = vor.u32 %v5042, %v5043
        %v5046 = vsel %vm304, %v5038, %v5045
        %v5048 = vshrl.u32 %v4662, 16
        %v5050 = vrot.slane %v5048, 7
        %v5051 = vrot.slane %v4739, 7
        %v5052 = vor.u32 %v5051, %v4736
        %v5053 = vsel %vm304, %v5050, %v5052
        %v5055 = vshrl.u32 %v4738, 16
        %v5057 = vrot.slane %v5055, 7
        %v5059 = vshrl.u32 %v4741, 16
        %v5061 = vrot.slane %v5059, 7
        %v5062 = vshll.u32 %v4741, 16
        %v5064 = vor.u32 %v5061, %v5062
        %v5065 = vsel %vm304, %v5057, %v5064
        %v5067 = vshrl.u32 %v4859, 16
        %v5069 = vrot.slane %v5067, 7
        %v5071 = vshrl.u32 %v4861, 16
        %v5073 = vrot.slane %v5071, 7
        %v5074 = vshll.u32 %v4861, 16
        %v5076 = vor.u32 %v5073, %v5074
        %v5077 = vsel %vm304, %v5069, %v5076
        %v5079 = vshrl.u32 %v4664, 16
        %v5081 = vrot.slane %v5079, 7
        %v5082 = vrot.slane %v4746, 7
        %v5083 = vor.u32 %v5082, %v4743
        %v5084 = vsel %vm304, %v5081, %v5083
        %v5086 = vshrl.u32 %v4745, 16
        %v5088 = vrot.slane %v5086, 7
        %v5090 = vshrl.u32 %v4748, 16
        %v5092 = vrot.slane %v5090, 7
        %v5093 = vshll.u32 %v4748, 16
        %v5095 = vor.u32 %v5092, %v5093
        %v5096 = vsel %vm304, %v5088, %v5095
        %v5098 = vshrl.u32 %v4862, 16
        %v5100 = vrot.slane %v5098, 7
        %v5102 = vshrl.u32 %v4864, 16
        %v5104 = vrot.slane %v5102, 7
        %v5105 = vshll.u32 %v4864, 16
        %v5107 = vor.u32 %v5104, %v5105
        %v5108 = vsel %vm304, %v5100, %v5107
        %v5110 = vshrl.u32 %v4666, 16
        %v5112 = vrot.slane %v5110, 7
        %v5113 = vrot.slane %v4753, 7
        %v5114 = vor.u32 %v5113, %v4750
        %v5115 = vsel %vm304, %v5112, %v5114
        %v5117 = vshrl.u32 %v4752, 16
        %v5119 = vrot.slane %v5117, 7
        %v5121 = vshrl.u32 %v4755, 16
        %v5123 = vrot.slane %v5121, 7
        %v5124 = vshll.u32 %v4755, 16
        %v5126 = vor.u32 %v5123, %v5124
        %v5127 = vsel %vm304, %v5119, %v5126
        %v5129 = vshrl.u32 %v4865, 16
        %v5131 = vrot.slane %v5129, 7
        %v5133 = vshrl.u32 %v4867, 16
        %v5135 = vrot.slane %v5133, 7
        %v5136 = vshll.u32 %v4867, 16
        %v5138 = vor.u32 %v5135, %v5136
        %v5139 = vsel %vm304, %v5131, %v5138
        %v5141 = vshrl.u32 %v4668, 16
        %v5143 = vrot.slane %v5141, 7
        %v5144 = vrot.slane %v4760, 7
        %v5145 = vor.u32 %v5144, %v4757
        %v5146 = vsel %vm304, %v5143, %v5145
        %v5148 = vshrl.u32 %v4759, 16
        %v5150 = vrot.slane %v5148, 7
        %v5152 = vshrl.u32 %v4762, 16
        %v5154 = vrot.slane %v5152, 7
        %v5155 = vshll.u32 %v4762, 16
        %v5157 = vor.u32 %v5154, %v5155
        %v5158 = vsel %vm304, %v5150, %v5157
        %v5160 = vshrl.u32 %v4868, 16
        %v5162 = vrot.slane %v5160, 7
        %v5164 = vshrl.u32 %v4870, 16
        %v5166 = vrot.slane %v5164, 7
        %v5167 = vshll.u32 %v4870, 16
        %v5169 = vor.u32 %v5166, %v5167
        %v5170 = vsel %vm304, %v5162, %v5169
        %v5172 = vshrl.u32 %v4670, 16
        %v5174 = vrot.slane %v5172, 7
        %v5175 = vrot.slane %v4767, 7
        %v5176 = vor.u32 %v5175, %v4764
        %v5177 = vsel %vm304, %v5174, %v5176
        %v5179 = vshrl.u32 %v4766, 16
        %v5181 = vrot.slane %v5179, 7
        %v5183 = vshrl.u32 %v4769, 16
        %v5185 = vrot.slane %v5183, 7
        %v5186 = vshll.u32 %v4769, 16
        %v5188 = vor.u32 %v5185, %v5186
        %v5189 = vsel %vm304, %v5181, %v5188
        %v5191 = vshrl.u32 %v4871, 16
        %v5193 = vrot.slane %v5191, 7
        %v5195 = vshrl.u32 %v4873, 16
        %v5197 = vrot.slane %v5195, 7
        %v5198 = vshll.u32 %v4873, 16
        %v5200 = vor.u32 %v5197, %v5198
        %v5201 = vsel %vm304, %v5193, %v5200
        %v5203 = vshrl.u32 %v4672, 16
        %v5205 = vrot.slane %v5203, 7
        %v5206 = vrot.slane %v4774, 7
        %v5207 = vor.u32 %v5206, %v4771
        %v5208 = vsel %vm304, %v5205, %v5207
        %v5210 = vshrl.u32 %v4773, 16
        %v5212 = vrot.slane %v5210, 7
        %v5214 = vshrl.u32 %v4776, 16
        %v5216 = vrot.slane %v5214, 7
        %v5217 = vshll.u32 %v4776, 16
        %v5219 = vor.u32 %v5216, %v5217
        %v5220 = vsel %vm304, %v5212, %v5219
        %v5222 = vshrl.u32 %v4874, 16
        %v5224 = vrot.slane %v5222, 7
        %v5226 = vshrl.u32 %v4876, 16
        %v5228 = vrot.slane %v5226, 7
        %v5229 = vshll.u32 %v4876, 16
        %v5231 = vor.u32 %v5228, %v5229
        %v5232 = vsel %vm304, %v5224, %v5231
        %v5234 = vshrl.u32 %v4674, 16
        %v5236 = vrot.slane %v5234, 7
        %v5237 = vrot.slane %v4781, 7
        %v5238 = vor.u32 %v5237, %v4778
        %v5239 = vsel %vm304, %v5236, %v5238
        %v5241 = vshrl.u32 %v4780, 16
        %v5243 = vrot.slane %v5241, 7
        %v5245 = vshrl.u32 %v4783, 16
        %v5247 = vrot.slane %v5245, 7
        %v5248 = vshll.u32 %v4783, 16
        %v5250 = vor.u32 %v5247, %v5248
        %v5251 = vsel %vm304, %v5243, %v5250
        %v5253 = vshrl.u32 %v4877, 16
        %v5255 = vrot.slane %v5253, 7
        %v5257 = vshrl.u32 %v4879, 16
        %v5259 = vrot.slane %v5257, 7
        %v5260 = vshll.u32 %v4879, 16
        %v5262 = vor.u32 %v5259, %v5260
        %v5263 = vsel %vm304, %v5255, %v5262
        %v5265 = vshrl.u32 %v4676, 16
        %v5267 = vrot.slane %v5265, 7
        %v5268 = vrot.slane %v4788, 7
        %v5269 = vor.u32 %v5268, %v4785
        %v5270 = vsel %vm304, %v5267, %v5269
        %v5272 = vshrl.u32 %v4787, 16
        %v5274 = vrot.slane %v5272, 7
        %v5276 = vshrl.u32 %v4790, 16
        %v5278 = vrot.slane %v5276, 7
        %v5279 = vshll.u32 %v4790, 16
        %v5281 = vor.u32 %v5278, %v5279
        %v5282 = vsel %vm304, %v5274, %v5281
        %v5284 = vshrl.u32 %v4880, 16
        %v5286 = vrot.slane %v5284, 7
        %v5288 = vshrl.u32 %v4882, 16
        %v5290 = vrot.slane %v5288, 7
        %v5291 = vshll.u32 %v4882, 16
        %v5293 = vor.u32 %v5290, %v5291
        %v5294 = vsel %vm304, %v5286, %v5293
        %v5296 = vshrl.u32 %v4678, 16
        %v5298 = vrot.slane %v5296, 7
        %v5299 = vrot.slane %v4795, 7
        %v5300 = vor.u32 %v5299, %v4792
        %v5301 = vsel %vm304, %v5298, %v5300
        %v5303 = vshrl.u32 %v4794, 16
        %v5305 = vrot.slane %v5303, 7
        %v5307 = vshrl.u32 %v4797, 16
        %v5309 = vrot.slane %v5307, 7
        %v5310 = vshll.u32 %v4797, 16
        %v5312 = vor.u32 %v5309, %v5310
        %v5313 = vsel %vm304, %v5305, %v5312
        %v5315 = vshrl.u32 %v4883, 16
        %v5317 = vrot.slane %v5315, 7
        %v5319 = vshrl.u32 %v4885, 16
        %v5321 = vrot.slane %v5319, 7
        %v5322 = vshll.u32 %v4885, 16
        %v5324 = vor.u32 %v5321, %v5322
        %v5325 = vsel %vm304, %v5317, %v5324
        %v5327 = vshrl.u32 %v4680, 16
        %v5329 = vrot.slane %v5327, 7
        %v5330 = vrot.slane %v4802, 7
        %v5331 = vor.u32 %v5330, %v4799
        %v5332 = vsel %vm304, %v5329, %v5331
        %v5334 = vshrl.u32 %v4801, 16
        %v5336 = vrot.slane %v5334, 7
        %v5338 = vshrl.u32 %v4804, 16
        %v5340 = vrot.slane %v5338, 7
        %v5341 = vshll.u32 %v4804, 16
        %v5343 = vor.u32 %v5340, %v5341
        %v5344 = vsel %vm304, %v5336, %v5343
        %v5346 = vshrl.u32 %v4886, 16
        %v5348 = vrot.slane %v5346, 7
        %v5350 = vshrl.u32 %v4888, 16
        %v5352 = vrot.slane %v5350, 7
        %v5353 = vshll.u32 %v4888, 16
        %v5355 = vor.u32 %v5352, %v5353
        %v5356 = vsel %vm304, %v5348, %v5355
        %v5358 = vshrl.u32 %v4682, 16
        %v5360 = vrot.slane %v5358, 7
        %v5361 = vrot.slane %v4809, 7
        %v5362 = vor.u32 %v5361, %v4806
        %v5363 = vsel %vm304, %v5360, %v5362
        %v5365 = vshrl.u32 %v4808, 16
        %v5367 = vrot.slane %v5365, 7
        %v5369 = vshrl.u32 %v4811, 16
        %v5371 = vrot.slane %v5369, 7
        %v5372 = vshll.u32 %v4811, 16
        %v5374 = vor.u32 %v5371, %v5372
        %v5375 = vsel %vm304, %v5367, %v5374
        %v5377 = vshrl.u32 %v4889, 16
        %v5379 = vrot.slane %v5377, 7
        %v5381 = vshrl.u32 %v4891, 16
        %v5383 = vrot.slane %v5381, 7
        %v5384 = vshll.u32 %v4891, 16
        %v5386 = vor.u32 %v5383, %v5384
        %v5387 = vsel %vm304, %v5379, %v5386
        %s5436 = scalar_lea.vmem [#allocation3], 192
        %v5437 = vld [vmem:[%s5436] sm:$0xf]
        %v5438 = vld [vmem:[%s5436 + $0x4] sm:$0xf]
        %v5439 = vld [vmem:[%s5436 + $0x8] sm:$0xf]
        %v5440 = vld [vmem:[%s5436 + $0xc] sm:$0xf]
        %v5441 = vld [vmem:[%s5436 + $0x10] sm:$0xf]
        %v5442 = vld [vmem:[%s5436 + $0x14] sm:$0xf]
        %v5443 = vld [vmem:[%s5436 + $0x18] sm:$0xf]
        %v5444 = vld [vmem:[%s5436 + $0x1c] sm:$0xf]
        %v5445 = vld [vmem:[%s5436 + $0x20] sm:$0xf]
        %v5446 = vld [vmem:[%s5436 + $0x24] sm:$0xf]
        %v5447 = vld [vmem:[%s5436 + $0x28] sm:$0xf]
        %v5448 = vld [vmem:[%s5436 + $0x2c] sm:$0xf]
        %v5449 = vld [vmem:[%s5436 + $0x30] sm:$0xf]
        %v5450 = vld [vmem:[%s5436 + $0x34] sm:$0xf]
        %v5451 = vld [vmem:[%s5436 + $0x38] sm:$0xf]
        %v5452 = vld [vmem:[%s5436 + $0x3c] sm:$0xf]
        %v5453 = vld [vmem:[%s5436 + $0x40] sm:$0xf]
        %v5454 = vld [vmem:[%s5436 + $0x44] sm:$0xf]
        %v5455 = vld [vmem:[%s5436 + $0x48] sm:$0xf]
        %v5456 = vld [vmem:[%s5436 + $0x4c] sm:$0xf]
        %v5457 = vld [vmem:[%s5436 + $0x50] sm:$0xf]
        %v5458 = vld [vmem:[%s5436 + $0x54] sm:$0xf]
        %v5459 = vld [vmem:[%s5436 + $0x58] sm:$0xf]
        %v5460 = vld [vmem:[%s5436 + $0x5c] sm:$0xf]
        %v5461 = vld [vmem:[%s5436 + $0x60] sm:$0xf]
        %v5462 = vld [vmem:[%s5436 + $0x64] sm:$0xf]
        %v5463 = vld [vmem:[%s5436 + $0x68] sm:$0xf]
        %v5464 = vld [vmem:[%s5436 + $0x6c] sm:$0xf]
        %v5465 = vld [vmem:[%s5436 + $0x70] sm:$0xf]
        %v5466 = vld [vmem:[%s5436 + $0x74] sm:$0xf]
        %v5467 = vld [vmem:[%s5436 + $0x78] sm:$0xf]
        %v5468 = vld [vmem:[%s5436 + $0x7c] sm:$0xf]
        %v5469 = vld [vmem:[%s5436 + $0x80] sm:$0xf]
        %v5470 = vld [vmem:[%s5436 + $0x84] sm:$0xf]
        %v5471 = vld [vmem:[%s5436 + $0x88] sm:$0xf]
        %v5472 = vld [vmem:[%s5436 + $0x8c] sm:$0xf]
        %v5473 = vld [vmem:[%s5436 + $0x90] sm:$0xf]
        %v5474 = vld [vmem:[%s5436 + $0x94] sm:$0xf]
        %v5475 = vld [vmem:[%s5436 + $0x98] sm:$0xf]
        %v5476 = vld [vmem:[%s5436 + $0x9c] sm:$0xf]
        %v5477 = vld [vmem:[%s5436 + $0xa0] sm:$0xf]
        %v5478 = vld [vmem:[%s5436 + $0xa4] sm:$0xf]
        %v5479 = vld [vmem:[%s5436 + $0xa8] sm:$0xf]
        %v5480 = vld [vmem:[%s5436 + $0xac] sm:$0xf]
        %v5481 = vld [vmem:[%s5436 + $0xb0] sm:$0xf]
        %v5482 = vld [vmem:[%s5436 + $0xb4] sm:$0xf]
        %v5483 = vld [vmem:[%s5436 + $0xb8] sm:$0xf]
        %v5484 = vld [vmem:[%s5436 + $0xbc] sm:$0xf]
        %v5533 = vunpack.c.l.b16 %v5437
        %v5534 = vunpack.c.l.b16 %v5438
        %v5535 = vunpack.c.l.b16 %v5439
        %v5536 = vunpack.c.l.b16 %v5440
        %v5537 = vunpack.c.l.b16 %v5441
        %v5538 = vunpack.c.l.b16 %v5442
        %v5539 = vunpack.c.l.b16 %v5443
        %v5540 = vunpack.c.l.b16 %v5444
        %v5541 = vunpack.c.l.b16 %v5445
        %v5542 = vunpack.c.l.b16 %v5446
        %v5543 = vunpack.c.l.b16 %v5447
        %v5544 = vunpack.c.l.b16 %v5448
        %v5545 = vunpack.c.l.b16 %v5449
        %v5546 = vunpack.c.l.b16 %v5450
        %v5547 = vunpack.c.l.b16 %v5451
        %v5548 = vunpack.c.l.b16 %v5452
        %v5549 = vunpack.c.l.b16 %v5453
        %v5550 = vunpack.c.l.b16 %v5454
        %v5551 = vunpack.c.l.b16 %v5455
        %v5552 = vunpack.c.l.b16 %v5456
        %v5553 = vunpack.c.l.b16 %v5457
        %v5554 = vunpack.c.l.b16 %v5458
        %v5555 = vunpack.c.l.b16 %v5459
        %v5556 = vunpack.c.l.b16 %v5460
        %v5557 = vunpack.c.l.b16 %v5461
        %v5558 = vunpack.c.l.b16 %v5462
        %v5559 = vunpack.c.l.b16 %v5463
        %v5560 = vunpack.c.l.b16 %v5464
        %v5561 = vunpack.c.l.b16 %v5465
        %v5562 = vunpack.c.l.b16 %v5466
        %v5563 = vunpack.c.l.b16 %v5467
        %v5564 = vunpack.c.l.b16 %v5468
        %v5565 = vunpack.c.l.b16 %v5469
        %v5566 = vunpack.c.l.b16 %v5470
        %v5567 = vunpack.c.l.b16 %v5471
        %v5568 = vunpack.c.l.b16 %v5472
        %v5569 = vunpack.c.l.b16 %v5473
        %v5570 = vunpack.c.l.b16 %v5474
        %v5571 = vunpack.c.l.b16 %v5475
        %v5572 = vunpack.c.l.b16 %v5476
        %v5573 = vunpack.c.l.b16 %v5477
        %v5574 = vunpack.c.l.b16 %v5478
        %v5575 = vunpack.c.l.b16 %v5479
        %v5576 = vunpack.c.l.b16 %v5480
        %v5577 = vunpack.c.l.b16 %v5481
        %v5578 = vunpack.c.l.b16 %v5482
        %v5579 = vunpack.c.l.b16 %v5483
        %v5580 = vunpack.c.l.b16 %v5484
        %v5581 = vpack.c.b16 %v5534, %v5533
        %v5582 = vpack.c.b16 %v5536, %v5535
        %v5583 = vpack.c.b16 %v5538, %v5537
        %v5584 = vpack.c.b16 %v5540, %v5539
        %v5585 = vpack.c.b16 %v5542, %v5541
        %v5586 = vpack.c.b16 %v5544, %v5543
        %v5587 = vpack.c.b16 %v5546, %v5545
        %v5588 = vpack.c.b16 %v5548, %v5547
        %v5589 = vpack.c.b16 %v5550, %v5549
        %v5590 = vpack.c.b16 %v5552, %v5551
        %v5591 = vpack.c.b16 %v5554, %v5553
        %v5592 = vpack.c.b16 %v5556, %v5555
        %v5593 = vpack.c.b16 %v5558, %v5557
        %v5594 = vpack.c.b16 %v5560, %v5559
        %v5595 = vpack.c.b16 %v5562, %v5561
        %v5596 = vpack.c.b16 %v5564, %v5563
        %v5597 = vpack.c.b16 %v5566, %v5565
        %v5598 = vpack.c.b16 %v5568, %v5567
        %v5599 = vpack.c.b16 %v5570, %v5569
        %v5600 = vpack.c.b16 %v5572, %v5571
        %v5601 = vpack.c.b16 %v5574, %v5573
        %v5602 = vpack.c.b16 %v5576, %v5575
        %v5603 = vpack.c.b16 %v5578, %v5577
        %v5604 = vpack.c.b16 %v5580, %v5579
        %5629 = vmatprep.subr.bf16.mxu0 0
        %5630 = vmatpush1.bf16.msra.mxu0 %v5581
        %5631 = vmatprep.subr.bf16.mxu0 0
        %5632 = vmatpush1.bf16.msra.mxu0 %v5582
        %5633 = vmatprep.subr.bf16.mxu0 0
        %5634 = vmatpush1.bf16.msra.mxu0 %v5583
        %5635 = vmatprep.subr.bf16.mxu0 0
        %5636 = vmatpush1.bf16.msra.mxu0 %v5584
        %5637 = vmatprep.subr.bf16.mxu0 0
        %5638 = vmatpush1.bf16.msra.mxu0 %v5585
        %5639 = vmatprep.subr.bf16.mxu0 0
        %5640 = vmatpush1.bf16.msra.mxu0 %v5586
        %5641 = vmatprep.subr.bf16.mxu0 0
        %5642 = vmatpush1.bf16.msra.mxu0 %v5587
        %5643 = vmatprep.subr.bf16.mxu0 0
        %5644 = vmatpush1.bf16.msra.mxu0 %v5588
        %5645 = vmatprep.subr.bf16.mxu0 0
        %5646 = vmatpush1.bf16.msra.mxu0 %v5589
        %5647 = vmatprep.subr.bf16.mxu0 0
        %5648 = vmatpush1.bf16.msra.mxu0 %v5590
        %5649 = vmatprep.subr.bf16.mxu0 0
        %5650 = vmatpush1.bf16.msra.mxu0 %v5591
        %5651 = vmatprep.subr.bf16.mxu0 0
        %5652 = vmatpush1.bf16.msra.mxu0 %v5592
        %5653 = vmatprep.subr.bf16.mxu0 0
        %5654 = vmatpush1.bf16.msra.mxu0 %v5593
        %5655 = vmatprep.subr.bf16.mxu0 0
        %5656 = vmatpush1.bf16.msra.mxu0 %v5594
        %5657 = vmatprep.subr.bf16.mxu0 0
        %5658 = vmatpush1.bf16.msra.mxu0 %v5595
        %5659 = vmatprep.subr.bf16.mxu0 0
        %5660 = vmatpush1.bf16.msra.mxu0 %v5596
        %5661 = vmatprep.mubr.bf16.mxu0 %v4910
        %5662 = vmatmul.mubr.bf16.gmra.mrb[0].mxu0 %v4898
        %v5663 = vpop.f32.mrb[0].mxu0
        %v5664 = vadd.f32 0.0, %v5663
        %v5665 = vpop.f32.mrb[0].mxu0
        %v5666 = vpop.f32.mrb[0].mxu0
        %v5667 = vadd.f32 0.0, %v5666
        %v5668 = vpop.f32.mrb[0].mxu0
        %5669 = vmatprep.mubr.bf16.mxu0 %v4941
        %5670 = vmatmul.mubr.bf16.gmra.mrb[0].mxu0 %v4929
        %v5671 = vpop.f32.mrb[0].mxu0
        %v5672 = vadd.f32 0.0, %v5671
        %v5673 = vpop.f32.mrb[0].mxu0
        %v5674 = vpop.f32.mrb[0].mxu0
        %v5675 = vadd.f32 0.0, %v5674
        %v5676 = vpop.f32.mrb[0].mxu0
        %5677 = vmatprep.mubr.bf16.mxu0 %v4972
        %5678 = vmatmul.mubr.bf16.gmra.mrb[0].mxu0 %v4960
        %v5679 = vpop.f32.mrb[0].mxu0
        %v5680 = vadd.f32 0.0, %v5679
        %v5681 = vpop.f32.mrb[0].mxu0
        %v5682 = vpop.f32.mrb[0].mxu0
        %v5683 = vadd.f32 0.0, %v5682
        %v5684 = vpop.f32.mrb[0].mxu0
        %5685 = vmatprep.mubr.bf16.mxu0 %v5003
        %5686 = vmatmul.mubr.bf16.gmra.mrb[0].mxu0 %v4991
        %v5687 = vpop.f32.mrb[0].mxu0
        %v5688 = vadd.f32 0.0, %v5687
        %v5689 = vpop.f32.mrb[0].mxu0
        %v5690 = vpop.f32.mrb[0].mxu0
        %v5691 = vadd.f32 0.0, %v5690
        %v5692 = vpop.f32.mrb[0].mxu0
        %5693 = vmatprep.mubr.bf16.mxu0 %v5034
        %5694 = vmatmul.mubr.bf16.gmra.mrb[0].mxu0 %v5022
        %v5695 = vpop.f32.mrb[0].mxu0
        %v5696 = vadd.f32 0.0, %v5695
        %v5697 = vpop.f32.mrb[0].mxu0
        %v5698 = vpop.f32.mrb[0].mxu0
        %v5699 = vadd.f32 0.0, %v5698
        %v5700 = vpop.f32.mrb[0].mxu0
        %5701 = vmatprep.mubr.bf16.mxu0 %v5065
        %5702 = vmatmul.mubr.bf16.gmra.mrb[0].mxu0 %v5053
        %v5703 = vpop.f32.mrb[0].mxu0
        %v5704 = vadd.f32 0.0, %v5703
        %v5705 = vpop.f32.mrb[0].mxu0
        %v5706 = vpop.f32.mrb[0].mxu0
        %v5707 = vadd.f32 0.0, %v5706
        %v5708 = vpop.f32.mrb[0].mxu0
        %5709 = vmatprep.mubr.bf16.mxu0 %v5096
        %5710 = vmatmul.mubr.bf16.gmra.mrb[0].mxu0 %v5084
        %v5711 = vpop.f32.mrb[0].mxu0
        %v5712 = vadd.f32 0.0, %v5711
        %v5713 = vpop.f32.mrb[0].mxu0
        %v5714 = vpop.f32.mrb[0].mxu0
        %v5715 = vadd.f32 0.0, %v5714
        %v5716 = vpop.f32.mrb[0].mxu0
        %5717 = vmatprep.mubr.bf16.mxu0 %v5127
        %5718 = vmatmul.mubr.bf16.gmra.mrb[0].mxu0 %v5115
        %v5719 = vpop.f32.mrb[0].mxu0
        %v5720 = vadd.f32 0.0, %v5719
        %v5721 = vpop.f32.mrb[0].mxu0
        %v5722 = vpop.f32.mrb[0].mxu0
        %v5723 = vadd.f32 0.0, %v5722
        %v5724 = vpop.f32.mrb[0].mxu0
        %5725 = vmatprep.mubr.bf16.mxu0 %v5158
        %5726 = vmatmul.mubr.bf16.gmra.mrb[0].mxu0 %v5146
        %v5727 = vpop.f32.mrb[0].mxu0
        %v5728 = vadd.f32 0.0, %v5727
        %v5729 = vpop.f32.mrb[0].mxu0
        %v5730 = vpop.f32.mrb[0].mxu0
        %v5731 = vadd.f32 0.0, %v5730
        %v5732 = vpop.f32.mrb[0].mxu0
        %5733 = vmatprep.mubr.bf16.mxu0 %v5189
        %5734 = vmatmul.mubr.bf16.gmra.mrb[0].mxu0 %v5177
        %v5735 = vpop.f32.mrb[0].mxu0
        %v5736 = vadd.f32 0.0, %v5735
        %v5737 = vpop.f32.mrb[0].mxu0
        %v5738 = vpop.f32.mrb[0].mxu0
        %v5739 = vadd.f32 0.0, %v5738
        %v5740 = vpop.f32.mrb[0].mxu0
        %5741 = vmatprep.mubr.bf16.mxu0 %v5220
        %5742 = vmatmul.mubr.bf16.gmra.mrb[0].mxu0 %v5208
        %v5743 = vpop.f32.mrb[0].mxu0
        %v5744 = vadd.f32 0.0, %v5743
        %v5745 = vpop.f32.mrb[0].mxu0
        %v5746 = vpop.f32.mrb[0].mxu0
        %v5747 = vadd.f32 0.0, %v5746
        %v5748 = vpop.f32.mrb[0].mxu0
        %5749 = vmatprep.mubr.bf16.mxu0 %v5251
        %5750 = vmatmul.mubr.bf16.gmra.mrb[0].mxu0 %v5239
        %v5751 = vpop.f32.mrb[0].mxu0
        %v5752 = vadd.f32 0.0, %v5751
        %v5753 = vpop.f32.mrb[0].mxu0
        %v5754 = vpop.f32.mrb[0].mxu0
        %v5755 = vadd.f32 0.0, %v5754
        %v5756 = vpop.f32.mrb[0].mxu0
        %5757 = vmatprep.mubr.bf16.mxu0 %v5282
        %5758 = vmatmul.mubr.bf16.gmra.mrb[0].mxu0 %v5270
        %v5759 = vpop.f32.mrb[0].mxu0
        %v5760 = vadd.f32 0.0, %v5759
        %v5761 = vpop.f32.mrb[0].mxu0
        %v5762 = vpop.f32.mrb[0].mxu0
        %v5763 = vadd.f32 0.0, %v5762
        %v5764 = vpop.f32.mrb[0].mxu0
        %5765 = vmatprep.mubr.bf16.mxu0 %v5313
        %5766 = vmatmul.mubr.bf16.gmra.mrb[0].mxu0 %v5301
        %v5767 = vpop.f32.mrb[0].mxu0
        %v5768 = vadd.f32 0.0, %v5767
        %v5769 = vpop.f32.mrb[0].mxu0
        %v5770 = vpop.f32.mrb[0].mxu0
        %v5771 = vadd.f32 0.0, %v5770
        %v5772 = vpop.f32.mrb[0].mxu0
        %5773 = vmatprep.mubr.bf16.mxu0 %v5344
        %5774 = vmatmul.mubr.bf16.gmra.mrb[0].mxu0 %v5332
        %v5775 = vpop.f32.mrb[0].mxu0
        %v5776 = vadd.f32 0.0, %v5775
        %v5777 = vpop.f32.mrb[0].mxu0
        %v5778 = vpop.f32.mrb[0].mxu0
        %v5779 = vadd.f32 0.0, %v5778
        %v5780 = vpop.f32.mrb[0].mxu0
        %5781 = vmatprep.mubr.bf16.mxu0 %v5375
        %5782 = vmatmul.mubr.bf16.gmra.mrb[0].mxu0 %v5363
        %v5783 = vpop.f32.mrb[0].mxu0
        %v5784 = vadd.f32 0.0, %v5783
        %v5785 = vpop.f32.mrb[0].mxu0
        %v5786 = vpop.f32.mrb[0].mxu0
        %v5787 = vadd.f32 0.0, %v5786
        %v5788 = vpop.f32.mrb[0].mxu0
        %5789 = vdwg.mxu0
        %5790 = vmatprep.subr.bf16.mxu0 0
        %5791 = vmatpush1.bf16.msra.mxu0 %v5597
        %5792 = vmatprep.subr.bf16.mxu0 0
        %5793 = vmatpush1.bf16.msra.mxu0 %v5598
        %5794 = vmatprep.subr.bf16.mxu0 0
        %5795 = vmatpush1.bf16.msra.mxu0 %v5599
        %5796 = vmatprep.subr.bf16.mxu0 0
        %5797 = vmatpush1.bf16.msra.mxu0 %v5600
        %5798 = vmatprep.subr.bf16.mxu0 0
        %5799 = vmatpush1.bf16.msra.mxu0 %v5601
        %5800 = vmatprep.subr.bf16.mxu0 0
        %5801 = vmatpush1.bf16.msra.mxu0 %v5602
        %5802 = vmatprep.subr.bf16.mxu0 0
        %5803 = vmatpush1.bf16.msra.mxu0 %v5603
        %5804 = vmatprep.subr.bf16.mxu0 0
        %5805 = vmatpush1.bf16.msra.mxu0 %v5604
        %5806 = vmatprep.subr.bf16.mxu0 0
        %5807 = vmatpush1.bf16.msra.mxu0 0
        %5808 = vmatprep.subr.bf16.mxu0 0
        %5809 = vmatpush1.bf16.msra.mxu0 0
        %5810 = vmatprep.subr.bf16.mxu0 0
        %5811 = vmatpush1.bf16.msra.mxu0 0
        %5812 = vmatprep.subr.bf16.mxu0 0
        %5813 = vmatpush1.bf16.msra.mxu0 0
        %5814 = vmatprep.subr.bf16.mxu0 0
        %5815 = vmatpush1.bf16.msra.mxu0 0
        %5816 = vmatprep.subr.bf16.mxu0 0
        %5817 = vmatpush1.bf16.msra.mxu0 0
        %5818 = vmatprep.subr.bf16.mxu0 0
        %5819 = vmatpush1.bf16.msra.mxu0 0
        %5820 = vmatprep.subr.bf16.mxu0 0
        %5821 = vmatpush1.bf16.msra.mxu0 0
        %5822 = vmatprep.mubr.bf16.mxu0 0
        %5823 = vmatmul.mubr.bf16.gmra.mrb[0].mxu0 %v4922
        %v5824 = vpop.f32.mrb[0].mxu0
        %v5825 = vadd.f32 %v5664, %v5824
        %v5826 = vpop.f32.mrb[0].mxu0
        %v5827 = vpop.f32.mrb[0].mxu0
        %v5828 = vadd.f32 %v5667, %v5827
        %v5829 = vpop.f32.mrb[0].mxu0
        %5830 = vmatprep.mubr.bf16.mxu0 0
        %5831 = vmatmul.mubr.bf16.gmra.mrb[0].mxu0 %v4953
        %v5832 = vpop.f32.mrb[0].mxu0
        %v5833 = vadd.f32 %v5672, %v5832
        %v5834 = vpop.f32.mrb[0].mxu0
        %v5835 = vpop.f32.mrb[0].mxu0
        %v5836 = vadd.f32 %v5675, %v5835
        %v5837 = vpop.f32.mrb[0].mxu0
        %5838 = vmatprep.mubr.bf16.mxu0 0
        %5839 = vmatmul.mubr.bf16.gmra.mrb[0].mxu0 %v4984
        %v5840 = vpop.f32.mrb[0].mxu0
        %v5841 = vadd.f32 %v5680, %v5840
        %v5842 = vpop.f32.mrb[0].mxu0
        %v5843 = vpop.f32.mrb[0].mxu0
        %v5844 = vadd.f32 %v5683, %v5843
        %v5845 = vpop.f32.mrb[0].mxu0
        %5846 = vmatprep.mubr.bf16.mxu0 0
        %5847 = vmatmul.mubr.bf16.gmra.mrb[0].mxu0 %v5015
        %v5848 = vpop.f32.mrb[0].mxu0
        %v5849 = vadd.f32 %v5688, %v5848
        %v5850 = vpop.f32.mrb[0].mxu0
        %v5851 = vpop.f32.mrb[0].mxu0
        %v5852 = vadd.f32 %v5691, %v5851
        %v5853 = vpop.f32.mrb[0].mxu0
        %5854 = vmatprep.mubr.bf16.mxu0 0
        %5855 = vmatmul.mubr.bf16.gmra.mrb[0].mxu0 %v5046
        %v5856 = vpop.f32.mrb[0].mxu0
        %v5857 = vadd.f32 %v5696, %v5856
        %v5858 = vpop.f32.mrb[0].mxu0
        %v5859 = vpop.f32.mrb[0].mxu0
        %v5860 = vadd.f32 %v5699, %v5859
        %v5861 = vpop.f32.mrb[0].mxu0
        %5862 = vmatprep.mubr.bf16.mxu0 0
        %5863 = vmatmul.mubr.bf16.gmra.mrb[0].mxu0 %v5077
        %v5864 = vpop.f32.mrb[0].mxu0
        %v5865 = vadd.f32 %v5704, %v5864
        %v5866 = vpop.f32.mrb[0].mxu0
        %v5867 = vpop.f32.mrb[0].mxu0
        %v5868 = vadd.f32 %v5707, %v5867
        %v5869 = vpop.f32.mrb[0].mxu0
        %5870 = vmatprep.mubr.bf16.mxu0 0
        %5871 = vmatmul.mubr.bf16.gmra.mrb[0].mxu0 %v5108
        %v5872 = vpop.f32.mrb[0].mxu0
        %v5873 = vadd.f32 %v5712, %v5872
        %v5874 = vpop.f32.mrb[0].mxu0
        %v5875 = vpop.f32.mrb[0].mxu0
        %v5876 = vadd.f32 %v5715, %v5875
        %v5877 = vpop.f32.mrb[0].mxu0
        %5878 = vmatprep.mubr.bf16.mxu0 0
        %5879 = vmatmul.mubr.bf16.gmra.mrb[0].mxu0 %v5139
        %v5880 = vpop.f32.mrb[0].mxu0
        %v5881 = vadd.f32 %v5720, %v5880
        %v5882 = vpop.f32.mrb[0].mxu0
        %v5883 = vpop.f32.mrb[0].mxu0
        %v5884 = vadd.f32 %v5723, %v5883
        %v5885 = vpop.f32.mrb[0].mxu0
        %5886 = vmatprep.mubr.bf16.mxu0 0
        %5887 = vmatmul.mubr.bf16.gmra.mrb[0].mxu0 %v5170
        %v5888 = vpop.f32.mrb[0].mxu0
        %v5889 = vadd.f32 %v5728, %v5888
        %v5890 = vpop.f32.mrb[0].mxu0
        %v5891 = vpop.f32.mrb[0].mxu0
        %v5892 = vadd.f32 %v5731, %v5891
        %v5893 = vpop.f32.mrb[0].mxu0
        %5894 = vmatprep.mubr.bf16.mxu0 0
        %5895 = vmatmul.mubr.bf16.gmra.mrb[0].mxu0 %v5201
        %v5896 = vpop.f32.mrb[0].mxu0
        %v5897 = vadd.f32 %v5736, %v5896
        %v5898 = vpop.f32.mrb[0].mxu0
        %v5899 = vpop.f32.mrb[0].mxu0
        %v5900 = vadd.f32 %v5739, %v5899
        %v5901 = vpop.f32.mrb[0].mxu0
        %5902 = vmatprep.mubr.bf16.mxu0 0
        %5903 = vmatmul.mubr.bf16.gmra.mrb[0].mxu0 %v5232
        %v5904 = vpop.f32.mrb[0].mxu0
        %v5905 = vadd.f32 %v5744, %v5904
        %v5906 = vpop.f32.mrb[0].mxu0
        %v5907 = vpop.f32.mrb[0].mxu0
        %v5908 = vadd.f32 %v5747, %v5907
        %v5909 = vpop.f32.mrb[0].mxu0
        %5910 = vmatprep.mubr.bf16.mxu0 0
        %5911 = vmatmul.mubr.bf16.gmra.mrb[0].mxu0 %v5263
        %v5912 = vpop.f32.mrb[0].mxu0
        %v5913 = vadd.f32 %v5752, %v5912
        %v5914 = vpop.f32.mrb[0].mxu0
        %v5915 = vpop.f32.mrb[0].mxu0
        %v5916 = vadd.f32 %v5755, %v5915
        %v5917 = vpop.f32.mrb[0].mxu0
        %5918 = vmatprep.mubr.bf16.mxu0 0
        %5919 = vmatmul.mubr.bf16.gmra.mrb[0].mxu0 %v5294
        %v5920 = vpop.f32.mrb[0].mxu0
        %v5921 = vadd.f32 %v5760, %v5920
        %v5922 = vpop.f32.mrb[0].mxu0
        %v5923 = vpop.f32.mrb[0].mxu0
        %v5924 = vadd.f32 %v5763, %v5923
        %v5925 = vpop.f32.mrb[0].mxu0
        %5926 = vmatprep.mubr.bf16.mxu0 0
        %5927 = vmatmul.mubr.bf16.gmra.mrb[0].mxu0 %v5325
        %v5928 = vpop.f32.mrb[0].mxu0
        %v5929 = vadd.f32 %v5768, %v5928
        %v5930 = vpop.f32.mrb[0].mxu0
        %v5931 = vpop.f32.mrb[0].mxu0
        %v5932 = vadd.f32 %v5771, %v5931
        %v5933 = vpop.f32.mrb[0].mxu0
        %5934 = vmatprep.mubr.bf16.mxu0 0
        %5935 = vmatmul.mubr.bf16.gmra.mrb[0].mxu0 %v5356
        %v5936 = vpop.f32.mrb[0].mxu0
        %v5937 = vadd.f32 %v5776, %v5936
        %v5938 = vpop.f32.mrb[0].mxu0
        %v5939 = vpop.f32.mrb[0].mxu0
        %v5940 = vadd.f32 %v5779, %v5939
        %v5941 = vpop.f32.mrb[0].mxu0
        %5942 = vmatprep.mubr.bf16.mxu0 0
        %5943 = vmatmul.mubr.bf16.gmra.mrb[0].mxu0 %v5387
        %v5944 = vpop.f32.mrb[0].mxu0
        %v5945 = vadd.f32 %v5784, %v5944
        %v5946 = vpop.f32.mrb[0].mxu0
        %v5947 = vpop.f32.mrb[0].mxu0
        %v5948 = vadd.f32 %v5787, %v5947
        %v5949 = vpop.f32.mrb[0].mxu0
        %5950 = vdwg.mxu0
        %v5999 = vunpack.c.l.b16 %v4604
        %v6000 = vunpack.c.l.b16 %v4605
        %v6001 = vunpack.c.l.b16 %v4606
        %v6002 = vunpack.c.l.b16 %v4607
        %v6003 = vunpack.c.l.b16 %v4608
        %v6004 = vunpack.c.l.b16 %v4609
        %v6005 = vunpack.c.l.b16 %v4610
        %v6006 = vunpack.c.l.b16 %v4611
        %v6007 = vunpack.c.l.b16 %v4612
        %v6008 = vunpack.c.l.b16 %v4613
        %v6009 = vunpack.c.l.b16 %v4614
        %v6010 = vunpack.c.l.b16 %v4615
        %v6011 = vunpack.c.l.b16 %v4616
        %v6012 = vunpack.c.l.b16 %v4617
        %v6013 = vunpack.c.l.b16 %v4618
        %v6014 = vunpack.c.l.b16 %v4619
        %v6015 = vunpack.c.l.b16 %v4620
        %v6016 = vunpack.c.l.b16 %v4621
        %v6017 = vunpack.c.l.b16 %v4622
        %v6018 = vunpack.c.l.b16 %v4623
        %v6019 = vunpack.c.l.b16 %v4624
        %v6020 = vunpack.c.l.b16 %v4625
        %v6021 = vunpack.c.l.b16 %v4626
        %v6022 = vunpack.c.l.b16 %v4627
        %v6023 = vunpack.c.l.b16 %v4628
        %v6024 = vunpack.c.l.b16 %v4629
        %v6025 = vunpack.c.l.b16 %v4630
        %v6026 = vunpack.c.l.b16 %v4631
        %v6027 = vunpack.c.l.b16 %v4632
        %v6028 = vunpack.c.l.b16 %v4633
        %v6029 = vunpack.c.l.b16 %v4634
        %v6030 = vunpack.c.l.b16 %v4635
        %v6031 = vunpack.c.l.b16 %v4636
        %v6032 = vunpack.c.l.b16 %v4637
        %v6033 = vunpack.c.l.b16 %v4638
        %v6034 = vunpack.c.l.b16 %v4639
        %v6035 = vunpack.c.l.b16 %v4640
        %v6036 = vunpack.c.l.b16 %v4641
        %v6037 = vunpack.c.l.b16 %v4642
        %v6038 = vunpack.c.l.b16 %v4643
        %v6039 = vunpack.c.l.b16 %v4644
        %v6040 = vunpack.c.l.b16 %v4645
        %v6041 = vunpack.c.l.b16 %v4646
        %v6042 = vunpack.c.l.b16 %v4647
        %v6043 = vunpack.c.l.b16 %v4648
        %v6044 = vunpack.c.l.b16 %v4649
        %v6045 = vunpack.c.l.b16 %v4650
        %v6046 = vunpack.c.l.b16 %v4651
        %v6047 = vpack.c.b16 %v6000, %v5999
        %v6048 = vpack.c.b16 %v6002, %v6001
        %v6049 = vpack.c.b16 %v6004, %v6003
        %v6050 = vpack.c.b16 %v6006, %v6005
        %v6051 = vpack.c.b16 %v6008, %v6007
        %v6052 = vpack.c.b16 %v6010, %v6009
        %v6053 = vpack.c.b16 %v6012, %v6011
        %v6054 = vpack.c.b16 %v6014, %v6013
        %v6055 = vpack.c.b16 %v6016, %v6015
        %v6056 = vpack.c.b16 %v6018, %v6017
        %v6057 = vpack.c.b16 %v6020, %v6019
        %v6058 = vpack.c.b16 %v6022, %v6021
        %v6059 = vpack.c.b16 %v6024, %v6023
        %v6060 = vpack.c.b16 %v6026, %v6025
        %v6061 = vpack.c.b16 %v6028, %v6027
        %v6062 = vpack.c.b16 %v6030, %v6029
        %v6063 = vpack.c.b16 %v6032, %v6031
        %v6064 = vpack.c.b16 %v6034, %v6033
        %v6065 = vpack.c.b16 %v6036, %v6035
        %v6066 = vpack.c.b16 %v6038, %v6037
        %v6067 = vpack.c.b16 %v6040, %v6039
        %v6068 = vpack.c.b16 %v6042, %v6041
        %v6069 = vpack.c.b16 %v6044, %v6043
        %v6070 = vpack.c.b16 %v6046, %v6045
        %6095 = vmatprep.subr.bf16.mxu0 0
        %6096 = vmatpush1.bf16.msra.mxu0 %v6047
        %6097 = vmatprep.subr.bf16.mxu0 0
        %6098 = vmatpush1.bf16.msra.mxu0 %v6048
        %6099 = vmatprep.subr.bf16.mxu0 0
        %6100 = vmatpush1.bf16.msra.mxu0 %v6049
        %6101 = vmatprep.subr.bf16.mxu0 0
        %6102 = vmatpush1.bf16.msra.mxu0 %v6050
        %6103 = vmatprep.subr.bf16.mxu0 0
        %6104 = vmatpush1.bf16.msra.mxu0 %v6051
        %6105 = vmatprep.subr.bf16.mxu0 0
        %6106 = vmatpush1.bf16.msra.mxu0 %v6052
        %6107 = vmatprep.subr.bf16.mxu0 0
        %6108 = vmatpush1.bf16.msra.mxu0 %v6053
        %6109 = vmatprep.subr.bf16.mxu0 0
        %6110 = vmatpush1.bf16.msra.mxu0 %v6054
        %6111 = vmatprep.subr.bf16.mxu0 0
        %6112 = vmatpush1.bf16.msra.mxu0 %v6055
        %6113 = vmatprep.subr.bf16.mxu0 0
        %6114 = vmatpush1.bf16.msra.mxu0 %v6056
        %6115 = vmatprep.subr.bf16.mxu0 0
        %6116 = vmatpush1.bf16.msra.mxu0 %v6057
        %6117 = vmatprep.subr.bf16.mxu0 0
        %6118 = vmatpush1.bf16.msra.mxu0 %v6058
        %6119 = vmatprep.subr.bf16.mxu0 0
        %6120 = vmatpush1.bf16.msra.mxu0 %v6059
        %6121 = vmatprep.subr.bf16.mxu0 0
        %6122 = vmatpush1.bf16.msra.mxu0 %v6060
        %6123 = vmatprep.subr.bf16.mxu0 0
        %6124 = vmatpush1.bf16.msra.mxu0 %v6061
        %6125 = vmatprep.subr.bf16.mxu0 0
        %6126 = vmatpush1.bf16.msra.mxu0 %v6062
        %6127 = vmatprep.mubr.bf16.mxu0 %v4078
        %6128 = vmatmul.mubr.bf16.gmra.mrb[0].mxu0 %v4066
        %v6129 = vpop.f32.mrb[0].mxu0
        %v6130 = vadd.f32 %v5825, %v6129
        %v6131 = vpop.f32.mrb[0].mxu0
        %v6132 = vpop.f32.mrb[0].mxu0
        %v6133 = vadd.f32 %v5828, %v6132
        %v6134 = vpop.f32.mrb[0].mxu0
        %6135 = vmatprep.mubr.bf16.mxu0 %v4109
        %6136 = vmatmul.mubr.bf16.gmra.mrb[0].mxu0 %v4097
        %v6137 = vpop.f32.mrb[0].mxu0
        %v6138 = vadd.f32 %v5833, %v6137
        %v6139 = vpop.f32.mrb[0].mxu0
        %v6140 = vpop.f32.mrb[0].mxu0
        %v6141 = vadd.f32 %v5836, %v6140
        %v6142 = vpop.f32.mrb[0].mxu0
        %6143 = vmatprep.mubr.bf16.mxu0 %v4140
        %6144 = vmatmul.mubr.bf16.gmra.mrb[0].mxu0 %v4128
        %v6145 = vpop.f32.mrb[0].mxu0
        %v6146 = vadd.f32 %v5841, %v6145
        %v6147 = vpop.f32.mrb[0].mxu0
        %v6148 = vpop.f32.mrb[0].mxu0
        %v6149 = vadd.f32 %v5844, %v6148
        %v6150 = vpop.f32.mrb[0].mxu0
        %6151 = vmatprep.mubr.bf16.mxu0 %v4171
        %6152 = vmatmul.mubr.bf16.gmra.mrb[0].mxu0 %v4159
        %v6153 = vpop.f32.mrb[0].mxu0
        %v6154 = vadd.f32 %v5849, %v6153
        %v6155 = vpop.f32.mrb[0].mxu0
        %v6156 = vpop.f32.mrb[0].mxu0
        %v6157 = vadd.f32 %v5852, %v6156
        %v6158 = vpop.f32.mrb[0].mxu0
        %6159 = vmatprep.mubr.bf16.mxu0 %v4202
        %6160 = vmatmul.mubr.bf16.gmra.mrb[0].mxu0 %v4190
        %v6161 = vpop.f32.mrb[0].mxu0
        %v6162 = vadd.f32 %v5857, %v6161
        %v6163 = vpop.f32.mrb[0].mxu0
        %v6164 = vpop.f32.mrb[0].mxu0
        %v6165 = vadd.f32 %v5860, %v6164
        %v6166 = vpop.f32.mrb[0].mxu0
        %6167 = vmatprep.mubr.bf16.mxu0 %v4233
        %6168 = vmatmul.mubr.bf16.gmra.mrb[0].mxu0 %v4221
        %v6169 = vpop.f32.mrb[0].mxu0
        %v6170 = vadd.f32 %v5865, %v6169
        %v6171 = vpop.f32.mrb[0].mxu0
        %v6172 = vpop.f32.mrb[0].mxu0
        %v6173 = vadd.f32 %v5868, %v6172
        %v6174 = vpop.f32.mrb[0].mxu0
        %6175 = vmatprep.mubr.bf16.mxu0 %v4264
        %6176 = vmatmul.mubr.bf16.gmra.mrb[0].mxu0 %v4252
        %v6177 = vpop.f32.mrb[0].mxu0
        %v6178 = vadd.f32 %v5873, %v6177
        %v6179 = vpop.f32.mrb[0].mxu0
        %v6180 = vpop.f32.mrb[0].mxu0
        %v6181 = vadd.f32 %v5876, %v6180
        %v6182 = vpop.f32.mrb[0].mxu0
        %6183 = vmatprep.mubr.bf16.mxu0 %v4295
        %6184 = vmatmul.mubr.bf16.gmra.mrb[0].mxu0 %v4283
        %v6185 = vpop.f32.mrb[0].mxu0
        %v6186 = vadd.f32 %v5881, %v6185
        %v6187 = vpop.f32.mrb[0].mxu0
        %v6188 = vpop.f32.mrb[0].mxu0
        %v6189 = vadd.f32 %v5884, %v6188
        %v6190 = vpop.f32.mrb[0].mxu0
        %6191 = vmatprep.mubr.bf16.mxu0 %v4326
        %6192 = vmatmul.mubr.bf16.gmra.mrb[0].mxu0 %v4314
        %v6193 = vpop.f32.mrb[0].mxu0
        %v6194 = vadd.f32 %v5889, %v6193
        %v6195 = vpop.f32.mrb[0].mxu0
        %v6196 = vpop.f32.mrb[0].mxu0
        %v6197 = vadd.f32 %v5892, %v6196
        %v6198 = vpop.f32.mrb[0].mxu0
        %6199 = vmatprep.mubr.bf16.mxu0 %v4357
        %6200 = vmatmul.mubr.bf16.gmra.mrb[0].mxu0 %v4345
        %v6201 = vpop.f32.mrb[0].mxu0
        %v6202 = vadd.f32 %v5897, %v6201
        %v6203 = vpop.f32.mrb[0].mxu0
        %v6204 = vpop.f32.mrb[0].mxu0
        %v6205 = vadd.f32 %v5900, %v6204
        %v6206 = vpop.f32.mrb[0].mxu0
        %6207 = vmatprep.mubr.bf16.mxu0 %v4388
        %6208 = vmatmul.mubr.bf16.gmra.mrb[0].mxu0 %v4376
        %v6209 = vpop.f32.mrb[0].mxu0
        %v6210 = vadd.f32 %v5905, %v6209
        %v6211 = vpop.f32.mrb[0].mxu0
        %v6212 = vpop.f32.mrb[0].mxu0
        %v6213 = vadd.f32 %v5908, %v6212
        %v6214 = vpop.f32.mrb[0].mxu0
        %6215 = vmatprep.mubr.bf16.mxu0 %v4419
        %6216 = vmatmul.mubr.bf16.gmra.mrb[0].mxu0 %v4407
        %v6217 = vpop.f32.mrb[0].mxu0
        %v6218 = vadd.f32 %v5913, %v6217
        %v6219 = vpop.f32.mrb[0].mxu0
        %v6220 = vpop.f32.mrb[0].mxu0
        %v6221 = vadd.f32 %v5916, %v6220
        %v6222 = vpop.f32.mrb[0].mxu0
        %6223 = vmatprep.mubr.bf16.mxu0 %v4450
        %6224 = vmatmul.mubr.bf16.gmra.mrb[0].mxu0 %v4438
        %v6225 = vpop.f32.mrb[0].mxu0
        %v6226 = vadd.f32 %v5921, %v6225
        %v6227 = vpop.f32.mrb[0].mxu0
        %v6228 = vpop.f32.mrb[0].mxu0
        %v6229 = vadd.f32 %v5924, %v6228
        %v6230 = vpop.f32.mrb[0].mxu0
        %6231 = vmatprep.mubr.bf16.mxu0 %v4481
        %6232 = vmatmul.mubr.bf16.gmra.mrb[0].mxu0 %v4469
        %v6233 = vpop.f32.mrb[0].mxu0
        %v6234 = vadd.f32 %v5929, %v6233
        %v6235 = vpop.f32.mrb[0].mxu0
        %v6236 = vpop.f32.mrb[0].mxu0
        %v6237 = vadd.f32 %v5932, %v6236
        %v6238 = vpop.f32.mrb[0].mxu0
        %6239 = vmatprep.mubr.bf16.mxu0 %v4512
        %6240 = vmatmul.mubr.bf16.gmra.mrb[0].mxu0 %v4500
        %v6241 = vpop.f32.mrb[0].mxu0
        %v6242 = vadd.f32 %v5937, %v6241
        %v6243 = vpop.f32.mrb[0].mxu0
        %v6244 = vpop.f32.mrb[0].mxu0
        %v6245 = vadd.f32 %v5940, %v6244
        %v6246 = vpop.f32.mrb[0].mxu0
        %6247 = vmatprep.mubr.bf16.mxu0 %v4543
        %6248 = vmatmul.mubr.bf16.gmra.mrb[0].mxu0 %v4531
        %v6249 = vpop.f32.mrb[0].mxu0
        %v6250 = vadd.f32 %v5945, %v6249
        %v6251 = vpop.f32.mrb[0].mxu0
        %v6252 = vpop.f32.mrb[0].mxu0
        %v6253 = vadd.f32 %v5948, %v6252
        %v6254 = vpop.f32.mrb[0].mxu0
        %6255 = vdwg.mxu0
        %6256 = vmatprep.subr.bf16.mxu0 0
        %6257 = vmatpush1.bf16.msra.mxu0 %v6063
        %6258 = vmatprep.subr.bf16.mxu0 0
        %6259 = vmatpush1.bf16.msra.mxu0 %v6064
        %6260 = vmatprep.subr.bf16.mxu0 0
        %6261 = vmatpush1.bf16.msra.mxu0 %v6065
        %6262 = vmatprep.subr.bf16.mxu0 0
        %6263 = vmatpush1.bf16.msra.mxu0 %v6066
        %6264 = vmatprep.subr.bf16.mxu0 0
        %6265 = vmatpush1.bf16.msra.mxu0 %v6067
        %6266 = vmatprep.subr.bf16.mxu0 0
        %6267 = vmatpush1.bf16.msra.mxu0 %v6068
        %6268 = vmatprep.subr.bf16.mxu0 0
        %6269 = vmatpush1.bf16.msra.mxu0 %v6069
        %6270 = vmatprep.subr.bf16.mxu0 0
        %6271 = vmatpush1.bf16.msra.mxu0 %v6070
        %6272 = vmatprep.subr.bf16.mxu0 0
        %6273 = vmatpush1.bf16.msra.mxu0 0
        %6274 = vmatprep.subr.bf16.mxu0 0
        %6275 = vmatpush1.bf16.msra.mxu0 0
        %6276 = vmatprep.subr.bf16.mxu0 0
        %6277 = vmatpush1.bf16.msra.mxu0 0
        %6278 = vmatprep.subr.bf16.mxu0 0
        %6279 = vmatpush1.bf16.msra.mxu0 0
        %6280 = vmatprep.subr.bf16.mxu0 0
        %6281 = vmatpush1.bf16.msra.mxu0 0
        %6282 = vmatprep.subr.bf16.mxu0 0
        %6283 = vmatpush1.bf16.msra.mxu0 0
        %6284 = vmatprep.subr.bf16.mxu0 0
        %6285 = vmatpush1.bf16.msra.mxu0 0
        %6286 = vmatprep.subr.bf16.mxu0 0
        %6287 = vmatpush1.bf16.msra.mxu0 0
        %6288 = vmatprep.mubr.bf16.mxu0 0
        %6289 = vmatmul.mubr.bf16.gmra.mrb[0].mxu0 %v4090
        %v6290 = vpop.f32.mrb[0].mxu0
        %v6291 = vadd.f32 %v6130, %v6290
        %v6292 = vpop.f32.mrb[0].mxu0
        %v6293 = vpop.f32.mrb[0].mxu0
        %v6294 = vadd.f32 %v6133, %v6293
        %v6295 = vpop.f32.mrb[0].mxu0
        %6296 = vmatprep.mubr.bf16.mxu0 0
        %6297 = vmatmul.mubr.bf16.gmra.mrb[0].mxu0 %v4121
        %v6298 = vpop.f32.mrb[0].mxu0
        %v6299 = vadd.f32 %v6138, %v6298
        %v6300 = vpop.f32.mrb[0].mxu0
        %v6301 = vpop.f32.mrb[0].mxu0
        %v6302 = vadd.f32 %v6141, %v6301
        %v6303 = vpop.f32.mrb[0].mxu0
        %6304 = vmatprep.mubr.bf16.mxu0 0
        %6305 = vmatmul.mubr.bf16.gmra.mrb[0].mxu0 %v4152
        %v6306 = vpop.f32.mrb[0].mxu0
        %v6307 = vadd.f32 %v6146, %v6306
        %v6308 = vpop.f32.mrb[0].mxu0
        %v6309 = vpop.f32.mrb[0].mxu0
        %v6310 = vadd.f32 %v6149, %v6309
        %v6311 = vpop.f32.mrb[0].mxu0
        %6312 = vmatprep.mubr.bf16.mxu0 0
        %6313 = vmatmul.mubr.bf16.gmra.mrb[0].mxu0 %v4183
        %v6314 = vpop.f32.mrb[0].mxu0
        %v6315 = vadd.f32 %v6154, %v6314
        %v6316 = vpop.f32.mrb[0].mxu0
        %v6317 = vpop.f32.mrb[0].mxu0
        %v6318 = vadd.f32 %v6157, %v6317
        %v6319 = vpop.f32.mrb[0].mxu0
        %6320 = vmatprep.mubr.bf16.mxu0 0
        %6321 = vmatmul.mubr.bf16.gmra.mrb[0].mxu0 %v4214
        %v6322 = vpop.f32.mrb[0].mxu0
        %v6323 = vadd.f32 %v6162, %v6322
        %v6324 = vpop.f32.mrb[0].mxu0
        %v6325 = vpop.f32.mrb[0].mxu0
        %v6326 = vadd.f32 %v6165, %v6325
        %v6327 = vpop.f32.mrb[0].mxu0
        %6328 = vmatprep.mubr.bf16.mxu0 0
        %6329 = vmatmul.mubr.bf16.gmra.mrb[0].mxu0 %v4245
        %v6330 = vpop.f32.mrb[0].mxu0
        %v6331 = vadd.f32 %v6170, %v6330
        %v6332 = vpop.f32.mrb[0].mxu0
        %v6333 = vpop.f32.mrb[0].mxu0
        %v6334 = vadd.f32 %v6173, %v6333
        %v6335 = vpop.f32.mrb[0].mxu0
        %6336 = vmatprep.mubr.bf16.mxu0 0
        %6337 = vmatmul.mubr.bf16.gmra.mrb[0].mxu0 %v4276
        %v6338 = vpop.f32.mrb[0].mxu0
        %v6339 = vadd.f32 %v6178, %v6338
        %v6340 = vpop.f32.mrb[0].mxu0
        %v6341 = vpop.f32.mrb[0].mxu0
        %v6342 = vadd.f32 %v6181, %v6341
        %v6343 = vpop.f32.mrb[0].mxu0
        %6344 = vmatprep.mubr.bf16.mxu0 0
        %6345 = vmatmul.mubr.bf16.gmra.mrb[0].mxu0 %v4307
        %v6346 = vpop.f32.mrb[0].mxu0
        %v6347 = vadd.f32 %v6186, %v6346
        %v6348 = vpop.f32.mrb[0].mxu0
        %v6349 = vpop.f32.mrb[0].mxu0
        %v6350 = vadd.f32 %v6189, %v6349
        %v6351 = vpop.f32.mrb[0].mxu0
        %6352 = vmatprep.mubr.bf16.mxu0 0
        %6353 = vmatmul.mubr.bf16.gmra.mrb[0].mxu0 %v4338
        %v6354 = vpop.f32.mrb[0].mxu0
        %v6355 = vadd.f32 %v6194, %v6354
        %v6356 = vpop.f32.mrb[0].mxu0
        %v6357 = vpop.f32.mrb[0].mxu0
        %v6358 = vadd.f32 %v6197, %v6357
        %v6359 = vpop.f32.mrb[0].mxu0
        %6360 = vmatprep.mubr.bf16.mxu0 0
        %6361 = vmatmul.mubr.bf16.gmra.mrb[0].mxu0 %v4369
        %v6362 = vpop.f32.mrb[0].mxu0
        %v6363 = vadd.f32 %v6202, %v6362
        %v6364 = vpop.f32.mrb[0].mxu0
        %v6365 = vpop.f32.mrb[0].mxu0
        %v6366 = vadd.f32 %v6205, %v6365
        %v6367 = vpop.f32.mrb[0].mxu0
        %6368 = vmatprep.mubr.bf16.mxu0 0
        %6369 = vmatmul.mubr.bf16.gmra.mrb[0].mxu0 %v4400
        %v6370 = vpop.f32.mrb[0].mxu0
        %v6371 = vadd.f32 %v6210, %v6370
        %v6372 = vpop.f32.mrb[0].mxu0
        %v6373 = vpop.f32.mrb[0].mxu0
        %v6374 = vadd.f32 %v6213, %v6373
        %v6375 = vpop.f32.mrb[0].mxu0
        %6376 = vmatprep.mubr.bf16.mxu0 0
        %6377 = vmatmul.mubr.bf16.gmra.mrb[0].mxu0 %v4431
        %v6378 = vpop.f32.mrb[0].mxu0
        %v6379 = vadd.f32 %v6218, %v6378
        %v6380 = vpop.f32.mrb[0].mxu0
        %v6381 = vpop.f32.mrb[0].mxu0
        %v6382 = vadd.f32 %v6221, %v6381
        %v6383 = vpop.f32.mrb[0].mxu0
        %6384 = vmatprep.mubr.bf16.mxu0 0
        %6385 = vmatmul.mubr.bf16.gmra.mrb[0].mxu0 %v4462
        %v6386 = vpop.f32.mrb[0].mxu0
        %v6387 = vadd.f32 %v6226, %v6386
        %v6388 = vpop.f32.mrb[0].mxu0
        %v6389 = vpop.f32.mrb[0].mxu0
        %v6390 = vadd.f32 %v6229, %v6389
        %v6391 = vpop.f32.mrb[0].mxu0
        %6392 = vmatprep.mubr.bf16.mxu0 0
        %6393 = vmatmul.mubr.bf16.gmra.mrb[0].mxu0 %v4493
        %v6394 = vpop.f32.mrb[0].mxu0
        %v6395 = vadd.f32 %v6234, %v6394
        %v6396 = vpop.f32.mrb[0].mxu0
        %v6397 = vpop.f32.mrb[0].mxu0
        %v6398 = vadd.f32 %v6237, %v6397
        %v6399 = vpop.f32.mrb[0].mxu0
        %6400 = vmatprep.mubr.bf16.mxu0 0
        %6401 = vmatmul.mubr.bf16.gmra.mrb[0].mxu0 %v4524
        %v6402 = vpop.f32.mrb[0].mxu0
        %v6403 = vadd.f32 %v6242, %v6402
        %v6404 = vpop.f32.mrb[0].mxu0
        %v6405 = vpop.f32.mrb[0].mxu0
        %v6406 = vadd.f32 %v6245, %v6405
        %v6407 = vpop.f32.mrb[0].mxu0
        %6408 = vmatprep.mubr.bf16.mxu0 0
        %6409 = vmatmul.mubr.bf16.gmra.mrb[0].mxu0 %v4555
        %v6410 = vpop.f32.mrb[0].mxu0
        %v6411 = vadd.f32 %v6250, %v6410
        %v6412 = vpop.f32.mrb[0].mxu0
        %v6413 = vpop.f32.mrb[0].mxu0
        %v6414 = vadd.f32 %v6253, %v6413
        %v6415 = vpop.f32.mrb[0].mxu0
        %6416 = vdwg.mxu0
        %s6417 = scalar_lea.vmem [#allocation2], 48
        %v6418 = vld [vmem:[%s6417] sm:$0x80]
        %v6419 = vld [vmem:[%s6417 + $0x8] sm:$0xff]
        %v6420 = vld [vmem:[%s6417 + $0x18] sm:$0x80]
        %v6421 = vld [vmem:[%s6417 + $0x20] sm:$0xff]
        %v6422 = vld [vmem:[%s6417 + $0x30] sm:$0x80]
        %v6423 = vld [vmem:[%s6417 + $0x38] sm:$0xff]
        %v6424 = vld [vmem:[%s6417 + $0x48] sm:$0x80]
        %v6425 = vld [vmem:[%s6417 + $0x50] sm:$0xff]
        %v6426 = vld [vmem:[%s6417 + $0x60] sm:$0x80]
        %v6427 = vld [vmem:[%s6417 + $0x68] sm:$0xff]
        %v6428 = vld [vmem:[%s6417 + $0x78] sm:$0x80]
        %v6429 = vld [vmem:[%s6417 + $0x80] sm:$0xff]
        %v6430 = vld [vmem:[%s6417 + $0x90] sm:$0x80]
        %v6431 = vld [vmem:[%s6417 + $0x98] sm:$0xff]
        %v6432 = vld [vmem:[%s6417 + $0xa8] sm:$0x80]
        %v6433 = vld [vmem:[%s6417 + $0xb0] sm:$0xff]
        %v6434 = vld [vmem:[%s6417 + $0xc0] sm:$0x80]
        %v6435 = vld [vmem:[%s6417 + $0xc8] sm:$0xff]
        %v6436 = vld [vmem:[%s6417 + $0xd8] sm:$0x80]
        %v6437 = vld [vmem:[%s6417 + $0xe0] sm:$0xff]
        %v6438 = vld [vmem:[%s6417 + $0xf0] sm:$0x80]
        %v6439 = vld [vmem:[%s6417 + $0xf8] sm:$0xff]
        %v6440 = vld [vmem:[%s6417 + $0x108] sm:$0x80]
        %v6441 = vld [vmem:[%s6417 + $0x110] sm:$0xff]
        %v6442 = vld [vmem:[%s6417 + $0x120] sm:$0x80]
        %v6443 = vld [vmem:[%s6417 + $0x128] sm:$0xff]
        %v6444 = vld [vmem:[%s6417 + $0x138] sm:$0x80]
        %v6445 = vld [vmem:[%s6417 + $0x140] sm:$0xff]
        %v6446 = vld [vmem:[%s6417 + $0x150] sm:$0x80]
        %v6447 = vld [vmem:[%s6417 + $0x158] sm:$0xff]
        %v6448 = vld [vmem:[%s6417 + $0x168] sm:$0x80]
        %v6449 = vld [vmem:[%s6417 + $0x170] sm:$0xff]
        %v6450 = vld [vmem:[%s6417 + $0x10] sm:$0x1]
        %v6451 = vld [vmem:[%s6417 + $0x28] sm:$0x1]
        %v6452 = vld [vmem:[%s6417 + $0x40] sm:$0x1]
        %v6453 = vld [vmem:[%s6417 + $0x58] sm:$0x1]
        %v6454 = vld [vmem:[%s6417 + $0x70] sm:$0x1]
        %v6455 = vld [vmem:[%s6417 + $0x88] sm:$0x1]
        %v6456 = vld [vmem:[%s6417 + $0xa0] sm:$0x1]
        %v6457 = vld [vmem:[%s6417 + $0xb8] sm:$0x1]
        %v6458 = vld [vmem:[%s6417 + $0xd0] sm:$0x1]
        %v6459 = vld [vmem:[%s6417 + $0xe8] sm:$0x1]
        %v6460 = vld [vmem:[%s6417 + $0x100] sm:$0x1]
        %v6461 = vld [vmem:[%s6417 + $0x118] sm:$0x1]
        %v6462 = vld [vmem:[%s6417 + $0x130] sm:$0x1]
        %v6463 = vld [vmem:[%s6417 + $0x148] sm:$0x1]
        %v6464 = vld [vmem:[%s6417 + $0x160] sm:$0x1]
        %v6465 = vld [vmem:[%s6417 + $0x178] sm:$0x1]
        %v6467 = vshll.u32 %v6419, 16
        %v6469 = vrot.slane %v6467, 1
        %v6470 = vshrl.u32 %v6419, 16
        %v6472 = vor.u32 %v6470, %v6469
        %v6474 = vshll.u32 %v6421, 16
        %v6476 = vrot.slane %v6474, 1
        %v6477 = vshrl.u32 %v6421, 16
        %v6479 = vor.u32 %v6477, %v6476
        %v6481 = vshll.u32 %v6423, 16
        %v6483 = vrot.slane %v6481, 1
        %v6484 = vshrl.u32 %v6423, 16
        %v6486 = vor.u32 %v6484, %v6483
        %v6488 = vshll.u32 %v6425, 16
        %v6490 = vrot.slane %v6488, 1
        %v6491 = vshrl.u32 %v6425, 16
        %v6493 = vor.u32 %v6491, %v6490
        %v6495 = vshll.u32 %v6427, 16
        %v6497 = vrot.slane %v6495, 1
        %v6498 = vshrl.u32 %v6427, 16
        %v6500 = vor.u32 %v6498, %v6497
        %v6502 = vshll.u32 %v6429, 16
        %v6504 = vrot.slane %v6502, 1
        %v6505 = vshrl.u32 %v6429, 16
        %v6507 = vor.u32 %v6505, %v6504
        %v6509 = vshll.u32 %v6431, 16
        %v6511 = vrot.slane %v6509, 1
        %v6512 = vshrl.u32 %v6431, 16
        %v6514 = vor.u32 %v6512, %v6511
        %v6516 = vshll.u32 %v6433, 16
        %v6518 = vrot.slane %v6516, 1
        %v6519 = vshrl.u32 %v6433, 16
        %v6521 = vor.u32 %v6519, %v6518
        %v6523 = vshll.u32 %v6435, 16
        %v6525 = vrot.slane %v6523, 1
        %v6526 = vshrl.u32 %v6435, 16
        %v6528 = vor.u32 %v6526, %v6525
        %v6530 = vshll.u32 %v6437, 16
        %v6532 = vrot.slane %v6530, 1
        %v6533 = vshrl.u32 %v6437, 16
        %v6535 = vor.u32 %v6533, %v6532
        %v6537 = vshll.u32 %v6439, 16
        %v6539 = vrot.slane %v6537, 1
        %v6540 = vshrl.u32 %v6439, 16
        %v6542 = vor.u32 %v6540, %v6539
        %v6544 = vshll.u32 %v6441, 16
        %v6546 = vrot.slane %v6544, 1
        %v6547 = vshrl.u32 %v6441, 16
        %v6549 = vor.u32 %v6547, %v6546
        %v6551 = vshll.u32 %v6443, 16
        %v6553 = vrot.slane %v6551, 1
        %v6554 = vshrl.u32 %v6443, 16
        %v6556 = vor.u32 %v6554, %v6553
        %v6558 = vshll.u32 %v6445, 16
        %v6560 = vrot.slane %v6558, 1
        %v6561 = vshrl.u32 %v6445, 16
        %v6563 = vor.u32 %v6561, %v6560
        %v6565 = vshll.u32 %v6447, 16
        %v6567 = vrot.slane %v6565, 1
        %v6568 = vshrl.u32 %v6447, 16
        %v6570 = vor.u32 %v6568, %v6567
        %v6572 = vshll.u32 %v6449, 16
        %v6574 = vrot.slane %v6572, 1
        %v6575 = vshrl.u32 %v6449, 16
        %v6577 = vor.u32 %v6575, %v6574
        %v6610 = vrot.slane %v6419, 1
        %v6611 = vrot.slane %v6450, 1
        %v6612 = vsel %vm825, %v6610, %v6611
        %v6613 = vrot.slane %v6421, 1
        %v6614 = vrot.slane %v6451, 1
        %v6615 = vsel %vm825, %v6613, %v6614
        %v6616 = vrot.slane %v6423, 1
        %v6617 = vrot.slane %v6452, 1
        %v6618 = vsel %vm825, %v6616, %v6617
        %v6619 = vrot.slane %v6425, 1
        %v6620 = vrot.slane %v6453, 1
        %v6621 = vsel %vm825, %v6619, %v6620
        %v6622 = vrot.slane %v6427, 1
        %v6623 = vrot.slane %v6454, 1
        %v6624 = vsel %vm825, %v6622, %v6623
        %v6625 = vrot.slane %v6429, 1
        %v6626 = vrot.slane %v6455, 1
        %v6627 = vsel %vm825, %v6625, %v6626
        %v6628 = vrot.slane %v6431, 1
        %v6629 = vrot.slane %v6456, 1
        %v6630 = vsel %vm825, %v6628, %v6629
        %v6631 = vrot.slane %v6433, 1
        %v6632 = vrot.slane %v6457, 1
        %v6633 = vsel %vm825, %v6631, %v6632
        %v6634 = vrot.slane %v6435, 1
        %v6635 = vrot.slane %v6458, 1
        %v6636 = vsel %vm825, %v6634, %v6635
        %v6637 = vrot.slane %v6437, 1
        %v6638 = vrot.slane %v6459, 1
        %v6639 = vsel %vm825, %v6637, %v6638
        %v6640 = vrot.slane %v6439, 1
        %v6641 = vrot.slane %v6460, 1
        %v6642 = vsel %vm825, %v6640, %v6641
        %v6643 = vrot.slane %v6441, 1
        %v6644 = vrot.slane %v6461, 1
        %v6645 = vsel %vm825, %v6643, %v6644
        %v6646 = vrot.slane %v6443, 1
        %v6647 = vrot.slane %v6462, 1
        %v6648 = vsel %vm825, %v6646, %v6647
        %v6649 = vrot.slane %v6445, 1
        %v6650 = vrot.slane %v6463, 1
        %v6651 = vsel %vm825, %v6649, %v6650
        %v6652 = vrot.slane %v6447, 1
        %v6653 = vrot.slane %v6464, 1
        %v6654 = vsel %vm825, %v6652, %v6653
        %v6655 = vrot.slane %v6449, 1
        %v6656 = vrot.slane %v6465, 1
        %v6657 = vsel %vm825, %v6655, %v6656
        %v6659 = vshrl.u32 %v6418, 16
        %v6661 = vrot.slane %v6659, 7
        %v6662 = vrot.slane %v6470, 7
        %v6663 = vor.u32 %v6662, %v6467
        %v6664 = vsel %vm304, %v6661, %v6663
        %v6666 = vshrl.u32 %v6469, 16
        %v6668 = vrot.slane %v6666, 7
        %v6670 = vshrl.u32 %v6472, 16
        %v6672 = vrot.slane %v6670, 7
        %v6673 = vshll.u32 %v6472, 16
        %v6675 = vor.u32 %v6672, %v6673
        %v6676 = vsel %vm304, %v6668, %v6675
        %v6678 = vshrl.u32 %v6610, 16
        %v6680 = vrot.slane %v6678, 7
        %v6682 = vshrl.u32 %v6612, 16
        %v6684 = vrot.slane %v6682, 7
        %v6685 = vshll.u32 %v6612, 16
        %v6687 = vor.u32 %v6684, %v6685
        %v6688 = vsel %vm304, %v6680, %v6687
        %v6690 = vshrl.u32 %v6420, 16
        %v6692 = vrot.slane %v6690, 7
        %v6693 = vrot.slane %v6477, 7
        %v6694 = vor.u32 %v6693, %v6474
        %v6695 = vsel %vm304, %v6692, %v6694
        %v6697 = vshrl.u32 %v6476, 16
        %v6699 = vrot.slane %v6697, 7
        %v6701 = vshrl.u32 %v6479, 16
        %v6703 = vrot.slane %v6701, 7
        %v6704 = vshll.u32 %v6479, 16
        %v6706 = vor.u32 %v6703, %v6704
        %v6707 = vsel %vm304, %v6699, %v6706
        %v6709 = vshrl.u32 %v6613, 16
        %v6711 = vrot.slane %v6709, 7
        %v6713 = vshrl.u32 %v6615, 16
        %v6715 = vrot.slane %v6713, 7
        %v6716 = vshll.u32 %v6615, 16
        %v6718 = vor.u32 %v6715, %v6716
        %v6719 = vsel %vm304, %v6711, %v6718
        %v6721 = vshrl.u32 %v6422, 16
        %v6723 = vrot.slane %v6721, 7
        %v6724 = vrot.slane %v6484, 7
        %v6725 = vor.u32 %v6724, %v6481
        %v6726 = vsel %vm304, %v6723, %v6725
        %v6728 = vshrl.u32 %v6483, 16
        %v6730 = vrot.slane %v6728, 7
        %v6732 = vshrl.u32 %v6486, 16
        %v6734 = vrot.slane %v6732, 7
        %v6735 = vshll.u32 %v6486, 16
        %v6737 = vor.u32 %v6734, %v6735
        %v6738 = vsel %vm304, %v6730, %v6737
        %v6740 = vshrl.u32 %v6616, 16
        %v6742 = vrot.slane %v6740, 7
        %v6744 = vshrl.u32 %v6618, 16
        %v6746 = vrot.slane %v6744, 7
        %v6747 = vshll.u32 %v6618, 16
        %v6749 = vor.u32 %v6746, %v6747
        %v6750 = vsel %vm304, %v6742, %v6749
        %v6752 = vshrl.u32 %v6424, 16
        %v6754 = vrot.slane %v6752, 7
        %v6755 = vrot.slane %v6491, 7
        %v6756 = vor.u32 %v6755, %v6488
        %v6757 = vsel %vm304, %v6754, %v6756
        %v6759 = vshrl.u32 %v6490, 16
        %v6761 = vrot.slane %v6759, 7
        %v6763 = vshrl.u32 %v6493, 16
        %v6765 = vrot.slane %v6763, 7
        %v6766 = vshll.u32 %v6493, 16
        %v6768 = vor.u32 %v6765, %v6766
        %v6769 = vsel %vm304, %v6761, %v6768
        %v6771 = vshrl.u32 %v6619, 16
        %v6773 = vrot.slane %v6771, 7
        %v6775 = vshrl.u32 %v6621, 16
        %v6777 = vrot.slane %v6775, 7
        %v6778 = vshll.u32 %v6621, 16
        %v6780 = vor.u32 %v6777, %v6778
        %v6781 = vsel %vm304, %v6773, %v6780
        %v6783 = vshrl.u32 %v6426, 16
        %v6785 = vrot.slane %v6783, 7
        %v6786 = vrot.slane %v6498, 7
        %v6787 = vor.u32 %v6786, %v6495
        %v6788 = vsel %vm304, %v6785, %v6787
        %v6790 = vshrl.u32 %v6497, 16
        %v6792 = vrot.slane %v6790, 7
        %v6794 = vshrl.u32 %v6500, 16
        %v6796 = vrot.slane %v6794, 7
        %v6797 = vshll.u32 %v6500, 16
        %v6799 = vor.u32 %v6796, %v6797
        %v6800 = vsel %vm304, %v6792, %v6799
        %v6802 = vshrl.u32 %v6622, 16
        %v6804 = vrot.slane %v6802, 7
        %v6806 = vshrl.u32 %v6624, 16
        %v6808 = vrot.slane %v6806, 7
        %v6809 = vshll.u32 %v6624, 16
        %v6811 = vor.u32 %v6808, %v6809
        %v6812 = vsel %vm304, %v6804, %v6811
        %v6814 = vshrl.u32 %v6428, 16
        %v6816 = vrot.slane %v6814, 7
        %v6817 = vrot.slane %v6505, 7
        %v6818 = vor.u32 %v6817, %v6502
        %v6819 = vsel %vm304, %v6816, %v6818
        %v6821 = vshrl.u32 %v6504, 16
        %v6823 = vrot.slane %v6821, 7
        %v6825 = vshrl.u32 %v6507, 16
        %v6827 = vrot.slane %v6825, 7
        %v6828 = vshll.u32 %v6507, 16
        %v6830 = vor.u32 %v6827, %v6828
        %v6831 = vsel %vm304, %v6823, %v6830
        %v6833 = vshrl.u32 %v6625, 16
        %v6835 = vrot.slane %v6833, 7
        %v6837 = vshrl.u32 %v6627, 16
        %v6839 = vrot.slane %v6837, 7
        %v6840 = vshll.u32 %v6627, 16
        %v6842 = vor.u32 %v6839, %v6840
        %v6843 = vsel %vm304, %v6835, %v6842
        %v6845 = vshrl.u32 %v6430, 16
        %v6847 = vrot.slane %v6845, 7
        %v6848 = vrot.slane %v6512, 7
        %v6849 = vor.u32 %v6848, %v6509
        %v6850 = vsel %vm304, %v6847, %v6849
        %v6852 = vshrl.u32 %v6511, 16
        %v6854 = vrot.slane %v6852, 7
        %v6856 = vshrl.u32 %v6514, 16
        %v6858 = vrot.slane %v6856, 7
        %v6859 = vshll.u32 %v6514, 16
        %v6861 = vor.u32 %v6858, %v6859
        %v6862 = vsel %vm304, %v6854, %v6861
        %v6864 = vshrl.u32 %v6628, 16
        %v6866 = vrot.slane %v6864, 7
        %v6868 = vshrl.u32 %v6630, 16
        %v6870 = vrot.slane %v6868, 7
        %v6871 = vshll.u32 %v6630, 16
        %v6873 = vor.u32 %v6870, %v6871
        %v6874 = vsel %vm304, %v6866, %v6873
        %v6876 = vshrl.u32 %v6432, 16
        %v6878 = vrot.slane %v6876, 7
        %v6879 = vrot.slane %v6519, 7
        %v6880 = vor.u32 %v6879, %v6516
        %v6881 = vsel %vm304, %v6878, %v6880
        %v6883 = vshrl.u32 %v6518, 16
        %v6885 = vrot.slane %v6883, 7
        %v6887 = vshrl.u32 %v6521, 16
        %v6889 = vrot.slane %v6887, 7
        %v6890 = vshll.u32 %v6521, 16
        %v6892 = vor.u32 %v6889, %v6890
        %v6893 = vsel %vm304, %v6885, %v6892
        %v6895 = vshrl.u32 %v6631, 16
        %v6897 = vrot.slane %v6895, 7
        %v6899 = vshrl.u32 %v6633, 16
        %v6901 = vrot.slane %v6899, 7
        %v6902 = vshll.u32 %v6633, 16
        %v6904 = vor.u32 %v6901, %v6902
        %v6905 = vsel %vm304, %v6897, %v6904
        %v6907 = vshrl.u32 %v6434, 16
        %v6909 = vrot.slane %v6907, 7
        %v6910 = vrot.slane %v6526, 7
        %v6911 = vor.u32 %v6910, %v6523
        %v6912 = vsel %vm304, %v6909, %v6911
        %v6914 = vshrl.u32 %v6525, 16
        %v6916 = vrot.slane %v6914, 7
        %v6918 = vshrl.u32 %v6528, 16
        %v6920 = vrot.slane %v6918, 7
        %v6921 = vshll.u32 %v6528, 16
        %v6923 = vor.u32 %v6920, %v6921
        %v6924 = vsel %vm304, %v6916, %v6923
        %v6926 = vshrl.u32 %v6634, 16
        %v6928 = vrot.slane %v6926, 7
        %v6930 = vshrl.u32 %v6636, 16
        %v6932 = vrot.slane %v6930, 7
        %v6933 = vshll.u32 %v6636, 16
        %v6935 = vor.u32 %v6932, %v6933
        %v6936 = vsel %vm304, %v6928, %v6935
        %v6938 = vshrl.u32 %v6436, 16
        %v6940 = vrot.slane %v6938, 7
        %v6941 = vrot.slane %v6533, 7
        %v6942 = vor.u32 %v6941, %v6530
        %v6943 = vsel %vm304, %v6940, %v6942
        %v6945 = vshrl.u32 %v6532, 16
        %v6947 = vrot.slane %v6945, 7
        %v6949 = vshrl.u32 %v6535, 16
        %v6951 = vrot.slane %v6949, 7
        %v6952 = vshll.u32 %v6535, 16
        %v6954 = vor.u32 %v6951, %v6952
        %v6955 = vsel %vm304, %v6947, %v6954
        %v6957 = vshrl.u32 %v6637, 16
        %v6959 = vrot.slane %v6957, 7
        %v6961 = vshrl.u32 %v6639, 16
        %v6963 = vrot.slane %v6961, 7
        %v6964 = vshll.u32 %v6639, 16
        %v6966 = vor.u32 %v6963, %v6964
        %v6967 = vsel %vm304, %v6959, %v6966
        %v6969 = vshrl.u32 %v6438, 16
        %v6971 = vrot.slane %v6969, 7
        %v6972 = vrot.slane %v6540, 7
        %v6973 = vor.u32 %v6972, %v6537
        %v6974 = vsel %vm304, %v6971, %v6973
        %v6976 = vshrl.u32 %v6539, 16
        %v6978 = vrot.slane %v6976, 7
        %v6980 = vshrl.u32 %v6542, 16
        %v6982 = vrot.slane %v6980, 7
        %v6983 = vshll.u32 %v6542, 16
        %v6985 = vor.u32 %v6982, %v6983
        %v6986 = vsel %vm304, %v6978, %v6985
        %v6988 = vshrl.u32 %v6640, 16
        %v6990 = vrot.slane %v6988, 7
        %v6992 = vshrl.u32 %v6642, 16
        %v6994 = vrot.slane %v6992, 7
        %v6995 = vshll.u32 %v6642, 16
        %v6997 = vor.u32 %v6994, %v6995
        %v6998 = vsel %vm304, %v6990, %v6997
        %v7000 = vshrl.u32 %v6440, 16
        %v7002 = vrot.slane %v7000, 7
        %v7003 = vrot.slane %v6547, 7
        %v7004 = vor.u32 %v7003, %v6544
        %v7005 = vsel %vm304, %v7002, %v7004
        %v7007 = vshrl.u32 %v6546, 16
        %v7009 = vrot.slane %v7007, 7
        %v7011 = vshrl.u32 %v6549, 16
        %v7013 = vrot.slane %v7011, 7
        %v7014 = vshll.u32 %v6549, 16
        %v7016 = vor.u32 %v7013, %v7014
        %v7017 = vsel %vm304, %v7009, %v7016
        %v7019 = vshrl.u32 %v6643, 16
        %v7021 = vrot.slane %v7019, 7
        %v7023 = vshrl.u32 %v6645, 16
        %v7025 = vrot.slane %v7023, 7
        %v7026 = vshll.u32 %v6645, 16
        %v7028 = vor.u32 %v7025, %v7026
        %v7029 = vsel %vm304, %v7021, %v7028
        %v7031 = vshrl.u32 %v6442, 16
        %v7033 = vrot.slane %v7031, 7
        %v7034 = vrot.slane %v6554, 7
        %v7035 = vor.u32 %v7034, %v6551
        %v7036 = vsel %vm304, %v7033, %v7035
        %v7038 = vshrl.u32 %v6553, 16
        %v7040 = vrot.slane %v7038, 7
        %v7042 = vshrl.u32 %v6556, 16
        %v7044 = vrot.slane %v7042, 7
        %v7045 = vshll.u32 %v6556, 16
        %v7047 = vor.u32 %v7044, %v7045
        %v7048 = vsel %vm304, %v7040, %v7047
        %v7050 = vshrl.u32 %v6646, 16
        %v7052 = vrot.slane %v7050, 7
        %v7054 = vshrl.u32 %v6648, 16
        %v7056 = vrot.slane %v7054, 7
        %v7057 = vshll.u32 %v6648, 16
        %v7059 = vor.u32 %v7056, %v7057
        %v7060 = vsel %vm304, %v7052, %v7059
        %v7062 = vshrl.u32 %v6444, 16
        %v7064 = vrot.slane %v7062, 7
        %v7065 = vrot.slane %v6561, 7
        %v7066 = vor.u32 %v7065, %v6558
        %v7067 = vsel %vm304, %v7064, %v7066
        %v7069 = vshrl.u32 %v6560, 16
        %v7071 = vrot.slane %v7069, 7
        %v7073 = vshrl.u32 %v6563, 16
        %v7075 = vrot.slane %v7073, 7
        %v7076 = vshll.u32 %v6563, 16
        %v7078 = vor.u32 %v7075, %v7076
        %v7079 = vsel %vm304, %v7071, %v7078
        %v7081 = vshrl.u32 %v6649, 16
        %v7083 = vrot.slane %v7081, 7
        %v7085 = vshrl.u32 %v6651, 16
        %v7087 = vrot.slane %v7085, 7
        %v7088 = vshll.u32 %v6651, 16
        %v7090 = vor.u32 %v7087, %v7088
        %v7091 = vsel %vm304, %v7083, %v7090
        %v7093 = vshrl.u32 %v6446, 16
        %v7095 = vrot.slane %v7093, 7
        %v7096 = vrot.slane %v6568, 7
        %v7097 = vor.u32 %v7096, %v6565
        %v7098 = vsel %vm304, %v7095, %v7097
        %v7100 = vshrl.u32 %v6567, 16
        %v7102 = vrot.slane %v7100, 7
        %v7104 = vshrl.u32 %v6570, 16
        %v7106 = vrot.slane %v7104, 7
        %v7107 = vshll.u32 %v6570, 16
        %v7109 = vor.u32 %v7106, %v7107
        %v7110 = vsel %vm304, %v7102, %v7109
        %v7112 = vshrl.u32 %v6652, 16
        %v7114 = vrot.slane %v7112, 7
        %v7116 = vshrl.u32 %v6654, 16
        %v7118 = vrot.slane %v7116, 7
        %v7119 = vshll.u32 %v6654, 16
        %v7121 = vor.u32 %v7118, %v7119
        %v7122 = vsel %vm304, %v7114, %v7121
        %v7124 = vshrl.u32 %v6448, 16
        %v7126 = vrot.slane %v7124, 7
        %v7127 = vrot.slane %v6575, 7
        %v7128 = vor.u32 %v7127, %v6572
        %v7129 = vsel %vm304, %v7126, %v7128
        %v7131 = vshrl.u32 %v6574, 16
        %v7133 = vrot.slane %v7131, 7
        %v7135 = vshrl.u32 %v6577, 16
        %v7137 = vrot.slane %v7135, 7
        %v7138 = vshll.u32 %v6577, 16
        %v7140 = vor.u32 %v7137, %v7138
        %v7141 = vsel %vm304, %v7133, %v7140
        %v7143 = vshrl.u32 %v6655, 16
        %v7145 = vrot.slane %v7143, 7
        %v7147 = vshrl.u32 %v6657, 16
        %v7149 = vrot.slane %v7147, 7
        %v7150 = vshll.u32 %v6657, 16
        %v7152 = vor.u32 %v7149, %v7150
        %v7153 = vsel %vm304, %v7145, %v7152
        %s7202 = scalar_lea.vmem [#allocation3], 384
        %v7203 = vld [vmem:[%s7202] sm:$0xf]
        %v7204 = vld [vmem:[%s7202 + $0x4] sm:$0xf]
        %v7205 = vld [vmem:[%s7202 + $0x8] sm:$0xf]
        %v7206 = vld [vmem:[%s7202 + $0xc] sm:$0xf]
        %v7207 = vld [vmem:[%s7202 + $0x10] sm:$0xf]
        %v7208 = vld [vmem:[%s7202 + $0x14] sm:$0xf]
        %v7209 = vld [vmem:[%s7202 + $0x18] sm:$0xf]
        %v7210 = vld [vmem:[%s7202 + $0x1c] sm:$0xf]
        %v7211 = vld [vmem:[%s7202 + $0x20] sm:$0xf]
        %v7212 = vld [vmem:[%s7202 + $0x24] sm:$0xf]
        %v7213 = vld [vmem:[%s7202 + $0x28] sm:$0xf]
        %v7214 = vld [vmem:[%s7202 + $0x2c] sm:$0xf]
        %v7215 = vld [vmem:[%s7202 + $0x30] sm:$0xf]
        %v7216 = vld [vmem:[%s7202 + $0x34] sm:$0xf]
        %v7217 = vld [vmem:[%s7202 + $0x38] sm:$0xf]
        %v7218 = vld [vmem:[%s7202 + $0x3c] sm:$0xf]
        %v7219 = vld [vmem:[%s7202 + $0x40] sm:$0xf]
        %v7220 = vld [vmem:[%s7202 + $0x44] sm:$0xf]
        %v7221 = vld [vmem:[%s7202 + $0x48] sm:$0xf]
        %v7222 = vld [vmem:[%s7202 + $0x4c] sm:$0xf]
        %v7223 = vld [vmem:[%s7202 + $0x50] sm:$0xf]
        %v7224 = vld [vmem:[%s7202 + $0x54] sm:$0xf]
        %v7225 = vld [vmem:[%s7202 + $0x58] sm:$0xf]
        %v7226 = vld [vmem:[%s7202 + $0x5c] sm:$0xf]
        %v7227 = vld [vmem:[%s7202 + $0x60] sm:$0xf]
        %v7228 = vld [vmem:[%s7202 + $0x64] sm:$0xf]
        %v7229 = vld [vmem:[%s7202 + $0x68] sm:$0xf]
        %v7230 = vld [vmem:[%s7202 + $0x6c] sm:$0xf]
        %v7231 = vld [vmem:[%s7202 + $0x70] sm:$0xf]
        %v7232 = vld [vmem:[%s7202 + $0x74] sm:$0xf]
        %v7233 = vld [vmem:[%s7202 + $0x78] sm:$0xf]
        %v7234 = vld [vmem:[%s7202 + $0x7c] sm:$0xf]
        %v7235 = vld [vmem:[%s7202 + $0x80] sm:$0xf]
        %v7236 = vld [vmem:[%s7202 + $0x84] sm:$0xf]
        %v7237 = vld [vmem:[%s7202 + $0x88] sm:$0xf]
        %v7238 = vld [vmem:[%s7202 + $0x8c] sm:$0xf]
        %v7239 = vld [vmem:[%s7202 + $0x90] sm:$0xf]
        %v7240 = vld [vmem:[%s7202 + $0x94] sm:$0xf]
        %v7241 = vld [vmem:[%s7202 + $0x98] sm:$0xf]
        %v7242 = vld [vmem:[%s7202 + $0x9c] sm:$0xf]
        %v7243 = vld [vmem:[%s7202 + $0xa0] sm:$0xf]
        %v7244 = vld [vmem:[%s7202 + $0xa4] sm:$0xf]
        %v7245 = vld [vmem:[%s7202 + $0xa8] sm:$0xf]
        %v7246 = vld [vmem:[%s7202 + $0xac] sm:$0xf]
        %v7247 = vld [vmem:[%s7202 + $0xb0] sm:$0xf]
        %v7248 = vld [vmem:[%s7202 + $0xb4] sm:$0xf]
        %v7249 = vld [vmem:[%s7202 + $0xb8] sm:$0xf]
        %v7250 = vld [vmem:[%s7202 + $0xbc] sm:$0xf]
        %v7299 = vunpack.c.l.b16 %v7203
        %v7300 = vunpack.c.l.b16 %v7204
        %v7301 = vunpack.c.l.b16 %v7205
        %v7302 = vunpack.c.l.b16 %v7206
        %v7303 = vunpack.c.l.b16 %v7207
        %v7304 = vunpack.c.l.b16 %v7208
        %v7305 = vunpack.c.l.b16 %v7209
        %v7306 = vunpack.c.l.b16 %v7210
        %v7307 = vunpack.c.l.b16 %v7211
        %v7308 = vunpack.c.l.b16 %v7212
        %v7309 = vunpack.c.l.b16 %v7213
        %v7310 = vunpack.c.l.b16 %v7214
        %v7311 = vunpack.c.l.b16 %v7215
        %v7312 = vunpack.c.l.b16 %v7216
        %v7313 = vunpack.c.l.b16 %v7217
        %v7314 = vunpack.c.l.b16 %v7218
        %v7315 = vunpack.c.l.b16 %v7219
        %v7316 = vunpack.c.l.b16 %v7220
        %v7317 = vunpack.c.l.b16 %v7221
        %v7318 = vunpack.c.l.b16 %v7222
        %v7319 = vunpack.c.l.b16 %v7223
        %v7320 = vunpack.c.l.b16 %v7224
        %v7321 = vunpack.c.l.b16 %v7225
        %v7322 = vunpack.c.l.b16 %v7226
        %v7323 = vunpack.c.l.b16 %v7227
        %v7324 = vunpack.c.l.b16 %v7228
        %v7325 = vunpack.c.l.b16 %v7229
        %v7326 = vunpack.c.l.b16 %v7230
        %v7327 = vunpack.c.l.b16 %v7231
        %v7328 = vunpack.c.l.b16 %v7232
        %v7329 = vunpack.c.l.b16 %v7233
        %v7330 = vunpack.c.l.b16 %v7234
        %v7331 = vunpack.c.l.b16 %v7235
        %v7332 = vunpack.c.l.b16 %v7236
        %v7333 = vunpack.c.l.b16 %v7237
        %v7334 = vunpack.c.l.b16 %v7238
        %v7335 = vunpack.c.l.b16 %v7239
        %v7336 = vunpack.c.l.b16 %v7240
        %v7337 = vunpack.c.l.b16 %v7241
        %v7338 = vunpack.c.l.b16 %v7242
        %v7339 = vunpack.c.l.b16 %v7243
        %v7340 = vunpack.c.l.b16 %v7244
        %v7341 = vunpack.c.l.b16 %v7245
        %v7342 = vunpack.c.l.b16 %v7246
        %v7343 = vunpack.c.l.b16 %v7247
        %v7344 = vunpack.c.l.b16 %v7248
        %v7345 = vunpack.c.l.b16 %v7249
        %v7346 = vunpack.c.l.b16 %v7250
        %v7347 = vpack.c.b16 %v7300, %v7299
        %v7348 = vpack.c.b16 %v7302, %v7301
        %v7349 = vpack.c.b16 %v7304, %v7303
        %v7350 = vpack.c.b16 %v7306, %v7305
        %v7351 = vpack.c.b16 %v7308, %v7307
        %v7352 = vpack.c.b16 %v7310, %v7309
        %v7353 = vpack.c.b16 %v7312, %v7311
        %v7354 = vpack.c.b16 %v7314, %v7313
        %v7355 = vpack.c.b16 %v7316, %v7315
        %v7356 = vpack.c.b16 %v7318, %v7317
        %v7357 = vpack.c.b16 %v7320, %v7319
        %v7358 = vpack.c.b16 %v7322, %v7321
        %v7359 = vpack.c.b16 %v7324, %v7323
        %v7360 = vpack.c.b16 %v7326, %v7325
        %v7361 = vpack.c.b16 %v7328, %v7327
        %v7362 = vpack.c.b16 %v7330, %v7329
        %v7363 = vpack.c.b16 %v7332, %v7331
        %v7364 = vpack.c.b16 %v7334, %v7333
        %v7365 = vpack.c.b16 %v7336, %v7335
        %v7366 = vpack.c.b16 %v7338, %v7337
        %v7367 = vpack.c.b16 %v7340, %v7339
        %v7368 = vpack.c.b16 %v7342, %v7341
        %v7369 = vpack.c.b16 %v7344, %v7343
        %v7370 = vpack.c.b16 %v7346, %v7345
        %7395 = vmatprep.subr.bf16.mxu0 0
        %7396 = vmatpush1.bf16.msra.mxu0 %v7347
        %7397 = vmatprep.subr.bf16.mxu0 0
        %7398 = vmatpush1.bf16.msra.mxu0 %v7348
        %7399 = vmatprep.subr.bf16.mxu0 0
        %7400 = vmatpush1.bf16.msra.mxu0 %v7349
        %7401 = vmatprep.subr.bf16.mxu0 0
        %7402 = vmatpush1.bf16.msra.mxu0 %v7350
        %7403 = vmatprep.subr.bf16.mxu0 0
        %7404 = vmatpush1.bf16.msra.mxu0 %v7351
        %7405 = vmatprep.subr.bf16.mxu0 0
        %7406 = vmatpush1.bf16.msra.mxu0 %v7352
        %7407 = vmatprep.subr.bf16.mxu0 0
        %7408 = vmatpush1.bf16.msra.mxu0 %v7353
        %7409 = vmatprep.subr.bf16.mxu0 0
        %7410 = vmatpush1.bf16.msra.mxu0 %v7354
        %7411 = vmatprep.subr.bf16.mxu0 0
        %7412 = vmatpush1.bf16.msra.mxu0 %v7355
        %7413 = vmatprep.subr.bf16.mxu0 0
        %7414 = vmatpush1.bf16.msra.mxu0 %v7356
        %7415 = vmatprep.subr.bf16.mxu0 0
        %7416 = vmatpush1.bf16.msra.mxu0 %v7357
        %7417 = vmatprep.subr.bf16.mxu0 0
        %7418 = vmatpush1.bf16.msra.mxu0 %v7358
        %7419 = vmatprep.subr.bf16.mxu0 0
        %7420 = vmatpush1.bf16.msra.mxu0 %v7359
        %7421 = vmatprep.subr.bf16.mxu0 0
        %7422 = vmatpush1.bf16.msra.mxu0 %v7360
        %7423 = vmatprep.subr.bf16.mxu0 0
        %7424 = vmatpush1.bf16.msra.mxu0 %v7361
        %7425 = vmatprep.subr.bf16.mxu0 0
        %7426 = vmatpush1.bf16.msra.mxu0 %v7362
        %7427 = vmatprep.mubr.bf16.mxu0 %v6676
        %7428 = vmatmul.mubr.bf16.gmra.mrb[0].mxu0 %v6664
        %v7429 = vpop.f32.mrb[0].mxu0
        %v7430 = vadd.f32 0.0, %v7429
        %v7431 = vpop.f32.mrb[0].mxu0
        %v7432 = vpop.f32.mrb[0].mxu0
        %v7433 = vadd.f32 0.0, %v7432
        %v7434 = vpop.f32.mrb[0].mxu0
        %7435 = vmatprep.mubr.bf16.mxu0 %v6707
        %7436 = vmatmul.mubr.bf16.gmra.mrb[0].mxu0 %v6695
        %v7437 = vpop.f32.mrb[0].mxu0
        %v7438 = vadd.f32 0.0, %v7437
        %v7439 = vpop.f32.mrb[0].mxu0
        %v7440 = vpop.f32.mrb[0].mxu0
        %v7441 = vadd.f32 0.0, %v7440
        %v7442 = vpop.f32.mrb[0].mxu0
        %7443 = vmatprep.mubr.bf16.mxu0 %v6738
        %7444 = vmatmul.mubr.bf16.gmra.mrb[0].mxu0 %v6726
        %v7445 = vpop.f32.mrb[0].mxu0
        %v7446 = vadd.f32 0.0, %v7445
        %v7447 = vpop.f32.mrb[0].mxu0
        %v7448 = vpop.f32.mrb[0].mxu0
        %v7449 = vadd.f32 0.0, %v7448
        %v7450 = vpop.f32.mrb[0].mxu0
        %7451 = vmatprep.mubr.bf16.mxu0 %v6769
        %7452 = vmatmul.mubr.bf16.gmra.mrb[0].mxu0 %v6757
        %v7453 = vpop.f32.mrb[0].mxu0
        %v7454 = vadd.f32 0.0, %v7453
        %v7455 = vpop.f32.mrb[0].mxu0
        %v7456 = vpop.f32.mrb[0].mxu0
        %v7457 = vadd.f32 0.0, %v7456
        %v7458 = vpop.f32.mrb[0].mxu0
        %7459 = vmatprep.mubr.bf16.mxu0 %v6800
        %7460 = vmatmul.mubr.bf16.gmra.mrb[0].mxu0 %v6788
        %v7461 = vpop.f32.mrb[0].mxu0
        %v7462 = vadd.f32 0.0, %v7461
        %v7463 = vpop.f32.mrb[0].mxu0
        %v7464 = vpop.f32.mrb[0].mxu0
        %v7465 = vadd.f32 0.0, %v7464
        %v7466 = vpop.f32.mrb[0].mxu0
        %7467 = vmatprep.mubr.bf16.mxu0 %v6831
        %7468 = vmatmul.mubr.bf16.gmra.mrb[0].mxu0 %v6819
        %v7469 = vpop.f32.mrb[0].mxu0
        %v7470 = vadd.f32 0.0, %v7469
        %v7471 = vpop.f32.mrb[0].mxu0
        %v7472 = vpop.f32.mrb[0].mxu0
        %v7473 = vadd.f32 0.0, %v7472
        %v7474 = vpop.f32.mrb[0].mxu0
        %7475 = vmatprep.mubr.bf16.mxu0 %v6862
        %7476 = vmatmul.mubr.bf16.gmra.mrb[0].mxu0 %v6850
        %v7477 = vpop.f32.mrb[0].mxu0
        %v7478 = vadd.f32 0.0, %v7477
        %v7479 = vpop.f32.mrb[0].mxu0
        %v7480 = vpop.f32.mrb[0].mxu0
        %v7481 = vadd.f32 0.0, %v7480
        %v7482 = vpop.f32.mrb[0].mxu0
        %7483 = vmatprep.mubr.bf16.mxu0 %v6893
        %7484 = vmatmul.mubr.bf16.gmra.mrb[0].mxu0 %v6881
        %v7485 = vpop.f32.mrb[0].mxu0
        %v7486 = vadd.f32 0.0, %v7485
        %v7487 = vpop.f32.mrb[0].mxu0
        %v7488 = vpop.f32.mrb[0].mxu0
        %v7489 = vadd.f32 0.0, %v7488
        %v7490 = vpop.f32.mrb[0].mxu0
        %7491 = vmatprep.mubr.bf16.mxu0 %v6924
        %7492 = vmatmul.mubr.bf16.gmra.mrb[0].mxu0 %v6912
        %v7493 = vpop.f32.mrb[0].mxu0
        %v7494 = vadd.f32 0.0, %v7493
        %v7495 = vpop.f32.mrb[0].mxu0
        %v7496 = vpop.f32.mrb[0].mxu0
        %v7497 = vadd.f32 0.0, %v7496
        %v7498 = vpop.f32.mrb[0].mxu0
        %7499 = vmatprep.mubr.bf16.mxu0 %v6955
        %7500 = vmatmul.mubr.bf16.gmra.mrb[0].mxu0 %v6943
        %v7501 = vpop.f32.mrb[0].mxu0
        %v7502 = vadd.f32 0.0, %v7501
        %v7503 = vpop.f32.mrb[0].mxu0
        %v7504 = vpop.f32.mrb[0].mxu0
        %v7505 = vadd.f32 0.0, %v7504
        %v7506 = vpop.f32.mrb[0].mxu0
        %7507 = vmatprep.mubr.bf16.mxu0 %v6986
        %7508 = vmatmul.mubr.bf16.gmra.mrb[0].mxu0 %v6974
        %v7509 = vpop.f32.mrb[0].mxu0
        %v7510 = vadd.f32 0.0, %v7509
        %v7511 = vpop.f32.mrb[0].mxu0
        %v7512 = vpop.f32.mrb[0].mxu0
        %v7513 = vadd.f32 0.0, %v7512
        %v7514 = vpop.f32.mrb[0].mxu0
        %7515 = vmatprep.mubr.bf16.mxu0 %v7017
        %7516 = vmatmul.mubr.bf16.gmra.mrb[0].mxu0 %v7005
        %v7517 = vpop.f32.mrb[0].mxu0
        %v7518 = vadd.f32 0.0, %v7517
        %v7519 = vpop.f32.mrb[0].mxu0
        %v7520 = vpop.f32.mrb[0].mxu0
        %v7521 = vadd.f32 0.0, %v7520
        %v7522 = vpop.f32.mrb[0].mxu0
        %7523 = vmatprep.mubr.bf16.mxu0 %v7048
        %7524 = vmatmul.mubr.bf16.gmra.mrb[0].mxu0 %v7036
        %v7525 = vpop.f32.mrb[0].mxu0
        %v7526 = vadd.f32 0.0, %v7525
        %v7527 = vpop.f32.mrb[0].mxu0
        %v7528 = vpop.f32.mrb[0].mxu0
        %v7529 = vadd.f32 0.0, %v7528
        %v7530 = vpop.f32.mrb[0].mxu0
        %7531 = vmatprep.mubr.bf16.mxu0 %v7079
        %7532 = vmatmul.mubr.bf16.gmra.mrb[0].mxu0 %v7067
        %v7533 = vpop.f32.mrb[0].mxu0
        %v7534 = vadd.f32 0.0, %v7533
        %v7535 = vpop.f32.mrb[0].mxu0
        %v7536 = vpop.f32.mrb[0].mxu0
        %v7537 = vadd.f32 0.0, %v7536
        %v7538 = vpop.f32.mrb[0].mxu0
        %7539 = vmatprep.mubr.bf16.mxu0 %v7110
        %7540 = vmatmul.mubr.bf16.gmra.mrb[0].mxu0 %v7098
        %v7541 = vpop.f32.mrb[0].mxu0
        %v7542 = vadd.f32 0.0, %v7541
        %v7543 = vpop.f32.mrb[0].mxu0
        %v7544 = vpop.f32.mrb[0].mxu0
        %v7545 = vadd.f32 0.0, %v7544
        %v7546 = vpop.f32.mrb[0].mxu0
        %7547 = vmatprep.mubr.bf16.mxu0 %v7141
        %7548 = vmatmul.mubr.bf16.gmra.mrb[0].mxu0 %v7129
        %v7549 = vpop.f32.mrb[0].mxu0
        %v7550 = vadd.f32 0.0, %v7549
        %v7551 = vpop.f32.mrb[0].mxu0
        %v7552 = vpop.f32.mrb[0].mxu0
        %v7553 = vadd.f32 0.0, %v7552
        %v7554 = vpop.f32.mrb[0].mxu0
        %7555 = vdwg.mxu0
        %7556 = vmatprep.subr.bf16.mxu0 0
        %7557 = vmatpush1.bf16.msra.mxu0 %v7363
        %7558 = vmatprep.subr.bf16.mxu0 0
        %7559 = vmatpush1.bf16.msra.mxu0 %v7364
        %7560 = vmatprep.subr.bf16.mxu0 0
        %7561 = vmatpush1.bf16.msra.mxu0 %v7365
        %7562 = vmatprep.subr.bf16.mxu0 0
        %7563 = vmatpush1.bf16.msra.mxu0 %v7366
        %7564 = vmatprep.subr.bf16.mxu0 0
        %7565 = vmatpush1.bf16.msra.mxu0 %v7367
        %7566 = vmatprep.subr.bf16.mxu0 0
        %7567 = vmatpush1.bf16.msra.mxu0 %v7368
        %7568 = vmatprep.subr.bf16.mxu0 0
        %7569 = vmatpush1.bf16.msra.mxu0 %v7369
        %7570 = vmatprep.subr.bf16.mxu0 0
        %7571 = vmatpush1.bf16.msra.mxu0 %v7370
        %7572 = vmatprep.subr.bf16.mxu0 0
        %7573 = vmatpush1.bf16.msra.mxu0 0
        %7574 = vmatprep.subr.bf16.mxu0 0
        %7575 = vmatpush1.bf16.msra.mxu0 0
        %7576 = vmatprep.subr.bf16.mxu0 0
        %7577 = vmatpush1.bf16.msra.mxu0 0
        %7578 = vmatprep.subr.bf16.mxu0 0
        %7579 = vmatpush1.bf16.msra.mxu0 0
        %7580 = vmatprep.subr.bf16.mxu0 0
        %7581 = vmatpush1.bf16.msra.mxu0 0
        %7582 = vmatprep.subr.bf16.mxu0 0
        %7583 = vmatpush1.bf16.msra.mxu0 0
        %7584 = vmatprep.subr.bf16.mxu0 0
        %7585 = vmatpush1.bf16.msra.mxu0 0
        %7586 = vmatprep.subr.bf16.mxu0 0
        %7587 = vmatpush1.bf16.msra.mxu0 0
        %7588 = vmatprep.mubr.bf16.mxu0 0
        %7589 = vmatmul.mubr.bf16.gmra.mrb[0].mxu0 %v6688
        %v7590 = vpop.f32.mrb[0].mxu0
        %v7591 = vadd.f32 %v7430, %v7590
        %v7592 = vpop.f32.mrb[0].mxu0
        %v7593 = vpop.f32.mrb[0].mxu0
        %v7594 = vadd.f32 %v7433, %v7593
        %v7595 = vpop.f32.mrb[0].mxu0
        %7596 = vmatprep.mubr.bf16.mxu0 0
        %7597 = vmatmul.mubr.bf16.gmra.mrb[0].mxu0 %v6719
        %v7598 = vpop.f32.mrb[0].mxu0
        %v7599 = vadd.f32 %v7438, %v7598
        %v7600 = vpop.f32.mrb[0].mxu0
        %v7601 = vpop.f32.mrb[0].mxu0
        %v7602 = vadd.f32 %v7441, %v7601
        %v7603 = vpop.f32.mrb[0].mxu0
        %7604 = vmatprep.mubr.bf16.mxu0 0
        %7605 = vmatmul.mubr.bf16.gmra.mrb[0].mxu0 %v6750
        %v7606 = vpop.f32.mrb[0].mxu0
        %v7607 = vadd.f32 %v7446, %v7606
        %v7608 = vpop.f32.mrb[0].mxu0
        %v7609 = vpop.f32.mrb[0].mxu0
        %v7610 = vadd.f32 %v7449, %v7609
        %v7611 = vpop.f32.mrb[0].mxu0
        %7612 = vmatprep.mubr.bf16.mxu0 0
        %7613 = vmatmul.mubr.bf16.gmra.mrb[0].mxu0 %v6781
        %v7614 = vpop.f32.mrb[0].mxu0
        %v7615 = vadd.f32 %v7454, %v7614
        %v7616 = vpop.f32.mrb[0].mxu0
        %v7617 = vpop.f32.mrb[0].mxu0
        %v7618 = vadd.f32 %v7457, %v7617
        %v7619 = vpop.f32.mrb[0].mxu0
        %7620 = vmatprep.mubr.bf16.mxu0 0
        %7621 = vmatmul.mubr.bf16.gmra.mrb[0].mxu0 %v6812
        %v7622 = vpop.f32.mrb[0].mxu0
        %v7623 = vadd.f32 %v7462, %v7622
        %v7624 = vpop.f32.mrb[0].mxu0
        %v7625 = vpop.f32.mrb[0].mxu0
        %v7626 = vadd.f32 %v7465, %v7625
        %v7627 = vpop.f32.mrb[0].mxu0
        %7628 = vmatprep.mubr.bf16.mxu0 0
        %7629 = vmatmul.mubr.bf16.gmra.mrb[0].mxu0 %v6843
        %v7630 = vpop.f32.mrb[0].mxu0
        %v7631 = vadd.f32 %v7470, %v7630
        %v7632 = vpop.f32.mrb[0].mxu0
        %v7633 = vpop.f32.mrb[0].mxu0
        %v7634 = vadd.f32 %v7473, %v7633
        %v7635 = vpop.f32.mrb[0].mxu0
        %7636 = vmatprep.mubr.bf16.mxu0 0
        %7637 = vmatmul.mubr.bf16.gmra.mrb[0].mxu0 %v6874
        %v7638 = vpop.f32.mrb[0].mxu0
        %v7639 = vadd.f32 %v7478, %v7638
        %v7640 = vpop.f32.mrb[0].mxu0
        %v7641 = vpop.f32.mrb[0].mxu0
        %v7642 = vadd.f32 %v7481, %v7641
        %v7643 = vpop.f32.mrb[0].mxu0
        %7644 = vmatprep.mubr.bf16.mxu0 0
        %7645 = vmatmul.mubr.bf16.gmra.mrb[0].mxu0 %v6905
        %v7646 = vpop.f32.mrb[0].mxu0
        %v7647 = vadd.f32 %v7486, %v7646
        %v7648 = vpop.f32.mrb[0].mxu0
        %v7649 = vpop.f32.mrb[0].mxu0
        %v7650 = vadd.f32 %v7489, %v7649
        %v7651 = vpop.f32.mrb[0].mxu0
        %7652 = vmatprep.mubr.bf16.mxu0 0
        %7653 = vmatmul.mubr.bf16.gmra.mrb[0].mxu0 %v6936
        %v7654 = vpop.f32.mrb[0].mxu0
        %v7655 = vadd.f32 %v7494, %v7654
        %v7656 = vpop.f32.mrb[0].mxu0
        %v7657 = vpop.f32.mrb[0].mxu0
        %v7658 = vadd.f32 %v7497, %v7657
        %v7659 = vpop.f32.mrb[0].mxu0
        %7660 = vmatprep.mubr.bf16.mxu0 0
        %7661 = vmatmul.mubr.bf16.gmra.mrb[0].mxu0 %v6967
        %v7662 = vpop.f32.mrb[0].mxu0
        %v7663 = vadd.f32 %v7502, %v7662
        %v7664 = vpop.f32.mrb[0].mxu0
        %v7665 = vpop.f32.mrb[0].mxu0
        %v7666 = vadd.f32 %v7505, %v7665
        %v7667 = vpop.f32.mrb[0].mxu0
        %7668 = vmatprep.mubr.bf16.mxu0 0
        %7669 = vmatmul.mubr.bf16.gmra.mrb[0].mxu0 %v6998
        %v7670 = vpop.f32.mrb[0].mxu0
        %v7671 = vadd.f32 %v7510, %v7670
        %v7672 = vpop.f32.mrb[0].mxu0
        %v7673 = vpop.f32.mrb[0].mxu0
        %v7674 = vadd.f32 %v7513, %v7673
        %v7675 = vpop.f32.mrb[0].mxu0
        %7676 = vmatprep.mubr.bf16.mxu0 0
        %7677 = vmatmul.mubr.bf16.gmra.mrb[0].mxu0 %v7029
        %v7678 = vpop.f32.mrb[0].mxu0
        %v7679 = vadd.f32 %v7518, %v7678
        %v7680 = vpop.f32.mrb[0].mxu0
        %v7681 = vpop.f32.mrb[0].mxu0
        %v7682 = vadd.f32 %v7521, %v7681
        %v7683 = vpop.f32.mrb[0].mxu0
        %7684 = vmatprep.mubr.bf16.mxu0 0
        %7685 = vmatmul.mubr.bf16.gmra.mrb[0].mxu0 %v7060
        %v7686 = vpop.f32.mrb[0].mxu0
        %v7687 = vadd.f32 %v7526, %v7686
        %v7688 = vpop.f32.mrb[0].mxu0
        %v7689 = vpop.f32.mrb[0].mxu0
        %v7690 = vadd.f32 %v7529, %v7689
        %v7691 = vpop.f32.mrb[0].mxu0
        %7692 = vmatprep.mubr.bf16.mxu0 0
        %7693 = vmatmul.mubr.bf16.gmra.mrb[0].mxu0 %v7091
        %v7694 = vpop.f32.mrb[0].mxu0
        %v7695 = vadd.f32 %v7534, %v7694
        %v7696 = vpop.f32.mrb[0].mxu0
        %v7697 = vpop.f32.mrb[0].mxu0
        %v7698 = vadd.f32 %v7537, %v7697
        %v7699 = vpop.f32.mrb[0].mxu0
        %7700 = vmatprep.mubr.bf16.mxu0 0
        %7701 = vmatmul.mubr.bf16.gmra.mrb[0].mxu0 %v7122
        %v7702 = vpop.f32.mrb[0].mxu0
        %v7703 = vadd.f32 %v7542, %v7702
        %v7704 = vpop.f32.mrb[0].mxu0
        %v7705 = vpop.f32.mrb[0].mxu0
        %v7706 = vadd.f32 %v7545, %v7705
        %v7707 = vpop.f32.mrb[0].mxu0
        %7708 = vmatprep.mubr.bf16.mxu0 0
        %7709 = vmatmul.mubr.bf16.gmra.mrb[0].mxu0 %v7153
        %v7710 = vpop.f32.mrb[0].mxu0
        %v7711 = vadd.f32 %v7550, %v7710
        %v7712 = vpop.f32.mrb[0].mxu0
        %v7713 = vpop.f32.mrb[0].mxu0
        %v7714 = vadd.f32 %v7553, %v7713
        %v7715 = vpop.f32.mrb[0].mxu0
        %7716 = vdwg.mxu0
        %v7717 = vadd.f32 %v6291, %v7591
        %v7718 = vadd.f32 %v6294, %v7594
        %v7719 = vadd.f32 %v6299, %v7599
        %v7720 = vadd.f32 %v6302, %v7602
        %v7721 = vadd.f32 %v6307, %v7607
        %v7722 = vadd.f32 %v6310, %v7610
        %v7723 = vadd.f32 %v6315, %v7615
        %v7724 = vadd.f32 %v6318, %v7618
        %v7725 = vadd.f32 %v6323, %v7623
        %v7726 = vadd.f32 %v6326, %v7626
        %v7727 = vadd.f32 %v6331, %v7631
        %v7728 = vadd.f32 %v6334, %v7634
        %v7729 = vadd.f32 %v6339, %v7639
        %v7730 = vadd.f32 %v6342, %v7642
        %v7731 = vadd.f32 %v6347, %v7647
        %v7732 = vadd.f32 %v6350, %v7650
        %v7733 = vadd.f32 %v6355, %v7655
        %v7734 = vadd.f32 %v6358, %v7658
        %v7735 = vadd.f32 %v6363, %v7663
        %v7736 = vadd.f32 %v6366, %v7666
        %v7737 = vadd.f32 %v6371, %v7671
        %v7738 = vadd.f32 %v6374, %v7674
        %v7739 = vadd.f32 %v6379, %v7679
        %v7740 = vadd.f32 %v6382, %v7682
        %v7741 = vadd.f32 %v6387, %v7687
        %v7742 = vadd.f32 %v6390, %v7690
        %v7743 = vadd.f32 %v6395, %v7695
        %v7744 = vadd.f32 %v6398, %v7698
        %v7745 = vadd.f32 %v6403, %v7703
        %v7746 = vadd.f32 %v6406, %v7706
        %v7747 = vadd.f32 %v6411, %v7711
        %v7748 = vadd.f32 %v6414, %v7714
        %v7749 = vld [vmem:[%s4] sm:$0x1]
        %v7751 = vlaneseq
        %v7752 = vshrl.u32 %v7751, 7
        %v7753 = vsub.s32 0, %v7752
        %v7754 = vrot.slane %v7749, %v7753
        %v7756 = vadd.f32 %v7717, %v7754
        %v7757 = vadd.f32 %v7718, %v7754
        %v7758 = vadd.f32 %v7719, %v7754
        %v7759 = vadd.f32 %v7720, %v7754
        %v7760 = vadd.f32 %v7721, %v7754
        %v7761 = vadd.f32 %v7722, %v7754
        %v7762 = vadd.f32 %v7723, %v7754
        %v7763 = vadd.f32 %v7724, %v7754
        %v7764 = vadd.f32 %v7725, %v7754
        %v7765 = vadd.f32 %v7726, %v7754
        %v7766 = vadd.f32 %v7727, %v7754
        %v7767 = vadd.f32 %v7728, %v7754
        %v7768 = vadd.f32 %v7729, %v7754
        %v7769 = vadd.f32 %v7730, %v7754
        %v7770 = vadd.f32 %v7731, %v7754
        %v7771 = vadd.f32 %v7732, %v7754
        %v7772 = vadd.f32 %v7733, %v7754
        %v7773 = vadd.f32 %v7734, %v7754
        %v7774 = vadd.f32 %v7735, %v7754
        %v7775 = vadd.f32 %v7736, %v7754
        %v7776 = vadd.f32 %v7737, %v7754
        %v7777 = vadd.f32 %v7738, %v7754
        %v7778 = vadd.f32 %v7739, %v7754
        %v7779 = vadd.f32 %v7740, %v7754
        %v7780 = vadd.f32 %v7741, %v7754
        %v7781 = vadd.f32 %v7742, %v7754
        %v7782 = vadd.f32 %v7743, %v7754
        %v7783 = vadd.f32 %v7744, %v7754
        %v7784 = vadd.f32 %v7745, %v7754
        %v7785 = vadd.f32 %v7746, %v7754
        %v7786 = vadd.f32 %v7747, %v7754
        %v7787 = vadd.f32 %v7748, %v7754
        %v7788 = vxor.u32 %v7756, 2147483648
        %v7789 = vxor.u32 %v7757, 2147483648
        %v7790 = vxor.u32 %v7758, 2147483648
        %v7791 = vxor.u32 %v7759, 2147483648
        %v7792 = vxor.u32 %v7760, 2147483648
        %v7793 = vxor.u32 %v7761, 2147483648
        %v7794 = vxor.u32 %v7762, 2147483648
        %v7795 = vxor.u32 %v7763, 2147483648
        %v7796 = vxor.u32 %v7764, 2147483648
        %v7797 = vxor.u32 %v7765, 2147483648
        %v7798 = vxor.u32 %v7766, 2147483648
        %v7799 = vxor.u32 %v7767, 2147483648
        %v7800 = vxor.u32 %v7768, 2147483648
        %v7801 = vxor.u32 %v7769, 2147483648
        %v7802 = vxor.u32 %v7770, 2147483648
        %v7803 = vxor.u32 %v7771, 2147483648
        %v7804 = vxor.u32 %v7772, 2147483648
        %v7805 = vxor.u32 %v7773, 2147483648
        %v7806 = vxor.u32 %v7774, 2147483648
        %v7807 = vxor.u32 %v7775, 2147483648
        %v7808 = vxor.u32 %v7776, 2147483648
        %v7809 = vxor.u32 %v7777, 2147483648
        %v7810 = vxor.u32 %v7778, 2147483648
        %v7811 = vxor.u32 %v7779, 2147483648
        %v7812 = vxor.u32 %v7780, 2147483648
        %v7813 = vxor.u32 %v7781, 2147483648
        %v7814 = vxor.u32 %v7782, 2147483648
        %v7815 = vxor.u32 %v7783, 2147483648
        %v7816 = vxor.u32 %v7784, 2147483648
        %v7817 = vxor.u32 %v7785, 2147483648
        %v7818 = vxor.u32 %v7786, 2147483648
        %v7819 = vxor.u32 %v7787, 2147483648
        %v7820 = vmul.f32 %v7788, 1.442695
        %v7821 = vpow.pop %v7820
        %v7822 = vmul.f32 %v7789, 1.442695
        %v7823 = vpow.pop %v7822
        %v7824 = vmul.f32 %v7790, 1.442695
        %v7825 = vpow.pop %v7824
        %v7826 = vmul.f32 %v7791, 1.442695
        %v7827 = vpow.pop %v7826
        %v7828 = vmul.f32 %v7792, 1.442695
        %v7829 = vpow.pop %v7828
        %v7830 = vmul.f32 %v7793, 1.442695
        %v7831 = vpow.pop %v7830
        %v7832 = vmul.f32 %v7794, 1.442695
        %v7833 = vpow.pop %v7832
        %v7834 = vmul.f32 %v7795, 1.442695
        %v7835 = vpow.pop %v7834
        %v7836 = vmul.f32 %v7796, 1.442695
        %v7837 = vpow.pop %v7836
        %v7838 = vmul.f32 %v7797, 1.442695
        %v7839 = vpow.pop %v7838
        %v7840 = vmul.f32 %v7798, 1.442695
        %v7841 = vpow.pop %v7840
        %v7842 = vmul.f32 %v7799, 1.442695
        %v7843 = vpow.pop %v7842
        %v7844 = vmul.f32 %v7800, 1.442695
        %v7845 = vpow.pop %v7844
        %v7846 = vmul.f32 %v7801, 1.442695
        %v7847 = vpow.pop %v7846
        %v7848 = vmul.f32 %v7802, 1.442695
        %v7849 = vpow.pop %v7848
        %v7850 = vmul.f32 %v7803, 1.442695
        %v7851 = vpow.pop %v7850
        %v7852 = vmul.f32 %v7804, 1.442695
        %v7853 = vpow.pop %v7852
        %v7854 = vmul.f32 %v7805, 1.442695
        %v7855 = vpow.pop %v7854
        %v7856 = vmul.f32 %v7806, 1.442695
        %v7857 = vpow.pop %v7856
        %v7858 = vmul.f32 %v7807, 1.442695
        %v7859 = vpow.pop %v7858
        %v7860 = vmul.f32 %v7808, 1.442695
        %v7861 = vpow.pop %v7860
        %v7862 = vmul.f32 %v7809, 1.442695
        %v7863 = vpow.pop %v7862
        %v7864 = vmul.f32 %v7810, 1.442695
        %v7865 = vpow.pop %v7864
        %v7866 = vmul.f32 %v7811, 1.442695
        %v7867 = vpow.pop %v7866
        %v7868 = vmul.f32 %v7812, 1.442695
        %v7869 = vpow.pop %v7868
        %v7870 = vmul.f32 %v7813, 1.442695
        %v7871 = vpow.pop %v7870
        %v7872 = vmul.f32 %v7814, 1.442695
        %v7873 = vpow.pop %v7872
        %v7874 = vmul.f32 %v7815, 1.442695
        %v7875 = vpow.pop %v7874
        %v7876 = vmul.f32 %v7816, 1.442695
        %v7877 = vpow.pop %v7876
        %v7878 = vmul.f32 %v7817, 1.442695
        %v7879 = vpow.pop %v7878
        %v7880 = vmul.f32 %v7818, 1.442695
        %v7881 = vpow.pop %v7880
        %v7882 = vmul.f32 %v7819, 1.442695
        %v7883 = vpow.pop %v7882
        %v7884 = vadd.f32 %v7821, 1.0
        %v7885 = vadd.f32 %v7823, 1.0
        %v7886 = vadd.f32 %v7825, 1.0
        %v7887 = vadd.f32 %v7827, 1.0
        %v7888 = vadd.f32 %v7829, 1.0
        %v7889 = vadd.f32 %v7831, 1.0
        %v7890 = vadd.f32 %v7833, 1.0
        %v7891 = vadd.f32 %v7835, 1.0
        %v7892 = vadd.f32 %v7837, 1.0
        %v7893 = vadd.f32 %v7839, 1.0
        %v7894 = vadd.f32 %v7841, 1.0
        %v7895 = vadd.f32 %v7843, 1.0
        %v7896 = vadd.f32 %v7845, 1.0
        %v7897 = vadd.f32 %v7847, 1.0
        %v7898 = vadd.f32 %v7849, 1.0
        %v7899 = vadd.f32 %v7851, 1.0
        %v7900 = vadd.f32 %v7853, 1.0
        %v7901 = vadd.f32 %v7855, 1.0
        %v7902 = vadd.f32 %v7857, 1.0
        %v7903 = vadd.f32 %v7859, 1.0
        %v7904 = vadd.f32 %v7861, 1.0
        %v7905 = vadd.f32 %v7863, 1.0
        %v7906 = vadd.f32 %v7865, 1.0
        %v7907 = vadd.f32 %v7867, 1.0
        %v7908 = vadd.f32 %v7869, 1.0
        %v7909 = vadd.f32 %v7871, 1.0
        %v7910 = vadd.f32 %v7873, 1.0
        %v7911 = vadd.f32 %v7875, 1.0
        %v7912 = vadd.f32 %v7877, 1.0
        %v7913 = vadd.f32 %v7879, 1.0
        %v7914 = vadd.f32 %v7881, 1.0
        %v7915 = vadd.f32 %v7883, 1.0
        %v7916 = vrcp.pop %v7884
        %v7917 = vmul.f32 1.0, %v7916
        %v7918 = vrcp.pop %v7885
        %v7919 = vmul.f32 1.0, %v7918
        %v7920 = vrcp.pop %v7886
        %v7921 = vmul.f32 1.0, %v7920
        %v7922 = vrcp.pop %v7887
        %v7923 = vmul.f32 1.0, %v7922
        %v7924 = vrcp.pop %v7888
        %v7925 = vmul.f32 1.0, %v7924
        %v7926 = vrcp.pop %v7889
        %v7927 = vmul.f32 1.0, %v7926
        %v7928 = vrcp.pop %v7890
        %v7929 = vmul.f32 1.0, %v7928
        %v7930 = vrcp.pop %v7891
        %v7931 = vmul.f32 1.0, %v7930
        %v7932 = vrcp.pop %v7892
        %v7933 = vmul.f32 1.0, %v7932
        %v7934 = vrcp.pop %v7893
        %v7935 = vmul.f32 1.0, %v7934
        %v7936 = vrcp.pop %v7894
        %v7937 = vmul.f32 1.0, %v7936
        %v7938 = vrcp.pop %v7895
        %v7939 = vmul.f32 1.0, %v7938
        %v7940 = vrcp.pop %v7896
        %v7941 = vmul.f32 1.0, %v7940
        %v7942 = vrcp.pop %v7897
        %v7943 = vmul.f32 1.0, %v7942
        %v7944 = vrcp.pop %v7898
        %v7945 = vmul.f32 1.0, %v7944
        %v7946 = vrcp.pop %v7899
        %v7947 = vmul.f32 1.0, %v7946
        %v7948 = vrcp.pop %v7900
        %v7949 = vmul.f32 1.0, %v7948
        %v7950 = vrcp.pop %v7901
        %v7951 = vmul.f32 1.0, %v7950
        %v7952 = vrcp.pop %v7902
        %v7953 = vmul.f32 1.0, %v7952
        %v7954 = vrcp.pop %v7903
        %v7955 = vmul.f32 1.0, %v7954
        %v7956 = vrcp.pop %v7904
        %v7957 = vmul.f32 1.0, %v7956
        %v7958 = vrcp.pop %v7905
        %v7959 = vmul.f32 1.0, %v7958
        %v7960 = vrcp.pop %v7906
        %v7961 = vmul.f32 1.0, %v7960
        %v7962 = vrcp.pop %v7907
        %v7963 = vmul.f32 1.0, %v7962
        %v7964 = vrcp.pop %v7908
        %v7965 = vmul.f32 1.0, %v7964
        %v7966 = vrcp.pop %v7909
        %v7967 = vmul.f32 1.0, %v7966
        %v7968 = vrcp.pop %v7910
        %v7969 = vmul.f32 1.0, %v7968
        %v7970 = vrcp.pop %v7911
        %v7971 = vmul.f32 1.0, %v7970
        %v7972 = vrcp.pop %v7912
        %v7973 = vmul.f32 1.0, %v7972
        %v7974 = vrcp.pop %v7913
        %v7975 = vmul.f32 1.0, %v7974
        %v7976 = vrcp.pop %v7914
        %v7977 = vmul.f32 1.0, %v7976
        %v7978 = vrcp.pop %v7915
        %v7979 = vmul.f32 1.0, %v7978
        %v7980 = vmul.f32 %v7756, %v7917
        %v7981 = vmul.f32 %v7757, %v7919
        %v7982 = vmul.f32 %v7758, %v7921
        %v7983 = vmul.f32 %v7759, %v7923
        %v7984 = vmul.f32 %v7760, %v7925
        %v7985 = vmul.f32 %v7761, %v7927
        %v7986 = vmul.f32 %v7762, %v7929
        %v7987 = vmul.f32 %v7763, %v7931
        %v7988 = vmul.f32 %v7764, %v7933
        %v7989 = vmul.f32 %v7765, %v7935
        %v7990 = vmul.f32 %v7766, %v7937
        %v7991 = vmul.f32 %v7767, %v7939
        %v7992 = vmul.f32 %v7768, %v7941
        %v7993 = vmul.f32 %v7769, %v7943
        %v7994 = vmul.f32 %v7770, %v7945
        %v7995 = vmul.f32 %v7771, %v7947
        %v7996 = vmul.f32 %v7772, %v7949
        %v7997 = vmul.f32 %v7773, %v7951
        %v7998 = vmul.f32 %v7774, %v7953
        %v7999 = vmul.f32 %v7775, %v7955
        %v8000 = vmul.f32 %v7776, %v7957
        %v8001 = vmul.f32 %v7777, %v7959
        %v8002 = vmul.f32 %v7778, %v7961
        %v8003 = vmul.f32 %v7779, %v7963
        %v8004 = vmul.f32 %v7780, %v7965
        %v8005 = vmul.f32 %v7781, %v7967
        %v8006 = vmul.f32 %v7782, %v7969
        %v8007 = vmul.f32 %v7783, %v7971
        %v8008 = vmul.f32 %v7784, %v7973
        %v8009 = vmul.f32 %v7785, %v7975
        %v8010 = vmul.f32 %v7786, %v7977
        %v8011 = vmul.f32 %v7787, %v7979
        %v8012 = vld [vmem:[%s938] sm:$0xf]
        %v8013 = vld [vmem:[%s938 + $0x4] sm:$0xf]
        %v8014 = vld [vmem:[%s938 + $0x8] sm:$0x1]
        %v8015 = vld [vmem:[%s938 + $0xc] sm:$0xf]
        %v8016 = vld [vmem:[%s938 + $0x10] sm:$0xf]
        %v8017 = vld [vmem:[%s938 + $0x14] sm:$0x1]
        %v8018 = vld [vmem:[%s938 + $0x18] sm:$0xf]
        %v8019 = vld [vmem:[%s938 + $0x1c] sm:$0xf]
        %v8020 = vld [vmem:[%s938 + $0x20] sm:$0x1]
        %v8021 = vld [vmem:[%s938 + $0x24] sm:$0xf]
        %v8022 = vld [vmem:[%s938 + $0x28] sm:$0xf]
        %v8023 = vld [vmem:[%s938 + $0x2c] sm:$0x1]
        %v8024 = vld [vmem:[%s938 + $0x30] sm:$0xf]
        %v8025 = vld [vmem:[%s938 + $0x34] sm:$0xf]
        %v8026 = vld [vmem:[%s938 + $0x38] sm:$0x1]
        %v8027 = vld [vmem:[%s938 + $0x3c] sm:$0xf]
        %v8028 = vld [vmem:[%s938 + $0x40] sm:$0xf]
        %v8029 = vld [vmem:[%s938 + $0x44] sm:$0x1]
        %v8030 = vld [vmem:[%s938 + $0x48] sm:$0xf]
        %v8031 = vld [vmem:[%s938 + $0x4c] sm:$0xf]
        %v8032 = vld [vmem:[%s938 + $0x50] sm:$0x1]
        %v8033 = vld [vmem:[%s938 + $0x54] sm:$0xf]
        %v8034 = vld [vmem:[%s938 + $0x58] sm:$0xf]
        %v8035 = vld [vmem:[%s938 + $0x5c] sm:$0x1]
        %v8036 = vld [vmem:[%s938 + $0x60] sm:$0xf]
        %v8037 = vld [vmem:[%s938 + $0x64] sm:$0xf]
        %v8038 = vld [vmem:[%s938 + $0x68] sm:$0x1]
        %v8039 = vld [vmem:[%s938 + $0x6c] sm:$0xf]
        %v8040 = vld [vmem:[%s938 + $0x70] sm:$0xf]
        %v8041 = vld [vmem:[%s938 + $0x74] sm:$0x1]
        %v8042 = vld [vmem:[%s938 + $0x78] sm:$0xf]
        %v8043 = vld [vmem:[%s938 + $0x7c] sm:$0xf]
        %v8044 = vld [vmem:[%s938 + $0x80] sm:$0x1]
        %v8045 = vld [vmem:[%s938 + $0x84] sm:$0xf]
        %v8046 = vld [vmem:[%s938 + $0x88] sm:$0xf]
        %v8047 = vld [vmem:[%s938 + $0x8c] sm:$0x1]
        %v8048 = vld [vmem:[%s938 + $0x90] sm:$0xf]
        %v8049 = vld [vmem:[%s938 + $0x94] sm:$0xf]
        %v8050 = vld [vmem:[%s938 + $0x98] sm:$0x1]
        %v8051 = vld [vmem:[%s938 + $0x9c] sm:$0xf]
        %v8052 = vld [vmem:[%s938 + $0xa0] sm:$0xf]
        %v8053 = vld [vmem:[%s938 + $0xa4] sm:$0x1]
        %v8054 = vld [vmem:[%s938 + $0xa8] sm:$0xf]
        %v8055 = vld [vmem:[%s938 + $0xac] sm:$0xf]
        %v8056 = vld [vmem:[%s938 + $0xb0] sm:$0x1]
        %v8057 = vld [vmem:[%s938 + $0xb4] sm:$0xf]
        %v8058 = vld [vmem:[%s938 + $0xb8] sm:$0xf]
        %v8059 = vld [vmem:[%s938 + $0xbc] sm:$0x1]
        %v8060 = vunpack.c.l.bf16 %v8012
        %v8061 = vunpack.c.l.bf16 %v8013
        %v8062 = vunpack.c.l.bf16 %v8014
        %v8063 = vunpack.c.l.bf16 %v8015
        %v8064 = vunpack.c.l.bf16 %v8016
        %v8065 = vunpack.c.l.bf16 %v8017
        %v8066 = vunpack.c.l.bf16 %v8018
        %v8067 = vunpack.c.l.bf16 %v8019
        %v8068 = vunpack.c.l.bf16 %v8020
        %v8069 = vunpack.c.l.bf16 %v8021
        %v8070 = vunpack.c.l.bf16 %v8022
        %v8071 = vunpack.c.l.bf16 %v8023
        %v8072 = vunpack.c.l.bf16 %v8024
        %v8073 = vunpack.c.l.bf16 %v8025
        %v8074 = vunpack.c.l.bf16 %v8026
        %v8075 = vunpack.c.l.bf16 %v8027
        %v8076 = vunpack.c.l.bf16 %v8028
        %v8077 = vunpack.c.l.bf16 %v8029
        %v8078 = vunpack.c.l.bf16 %v8030
        %v8079 = vunpack.c.l.bf16 %v8031
        %v8080 = vunpack.c.l.bf16 %v8032
        %v8081 = vunpack.c.l.bf16 %v8033
        %v8082 = vunpack.c.l.bf16 %v8034
        %v8083 = vunpack.c.l.bf16 %v8035
        %v8084 = vunpack.c.l.bf16 %v8036
        %v8085 = vunpack.c.l.bf16 %v8037
        %v8086 = vunpack.c.l.bf16 %v8038
        %v8087 = vunpack.c.l.bf16 %v8039
        %v8088 = vunpack.c.l.bf16 %v8040
        %v8089 = vunpack.c.l.bf16 %v8041
        %v8090 = vunpack.c.l.bf16 %v8042
        %v8091 = vunpack.c.l.bf16 %v8043
        %v8092 = vunpack.c.l.bf16 %v8044
        %v8093 = vunpack.c.l.bf16 %v8045
        %v8094 = vunpack.c.l.bf16 %v8046
        %v8095 = vunpack.c.l.bf16 %v8047
        %v8096 = vunpack.c.l.bf16 %v8048
        %v8097 = vunpack.c.l.bf16 %v8049
        %v8098 = vunpack.c.l.bf16 %v8050
        %v8099 = vunpack.c.l.bf16 %v8051
        %v8100 = vunpack.c.l.bf16 %v8052
        %v8101 = vunpack.c.l.bf16 %v8053
        %v8102 = vunpack.c.l.bf16 %v8054
        %v8103 = vunpack.c.l.bf16 %v8055
        %v8104 = vunpack.c.l.bf16 %v8056
        %v8105 = vunpack.c.l.bf16 %v8057
        %v8106 = vunpack.c.l.bf16 %v8058
        %v8107 = vunpack.c.l.bf16 %v8059
        %vm8156 = vcmask 1046528
        %v8157 = vrot.slane %v8060, 1
        %v8158 = vrot.slane %v8061, 1
        %v8159 = vsel %vm8156, %v8157, %v8158
        %v8160 = vrot.slane %v8062, 1
        %v8161 = vsel %vm8156, %v8158, %v8160
        %v8162 = vrot.slane %v8063, 1
        %v8163 = vrot.slane %v8064, 1
        %v8164 = vsel %vm8156, %v8162, %v8163
        %v8165 = vrot.slane %v8065, 1
        %v8166 = vsel %vm8156, %v8163, %v8165
        %v8167 = vrot.slane %v8066, 1
        %v8168 = vrot.slane %v8067, 1
        %v8169 = vsel %vm8156, %v8167, %v8168
        %v8170 = vrot.slane %v8068, 1
        %v8171 = vsel %vm8156, %v8168, %v8170
        %v8172 = vrot.slane %v8069, 1
        %v8173 = vrot.slane %v8070, 1
        %v8174 = vsel %vm8156, %v8172, %v8173
        %v8175 = vrot.slane %v8071, 1
        %v8176 = vsel %vm8156, %v8173, %v8175
        %v8177 = vrot.slane %v8072, 1
        %v8178 = vrot.slane %v8073, 1
        %v8179 = vsel %vm8156, %v8177, %v8178
        %v8180 = vrot.slane %v8074, 1
        %v8181 = vsel %vm8156, %v8178, %v8180
        %v8182 = vrot.slane %v8075, 1
        %v8183 = vrot.slane %v8076, 1
        %v8184 = vsel %vm8156, %v8182, %v8183
        %v8185 = vrot.slane %v8077, 1
        %v8186 = vsel %vm8156, %v8183, %v8185
        %v8187 = vrot.slane %v8078, 1
        %v8188 = vrot.slane %v8079, 1
        %v8189 = vsel %vm8156, %v8187, %v8188
        %v8190 = vrot.slane %v8080, 1
        %v8191 = vsel %vm8156, %v8188, %v8190
        %v8192 = vrot.slane %v8081, 1
        %v8193 = vrot.slane %v8082, 1
        %v8194 = vsel %vm8156, %v8192, %v8193
        %v8195 = vrot.slane %v8083, 1
        %v8196 = vsel %vm8156, %v8193, %v8195
        %v8197 = vrot.slane %v8084, 1
        %v8198 = vrot.slane %v8085, 1
        %v8199 = vsel %vm8156, %v8197, %v8198
        %v8200 = vrot.slane %v8086, 1
        %v8201 = vsel %vm8156, %v8198, %v8200
        %v8202 = vrot.slane %v8087, 1
        %v8203 = vrot.slane %v8088, 1
        %v8204 = vsel %vm8156, %v8202, %v8203
        %v8205 = vrot.slane %v8089, 1
        %v8206 = vsel %vm8156, %v8203, %v8205
        %v8207 = vrot.slane %v8090, 1
        %v8208 = vrot.slane %v8091, 1
        %v8209 = vsel %vm8156, %v8207, %v8208
        %v8210 = vrot.slane %v8092, 1
        %v8211 = vsel %vm8156, %v8208, %v8210
        %v8212 = vrot.slane %v8093, 1
        %v8213 = vrot.slane %v8094, 1
        %v8214 = vsel %vm8156, %v8212, %v8213
        %v8215 = vrot.slane %v8095, 1
        %v8216 = vsel %vm8156, %v8213, %v8215
        %v8217 = vrot.slane %v8096, 1
        %v8218 = vrot.slane %v8097, 1
        %v8219 = vsel %vm8156, %v8217, %v8218
        %v8220 = vrot.slane %v8098, 1
        %v8221 = vsel %vm8156, %v8218, %v8220
        %v8222 = vrot.slane %v8099, 1
        %v8223 = vrot.slane %v8100, 1
        %v8224 = vsel %vm8156, %v8222, %v8223
        %v8225 = vrot.slane %v8101, 1
        %v8226 = vsel %vm8156, %v8223, %v8225
        %v8227 = vrot.slane %v8102, 1
        %v8228 = vrot.slane %v8103, 1
        %v8229 = vsel %vm8156, %v8227, %v8228
        %v8230 = vrot.slane %v8104, 1
        %v8231 = vsel %vm8156, %v8228, %v8230
        %v8232 = vrot.slane %v8105, 1
        %v8233 = vrot.slane %v8106, 1
        %v8234 = vsel %vm8156, %v8232, %v8233
        %v8235 = vrot.slane %v8107, 1
        %v8236 = vsel %vm8156, %v8233, %v8235
        %v8269 = vadd.f32 %v7980, %v8159
        %v8270 = vadd.f32 %v7981, %v8161
        %v8271 = vadd.f32 %v7982, %v8164
        %v8272 = vadd.f32 %v7983, %v8166
        %v8273 = vadd.f32 %v7984, %v8169
        %v8274 = vadd.f32 %v7985, %v8171
        %v8275 = vadd.f32 %v7986, %v8174
        %v8276 = vadd.f32 %v7987, %v8176
        %v8277 = vadd.f32 %v7988, %v8179
        %v8278 = vadd.f32 %v7989, %v8181
        %v8279 = vadd.f32 %v7990, %v8184
        %v8280 = vadd.f32 %v7991, %v8186
        %v8281 = vadd.f32 %v7992, %v8189
        %v8282 = vadd.f32 %v7993, %v8191
        %v8283 = vadd.f32 %v7994, %v8194
        %v8284 = vadd.f32 %v7995, %v8196
        %v8285 = vadd.f32 %v7996, %v8199
        %v8286 = vadd.f32 %v7997, %v8201
        %v8287 = vadd.f32 %v7998, %v8204
        %v8288 = vadd.f32 %v7999, %v8206
        %v8289 = vadd.f32 %v8000, %v8209
        %v8290 = vadd.f32 %v8001, %v8211
        %v8291 = vadd.f32 %v8002, %v8214
        %v8292 = vadd.f32 %v8003, %v8216
        %v8293 = vadd.f32 %v8004, %v8219
        %v8294 = vadd.f32 %v8005, %v8221
        %v8295 = vadd.f32 %v8006, %v8224
        %v8296 = vadd.f32 %v8007, %v8226
        %v8297 = vadd.f32 %v8008, %v8229
        %v8298 = vadd.f32 %v8009, %v8231
        %v8299 = vadd.f32 %v8010, %v8234
        %v8300 = vadd.f32 %v8011, %v8236
        %8301 = vst [vmem:[%s232] sm:$0xff] %v8269
        %8302 = vst [vmem:[%s232 + $0x8] sm:$0xff] %v8270
        %8303 = vst [vmem:[%s232 + $0x10] sm:$0xff] %v8271
        %8304 = vst [vmem:[%s232 + $0x18] sm:$0xff] %v8272
        %8305 = vst [vmem:[%s232 + $0x20] sm:$0xff] %v8273
        %8306 = vst [vmem:[%s232 + $0x28] sm:$0xff] %v8274
        %8307 = vst [vmem:[%s232 + $0x30] sm:$0xff] %v8275
        %8308 = vst [vmem:[%s232 + $0x38] sm:$0xff] %v8276
        %8309 = vst [vmem:[%s232 + $0x40] sm:$0xff] %v8277
        %8310 = vst [vmem:[%s232 + $0x48] sm:$0xff] %v8278
        %8311 = vst [vmem:[%s232 + $0x50] sm:$0xff] %v8279
        %8312 = vst [vmem:[%s232 + $0x58] sm:$0xff] %v8280
        %8313 = vst [vmem:[%s232 + $0x60] sm:$0xff] %v8281
        %8314 = vst [vmem:[%s232 + $0x68] sm:$0xff] %v8282
        %8315 = vst [vmem:[%s232 + $0x70] sm:$0xff] %v8283
        %8316 = vst [vmem:[%s232 + $0x78] sm:$0xff] %v8284
        %8317 = vst [vmem:[%s232 + $0x80] sm:$0xff] %v8285
        %8318 = vst [vmem:[%s232 + $0x88] sm:$0xff] %v8286
        %8319 = vst [vmem:[%s232 + $0x90] sm:$0xff] %v8287
        %8320 = vst [vmem:[%s232 + $0x98] sm:$0xff] %v8288
        %8321 = vst [vmem:[%s232 + $0xa0] sm:$0xff] %v8289
        %8322 = vst [vmem:[%s232 + $0xa8] sm:$0xff] %v8290
        %8323 = vst [vmem:[%s232 + $0xb0] sm:$0xff] %v8291
        %8324 = vst [vmem:[%s232 + $0xb8] sm:$0xff] %v8292
        %8325 = vst [vmem:[%s232 + $0xc0] sm:$0xff] %v8293
        %8326 = vst [vmem:[%s232 + $0xc8] sm:$0xff] %v8294
        %8327 = vst [vmem:[%s232 + $0xd0] sm:$0xff] %v8295
        %8328 = vst [vmem:[%s232 + $0xd8] sm:$0xff] %v8296
        %8329 = vst [vmem:[%s232 + $0xe0] sm:$0xff] %v8297
        %8330 = vst [vmem:[%s232 + $0xe8] sm:$0xff] %v8298
        %8331 = vst [vmem:[%s232 + $0xf0] sm:$0xff] %v8299
        %8332 = vst [vmem:[%s232 + $0xf8] sm:$0xff] %v8300
        %s8333 = sand.u32 %s138, 1
        %s8334 = scalar_lea.sflag [#allocation5], %s8333
        %s8335 = sand.u32 %s138, 1
        %s8336 = smul.addr %s8335, 256
        %s8337 = scalar_lea.vmem [#allocation6], %s8336
        // Predicated region
        $region45: #{tpu_custom_call.1} parent=39 // pred_check
          %p8338 = pneg %p148
        $region46: #{tpu_custom_call.1} parent=39 // pred_check_branch
          %8340 = sbr.rel (%p8338) target = $region48
        $region47: #{tpu_custom_call.1} parent=39 // pred_region
          %s8342 = ssub.s32 4096, 4096
          %8343 = vsyncadd %s8334, %s8342
          %s8344 = smul.addr %s20, 32
          %s8345 = smul.addr %s8344, 128
          %s8346 = scalar_lea.hbm %s5, %s8345
          %s8347 = sshll.u32 %s8337, 4
          %s8348 = int_to_ptr.vmem [resolvable:$true] %s8347
          %8353 = dma.vmem_to_hbm [thread:$0]  %s8348, 4096, %s8346, %s8334, 128, 128, 8
        $region48: #{tpu_custom_call.1} parent=39 // pred_fallthru
          _
      $region40: #{tpu_custom_call.1} parent=5 // pred_fallthru
        _
      %p8354 = scmp.le.s32.totalorder 2, %s15
      // Predicated region
      $region49: #{tpu_custom_call.1} parent=5 // pred_check
        %p8355 = pneg %p8354
      $region50: #{tpu_custom_call.1} parent=5 // pred_check_branch
        %8357 = sbr.rel (%p8355) target = $region52
      $region51: #{tpu_custom_call.1} parent=5 // pred_region
        %s8358 = ssub.s32 %s15, 2
        // Predicated region
        $region53: #{tpu_custom_call.1} parent=51 // pred_check
          %p8359 = pneg %p154
        $region54: #{tpu_custom_call.1} parent=51 // pred_check_branch
          %8361 = sbr.rel (%p8359) target = $region56
        $region55: #{tpu_custom_call.1} parent=51 // pred_region
          %s8362 = sand.u32 %s139, 1
          %s8363 = scalar_lea.sflag [#allocation5], %s8362
          %s8364 = sand.u32 %s139, 1
          %s8365 = smul.addr %s8364, 256
          %s8366 = scalar_lea.vmem [#allocation6], %s8365
          %8367 = dma.done %s8363, 4096
        $region56: #{tpu_custom_call.1} parent=51 // pred_fallthru
          _
      $region52: #{tpu_custom_call.1} parent=5 // pred_fallthru
        _
    $region6: #{tpu_custom_call.1} parent=1 // loop_footer
      %s19 = sadd.s32 1, %s15
    $region7: #{tpu_custom_call.1} parent=1 // loop_footer_branch
      %14 = sbr.rel target = $region3
    $region8: #{tpu_custom_call.1} parent=1 // loop_exit
      _
    %8368 = vsyncpa [#allocation4], 1
    %s8369 = scalar_lea.sflag [#allocation4], 1
    %8370 = vsyncpa %s8369, 1
    %8371 = vsyncpa [#allocation5], 1
    %s8372 = scalar_lea.sflag [#allocation5], 1
    %8373 = vsyncpa %s8372, 1

</llo_original>
